<compile_context>
chip_gen: v7x
topology: tpu7x:2x2x1
jax: 0.10.0
libtpu: 0.0.40
codegen_flags: <defaults>
</compile_context>

<pallas_src>
import functools
import numpy as np
import jax
import jax.numpy as jnp
from jax.experimental import pallas as pl
from jax.experimental.pallas import tpu as pltpu

# ----------------------------- small ViT config ------------------------------
PATCH = 14            # patch_size (module default)
IMG = 28              # small crop_size -> 2x2 = 4 patches / image
CHANNELS = 3
EMBED_DIM = 128       # lane-dense toy dim (real vit_huge = 1280)
DEPTH = 2             # small depth (real vit_huge = 32)
NUM_HEADS = 4
MLP_RATIO = 4.0
BATCH = 64            # 64 images * 4 tokens = 256 rows -> 2 grid steps of 128 rows
ROW_TILE = 128        # token rows per grid step (full MXU row block)
LN_EPS = 1e-6
_INV_SQRT2 = 0.7071067811865476
_NEG_BIG = -1e30


# --------------------------- fixed sin-cos pos embed --------------------------
def _get_1d_sincos(embed_dim, pos):
    omega = np.arange(embed_dim // 2, dtype=np.float64) / (embed_dim / 2.0)
    omega = 1.0 / 10000 ** omega
    pos = pos.reshape(-1)
    out = np.einsum("m,d->md", pos, omega)
    return np.concatenate([np.sin(out), np.cos(out)], axis=1)


def get_2d_sincos_pos_embed(embed_dim, grid_size):
    grid_h = np.arange(grid_size, dtype=np.float64)
    grid_w = np.arange(grid_size, dtype=np.float64)
    grid = np.meshgrid(grid_w, grid_h)                   # w first (I-JEPA convention)
    grid = np.stack(grid, axis=0).reshape([2, 1, grid_size, grid_size])
    emb_h = _get_1d_sincos(embed_dim // 2, grid[0])
    emb_w = _get_1d_sincos(embed_dim // 2, grid[1])
    return np.concatenate([emb_h, emb_w], axis=1).astype(np.float32)  # (N, D)


# --------------------------------- kernel ------------------------------------
def _layernorm(x, gamma, beta):
    mu = jnp.mean(x, axis=-1, keepdims=True)
    # var = E[x^2] - mu^2  (one fewer full-width pass than E[(x-mu)^2])
    var = jnp.maximum(jnp.mean(x * x, axis=-1, keepdims=True) - mu * mu, 0.0)
    return (x - mu) * jax.lax.rsqrt(var + LN_EPS) * gamma + beta


def fused_encoder_kernel(
        patches_ref, pw_ref, pb_ref, pos_ref, mask_ref,
        g1_ref, b1_ref, wqkv_ref, bqkv_ref, wo_ref, bo_ref,
        g2_ref, b2_ref, w1_ref, bm1_ref, w2_ref, bm2_ref,
        gn_ref, bn_ref,
        o_ref, *, num_heads, depth):
    # ------- patch embedding (Conv2d k=stride=P as matmul) + fixed pos-embed -----
    x = jnp.dot(patches_ref[...], pw_ref[...],
                preferred_element_type=jnp.float32) + pb_ref[...] + pos_ref[...]
    mask = mask_ref[...]                 # additive block-diagonal bias (0 / -1e30)
    R, D = x.shape
    hd = D // num_heads

    for l in range(depth):               # depth unrolled; all layer weights VMEM-resident
        # ----------------- pre-LN multi-head self-attention + residual ------------
        xn = _layernorm(x, g1_ref[l], b1_ref[l]).astype(jnp.bfloat16)
        qkv = jnp.dot(xn, wqkv_ref[l],
                      preferred_element_type=jnp.float32) + bqkv_ref[l]
        wo_l = wo_ref[l]
        proj = None
        for h in range(num_heads):        # R=128 -> lane-dense (R,R) scores per head
            lo, hi = h * hd, (h + 1) * hd
            qh = qkv[:, lo:hi].astype(jnp.bfloat16)           # 1/sqrt(hd) folded into wq
            kh = qkv[:, D + lo:D + hi].astype(jnp.bfloat16)
            vh = qkv[:, 2 * D + lo:2 * D + hi].astype(jnp.bfloat16)
            s = jax.lax.dot_general(qh, kh, (((1,), (1,)), ((), ())),
                                    preferred_element_type=jnp.float32) + mask
            s = s - jnp.max(s, axis=-1, keepdims=True)
            p = jnp.exp(s)
            p = p * pl.reciprocal(jnp.sum(p, axis=-1, keepdims=True), approx=True)
            oh = jnp.dot(p.astype(jnp.bfloat16), vh, preferred_element_type=jnp.float32)
            # concat_h(o_h) @ Wo  ==  sum_h o_h @ Wo[h*hd:(h+1)*hd, :]
            contrib = jnp.dot(oh.astype(jnp.bfloat16), wo_l[lo:hi, :],
                              preferred_element_type=jnp.float32)
            proj = contrib if proj is None else proj + contrib
        x = x + proj + bo_ref[l]

        # --------------- pre-LN MLP (Linear -> exact GELU -> Linear) + residual -----
        xn2 = _layernorm(x, g2_ref[l], b2_ref[l]).astype(jnp.bfloat16)
        h1 = jnp.dot(xn2, w1_ref[l], preferred_element_type=jnp.float32) + bm1_ref[l]
        h1 = 0.5 * h1 * (1.0 + jax.lax.erf(h1 * _INV_SQRT2))   # exact GELU (nn.GELU)
        h2 = jnp.dot(h1.astype(jnp.bfloat16), w2_ref[l],
                     preferred_element_type=jnp.float32) + bm2_ref[l]
        x = x + h2

    # ------------------------------ final LayerNorm --------------------------------
    o_ref[...] = _layernorm(x, gn_ref[...], bn_ref[...])


# ------------------------------ pallas wrapper --------------------------------
def _const_spec(shape):
    # shared (row-tile invariant) parameter: constant block index -> DMA'd once
    n = len(shape)
    return pl.BlockSpec(tuple(shape), lambda i: (0,) * n)


def _vmem_limit_bytes():
    # derive from the chip (v5e/v6e: 128 MiB physical, v7x: 64 MiB) instead of
    # hard-coding 32 MiB; actual usage here is ~3 MiB, so any value is safe.
    try:
        cap = int(pltpu.get_tpu_info().vmem_capacity_bytes)
        return int(min(cap // 2, 96 * 1024 * 1024))
    except Exception:
        return 32 * 1024 * 1024


def run_fused_encoder(patches, p, tokens_per_image):
    RT, CPPp = patches.shape                  # RT = B * N token rows, CPPp lane-padded
    D = p["patch_w"].shape[1]
    Dm = p["w1"].shape[2]
    R = ROW_TILE
    assert RT % R == 0 and R % tokens_per_image == 0
    n_tiles = RT // R
    grid = (n_tiles,)

    # fixed sin-cos pos-embed tiled over the images packed into one row tile
    pos_tile = jnp.tile(p["pos"], (R // tokens_per_image, 1))          # (R, D)
    # additive block-diagonal mask: tokens only attend within their own image
    img_idx = np.arange(R) // tokens_per_image
    mask = jnp.asarray(
        np.where(img_idx[:, None] == img_idx[None, :], 0.0, _NEG_BIG), jnp.float32)

    # rough cost hint for XLA scheduling around the custom call
    flops_layer = (2 * RT * D * 3 * D) + (4 * RT * R * D) + (2 * RT * D * D) + (4 * RT * D * Dm)
    flops = DEPTH * flops_layer + 2 * RT * CPPp * D
    transcendentals = DEPTH * (RT * R * NUM_HEADS + RT * Dm)
    bytes_accessed = sum(int(np.prod(a.shape)) * a.dtype.itemsize
                         for a in (patches, p["patch_w"], p["wqkv"], p["wo"],
                                   p["w1"], p["w2"])) + 2 * RT * D * 4

    kernel = functools.partial(fused_encoder_kernel,
                               num_heads=NUM_HEADS, depth=DEPTH)
    return pl.pallas_call(
        kernel,
        out_shape=jax.ShapeDtypeStruct((RT, D), jnp.float32),
        grid=grid,
        in_specs=[
            pl.BlockSpec((R, CPPp), lambda i: (i, 0)),    # patches: one tile per step
            _const_spec((CPPp, D)),                       # patch_w
            _const_spec((1, D)),                          # patch_b
            _const_spec((R, D)),                          # pos (pre-tiled)
            _const_spec((R, R)),                          # additive attention mask
            _const_spec(p["g1"].shape), _const_spec(p["b1"].shape),
            _const_spec(p["wqkv"].shape), _const_spec(p["bqkv"].shape),
            _const_spec(p["wo"].shape), _const_spec(p["bo"].shape),
            _const_spec(p["g2"].shape), _const_spec(p["b2"].shape),
            _const_spec(p["w1"].shape), _const_spec(p["bm1"].shape),
            _const_spec(p["w2"].shape), _const_spec(p["bm2"].shape),
            _const_spec((1, D)), _const_spec((1, D)),
        ],
        out_specs=pl.BlockSpec((R, D), lambda i: (i, 0)),
        compiler_params=pltpu.CompilerParams(
            dimension_semantics=("parallel",),            # >=2 steps -> both v7x TCs busy
            vmem_limit_bytes=_vmem_limit_bytes()),
        cost_estimate=pl.CostEstimate(flops=int(flops),
                                      transcendentals=int(transcendentals),
                                      bytes_accessed=int(bytes_accessed)),
    )(patches, p["patch_w"], p["patch_b"], pos_tile, mask,
      p["g1"], p["b1"], p["wqkv"], p["bqkv"], p["wo"], p["bo"],
      p["g2"], p["b2"], p["w1"], p["bm1"], p["w2"], p["bm2"],
      p["norm_g"], p["norm_b"])


# --------------------------- parameters & forward ------------------------------
def init_params(key):
    D = EMBED_DIM
    Dm = int(EMBED_DIM * MLP_RATIO)
    CPP = CHANNELS * PATCH * PATCH
    CPPp = ((CPP + 127) // 128) * 128          # lane-pad 588 -> 640
    grid_size = IMG // PATCH
    hd = D // NUM_HEADS
    scale = 1.0 / float(np.sqrt(hd))

    keys = iter(jax.random.split(key, 8))

    def w(shape, std=0.02):
        return jax.random.normal(next(keys), shape, jnp.float32) * std

    # 1/sqrt(head_dim) folded into the q projection (q bias is zero, so no bias fold).
    wq = w((DEPTH, D, D)) * scale
    wk = w((DEPTH, D, D))
    wv = w((DEPTH, D, D))

    # NOTE: patch_w flatten order is (C, P, P) row-major == Conv2d weight (D,C,P,P)^T
    patch_w = w((CPP, D))
    patch_w = jnp.pad(patch_w, ((0, CPPp - CPP), (0, 0)))   # zero rows for lane padding

    return {
        # matmul weights stored bf16 (MXU inputs); biases / LN params / pos stay fp32
        "patch_w": patch_w.astype(jnp.bfloat16),
        "patch_b": jnp.zeros((1, D), jnp.float32),
        "pos": jnp.asarray(get_2d_sincos_pos_embed(D, grid_size)),  # fixed, not learned
        "norm_g": jnp.ones((1, D), jnp.float32),
        "norm_b": jnp.zeros((1, D), jnp.float32),
        "g1": jnp.ones((DEPTH, 1, D), jnp.float32),
        "b1": jnp.zeros((DEPTH, 1, D), jnp.float32),
        "wqkv": jnp.concatenate([wq, wk, wv], axis=-1).astype(jnp.bfloat16),
        "bqkv": jnp.zeros((DEPTH, 1, 3 * D), jnp.float32),
        "wo": w((DEPTH, D, D)).astype(jnp.bfloat16),
        "bo": jnp.zeros((DEPTH, 1, D), jnp.float32),
        "g2": jnp.ones((DEPTH, 1, D), jnp.float32),
        "b2": jnp.zeros((DEPTH, 1, D), jnp.float32),
        "w1": w((DEPTH, D, Dm)).astype(jnp.bfloat16),
        "bm1": jnp.zeros((DEPTH, 1, Dm), jnp.float32),
        "w2": w((DEPTH, Dm, D)).astype(jnp.bfloat16),
        "bm2": jnp.zeros((DEPTH, 1, D), jnp.float32),
    }


def ijepa_encoder_forward(x, params):
    """x: (B, C, H, W) float32 NCHW image batch -> (B, N, D) encoded tokens."""
    B, C, H, W = x.shape
    Hn, Wn = H // PATCH, W // PATCH
    N = Hn * Wn
    CPP = C * PATCH * PATCH
    CPPp = params["patch_w"].shape[0]
    # patchify glue: Conv2d(k=stride=PATCH) expressed as matmul over flattened patches
    xp = x.reshape(B, C, Hn, PATCH, Wn, PATCH)
    xp = xp.transpose(0, 2, 4, 1, 3, 5).reshape(B * N, CPP)
    xp = jnp.pad(xp, ((0, 0), (0, CPPp - CPP))).astype(jnp.bfloat16)  # lane-pad + bf16
    tokens = run_fused_encoder(xp, params, N)
    return tokens.reshape(B, N, EMBED_DIM)


if __name__ == "__main__":
    key = jax.random.PRNGKey(0)
    kx, kp = jax.random.split(key)
    x = jax.random.normal(kx, (BATCH, CHANNELS, IMG, IMG), jnp.float32)
    params = init_params(kp)
    out = jax.jit(ijepa_encoder_forward)(x, params)
    jax.block_until_ready(out)
    assert out.shape == (BATCH, (IMG // PATCH) ** 2, EMBED_DIM)
    assert bool(jnp.all(jnp.isfinite(out)))
    print("KERNEL_OK")
</pallas_src>

<mosaic_0001>
module attributes {stable_mosaic.version = 11 : i64} {
  func.func @fused_encoder_kernel(%arg0: i32, %arg1: memref<128x640xbf16, #tpu.memory_space<vmem>>, %arg2: memref<640x128xbf16, #tpu.memory_space<vmem>>, %arg3: memref<1x128xf32, #tpu.memory_space<vmem>>, %arg4: memref<128x128xf32, #tpu.memory_space<vmem>>, %arg5: memref<128x128xf32, #tpu.memory_space<vmem>>, %arg6: memref<2x1x128xf32, #tpu.memory_space<vmem>>, %arg7: memref<2x1x128xf32, #tpu.memory_space<vmem>>, %arg8: memref<2x128x384xbf16, #tpu.memory_space<vmem>>, %arg9: memref<2x1x384xf32, #tpu.memory_space<vmem>>, %arg10: memref<2x128x128xbf16, #tpu.memory_space<vmem>>, %arg11: memref<2x1x128xf32, #tpu.memory_space<vmem>>, %arg12: memref<2x1x128xf32, #tpu.memory_space<vmem>>, %arg13: memref<2x1x128xf32, #tpu.memory_space<vmem>>, %arg14: memref<2x128x512xbf16, #tpu.memory_space<vmem>>, %arg15: memref<2x1x512xf32, #tpu.memory_space<vmem>>, %arg16: memref<2x512x128xbf16, #tpu.memory_space<vmem>>, %arg17: memref<2x1x128xf32, #tpu.memory_space<vmem>>, %arg18: memref<1x128xf32, #tpu.memory_space<vmem>>, %arg19: memref<1x128xf32, #tpu.memory_space<vmem>>, %arg20: memref<128x128xf32, #tpu.memory_space<vmem>>) attributes {dimension_semantics = [#tpu.dimension_semantics<parallel>], iteration_bounds = array<i64: 2>, scalar_prefetch = 0 : i64, scratch_operands = 0 : i64, tpu.core_type = #tpu.core_type<tc>, window_params = [{transform_indices = @transform_0, window_bounds = array<i64: 128, 640>}, {pipeline_mode = #tpu.pipeline_mode<synchronous>, transform_indices = @transform_1, window_bounds = array<i64: 640, 128>}, {pipeline_mode = #tpu.pipeline_mode<synchronous>, transform_indices = @transform_2, window_bounds = array<i64: 1, 128>}, {pipeline_mode = #tpu.pipeline_mode<synchronous>, transform_indices = @transform_3, window_bounds = array<i64: 128, 128>}, {pipeline_mode = #tpu.pipeline_mode<synchronous>, transform_indices = @transform_4, window_bounds = array<i64: 128, 128>}, {pipeline_mode = #tpu.pipeline_mode<synchronous>, transform_indices = @transform_5, window_bounds = array<i64: 2, 1, 128>}, {pipeline_mode = #tpu.pipeline_mode<synchronous>, transform_indices = @transform_6, window_bounds = array<i64: 2, 1, 128>}, {pipeline_mode = #tpu.pipeline_mode<synchronous>, transform_indices = @transform_7, window_bounds = array<i64: 2, 128, 384>}, {pipeline_mode = #tpu.pipeline_mode<synchronous>, transform_indices = @transform_8, window_bounds = array<i64: 2, 1, 384>}, {pipeline_mode = #tpu.pipeline_mode<synchronous>, transform_indices = @transform_9, window_bounds = array<i64: 2, 128, 128>}, {pipeline_mode = #tpu.pipeline_mode<synchronous>, transform_indices = @transform_10, window_bounds = array<i64: 2, 1, 128>}, {pipeline_mode = #tpu.pipeline_mode<synchronous>, transform_indices = @transform_11, window_bounds = array<i64: 2, 1, 128>}, {pipeline_mode = #tpu.pipeline_mode<synchronous>, transform_indices = @transform_12, window_bounds = array<i64: 2, 1, 128>}, {pipeline_mode = #tpu.pipeline_mode<synchronous>, transform_indices = @transform_13, window_bounds = array<i64: 2, 128, 512>}, {pipeline_mode = #tpu.pipeline_mode<synchronous>, transform_indices = @transform_14, window_bounds = array<i64: 2, 1, 512>}, {pipeline_mode = #tpu.pipeline_mode<synchronous>, transform_indices = @transform_15, window_bounds = array<i64: 2, 512, 128>}, {pipeline_mode = #tpu.pipeline_mode<synchronous>, transform_indices = @transform_16, window_bounds = array<i64: 2, 1, 128>}, {pipeline_mode = #tpu.pipeline_mode<synchronous>, transform_indices = @transform_17, window_bounds = array<i64: 1, 128>}, {pipeline_mode = #tpu.pipeline_mode<synchronous>, transform_indices = @transform_18, window_bounds = array<i64: 1, 128>}, {transform_indices = @transform_19, window_bounds = array<i64: 128, 128>}]} {
    %c0 = arith.constant 0 : index
    %c0_0 = arith.constant 0 : index
    %0 = vector.load %arg1[%c0, %c0_0] : memref<128x640xbf16, #tpu.memory_space<vmem>>, vector<128x640xbf16>
    %c0_1 = arith.constant 0 : index
    %c0_2 = arith.constant 0 : index
    %1 = vector.load %arg2[%c0_1, %c0_2] : memref<640x128xbf16, #tpu.memory_space<vmem>>, vector<640x128xbf16>
    %cst = arith.constant dense<0.000000e+00> : vector<128x128xf32>
    %2 = tpu.matmul %0, %1, %cst {dimension_numbers = #tpu.dot_dimension_numbers<[1], [0], [0], [1], [0, 0, 1, 1], [], []>} : vector<128x640xbf16>, vector<640x128xbf16>, vector<128x128xf32> -> vector<128x128xf32>
    %c0_3 = arith.constant 0 : index
    %c0_4 = arith.constant 0 : index
    %3 = vector.load %arg3[%c0_3, %c0_4] : memref<1x128xf32, #tpu.memory_space<vmem>>, vector<1x128xf32>
    %4 = vector.broadcast %3 : vector<1x128xf32> to vector<128x128xf32>
    %5 = arith.addf %2, %4 : vector<128x128xf32>
    %c0_5 = arith.constant 0 : index
    %c0_6 = arith.constant 0 : index
    %6 = vector.load %arg4[%c0_5, %c0_6] : memref<128x128xf32, #tpu.memory_space<vmem>>, vector<128x128xf32>
    %7 = arith.addf %5, %6 : vector<128x128xf32>
    %c0_7 = arith.constant 0 : index
    %c0_8 = arith.constant 0 : index
    %8 = vector.load %arg5[%c0_7, %c0_8] : memref<128x128xf32, #tpu.memory_space<vmem>>, vector<128x128xf32>
    %c0_9 = arith.constant 0 : index
    %c0_10 = arith.constant 0 : index
    %c0_11 = arith.constant 0 : index
    %9 = vector.load %arg6[%c0_9, %c0_10, %c0_11] : memref<2x1x128xf32, #tpu.memory_space<vmem>>, vector<1x1x128xf32>
    %10 = vector.shape_cast %9 : vector<1x1x128xf32> to vector<1x128xf32>
    %c0_12 = arith.constant 0 : index
    %c0_13 = arith.constant 0 : index
    %c0_14 = arith.constant 0 : index
    %11 = vector.load %arg7[%c0_12, %c0_13, %c0_14] : memref<2x1x128xf32, #tpu.memory_space<vmem>>, vector<1x1x128xf32>
    %12 = vector.shape_cast %11 : vector<1x1x128xf32> to vector<1x128xf32>
    %cst_15 = arith.constant dense<0.000000e+00> : vector<128xf32>
    %13 = vector.multi_reduction <add>, %7, %cst_15 [1] : vector<128x128xf32> to vector<128xf32>
    %14 = vector.shape_cast %13 : vector<128xf32> to vector<128x1xf32>
    %cst_16 = arith.constant 1.280000e+02 : f32
    %15 = vector.broadcast %cst_16 : f32 to vector<128x1xf32>
    %16 = arith.divf %14, %15 : vector<128x1xf32>
    %17 = arith.mulf %7, %7 : vector<128x128xf32>
    %cst_17 = arith.constant dense<0.000000e+00> : vector<128xf32>
    %18 = vector.multi_reduction <add>, %17, %cst_17 [1] : vector<128x128xf32> to vector<128xf32>
    %19 = vector.shape_cast %18 : vector<128xf32> to vector<128x1xf32>
    %cst_18 = arith.constant 1.280000e+02 : f32
    %20 = vector.broadcast %cst_18 : f32 to vector<128x1xf32>
    %21 = arith.divf %19, %20 : vector<128x1xf32>
    %22 = arith.mulf %16, %16 : vector<128x1xf32>
    %23 = arith.subf %21, %22 : vector<128x1xf32>
    %cst_19 = arith.constant 0.000000e+00 : f32
    %24 = vector.broadcast %cst_19 : f32 to vector<128x1xf32>
    %25 = arith.maximumf %23, %24 : vector<128x1xf32>
    %26 = vector.broadcast %16 : vector<128x1xf32> to vector<128x128xf32>
    %27 = arith.subf %7, %26 : vector<128x128xf32>
    %cst_20 = arith.constant 9.99999997E-7 : f32
    %28 = vector.broadcast %cst_20 : f32 to vector<128x1xf32>
    %29 = arith.addf %25, %28 : vector<128x1xf32>
    %30 = math.rsqrt %29 : vector<128x1xf32>
    %31 = vector.broadcast %30 : vector<128x1xf32> to vector<128x128xf32>
    %32 = arith.mulf %27, %31 : vector<128x128xf32>
    %33 = vector.broadcast %10 : vector<1x128xf32> to vector<128x128xf32>
    %34 = arith.mulf %32, %33 : vector<128x128xf32>
    %35 = vector.broadcast %12 : vector<1x128xf32> to vector<128x128xf32>
    %36 = arith.addf %34, %35 : vector<128x128xf32>
    %37 = arith.truncf %36 : vector<128x128xf32> to vector<128x128xbf16>
    %c0_21 = arith.constant 0 : index
    %c0_22 = arith.constant 0 : index
    %c0_23 = arith.constant 0 : index
    %38 = vector.load %arg8[%c0_21, %c0_22, %c0_23] : memref<2x128x384xbf16, #tpu.memory_space<vmem>>, vector<1x128x384xbf16>
    %39 = vector.shape_cast %38 : vector<1x128x384xbf16> to vector<128x384xbf16>
    %cst_24 = arith.constant dense<0.000000e+00> : vector<128x384xf32>
    %40 = tpu.matmul %37, %39, %cst_24 {dimension_numbers = #tpu.dot_dimension_numbers<[1], [0], [0], [1], [0, 0, 1, 1], [], []>} : vector<128x128xbf16>, vector<128x384xbf16>, vector<128x384xf32> -> vector<128x384xf32>
    %c0_25 = arith.constant 0 : index
    %c0_26 = arith.constant 0 : index
    %c0_27 = arith.constant 0 : index
    %41 = vector.load %arg9[%c0_25, %c0_26, %c0_27] : memref<2x1x384xf32, #tpu.memory_space<vmem>>, vector<1x1x384xf32>
    %42 = vector.shape_cast %41 : vector<1x1x384xf32> to vector<1x384xf32>
    %43 = vector.broadcast %42 : vector<1x384xf32> to vector<128x384xf32>
    %44 = arith.addf %40, %43 : vector<128x384xf32>
    %c0_28 = arith.constant 0 : index
    %c0_29 = arith.constant 0 : index
    %c0_30 = arith.constant 0 : index
    %45 = vector.load %arg10[%c0_28, %c0_29, %c0_30] : memref<2x128x128xbf16, #tpu.memory_space<vmem>>, vector<1x128x128xbf16>
    %46 = vector.shape_cast %45 : vector<1x128x128xbf16> to vector<128x128xbf16>
    %47 = vector.extract_strided_slice %44 {offsets = [0, 0], sizes = [128, 32], strides = [1, 1]} : vector<128x384xf32> to vector<128x32xf32>
    %48 = arith.truncf %47 : vector<128x32xf32> to vector<128x32xbf16>
    %49 = vector.extract_strided_slice %44 {offsets = [0, 128], sizes = [128, 32], strides = [1, 1]} : vector<128x384xf32> to vector<128x32xf32>
    %50 = arith.truncf %49 : vector<128x32xf32> to vector<128x32xbf16>
    %51 = vector.extract_strided_slice %44 {offsets = [0, 256], sizes = [128, 32], strides = [1, 1]} : vector<128x384xf32> to vector<128x32xf32>
    %52 = arith.truncf %51 : vector<128x32xf32> to vector<128x32xbf16>
    %cst_31 = arith.constant dense<0.000000e+00> : vector<128x128xf32>
    %53 = tpu.matmul %48, %50, %cst_31 {dimension_numbers = #tpu.dot_dimension_numbers<[1], [1], [0], [0], [0, 0, 1, 0], [], []>} : vector<128x32xbf16>, vector<128x32xbf16>, vector<128x128xf32> -> vector<128x128xf32>
    %54 = arith.addf %53, %8 : vector<128x128xf32>
    %cst_32 = arith.constant dense<0xFF800000> : vector<128xf32>
    %55 = vector.multi_reduction <maximumf>, %54, %cst_32 [1] : vector<128x128xf32> to vector<128xf32>
    %56 = vector.shape_cast %55 : vector<128xf32> to vector<128x1xf32>
    %57 = vector.broadcast %56 : vector<128x1xf32> to vector<128x128xf32>
    %58 = arith.subf %54, %57 : vector<128x128xf32>
    %59 = math.exp %58 : vector<128x128xf32>
    %cst_33 = arith.constant dense<0.000000e+00> : vector<128xf32>
    %60 = vector.multi_reduction <add>, %59, %cst_33 [1] : vector<128x128xf32> to vector<128xf32>
    %61 = vector.shape_cast %60 : vector<128xf32> to vector<128x1xf32>
    %62 = tpu.reciprocal %61 {approx = true} : vector<128x1xf32> -> vector<128x1xf32>
    %63 = vector.broadcast %62 : vector<128x1xf32> to vector<128x128xf32>
    %64 = arith.mulf %59, %63 : vector<128x128xf32>
    %65 = arith.truncf %64 : vector<128x128xf32> to vector<128x128xbf16>
    %cst_34 = arith.constant dense<0.000000e+00> : vector<128x32xf32>
    %66 = tpu.matmul %65, %52, %cst_34 {dimension_numbers = #tpu.dot_dimension_numbers<[1], [0], [0], [1], [0, 0, 1, 1], [], []>} : vector<128x128xbf16>, vector<128x32xbf16>, vector<128x32xf32> -> vector<128x32xf32>
    %67 = arith.truncf %66 : vector<128x32xf32> to vector<128x32xbf16>
    %68 = vector.extract_strided_slice %46 {offsets = [0, 0], sizes = [32, 128], strides = [1, 1]} : vector<128x128xbf16> to vector<32x128xbf16>
    %cst_35 = arith.constant dense<0.000000e+00> : vector<128x128xf32>
    %69 = tpu.matmul %67, %68, %cst_35 {dimension_numbers = #tpu.dot_dimension_numbers<[1], [0], [0], [1], [0, 0, 1, 1], [], []>} : vector<128x32xbf16>, vector<32x128xbf16>, vector<128x128xf32> -> vector<128x128xf32>
    %70 = vector.extract_strided_slice %44 {offsets = [0, 32], sizes = [128, 32], strides = [1, 1]} : vector<128x384xf32> to vector<128x32xf32>
    %71 = arith.truncf %70 : vector<128x32xf32> to vector<128x32xbf16>
    %72 = vector.extract_strided_slice %44 {offsets = [0, 160], sizes = [128, 32], strides = [1, 1]} : vector<128x384xf32> to vector<128x32xf32>
    %73 = arith.truncf %72 : vector<128x32xf32> to vector<128x32xbf16>
    %74 = vector.extract_strided_slice %44 {offsets = [0, 288], sizes = [128, 32], strides = [1, 1]} : vector<128x384xf32> to vector<128x32xf32>
    %75 = arith.truncf %74 : vector<128x32xf32> to vector<128x32xbf16>
    %cst_36 = arith.constant dense<0.000000e+00> : vector<128x128xf32>
    %76 = tpu.matmul %71, %73, %cst_36 {dimension_numbers = #tpu.dot_dimension_numbers<[1], [1], [0], [0], [0, 0, 1, 0], [], []>} : vector<128x32xbf16>, vector<128x32xbf16>, vector<128x128xf32> -> vector<128x128xf32>
    %77 = arith.addf %76, %8 : vector<128x128xf32>
    %cst_37 = arith.constant dense<0xFF800000> : vector<128xf32>
    %78 = vector.multi_reduction <maximumf>, %77, %cst_37 [1] : vector<128x128xf32> to vector<128xf32>
    %79 = vector.shape_cast %78 : vector<128xf32> to vector<128x1xf32>
    %80 = vector.broadcast %79 : vector<128x1xf32> to vector<128x128xf32>
    %81 = arith.subf %77, %80 : vector<128x128xf32>
    %82 = math.exp %81 : vector<128x128xf32>
    %cst_38 = arith.constant dense<0.000000e+00> : vector<128xf32>
    %83 = vector.multi_reduction <add>, %82, %cst_38 [1] : vector<128x128xf32> to vector<128xf32>
    %84 = vector.shape_cast %83 : vector<128xf32> to vector<128x1xf32>
    %85 = tpu.reciprocal %84 {approx = true} : vector<128x1xf32> -> vector<128x1xf32>
    %86 = vector.broadcast %85 : vector<128x1xf32> to vector<128x128xf32>
    %87 = arith.mulf %82, %86 : vector<128x128xf32>
    %88 = arith.truncf %87 : vector<128x128xf32> to vector<128x128xbf16>
    %cst_39 = arith.constant dense<0.000000e+00> : vector<128x32xf32>
    %89 = tpu.matmul %88, %75, %cst_39 {dimension_numbers = #tpu.dot_dimension_numbers<[1], [0], [0], [1], [0, 0, 1, 1], [], []>} : vector<128x128xbf16>, vector<128x32xbf16>, vector<128x32xf32> -> vector<128x32xf32>
    %90 = arith.truncf %89 : vector<128x32xf32> to vector<128x32xbf16>
    %91 = vector.extract_strided_slice %46 {offsets = [32, 0], sizes = [32, 128], strides = [1, 1]} : vector<128x128xbf16> to vector<32x128xbf16>
    %cst_40 = arith.constant dense<0.000000e+00> : vector<128x128xf32>
    %92 = tpu.matmul %90, %91, %cst_40 {dimension_numbers = #tpu.dot_dimension_numbers<[1], [0], [0], [1], [0, 0, 1, 1], [], []>} : vector<128x32xbf16>, vector<32x128xbf16>, vector<128x128xf32> -> vector<128x128xf32>
    %93 = arith.addf %69, %92 : vector<128x128xf32>
    %94 = vector.extract_strided_slice %44 {offsets = [0, 64], sizes = [128, 32], strides = [1, 1]} : vector<128x384xf32> to vector<128x32xf32>
    %95 = arith.truncf %94 : vector<128x32xf32> to vector<128x32xbf16>
    %96 = vector.extract_strided_slice %44 {offsets = [0, 192], sizes = [128, 32], strides = [1, 1]} : vector<128x384xf32> to vector<128x32xf32>
    %97 = arith.truncf %96 : vector<128x32xf32> to vector<128x32xbf16>
    %98 = vector.extract_strided_slice %44 {offsets = [0, 320], sizes = [128, 32], strides = [1, 1]} : vector<128x384xf32> to vector<128x32xf32>
    %99 = arith.truncf %98 : vector<128x32xf32> to vector<128x32xbf16>
    %cst_41 = arith.constant dense<0.000000e+00> : vector<128x128xf32>
    %100 = tpu.matmul %95, %97, %cst_41 {dimension_numbers = #tpu.dot_dimension_numbers<[1], [1], [0], [0], [0, 0, 1, 0], [], []>} : vector<128x32xbf16>, vector<128x32xbf16>, vector<128x128xf32> -> vector<128x128xf32>
    %101 = arith.addf %100, %8 : vector<128x128xf32>
    %cst_42 = arith.constant dense<0xFF800000> : vector<128xf32>
    %102 = vector.multi_reduction <maximumf>, %101, %cst_42 [1] : vector<128x128xf32> to vector<128xf32>
    %103 = vector.shape_cast %102 : vector<128xf32> to vector<128x1xf32>
    %104 = vector.broadcast %103 : vector<128x1xf32> to vector<128x128xf32>
    %105 = arith.subf %101, %104 : vector<128x128xf32>
    %106 = math.exp %105 : vector<128x128xf32>
    %cst_43 = arith.constant dense<0.000000e+00> : vector<128xf32>
    %107 = vector.multi_reduction <add>, %106, %cst_43 [1] : vector<128x128xf32> to vector<128xf32>
    %108 = vector.shape_cast %107 : vector<128xf32> to vector<128x1xf32>
    %109 = tpu.reciprocal %108 {approx = true} : vector<128x1xf32> -> vector<128x1xf32>
    %110 = vector.broadcast %109 : vector<128x1xf32> to vector<128x128xf32>
    %111 = arith.mulf %106, %110 : vector<128x128xf32>
    %112 = arith.truncf %111 : vector<128x128xf32> to vector<128x128xbf16>
    %cst_44 = arith.constant dense<0.000000e+00> : vector<128x32xf32>
    %113 = tpu.matmul %112, %99, %cst_44 {dimension_numbers = #tpu.dot_dimension_numbers<[1], [0], [0], [1], [0, 0, 1, 1], [], []>} : vector<128x128xbf16>, vector<128x32xbf16>, vector<128x32xf32> -> vector<128x32xf32>
    %114 = arith.truncf %113 : vector<128x32xf32> to vector<128x32xbf16>
    %115 = vector.extract_strided_slice %46 {offsets = [64, 0], sizes = [32, 128], strides = [1, 1]} : vector<128x128xbf16> to vector<32x128xbf16>
    %cst_45 = arith.constant dense<0.000000e+00> : vector<128x128xf32>
    %116 = tpu.matmul %114, %115, %cst_45 {dimension_numbers = #tpu.dot_dimension_numbers<[1], [0], [0], [1], [0, 0, 1, 1], [], []>} : vector<128x32xbf16>, vector<32x128xbf16>, vector<128x128xf32> -> vector<128x128xf32>
    %117 = arith.addf %93, %116 : vector<128x128xf32>
    %118 = vector.extract_strided_slice %44 {offsets = [0, 96], sizes = [128, 32], strides = [1, 1]} : vector<128x384xf32> to vector<128x32xf32>
    %119 = arith.truncf %118 : vector<128x32xf32> to vector<128x32xbf16>
    %120 = vector.extract_strided_slice %44 {offsets = [0, 224], sizes = [128, 32], strides = [1, 1]} : vector<128x384xf32> to vector<128x32xf32>
    %121 = arith.truncf %120 : vector<128x32xf32> to vector<128x32xbf16>
    %122 = vector.extract_strided_slice %44 {offsets = [0, 352], sizes = [128, 32], strides = [1, 1]} : vector<128x384xf32> to vector<128x32xf32>
    %123 = arith.truncf %122 : vector<128x32xf32> to vector<128x32xbf16>
    %cst_46 = arith.constant dense<0.000000e+00> : vector<128x128xf32>
    %124 = tpu.matmul %119, %121, %cst_46 {dimension_numbers = #tpu.dot_dimension_numbers<[1], [1], [0], [0], [0, 0, 1, 0], [], []>} : vector<128x32xbf16>, vector<128x32xbf16>, vector<128x128xf32> -> vector<128x128xf32>
    %125 = arith.addf %124, %8 : vector<128x128xf32>
    %cst_47 = arith.constant dense<0xFF800000> : vector<128xf32>
    %126 = vector.multi_reduction <maximumf>, %125, %cst_47 [1] : vector<128x128xf32> to vector<128xf32>
    %127 = vector.shape_cast %126 : vector<128xf32> to vector<128x1xf32>
    %128 = vector.broadcast %127 : vector<128x1xf32> to vector<128x128xf32>
    %129 = arith.subf %125, %128 : vector<128x128xf32>
    %130 = math.exp %129 : vector<128x128xf32>
    %cst_48 = arith.constant dense<0.000000e+00> : vector<128xf32>
    %131 = vector.multi_reduction <add>, %130, %cst_48 [1] : vector<128x128xf32> to vector<128xf32>
    %132 = vector.shape_cast %131 : vector<128xf32> to vector<128x1xf32>
    %133 = tpu.reciprocal %132 {approx = true} : vector<128x1xf32> -> vector<128x1xf32>
    %134 = vector.broadcast %133 : vector<128x1xf32> to vector<128x128xf32>
    %135 = arith.mulf %130, %134 : vector<128x128xf32>
    %136 = arith.truncf %135 : vector<128x128xf32> to vector<128x128xbf16>
    %cst_49 = arith.constant dense<0.000000e+00> : vector<128x32xf32>
    %137 = tpu.matmul %136, %123, %cst_49 {dimension_numbers = #tpu.dot_dimension_numbers<[1], [0], [0], [1], [0, 0, 1, 1], [], []>} : vector<128x128xbf16>, vector<128x32xbf16>, vector<128x32xf32> -> vector<128x32xf32>
    %138 = arith.truncf %137 : vector<128x32xf32> to vector<128x32xbf16>
    %139 = vector.extract_strided_slice %46 {offsets = [96, 0], sizes = [32, 128], strides = [1, 1]} : vector<128x128xbf16> to vector<32x128xbf16>
    %cst_50 = arith.constant dense<0.000000e+00> : vector<128x128xf32>
    %140 = tpu.matmul %138, %139, %cst_50 {dimension_numbers = #tpu.dot_dimension_numbers<[1], [0], [0], [1], [0, 0, 1, 1], [], []>} : vector<128x32xbf16>, vector<32x128xbf16>, vector<128x128xf32> -> vector<128x128xf32>
    %141 = arith.addf %117, %140 : vector<128x128xf32>
    %142 = arith.addf %7, %141 : vector<128x128xf32>
    %c0_51 = arith.constant 0 : index
    %c0_52 = arith.constant 0 : index
    %c0_53 = arith.constant 0 : index
    %143 = vector.load %arg11[%c0_51, %c0_52, %c0_53] : memref<2x1x128xf32, #tpu.memory_space<vmem>>, vector<1x1x128xf32>
    %144 = vector.shape_cast %143 : vector<1x1x128xf32> to vector<1x128xf32>
    %145 = vector.broadcast %144 : vector<1x128xf32> to vector<128x128xf32>
    %146 = arith.addf %142, %145 : vector<128x128xf32>
    %c0_54 = arith.constant 0 : index
    %c0_55 = arith.constant 0 : index
    %c0_56 = arith.constant 0 : index
    %147 = vector.load %arg12[%c0_54, %c0_55, %c0_56] : memref<2x1x128xf32, #tpu.memory_space<vmem>>, vector<1x1x128xf32>
    %148 = vector.shape_cast %147 : vector<1x1x128xf32> to vector<1x128xf32>
    %c0_57 = arith.constant 0 : index
    %c0_58 = arith.constant 0 : index
    %c0_59 = arith.constant 0 : index
    %149 = vector.load %arg13[%c0_57, %c0_58, %c0_59] : memref<2x1x128xf32, #tpu.memory_space<vmem>>, vector<1x1x128xf32>
    %150 = vector.shape_cast %149 : vector<1x1x128xf32> to vector<1x128xf32>
    %cst_60 = arith.constant dense<0.000000e+00> : vector<128xf32>
    %151 = vector.multi_reduction <add>, %146, %cst_60 [1] : vector<128x128xf32> to vector<128xf32>
    %152 = vector.shape_cast %151 : vector<128xf32> to vector<128x1xf32>
    %cst_61 = arith.constant 1.280000e+02 : f32
    %153 = vector.broadcast %cst_61 : f32 to vector<128x1xf32>
    %154 = arith.divf %152, %153 : vector<128x1xf32>
    %155 = arith.mulf %146, %146 : vector<128x128xf32>
    %cst_62 = arith.constant dense<0.000000e+00> : vector<128xf32>
    %156 = vector.multi_reduction <add>, %155, %cst_62 [1] : vector<128x128xf32> to vector<128xf32>
    %157 = vector.shape_cast %156 : vector<128xf32> to vector<128x1xf32>
    %cst_63 = arith.constant 1.280000e+02 : f32
    %158 = vector.broadcast %cst_63 : f32 to vector<128x1xf32>
    %159 = arith.divf %157, %158 : vector<128x1xf32>
    %160 = arith.mulf %154, %154 : vector<128x1xf32>
    %161 = arith.subf %159, %160 : vector<128x1xf32>
    %cst_64 = arith.constant 0.000000e+00 : f32
    %162 = vector.broadcast %cst_64 : f32 to vector<128x1xf32>
    %163 = arith.maximumf %161, %162 : vector<128x1xf32>
    %164 = vector.broadcast %154 : vector<128x1xf32> to vector<128x128xf32>
    %165 = arith.subf %146, %164 : vector<128x128xf32>
    %cst_65 = arith.constant 9.99999997E-7 : f32
    %166 = vector.broadcast %cst_65 : f32 to vector<128x1xf32>
    %167 = arith.addf %163, %166 : vector<128x1xf32>
    %168 = math.rsqrt %167 : vector<128x1xf32>
    %169 = vector.broadcast %168 : vector<128x1xf32> to vector<128x128xf32>
    %170 = arith.mulf %165, %169 : vector<128x128xf32>
    %171 = vector.broadcast %148 : vector<1x128xf32> to vector<128x128xf32>
    %172 = arith.mulf %170, %171 : vector<128x128xf32>
    %173 = vector.broadcast %150 : vector<1x128xf32> to vector<128x128xf32>
    %174 = arith.addf %172, %173 : vector<128x128xf32>
    %175 = arith.truncf %174 : vector<128x128xf32> to vector<128x128xbf16>
    %c0_66 = arith.constant 0 : index
    %c0_67 = arith.constant 0 : index
    %c0_68 = arith.constant 0 : index
    %176 = vector.load %arg14[%c0_66, %c0_67, %c0_68] : memref<2x128x512xbf16, #tpu.memory_space<vmem>>, vector<1x128x512xbf16>
    %177 = vector.shape_cast %176 : vector<1x128x512xbf16> to vector<128x512xbf16>
    %cst_69 = arith.constant dense<0.000000e+00> : vector<128x512xf32>
    %178 = tpu.matmul %175, %177, %cst_69 {dimension_numbers = #tpu.dot_dimension_numbers<[1], [0], [0], [1], [0, 0, 1, 1], [], []>} : vector<128x128xbf16>, vector<128x512xbf16>, vector<128x512xf32> -> vector<128x512xf32>
    %c0_70 = arith.constant 0 : index
    %c0_71 = arith.constant 0 : index
    %c0_72 = arith.constant 0 : index
    %179 = vector.load %arg15[%c0_70, %c0_71, %c0_72] : memref<2x1x512xf32, #tpu.memory_space<vmem>>, vector<1x1x512xf32>
    %180 = vector.shape_cast %179 : vector<1x1x512xf32> to vector<1x512xf32>
    %181 = vector.broadcast %180 : vector<1x512xf32> to vector<128x512xf32>
    %182 = arith.addf %178, %181 : vector<128x512xf32>
    %cst_73 = arith.constant 5.000000e-01 : f32
    %183 = vector.broadcast %cst_73 : f32 to vector<128x512xf32>
    %184 = arith.mulf %183, %182 : vector<128x512xf32>
    %cst_74 = arith.constant 0.707106769 : f32
    %185 = vector.broadcast %cst_74 : f32 to vector<128x512xf32>
    %186 = arith.mulf %182, %185 : vector<128x512xf32>
    %187 = math.erf %186 : vector<128x512xf32>
    %cst_75 = arith.constant 1.000000e+00 : f32
    %188 = vector.broadcast %cst_75 : f32 to vector<128x512xf32>
    %189 = arith.addf %188, %187 : vector<128x512xf32>
    %190 = arith.mulf %184, %189 : vector<128x512xf32>
    %191 = arith.truncf %190 : vector<128x512xf32> to vector<128x512xbf16>
    %c0_76 = arith.constant 0 : index
    %c0_77 = arith.constant 0 : index
    %c0_78 = arith.constant 0 : index
    %192 = vector.load %arg16[%c0_76, %c0_77, %c0_78] : memref<2x512x128xbf16, #tpu.memory_space<vmem>>, vector<1x512x128xbf16>
    %193 = vector.shape_cast %192 : vector<1x512x128xbf16> to vector<512x128xbf16>
    %cst_79 = arith.constant dense<0.000000e+00> : vector<128x128xf32>
    %194 = tpu.matmul %191, %193, %cst_79 {dimension_numbers = #tpu.dot_dimension_numbers<[1], [0], [0], [1], [0, 0, 1, 1], [], []>} : vector<128x512xbf16>, vector<512x128xbf16>, vector<128x128xf32> -> vector<128x128xf32>
    %c0_80 = arith.constant 0 : index
    %c0_81 = arith.constant 0 : index
    %c0_82 = arith.constant 0 : index
    %195 = vector.load %arg17[%c0_80, %c0_81, %c0_82] : memref<2x1x128xf32, #tpu.memory_space<vmem>>, vector<1x1x128xf32>
    %196 = vector.shape_cast %195 : vector<1x1x128xf32> to vector<1x128xf32>
    %197 = vector.broadcast %196 : vector<1x128xf32> to vector<128x128xf32>
    %198 = arith.addf %194, %197 : vector<128x128xf32>
    %199 = arith.addf %146, %198 : vector<128x128xf32>
    %c1 = arith.constant 1 : index
    %c0_83 = arith.constant 0 : index
    %c0_84 = arith.constant 0 : index
    %200 = vector.load %arg6[%c1, %c0_83, %c0_84] : memref<2x1x128xf32, #tpu.memory_space<vmem>>, vector<1x1x128xf32>
    %201 = vector.shape_cast %200 : vector<1x1x128xf32> to vector<1x128xf32>
    %c1_85 = arith.constant 1 : index
    %c0_86 = arith.constant 0 : index
    %c0_87 = arith.constant 0 : index
    %202 = vector.load %arg7[%c1_85, %c0_86, %c0_87] : memref<2x1x128xf32, #tpu.memory_space<vmem>>, vector<1x1x128xf32>
    %203 = vector.shape_cast %202 : vector<1x1x128xf32> to vector<1x128xf32>
    %cst_88 = arith.constant dense<0.000000e+00> : vector<128xf32>
    %204 = vector.multi_reduction <add>, %199, %cst_88 [1] : vector<128x128xf32> to vector<128xf32>
    %205 = vector.shape_cast %204 : vector<128xf32> to vector<128x1xf32>
    %cst_89 = arith.constant 1.280000e+02 : f32
    %206 = vector.broadcast %cst_89 : f32 to vector<128x1xf32>
    %207 = arith.divf %205, %206 : vector<128x1xf32>
    %208 = arith.mulf %199, %199 : vector<128x128xf32>
    %cst_90 = arith.constant dense<0.000000e+00> : vector<128xf32>
    %209 = vector.multi_reduction <add>, %208, %cst_90 [1] : vector<128x128xf32> to vector<128xf32>
    %210 = vector.shape_cast %209 : vector<128xf32> to vector<128x1xf32>
    %cst_91 = arith.constant 1.280000e+02 : f32
    %211 = vector.broadcast %cst_91 : f32 to vector<128x1xf32>
    %212 = arith.divf %210, %211 : vector<128x1xf32>
    %213 = arith.mulf %207, %207 : vector<128x1xf32>
    %214 = arith.subf %212, %213 : vector<128x1xf32>
    %cst_92 = arith.constant 0.000000e+00 : f32
    %215 = vector.broadcast %cst_92 : f32 to vector<128x1xf32>
    %216 = arith.maximumf %214, %215 : vector<128x1xf32>
    %217 = vector.broadcast %207 : vector<128x1xf32> to vector<128x128xf32>
    %218 = arith.subf %199, %217 : vector<128x128xf32>
    %cst_93 = arith.constant 9.99999997E-7 : f32
    %219 = vector.broadcast %cst_93 : f32 to vector<128x1xf32>
    %220 = arith.addf %216, %219 : vector<128x1xf32>
    %221 = math.rsqrt %220 : vector<128x1xf32>
    %222 = vector.broadcast %221 : vector<128x1xf32> to vector<128x128xf32>
    %223 = arith.mulf %218, %222 : vector<128x128xf32>
    %224 = vector.broadcast %201 : vector<1x128xf32> to vector<128x128xf32>
    %225 = arith.mulf %223, %224 : vector<128x128xf32>
    %226 = vector.broadcast %203 : vector<1x128xf32> to vector<128x128xf32>
    %227 = arith.addf %225, %226 : vector<128x128xf32>
    %228 = arith.truncf %227 : vector<128x128xf32> to vector<128x128xbf16>
    %c1_94 = arith.constant 1 : index
    %c0_95 = arith.constant 0 : index
    %c0_96 = arith.constant 0 : index
    %229 = vector.load %arg8[%c1_94, %c0_95, %c0_96] : memref<2x128x384xbf16, #tpu.memory_space<vmem>>, vector<1x128x384xbf16>
    %230 = vector.shape_cast %229 : vector<1x128x384xbf16> to vector<128x384xbf16>
    %cst_97 = arith.constant dense<0.000000e+00> : vector<128x384xf32>
    %231 = tpu.matmul %228, %230, %cst_97 {dimension_numbers = #tpu.dot_dimension_numbers<[1], [0], [0], [1], [0, 0, 1, 1], [], []>} : vector<128x128xbf16>, vector<128x384xbf16>, vector<128x384xf32> -> vector<128x384xf32>
    %c1_98 = arith.constant 1 : index
    %c0_99 = arith.constant 0 : index
    %c0_100 = arith.constant 0 : index
    %232 = vector.load %arg9[%c1_98, %c0_99, %c0_100] : memref<2x1x384xf32, #tpu.memory_space<vmem>>, vector<1x1x384xf32>
    %233 = vector.shape_cast %232 : vector<1x1x384xf32> to vector<1x384xf32>
    %234 = vector.broadcast %233 : vector<1x384xf32> to vector<128x384xf32>
    %235 = arith.addf %231, %234 : vector<128x384xf32>
    %c1_101 = arith.constant 1 : index
    %c0_102 = arith.constant 0 : index
    %c0_103 = arith.constant 0 : index
    %236 = vector.load %arg10[%c1_101, %c0_102, %c0_103] : memref<2x128x128xbf16, #tpu.memory_space<vmem>>, vector<1x128x128xbf16>
    %237 = vector.shape_cast %236 : vector<1x128x128xbf16> to vector<128x128xbf16>
    %238 = vector.extract_strided_slice %235 {offsets = [0, 0], sizes = [128, 32], strides = [1, 1]} : vector<128x384xf32> to vector<128x32xf32>
    %239 = arith.truncf %238 : vector<128x32xf32> to vector<128x32xbf16>
    %240 = vector.extract_strided_slice %235 {offsets = [0, 128], sizes = [128, 32], strides = [1, 1]} : vector<128x384xf32> to vector<128x32xf32>
    %241 = arith.truncf %240 : vector<128x32xf32> to vector<128x32xbf16>
    %242 = vector.extract_strided_slice %235 {offsets = [0, 256], sizes = [128, 32], strides = [1, 1]} : vector<128x384xf32> to vector<128x32xf32>
    %243 = arith.truncf %242 : vector<128x32xf32> to vector<128x32xbf16>
    %cst_104 = arith.constant dense<0.000000e+00> : vector<128x128xf32>
    %244 = tpu.matmul %239, %241, %cst_104 {dimension_numbers = #tpu.dot_dimension_numbers<[1], [1], [0], [0], [0, 0, 1, 0], [], []>} : vector<128x32xbf16>, vector<128x32xbf16>, vector<128x128xf32> -> vector<128x128xf32>
    %245 = arith.addf %244, %8 : vector<128x128xf32>
    %cst_105 = arith.constant dense<0xFF800000> : vector<128xf32>
    %246 = vector.multi_reduction <maximumf>, %245, %cst_105 [1] : vector<128x128xf32> to vector<128xf32>
    %247 = vector.shape_cast %246 : vector<128xf32> to vector<128x1xf32>
    %248 = vector.broadcast %247 : vector<128x1xf32> to vector<128x128xf32>
    %249 = arith.subf %245, %248 : vector<128x128xf32>
    %250 = math.exp %249 : vector<128x128xf32>
    %cst_106 = arith.constant dense<0.000000e+00> : vector<128xf32>
    %251 = vector.multi_reduction <add>, %250, %cst_106 [1] : vector<128x128xf32> to vector<128xf32>
    %252 = vector.shape_cast %251 : vector<128xf32> to vector<128x1xf32>
    %253 = tpu.reciprocal %252 {approx = true} : vector<128x1xf32> -> vector<128x1xf32>
    %254 = vector.broadcast %253 : vector<128x1xf32> to vector<128x128xf32>
    %255 = arith.mulf %250, %254 : vector<128x128xf32>
    %256 = arith.truncf %255 : vector<128x128xf32> to vector<128x128xbf16>
    %cst_107 = arith.constant dense<0.000000e+00> : vector<128x32xf32>
    %257 = tpu.matmul %256, %243, %cst_107 {dimension_numbers = #tpu.dot_dimension_numbers<[1], [0], [0], [1], [0, 0, 1, 1], [], []>} : vector<128x128xbf16>, vector<128x32xbf16>, vector<128x32xf32> -> vector<128x32xf32>
    %258 = arith.truncf %257 : vector<128x32xf32> to vector<128x32xbf16>
    %259 = vector.extract_strided_slice %237 {offsets = [0, 0], sizes = [32, 128], strides = [1, 1]} : vector<128x128xbf16> to vector<32x128xbf16>
    %cst_108 = arith.constant dense<0.000000e+00> : vector<128x128xf32>
    %260 = tpu.matmul %258, %259, %cst_108 {dimension_numbers = #tpu.dot_dimension_numbers<[1], [0], [0], [1], [0, 0, 1, 1], [], []>} : vector<128x32xbf16>, vector<32x128xbf16>, vector<128x128xf32> -> vector<128x128xf32>
    %261 = vector.extract_strided_slice %235 {offsets = [0, 32], sizes = [128, 32], strides = [1, 1]} : vector<128x384xf32> to vector<128x32xf32>
    %262 = arith.truncf %261 : vector<128x32xf32> to vector<128x32xbf16>
    %263 = vector.extract_strided_slice %235 {offsets = [0, 160], sizes = [128, 32], strides = [1, 1]} : vector<128x384xf32> to vector<128x32xf32>
    %264 = arith.truncf %263 : vector<128x32xf32> to vector<128x32xbf16>
    %265 = vector.extract_strided_slice %235 {offsets = [0, 288], sizes = [128, 32], strides = [1, 1]} : vector<128x384xf32> to vector<128x32xf32>
    %266 = arith.truncf %265 : vector<128x32xf32> to vector<128x32xbf16>
    %cst_109 = arith.constant dense<0.000000e+00> : vector<128x128xf32>
    %267 = tpu.matmul %262, %264, %cst_109 {dimension_numbers = #tpu.dot_dimension_numbers<[1], [1], [0], [0], [0, 0, 1, 0], [], []>} : vector<128x32xbf16>, vector<128x32xbf16>, vector<128x128xf32> -> vector<128x128xf32>
    %268 = arith.addf %267, %8 : vector<128x128xf32>
    %cst_110 = arith.constant dense<0xFF800000> : vector<128xf32>
    %269 = vector.multi_reduction <maximumf>, %268, %cst_110 [1] : vector<128x128xf32> to vector<128xf32>
    %270 = vector.shape_cast %269 : vector<128xf32> to vector<128x1xf32>
    %271 = vector.broadcast %270 : vector<128x1xf32> to vector<128x128xf32>
    %272 = arith.subf %268, %271 : vector<128x128xf32>
    %273 = math.exp %272 : vector<128x128xf32>
    %cst_111 = arith.constant dense<0.000000e+00> : vector<128xf32>
    %274 = vector.multi_reduction <add>, %273, %cst_111 [1] : vector<128x128xf32> to vector<128xf32>
    %275 = vector.shape_cast %274 : vector<128xf32> to vector<128x1xf32>
    %276 = tpu.reciprocal %275 {approx = true} : vector<128x1xf32> -> vector<128x1xf32>
    %277 = vector.broadcast %276 : vector<128x1xf32> to vector<128x128xf32>
    %278 = arith.mulf %273, %277 : vector<128x128xf32>
    %279 = arith.truncf %278 : vector<128x128xf32> to vector<128x128xbf16>
    %cst_112 = arith.constant dense<0.000000e+00> : vector<128x32xf32>
    %280 = tpu.matmul %279, %266, %cst_112 {dimension_numbers = #tpu.dot_dimension_numbers<[1], [0], [0], [1], [0, 0, 1, 1], [], []>} : vector<128x128xbf16>, vector<128x32xbf16>, vector<128x32xf32> -> vector<128x32xf32>
    %281 = arith.truncf %280 : vector<128x32xf32> to vector<128x32xbf16>
    %282 = vector.extract_strided_slice %237 {offsets = [32, 0], sizes = [32, 128], strides = [1, 1]} : vector<128x128xbf16> to vector<32x128xbf16>
    %cst_113 = arith.constant dense<0.000000e+00> : vector<128x128xf32>
    %283 = tpu.matmul %281, %282, %cst_113 {dimension_numbers = #tpu.dot_dimension_numbers<[1], [0], [0], [1], [0, 0, 1, 1], [], []>} : vector<128x32xbf16>, vector<32x128xbf16>, vector<128x128xf32> -> vector<128x128xf32>
    %284 = arith.addf %260, %283 : vector<128x128xf32>
    %285 = vector.extract_strided_slice %235 {offsets = [0, 64], sizes = [128, 32], strides = [1, 1]} : vector<128x384xf32> to vector<128x32xf32>
    %286 = arith.truncf %285 : vector<128x32xf32> to vector<128x32xbf16>
    %287 = vector.extract_strided_slice %235 {offsets = [0, 192], sizes = [128, 32], strides = [1, 1]} : vector<128x384xf32> to vector<128x32xf32>
    %288 = arith.truncf %287 : vector<128x32xf32> to vector<128x32xbf16>
    %289 = vector.extract_strided_slice %235 {offsets = [0, 320], sizes = [128, 32], strides = [1, 1]} : vector<128x384xf32> to vector<128x32xf32>
    %290 = arith.truncf %289 : vector<128x32xf32> to vector<128x32xbf16>
    %cst_114 = arith.constant dense<0.000000e+00> : vector<128x128xf32>
    %291 = tpu.matmul %286, %288, %cst_114 {dimension_numbers = #tpu.dot_dimension_numbers<[1], [1], [0], [0], [0, 0, 1, 0], [], []>} : vector<128x32xbf16>, vector<128x32xbf16>, vector<128x128xf32> -> vector<128x128xf32>
    %292 = arith.addf %291, %8 : vector<128x128xf32>
    %cst_115 = arith.constant dense<0xFF800000> : vector<128xf32>
    %293 = vector.multi_reduction <maximumf>, %292, %cst_115 [1] : vector<128x128xf32> to vector<128xf32>
    %294 = vector.shape_cast %293 : vector<128xf32> to vector<128x1xf32>
    %295 = vector.broadcast %294 : vector<128x1xf32> to vector<128x128xf32>
    %296 = arith.subf %292, %295 : vector<128x128xf32>
    %297 = math.exp %296 : vector<128x128xf32>
    %cst_116 = arith.constant dense<0.000000e+00> : vector<128xf32>
    %298 = vector.multi_reduction <add>, %297, %cst_116 [1] : vector<128x128xf32> to vector<128xf32>
    %299 = vector.shape_cast %298 : vector<128xf32> to vector<128x1xf32>
    %300 = tpu.reciprocal %299 {approx = true} : vector<128x1xf32> -> vector<128x1xf32>
    %301 = vector.broadcast %300 : vector<128x1xf32> to vector<128x128xf32>
    %302 = arith.mulf %297, %301 : vector<128x128xf32>
    %303 = arith.truncf %302 : vector<128x128xf32> to vector<128x128xbf16>
    %cst_117 = arith.constant dense<0.000000e+00> : vector<128x32xf32>
    %304 = tpu.matmul %303, %290, %cst_117 {dimension_numbers = #tpu.dot_dimension_numbers<[1], [0], [0], [1], [0, 0, 1, 1], [], []>} : vector<128x128xbf16>, vector<128x32xbf16>, vector<128x32xf32> -> vector<128x32xf32>
    %305 = arith.truncf %304 : vector<128x32xf32> to vector<128x32xbf16>
    %306 = vector.extract_strided_slice %237 {offsets = [64, 0], sizes = [32, 128], strides = [1, 1]} : vector<128x128xbf16> to vector<32x128xbf16>
    %cst_118 = arith.constant dense<0.000000e+00> : vector<128x128xf32>
    %307 = tpu.matmul %305, %306, %cst_118 {dimension_numbers = #tpu.dot_dimension_numbers<[1], [0], [0], [1], [0, 0, 1, 1], [], []>} : vector<128x32xbf16>, vector<32x128xbf16>, vector<128x128xf32> -> vector<128x128xf32>
    %308 = arith.addf %284, %307 : vector<128x128xf32>
    %309 = vector.extract_strided_slice %235 {offsets = [0, 96], sizes = [128, 32], strides = [1, 1]} : vector<128x384xf32> to vector<128x32xf32>
    %310 = arith.truncf %309 : vector<128x32xf32> to vector<128x32xbf16>
    %311 = vector.extract_strided_slice %235 {offsets = [0, 224], sizes = [128, 32], strides = [1, 1]} : vector<128x384xf32> to vector<128x32xf32>
    %312 = arith.truncf %311 : vector<128x32xf32> to vector<128x32xbf16>
    %313 = vector.extract_strided_slice %235 {offsets = [0, 352], sizes = [128, 32], strides = [1, 1]} : vector<128x384xf32> to vector<128x32xf32>
    %314 = arith.truncf %313 : vector<128x32xf32> to vector<128x32xbf16>
    %cst_119 = arith.constant dense<0.000000e+00> : vector<128x128xf32>
    %315 = tpu.matmul %310, %312, %cst_119 {dimension_numbers = #tpu.dot_dimension_numbers<[1], [1], [0], [0], [0, 0, 1, 0], [], []>} : vector<128x32xbf16>, vector<128x32xbf16>, vector<128x128xf32> -> vector<128x128xf32>
    %316 = arith.addf %315, %8 : vector<128x128xf32>
    %cst_120 = arith.constant dense<0xFF800000> : vector<128xf32>
    %317 = vector.multi_reduction <maximumf>, %316, %cst_120 [1] : vector<128x128xf32> to vector<128xf32>
    %318 = vector.shape_cast %317 : vector<128xf32> to vector<128x1xf32>
    %319 = vector.broadcast %318 : vector<128x1xf32> to vector<128x128xf32>
    %320 = arith.subf %316, %319 : vector<128x128xf32>
    %321 = math.exp %320 : vector<128x128xf32>
    %cst_121 = arith.constant dense<0.000000e+00> : vector<128xf32>
    %322 = vector.multi_reduction <add>, %321, %cst_121 [1] : vector<128x128xf32> to vector<128xf32>
    %323 = vector.shape_cast %322 : vector<128xf32> to vector<128x1xf32>
    %324 = tpu.reciprocal %323 {approx = true} : vector<128x1xf32> -> vector<128x1xf32>
    %325 = vector.broadcast %324 : vector<128x1xf32> to vector<128x128xf32>
    %326 = arith.mulf %321, %325 : vector<128x128xf32>
    %327 = arith.truncf %326 : vector<128x128xf32> to vector<128x128xbf16>
    %cst_122 = arith.constant dense<0.000000e+00> : vector<128x32xf32>
    %328 = tpu.matmul %327, %314, %cst_122 {dimension_numbers = #tpu.dot_dimension_numbers<[1], [0], [0], [1], [0, 0, 1, 1], [], []>} : vector<128x128xbf16>, vector<128x32xbf16>, vector<128x32xf32> -> vector<128x32xf32>
    %329 = arith.truncf %328 : vector<128x32xf32> to vector<128x32xbf16>
    %330 = vector.extract_strided_slice %237 {offsets = [96, 0], sizes = [32, 128], strides = [1, 1]} : vector<128x128xbf16> to vector<32x128xbf16>
    %cst_123 = arith.constant dense<0.000000e+00> : vector<128x128xf32>
    %331 = tpu.matmul %329, %330, %cst_123 {dimension_numbers = #tpu.dot_dimension_numbers<[1], [0], [0], [1], [0, 0, 1, 1], [], []>} : vector<128x32xbf16>, vector<32x128xbf16>, vector<128x128xf32> -> vector<128x128xf32>
    %332 = arith.addf %308, %331 : vector<128x128xf32>
    %333 = arith.addf %199, %332 : vector<128x128xf32>
    %c1_124 = arith.constant 1 : index
    %c0_125 = arith.constant 0 : index
    %c0_126 = arith.constant 0 : index
    %334 = vector.load %arg11[%c1_124, %c0_125, %c0_126] : memref<2x1x128xf32, #tpu.memory_space<vmem>>, vector<1x1x128xf32>
    %335 = vector.shape_cast %334 : vector<1x1x128xf32> to vector<1x128xf32>
    %336 = vector.broadcast %335 : vector<1x128xf32> to vector<128x128xf32>
    %337 = arith.addf %333, %336 : vector<128x128xf32>
    %c1_127 = arith.constant 1 : index
    %c0_128 = arith.constant 0 : index
    %c0_129 = arith.constant 0 : index
    %338 = vector.load %arg12[%c1_127, %c0_128, %c0_129] : memref<2x1x128xf32, #tpu.memory_space<vmem>>, vector<1x1x128xf32>
    %339 = vector.shape_cast %338 : vector<1x1x128xf32> to vector<1x128xf32>
    %c1_130 = arith.constant 1 : index
    %c0_131 = arith.constant 0 : index
    %c0_132 = arith.constant 0 : index
    %340 = vector.load %arg13[%c1_130, %c0_131, %c0_132] : memref<2x1x128xf32, #tpu.memory_space<vmem>>, vector<1x1x128xf32>
    %341 = vector.shape_cast %340 : vector<1x1x128xf32> to vector<1x128xf32>
    %cst_133 = arith.constant dense<0.000000e+00> : vector<128xf32>
    %342 = vector.multi_reduction <add>, %337, %cst_133 [1] : vector<128x128xf32> to vector<128xf32>
    %343 = vector.shape_cast %342 : vector<128xf32> to vector<128x1xf32>
    %cst_134 = arith.constant 1.280000e+02 : f32
    %344 = vector.broadcast %cst_134 : f32 to vector<128x1xf32>
    %345 = arith.divf %343, %344 : vector<128x1xf32>
    %346 = arith.mulf %337, %337 : vector<128x128xf32>
    %cst_135 = arith.constant dense<0.000000e+00> : vector<128xf32>
    %347 = vector.multi_reduction <add>, %346, %cst_135 [1] : vector<128x128xf32> to vector<128xf32>
    %348 = vector.shape_cast %347 : vector<128xf32> to vector<128x1xf32>
    %cst_136 = arith.constant 1.280000e+02 : f32
    %349 = vector.broadcast %cst_136 : f32 to vector<128x1xf32>
    %350 = arith.divf %348, %349 : vector<128x1xf32>
    %351 = arith.mulf %345, %345 : vector<128x1xf32>
    %352 = arith.subf %350, %351 : vector<128x1xf32>
    %cst_137 = arith.constant 0.000000e+00 : f32
    %353 = vector.broadcast %cst_137 : f32 to vector<128x1xf32>
    %354 = arith.maximumf %352, %353 : vector<128x1xf32>
    %355 = vector.broadcast %345 : vector<128x1xf32> to vector<128x128xf32>
    %356 = arith.subf %337, %355 : vector<128x128xf32>
    %cst_138 = arith.constant 9.99999997E-7 : f32
    %357 = vector.broadcast %cst_138 : f32 to vector<128x1xf32>
    %358 = arith.addf %354, %357 : vector<128x1xf32>
    %359 = math.rsqrt %358 : vector<128x1xf32>
    %360 = vector.broadcast %359 : vector<128x1xf32> to vector<128x128xf32>
    %361 = arith.mulf %356, %360 : vector<128x128xf32>
    %362 = vector.broadcast %339 : vector<1x128xf32> to vector<128x128xf32>
    %363 = arith.mulf %361, %362 : vector<128x128xf32>
    %364 = vector.broadcast %341 : vector<1x128xf32> to vector<128x128xf32>
    %365 = arith.addf %363, %364 : vector<128x128xf32>
    %366 = arith.truncf %365 : vector<128x128xf32> to vector<128x128xbf16>
    %c1_139 = arith.constant 1 : index
    %c0_140 = arith.constant 0 : index
    %c0_141 = arith.constant 0 : index
    %367 = vector.load %arg14[%c1_139, %c0_140, %c0_141] : memref<2x128x512xbf16, #tpu.memory_space<vmem>>, vector<1x128x512xbf16>
    %368 = vector.shape_cast %367 : vector<1x128x512xbf16> to vector<128x512xbf16>
    %cst_142 = arith.constant dense<0.000000e+00> : vector<128x512xf32>
    %369 = tpu.matmul %366, %368, %cst_142 {dimension_numbers = #tpu.dot_dimension_numbers<[1], [0], [0], [1], [0, 0, 1, 1], [], []>} : vector<128x128xbf16>, vector<128x512xbf16>, vector<128x512xf32> -> vector<128x512xf32>
    %c1_143 = arith.constant 1 : index
    %c0_144 = arith.constant 0 : index
    %c0_145 = arith.constant 0 : index
    %370 = vector.load %arg15[%c1_143, %c0_144, %c0_145] : memref<2x1x512xf32, #tpu.memory_space<vmem>>, vector<1x1x512xf32>
    %371 = vector.shape_cast %370 : vector<1x1x512xf32> to vector<1x512xf32>
    %372 = vector.broadcast %371 : vector<1x512xf32> to vector<128x512xf32>
    %373 = arith.addf %369, %372 : vector<128x512xf32>
    %cst_146 = arith.constant 5.000000e-01 : f32
    %374 = vector.broadcast %cst_146 : f32 to vector<128x512xf32>
    %375 = arith.mulf %374, %373 : vector<128x512xf32>
    %cst_147 = arith.constant 0.707106769 : f32
    %376 = vector.broadcast %cst_147 : f32 to vector<128x512xf32>
    %377 = arith.mulf %373, %376 : vector<128x512xf32>
    %378 = math.erf %377 : vector<128x512xf32>
    %cst_148 = arith.constant 1.000000e+00 : f32
    %379 = vector.broadcast %cst_148 : f32 to vector<128x512xf32>
    %380 = arith.addf %379, %378 : vector<128x512xf32>
    %381 = arith.mulf %375, %380 : vector<128x512xf32>
    %382 = arith.truncf %381 : vector<128x512xf32> to vector<128x512xbf16>
    %c1_149 = arith.constant 1 : index
    %c0_150 = arith.constant 0 : index
    %c0_151 = arith.constant 0 : index
    %383 = vector.load %arg16[%c1_149, %c0_150, %c0_151] : memref<2x512x128xbf16, #tpu.memory_space<vmem>>, vector<1x512x128xbf16>
    %384 = vector.shape_cast %383 : vector<1x512x128xbf16> to vector<512x128xbf16>
    %cst_152 = arith.constant dense<0.000000e+00> : vector<128x128xf32>
    %385 = tpu.matmul %382, %384, %cst_152 {dimension_numbers = #tpu.dot_dimension_numbers<[1], [0], [0], [1], [0, 0, 1, 1], [], []>} : vector<128x512xbf16>, vector<512x128xbf16>, vector<128x128xf32> -> vector<128x128xf32>
    %c1_153 = arith.constant 1 : index
    %c0_154 = arith.constant 0 : index
    %c0_155 = arith.constant 0 : index
    %386 = vector.load %arg17[%c1_153, %c0_154, %c0_155] : memref<2x1x128xf32, #tpu.memory_space<vmem>>, vector<1x1x128xf32>
    %387 = vector.shape_cast %386 : vector<1x1x128xf32> to vector<1x128xf32>
    %388 = vector.broadcast %387 : vector<1x128xf32> to vector<128x128xf32>
    %389 = arith.addf %385, %388 : vector<128x128xf32>
    %390 = arith.addf %337, %389 : vector<128x128xf32>
    %c0_156 = arith.constant 0 : index
    %c0_157 = arith.constant 0 : index
    %391 = vector.load %arg18[%c0_156, %c0_157] : memref<1x128xf32, #tpu.memory_space<vmem>>, vector<1x128xf32>
    %c0_158 = arith.constant 0 : index
    %c0_159 = arith.constant 0 : index
    %392 = vector.load %arg19[%c0_158, %c0_159] : memref<1x128xf32, #tpu.memory_space<vmem>>, vector<1x128xf32>
    %cst_160 = arith.constant dense<0.000000e+00> : vector<128xf32>
    %393 = vector.multi_reduction <add>, %390, %cst_160 [1] : vector<128x128xf32> to vector<128xf32>
    %394 = vector.shape_cast %393 : vector<128xf32> to vector<128x1xf32>
    %cst_161 = arith.constant 1.280000e+02 : f32
    %395 = vector.broadcast %cst_161 : f32 to vector<128x1xf32>
    %396 = arith.divf %394, %395 : vector<128x1xf32>
    %397 = arith.mulf %390, %390 : vector<128x128xf32>
    %cst_162 = arith.constant dense<0.000000e+00> : vector<128xf32>
    %398 = vector.multi_reduction <add>, %397, %cst_162 [1] : vector<128x128xf32> to vector<128xf32>
    %399 = vector.shape_cast %398 : vector<128xf32> to vector<128x1xf32>
    %cst_163 = arith.constant 1.280000e+02 : f32
    %400 = vector.broadcast %cst_163 : f32 to vector<128x1xf32>
    %401 = arith.divf %399, %400 : vector<128x1xf32>
    %402 = arith.mulf %396, %396 : vector<128x1xf32>
    %403 = arith.subf %401, %402 : vector<128x1xf32>
    %cst_164 = arith.constant 0.000000e+00 : f32
    %404 = vector.broadcast %cst_164 : f32 to vector<128x1xf32>
    %405 = arith.maximumf %403, %404 : vector<128x1xf32>
    %406 = vector.broadcast %396 : vector<128x1xf32> to vector<128x128xf32>
    %407 = arith.subf %390, %406 : vector<128x128xf32>
    %cst_165 = arith.constant 9.99999997E-7 : f32
    %408 = vector.broadcast %cst_165 : f32 to vector<128x1xf32>
    %409 = arith.addf %405, %408 : vector<128x1xf32>
    %410 = math.rsqrt %409 : vector<128x1xf32>
    %411 = vector.broadcast %410 : vector<128x1xf32> to vector<128x128xf32>
    %412 = arith.mulf %407, %411 : vector<128x128xf32>
    %413 = vector.broadcast %391 : vector<1x128xf32> to vector<128x128xf32>
    %414 = arith.mulf %412, %413 : vector<128x128xf32>
    %415 = vector.broadcast %392 : vector<1x128xf32> to vector<128x128xf32>
    %416 = arith.addf %414, %415 : vector<128x128xf32>
    %c0_166 = arith.constant 0 : index
    %c0_167 = arith.constant 0 : index
    %417 = vector.load %arg20[%c0_166, %c0_167] : memref<128x128xf32, #tpu.memory_space<vmem>>, vector<128x128xf32>
    tpu.vector_store %arg20[%c0_166, %c0_167], %416 {strides = array<i32>} : memref<128x128xf32, #tpu.memory_space<vmem>>, vector<128x128xf32>,
    return
  }
  func.func @transform_0(%arg0: i32) -> (i32, i32) {
    %c0_i32 = arith.constant 0 : i32
    %c0_i32_0 = arith.constant 0 : i32
    return %arg0, %c0_i32 : i32, i32
  }
  func.func @transform_1(%arg0: i32) -> (i32, i32) {
    %c0_i32 = arith.constant 0 : i32
    %c0_i32_0 = arith.constant 0 : i32
    %c0_i32_1 = arith.constant 0 : i32
    return %c0_i32, %c0_i32_0 : i32, i32
  }
  func.func @transform_2(%arg0: i32) -> (i32, i32) {
    %c0_i32 = arith.constant 0 : i32
    %c0_i32_0 = arith.constant 0 : i32
    %c0_i32_1 = arith.constant 0 : i32
    return %c0_i32, %c0_i32_0 : i32, i32
  }
  func.func @transform_3(%arg0: i32) -> (i32, i32) {
    %c0_i32 = arith.constant 0 : i32
    %c0_i32_0 = arith.constant 0 : i32
    %c0_i32_1 = arith.constant 0 : i32
    return %c0_i32, %c0_i32_0 : i32, i32
  }
  func.func @transform_4(%arg0: i32) -> (i32, i32) {
    %c0_i32 = arith.constant 0 : i32
    %c0_i32_0 = arith.constant 0 : i32
    %c0_i32_1 = arith.constant 0 : i32
    return %c0_i32, %c0_i32_0 : i32, i32
  }
  func.func @transform_5(%arg0: i32) -> (i32, i32, i32) {
    %c0_i32 = arith.constant 0 : i32
    %c0_i32_0 = arith.constant 0 : i32
    %c0_i32_1 = arith.constant 0 : i32
    %c0_i32_2 = arith.constant 0 : i32
    return %c0_i32, %c0_i32_0, %c0_i32_1 : i32, i32, i32
  }
  func.func @transform_6(%arg0: i32) -> (i32, i32, i32) {
    %c0_i32 = arith.constant 0 : i32
    %c0_i32_0 = arith.constant 0 : i32
    %c0_i32_1 = arith.constant 0 : i32
    %c0_i32_2 = arith.constant 0 : i32
    return %c0_i32, %c0_i32_0, %c0_i32_1 : i32, i32, i32
  }
  func.func @transform_7(%arg0: i32) -> (i32, i32, i32) {
    %c0_i32 = arith.constant 0 : i32
    %c0_i32_0 = arith.constant 0 : i32
    %c0_i32_1 = arith.constant 0 : i32
    %c0_i32_2 = arith.constant 0 : i32
    return %c0_i32, %c0_i32_0, %c0_i32_1 : i32, i32, i32
  }
  func.func @transform_8(%arg0: i32) -> (i32, i32, i32) {
    %c0_i32 = arith.constant 0 : i32
    %c0_i32_0 = arith.constant 0 : i32
    %c0_i32_1 = arith.constant 0 : i32
    %c0_i32_2 = arith.constant 0 : i32
    return %c0_i32, %c0_i32_0, %c0_i32_1 : i32, i32, i32
  }
  func.func @transform_9(%arg0: i32) -> (i32, i32, i32) {
    %c0_i32 = arith.constant 0 : i32
    %c0_i32_0 = arith.constant 0 : i32
    %c0_i32_1 = arith.constant 0 : i32
    %c0_i32_2 = arith.constant 0 : i32
    return %c0_i32, %c0_i32_0, %c0_i32_1 : i32, i32, i32
  }
  func.func @transform_10(%arg0: i32) -> (i32, i32, i32) {
    %c0_i32 = arith.constant 0 : i32
    %c0_i32_0 = arith.constant 0 : i32
    %c0_i32_1 = arith.constant 0 : i32
    %c0_i32_2 = arith.constant 0 : i32
    return %c0_i32, %c0_i32_0, %c0_i32_1 : i32, i32, i32
  }
  func.func @transform_11(%arg0: i32) -> (i32, i32, i32) {
    %c0_i32 = arith.constant 0 : i32
    %c0_i32_0 = arith.constant 0 : i32
    %c0_i32_1 = arith.constant 0 : i32
    %c0_i32_2 = arith.constant 0 : i32
    return %c0_i32, %c0_i32_0, %c0_i32_1 : i32, i32, i32
  }
  func.func @transform_12(%arg0: i32) -> (i32, i32, i32) {
    %c0_i32 = arith.constant 0 : i32
    %c0_i32_0 = arith.constant 0 : i32
    %c0_i32_1 = arith.constant 0 : i32
    %c0_i32_2 = arith.constant 0 : i32
    return %c0_i32, %c0_i32_0, %c0_i32_1 : i32, i32, i32
  }
  func.func @transform_13(%arg0: i32) -> (i32, i32, i32) {
    %c0_i32 = arith.constant 0 : i32
    %c0_i32_0 = arith.constant 0 : i32
    %c0_i32_1 = arith.constant 0 : i32
    %c0_i32_2 = arith.constant 0 : i32
    return %c0_i32, %c0_i32_0, %c0_i32_1 : i32, i32, i32
  }
  func.func @transform_14(%arg0: i32) -> (i32, i32, i32) {
    %c0_i32 = arith.constant 0 : i32
    %c0_i32_0 = arith.constant 0 : i32
    %c0_i32_1 = arith.constant 0 : i32
    %c0_i32_2 = arith.constant 0 : i32
    return %c0_i32, %c0_i32_0, %c0_i32_1 : i32, i32, i32
  }
  func.func @transform_15(%arg0: i32) -> (i32, i32, i32) {
    %c0_i32 = arith.constant 0 : i32
    %c0_i32_0 = arith.constant 0 : i32
    %c0_i32_1 = arith.constant 0 : i32
    %c0_i32_2 = arith.constant 0 : i32
    return %c0_i32, %c0_i32_0, %c0_i32_1 : i32, i32, i32
  }
  func.func @transform_16(%arg0: i32) -> (i32, i32, i32) {
    %c0_i32 = arith.constant 0 : i32
    %c0_i32_0 = arith.constant 0 : i32
    %c0_i32_1 = arith.constant 0 : i32
    %c0_i32_2 = arith.constant 0 : i32
    return %c0_i32, %c0_i32_0, %c0_i32_1 : i32, i32, i32
  }
  func.func @transform_17(%arg0: i32) -> (i32, i32) {
    %c0_i32 = arith.constant 0 : i32
    %c0_i32_0 = arith.constant 0 : i32
    %c0_i32_1 = arith.constant 0 : i32
    return %c0_i32, %c0_i32_0 : i32, i32
  }
  func.func @transform_18(%arg0: i32) -> (i32, i32) {
    %c0_i32 = arith.constant 0 : i32
    %c0_i32_0 = arith.constant 0 : i32
    %c0_i32_1 = arith.constant 0 : i32
    return %c0_i32, %c0_i32_0 : i32, i32
  }
  func.func @transform_19(%arg0: i32) -> (i32, i32) {
    %c0_i32 = arith.constant 0 : i32
    %c0_i32_0 = arith.constant 0 : i32
    return %arg0, %c0_i32 : i32, i32
  }
}

</mosaic_0001>

<llo_original>
// kernel: ijepa_encoder_forward.1
$region0: #{ijepa_encoder_forward.1}
  #allocation0 [shape = 'u32[]', space=smem, size = 0x4, offset = 0x4, fixed_abs, tag = 'smem constant byte address 0x4 - core index']
  #allocation1 [shape = 'u32[144,128]{1,0:T(1,128)}', space=vmem, size = 0x12000, scoped, tag = 'internal scratch']
  %s0 = inlined_call_operand.vmem [shape: bf16[256,640], index: 0, kind: input, shape index: {}]
  %s1 = inlined_call_operand.vmem [shape: bf16[640,128], index: 1, kind: input, shape index: {}]
  %s2 = inlined_call_operand.vmem [shape: f32[1,128], index: 2, kind: input, shape index: {}]
  %s3 = inlined_call_operand.vmem [shape: f32[128,128], index: 3, kind: input, shape index: {}]
  %s4 = inlined_call_operand.vmem [shape: f32[128,128], index: 4, kind: input, shape index: {}]
  %s5 = inlined_call_operand.vmem [shape: f32[2,1,128], index: 5, kind: input, shape index: {}]
  %s6 = inlined_call_operand.vmem [shape: f32[2,1,128], index: 6, kind: input, shape index: {}]
  %s7 = inlined_call_operand.vmem [shape: bf16[2,128,384], index: 7, kind: input, shape index: {}]
  %s8 = inlined_call_operand.vmem [shape: f32[2,1,384], index: 8, kind: input, shape index: {}]
  %s9 = inlined_call_operand.vmem [shape: bf16[2,128,128], index: 9, kind: input, shape index: {}]
  %s10 = inlined_call_operand.vmem [shape: f32[2,1,128], index: 10, kind: input, shape index: {}]
  %s11 = inlined_call_operand.vmem [shape: f32[2,1,128], index: 11, kind: input, shape index: {}]
  %s12 = inlined_call_operand.vmem [shape: f32[2,1,128], index: 12, kind: input, shape index: {}]
  %s13 = inlined_call_operand.vmem [shape: bf16[2,128,512], index: 13, kind: input, shape index: {}]
  %s14 = inlined_call_operand.vmem [shape: f32[2,1,512], index: 14, kind: input, shape index: {}]
  %s15 = inlined_call_operand.vmem [shape: bf16[2,512,128], index: 15, kind: input, shape index: {}]
  %s16 = inlined_call_operand.vmem [shape: f32[2,1,128], index: 16, kind: input, shape index: {}]
  %s17 = inlined_call_operand.vmem [shape: f32[1,128], index: 17, kind: input, shape index: {}]
  %s18 = inlined_call_operand.vmem [shape: f32[1,128], index: 18, kind: input, shape index: {}]
  %s19 = inlined_call_operand.hbm [shape: f32[256,128], index: 19, kind: output, shape index: {}]
  %s20 = sld [smem:[#allocation0]]
  $region109: #{ijepa_encoder_forward.1} parent=0
    _
  %s22 = ssub.s32 1, %s20
  %s23 = scalar_select 0, %s22, %s20
  $region1: #{ijepa_encoder_forward.1} parent=0
    #allocation2 [shape = 'u8[131072]{0}', space=vmem, size = 0x20000, scoped, tag = 'output window, operand 0']
    #allocation3 [shape = 's32[2]{0}', space=sflag, size = 0x8, scoped, tag = 'scoped memory for ijepa_encoder_forward.1']
    %24 = vsyncpa [#allocation3], 0
    %s25 = scalar_lea.sflag [#allocation3], 1
    %26 = vsyncpa %s25, 0
    loop: start=0, step=1, limit=4
    $region2: #{ijepa_encoder_forward.1} parent=1 // loop_pre_header
      _
    $region3: #{ijepa_encoder_forward.1} parent=1 // loop_header
      %s28 = sphi 0, %s32
      %p29 = scmp.ge.s32.totalorder %s28, 4
      %s38 = sphi 0, %s40
      %s41 = sphi 0, %s38
      %s42 = sphi 0, %s41
      %s58 = sphi 0, %s42
      %s62 = sphi 0, %s62
      %s64 = sphi 0, %s62
      %s65 = sphi 0, %s64
      %s79 = sphi 0, %s65
      %s83 = sphi 0, %s83
      %s85 = sphi 0, %s83
      %s86 = sphi 0, %s85
      %s100 = sphi 0, %s86
      %s104 = sphi 0, %s104
      %s106 = sphi 0, %s104
      %s107 = sphi 0, %s106
      %s121 = sphi 0, %s107
      %s125 = sphi 0, %s125
      %s127 = sphi 0, %s125
      %s128 = sphi 0, %s127
      %s142 = sphi 0, %s128
      %s146 = sphi 0, %s146
      %s148 = sphi 0, %s146
      %s149 = sphi 0, %s148
      %s163 = sphi 0, %s149
      %s167 = sphi 0, %s167
      %s169 = sphi 0, %s167
      %s170 = sphi 0, %s169
      %s184 = sphi 0, %s170
      %s188 = sphi 0, %s188
      %s190 = sphi 0, %s188
      %s191 = sphi 0, %s190
      %s205 = sphi 0, %s191
      %s209 = sphi 0, %s209
      %s211 = sphi 0, %s209
      %s212 = sphi 0, %s211
      %s226 = sphi 0, %s212
      %s230 = sphi 0, %s230
      %s232 = sphi 0, %s230
      %s233 = sphi 0, %s232
      %s247 = sphi 0, %s233
      %s251 = sphi 0, %s251
      %s253 = sphi 0, %s251
      %s254 = sphi 0, %s253
      %s268 = sphi 0, %s254
      %s272 = sphi 0, %s272
      %s274 = sphi 0, %s272
      %s275 = sphi 0, %s274
      %s289 = sphi 0, %s275
      %s293 = sphi 0, %s293
      %s295 = sphi 0, %s293
      %s296 = sphi 0, %s295
      %s310 = sphi 0, %s296
      %s314 = sphi 0, %s314
      %s316 = sphi 0, %s314
      %s317 = sphi 0, %s316
      %s331 = sphi 0, %s317
      %s335 = sphi 0, %s335
      %s337 = sphi 0, %s335
      %s338 = sphi 0, %s337
      %s352 = sphi 0, %s338
      %s356 = sphi 0, %s356
      %s358 = sphi 0, %s356
      %s359 = sphi 0, %s358
      %s373 = sphi 0, %s359
      %s377 = sphi 0, %s377
      %s379 = sphi 0, %s377
      %s380 = sphi 0, %s379
      %s394 = sphi 0, %s380
      %s398 = sphi 0, %s398
      %s400 = sphi 0, %s398
      %s401 = sphi 0, %s400
      %s415 = sphi 0, %s401
      %s419 = sphi 0, %s419
      %s421 = sphi 0, %s419
      %s422 = sphi 0, %s421
      %s436 = sphi 0, %s422
      %s442 = sphi 0, %s444
      %s445 = sphi 0, %s442
      %s446 = sphi 0, %s445
      %s462 = sphi 0, %s446
    $region4: #{ijepa_encoder_forward.1} parent=1 // loop_header_branch
      %31 = sbr.rel (%p29) target = $region8
    $region5: #{ijepa_encoder_forward.1} parent=1 // loop_body
      %s33 = ssub.s32 %s28, 1
      %s34 = ssub.s32 %s28, 2
      %s35 = sadd.s32 %s28, 1
      %s36 = ssub.s32 %s28, %s35
      %p37 = scmp.eq.s32.totalorder %s36, 0
      %s39 = sadd.s32 %s38, 1
      %s40 = scalar_select %p37, %s38, %s39
      %p43 = pneg %p37
      %p44 = scmp.eq.s32.totalorder %s28, 1
      %p45 = por %p43, %p44
      %p46 = scmp.ne.s32.totalorder %s38, %s41
      %p47 = scmp.eq.s32.totalorder %s28, 0
      %p48 = por %p46, %p47
      %p49 = scmp.ne.s32.totalorder %s38, %s41
      %p50 = scmp.eq.s32.totalorder %s33, 1
      %p51 = por %p49, %p50
      %p52 = scmp.ne.s32.totalorder %s41, %s42
      %p53 = scmp.eq.s32.totalorder %s33, 0
      %p54 = por %p52, %p53
      %p55 = scmp.ne.s32.totalorder %s41, %s42
      %p56 = scmp.eq.s32.totalorder %s34, 1
      %p57 = por %p55, %p56
      %p59 = scmp.ne.s32.totalorder %s42, %s58
      %p60 = scmp.eq.s32.totalorder %s34, 0
      %p61 = por %p59, %p60
      %s63 = sadd.s32 %s62, 1
      %p66 = scmp.eq.s32.totalorder %s28, 1
      %p67 = scmp.ne.s32.totalorder %s62, %s64
      %p68 = scmp.eq.s32.totalorder %s28, 0
      %p69 = por %p67, %p68
      %p70 = scmp.ne.s32.totalorder %s62, %s64
      %p71 = scmp.eq.s32.totalorder %s33, 1
      %p72 = por %p70, %p71
      %p73 = scmp.ne.s32.totalorder %s64, %s65
      %p74 = scmp.eq.s32.totalorder %s33, 0
      %p75 = por %p73, %p74
      %p76 = scmp.ne.s32.totalorder %s64, %s65
      %p77 = scmp.eq.s32.totalorder %s34, 1
      %p78 = por %p76, %p77
      %p80 = scmp.ne.s32.totalorder %s65, %s79
      %p81 = scmp.eq.s32.totalorder %s34, 0
      %p82 = por %p80, %p81
      %s84 = sadd.s32 %s83, 1
      %p87 = scmp.eq.s32.totalorder %s28, 1
      %p88 = scmp.ne.s32.totalorder %s83, %s85
      %p89 = scmp.eq.s32.totalorder %s28, 0
      %p90 = por %p88, %p89
      %p91 = scmp.ne.s32.totalorder %s83, %s85
      %p92 = scmp.eq.s32.totalorder %s33, 1
      %p93 = por %p91, %p92
      %p94 = scmp.ne.s32.totalorder %s85, %s86
      %p95 = scmp.eq.s32.totalorder %s33, 0
      %p96 = por %p94, %p95
      %p97 = scmp.ne.s32.totalorder %s85, %s86
      %p98 = scmp.eq.s32.totalorder %s34, 1
      %p99 = por %p97, %p98
      %p101 = scmp.ne.s32.totalorder %s86, %s100
      %p102 = scmp.eq.s32.totalorder %s34, 0
      %p103 = por %p101, %p102
      %s105 = sadd.s32 %s104, 1
      %p108 = scmp.eq.s32.totalorder %s28, 1
      %p109 = scmp.ne.s32.totalorder %s104, %s106
      %p110 = scmp.eq.s32.totalorder %s28, 0
      %p111 = por %p109, %p110
      %p112 = scmp.ne.s32.totalorder %s104, %s106
      %p113 = scmp.eq.s32.totalorder %s33, 1
      %p114 = por %p112, %p113
      %p115 = scmp.ne.s32.totalorder %s106, %s107
      %p116 = scmp.eq.s32.totalorder %s33, 0
      %p117 = por %p115, %p116
      %p118 = scmp.ne.s32.totalorder %s106, %s107
      %p119 = scmp.eq.s32.totalorder %s34, 1
      %p120 = por %p118, %p119
      %p122 = scmp.ne.s32.totalorder %s107, %s121
      %p123 = scmp.eq.s32.totalorder %s34, 0
      %p124 = por %p122, %p123
      %s126 = sadd.s32 %s125, 1
      %p129 = scmp.eq.s32.totalorder %s28, 1
      %p130 = scmp.ne.s32.totalorder %s125, %s127
      %p131 = scmp.eq.s32.totalorder %s28, 0
      %p132 = por %p130, %p131
      %p133 = scmp.ne.s32.totalorder %s125, %s127
      %p134 = scmp.eq.s32.totalorder %s33, 1
      %p135 = por %p133, %p134
      %p136 = scmp.ne.s32.totalorder %s127, %s128
      %p137 = scmp.eq.s32.totalorder %s33, 0
      %p138 = por %p136, %p137
      %p139 = scmp.ne.s32.totalorder %s127, %s128
      %p140 = scmp.eq.s32.totalorder %s34, 1
      %p141 = por %p139, %p140
      %p143 = scmp.ne.s32.totalorder %s128, %s142
      %p144 = scmp.eq.s32.totalorder %s34, 0
      %p145 = por %p143, %p144
      %s147 = sadd.s32 %s146, 1
      %p150 = scmp.eq.s32.totalorder %s28, 1
      %p151 = scmp.ne.s32.totalorder %s146, %s148
      %p152 = scmp.eq.s32.totalorder %s28, 0
      %p153 = por %p151, %p152
      %p154 = scmp.ne.s32.totalorder %s146, %s148
      %p155 = scmp.eq.s32.totalorder %s33, 1
      %p156 = por %p154, %p155
      %p157 = scmp.ne.s32.totalorder %s148, %s149
      %p158 = scmp.eq.s32.totalorder %s33, 0
      %p159 = por %p157, %p158
      %p160 = scmp.ne.s32.totalorder %s148, %s149
      %p161 = scmp.eq.s32.totalorder %s34, 1
      %p162 = por %p160, %p161
      %p164 = scmp.ne.s32.totalorder %s149, %s163
      %p165 = scmp.eq.s32.totalorder %s34, 0
      %p166 = por %p164, %p165
      %s168 = sadd.s32 %s167, 1
      %p171 = scmp.eq.s32.totalorder %s28, 1
      %p172 = scmp.ne.s32.totalorder %s167, %s169
      %p173 = scmp.eq.s32.totalorder %s28, 0
      %p174 = por %p172, %p173
      %p175 = scmp.ne.s32.totalorder %s167, %s169
      %p176 = scmp.eq.s32.totalorder %s33, 1
      %p177 = por %p175, %p176
      %p178 = scmp.ne.s32.totalorder %s169, %s170
      %p179 = scmp.eq.s32.totalorder %s33, 0
      %p180 = por %p178, %p179
      %p181 = scmp.ne.s32.totalorder %s169, %s170
      %p182 = scmp.eq.s32.totalorder %s34, 1
      %p183 = por %p181, %p182
      %p185 = scmp.ne.s32.totalorder %s170, %s184
      %p186 = scmp.eq.s32.totalorder %s34, 0
      %p187 = por %p185, %p186
      %s189 = sadd.s32 %s188, 1
      %p192 = scmp.eq.s32.totalorder %s28, 1
      %p193 = scmp.ne.s32.totalorder %s188, %s190
      %p194 = scmp.eq.s32.totalorder %s28, 0
      %p195 = por %p193, %p194
      %p196 = scmp.ne.s32.totalorder %s188, %s190
      %p197 = scmp.eq.s32.totalorder %s33, 1
      %p198 = por %p196, %p197
      %p199 = scmp.ne.s32.totalorder %s190, %s191
      %p200 = scmp.eq.s32.totalorder %s33, 0
      %p201 = por %p199, %p200
      %p202 = scmp.ne.s32.totalorder %s190, %s191
      %p203 = scmp.eq.s32.totalorder %s34, 1
      %p204 = por %p202, %p203
      %p206 = scmp.ne.s32.totalorder %s191, %s205
      %p207 = scmp.eq.s32.totalorder %s34, 0
      %p208 = por %p206, %p207
      %s210 = sadd.s32 %s209, 1
      %p213 = scmp.eq.s32.totalorder %s28, 1
      %p214 = scmp.ne.s32.totalorder %s209, %s211
      %p215 = scmp.eq.s32.totalorder %s28, 0
      %p216 = por %p214, %p215
      %p217 = scmp.ne.s32.totalorder %s209, %s211
      %p218 = scmp.eq.s32.totalorder %s33, 1
      %p219 = por %p217, %p218
      %p220 = scmp.ne.s32.totalorder %s211, %s212
      %p221 = scmp.eq.s32.totalorder %s33, 0
      %p222 = por %p220, %p221
      %p223 = scmp.ne.s32.totalorder %s211, %s212
      %p224 = scmp.eq.s32.totalorder %s34, 1
      %p225 = por %p223, %p224
      %p227 = scmp.ne.s32.totalorder %s212, %s226
      %p228 = scmp.eq.s32.totalorder %s34, 0
      %p229 = por %p227, %p228
      %s231 = sadd.s32 %s230, 1
      %p234 = scmp.eq.s32.totalorder %s28, 1
      %p235 = scmp.ne.s32.totalorder %s230, %s232
      %p236 = scmp.eq.s32.totalorder %s28, 0
      %p237 = por %p235, %p236
      %p238 = scmp.ne.s32.totalorder %s230, %s232
      %p239 = scmp.eq.s32.totalorder %s33, 1
      %p240 = por %p238, %p239
      %p241 = scmp.ne.s32.totalorder %s232, %s233
      %p242 = scmp.eq.s32.totalorder %s33, 0
      %p243 = por %p241, %p242
      %p244 = scmp.ne.s32.totalorder %s232, %s233
      %p245 = scmp.eq.s32.totalorder %s34, 1
      %p246 = por %p244, %p245
      %p248 = scmp.ne.s32.totalorder %s233, %s247
      %p249 = scmp.eq.s32.totalorder %s34, 0
      %p250 = por %p248, %p249
      %s252 = sadd.s32 %s251, 1
      %p255 = scmp.eq.s32.totalorder %s28, 1
      %p256 = scmp.ne.s32.totalorder %s251, %s253
      %p257 = scmp.eq.s32.totalorder %s28, 0
      %p258 = por %p256, %p257
      %p259 = scmp.ne.s32.totalorder %s251, %s253
      %p260 = scmp.eq.s32.totalorder %s33, 1
      %p261 = por %p259, %p260
      %p262 = scmp.ne.s32.totalorder %s253, %s254
      %p263 = scmp.eq.s32.totalorder %s33, 0
      %p264 = por %p262, %p263
      %p265 = scmp.ne.s32.totalorder %s253, %s254
      %p266 = scmp.eq.s32.totalorder %s34, 1
      %p267 = por %p265, %p266
      %p269 = scmp.ne.s32.totalorder %s254, %s268
      %p270 = scmp.eq.s32.totalorder %s34, 0
      %p271 = por %p269, %p270
      %s273 = sadd.s32 %s272, 1
      %p276 = scmp.eq.s32.totalorder %s28, 1
      %p277 = scmp.ne.s32.totalorder %s272, %s274
      %p278 = scmp.eq.s32.totalorder %s28, 0
      %p279 = por %p277, %p278
      %p280 = scmp.ne.s32.totalorder %s272, %s274
      %p281 = scmp.eq.s32.totalorder %s33, 1
      %p282 = por %p280, %p281
      %p283 = scmp.ne.s32.totalorder %s274, %s275
      %p284 = scmp.eq.s32.totalorder %s33, 0
      %p285 = por %p283, %p284
      %p286 = scmp.ne.s32.totalorder %s274, %s275
      %p287 = scmp.eq.s32.totalorder %s34, 1
      %p288 = por %p286, %p287
      %p290 = scmp.ne.s32.totalorder %s275, %s289
      %p291 = scmp.eq.s32.totalorder %s34, 0
      %p292 = por %p290, %p291
      %s294 = sadd.s32 %s293, 1
      %p297 = scmp.eq.s32.totalorder %s28, 1
      %p298 = scmp.ne.s32.totalorder %s293, %s295
      %p299 = scmp.eq.s32.totalorder %s28, 0
      %p300 = por %p298, %p299
      %p301 = scmp.ne.s32.totalorder %s293, %s295
      %p302 = scmp.eq.s32.totalorder %s33, 1
      %p303 = por %p301, %p302
      %p304 = scmp.ne.s32.totalorder %s295, %s296
      %p305 = scmp.eq.s32.totalorder %s33, 0
      %p306 = por %p304, %p305
      %p307 = scmp.ne.s32.totalorder %s295, %s296
      %p308 = scmp.eq.s32.totalorder %s34, 1
      %p309 = por %p307, %p308
      %p311 = scmp.ne.s32.totalorder %s296, %s310
      %p312 = scmp.eq.s32.totalorder %s34, 0
      %p313 = por %p311, %p312
      %s315 = sadd.s32 %s314, 1
      %p318 = scmp.eq.s32.totalorder %s28, 1
      %p319 = scmp.ne.s32.totalorder %s314, %s316
      %p320 = scmp.eq.s32.totalorder %s28, 0
      %p321 = por %p319, %p320
      %p322 = scmp.ne.s32.totalorder %s314, %s316
      %p323 = scmp.eq.s32.totalorder %s33, 1
      %p324 = por %p322, %p323
      %p325 = scmp.ne.s32.totalorder %s316, %s317
      %p326 = scmp.eq.s32.totalorder %s33, 0
      %p327 = por %p325, %p326
      %p328 = scmp.ne.s32.totalorder %s316, %s317
      %p329 = scmp.eq.s32.totalorder %s34, 1
      %p330 = por %p328, %p329
      %p332 = scmp.ne.s32.totalorder %s317, %s331
      %p333 = scmp.eq.s32.totalorder %s34, 0
      %p334 = por %p332, %p333
      %s336 = sadd.s32 %s335, 1
      %p339 = scmp.eq.s32.totalorder %s28, 1
      %p340 = scmp.ne.s32.totalorder %s335, %s337
      %p341 = scmp.eq.s32.totalorder %s28, 0
      %p342 = por %p340, %p341
      %p343 = scmp.ne.s32.totalorder %s335, %s337
      %p344 = scmp.eq.s32.totalorder %s33, 1
      %p345 = por %p343, %p344
      %p346 = scmp.ne.s32.totalorder %s337, %s338
      %p347 = scmp.eq.s32.totalorder %s33, 0
      %p348 = por %p346, %p347
      %p349 = scmp.ne.s32.totalorder %s337, %s338
      %p350 = scmp.eq.s32.totalorder %s34, 1
      %p351 = por %p349, %p350
      %p353 = scmp.ne.s32.totalorder %s338, %s352
      %p354 = scmp.eq.s32.totalorder %s34, 0
      %p355 = por %p353, %p354
      %s357 = sadd.s32 %s356, 1
      %p360 = scmp.eq.s32.totalorder %s28, 1
      %p361 = scmp.ne.s32.totalorder %s356, %s358
      %p362 = scmp.eq.s32.totalorder %s28, 0
      %p363 = por %p361, %p362
      %p364 = scmp.ne.s32.totalorder %s356, %s358
      %p365 = scmp.eq.s32.totalorder %s33, 1
      %p366 = por %p364, %p365
      %p367 = scmp.ne.s32.totalorder %s358, %s359
      %p368 = scmp.eq.s32.totalorder %s33, 0
      %p369 = por %p367, %p368
      %p370 = scmp.ne.s32.totalorder %s358, %s359
      %p371 = scmp.eq.s32.totalorder %s34, 1
      %p372 = por %p370, %p371
      %p374 = scmp.ne.s32.totalorder %s359, %s373
      %p375 = scmp.eq.s32.totalorder %s34, 0
      %p376 = por %p374, %p375
      %s378 = sadd.s32 %s377, 1
      %p381 = scmp.eq.s32.totalorder %s28, 1
      %p382 = scmp.ne.s32.totalorder %s377, %s379
      %p383 = scmp.eq.s32.totalorder %s28, 0
      %p384 = por %p382, %p383
      %p385 = scmp.ne.s32.totalorder %s377, %s379
      %p386 = scmp.eq.s32.totalorder %s33, 1
      %p387 = por %p385, %p386
      %p388 = scmp.ne.s32.totalorder %s379, %s380
      %p389 = scmp.eq.s32.totalorder %s33, 0
      %p390 = por %p388, %p389
      %p391 = scmp.ne.s32.totalorder %s379, %s380
      %p392 = scmp.eq.s32.totalorder %s34, 1
      %p393 = por %p391, %p392
      %p395 = scmp.ne.s32.totalorder %s380, %s394
      %p396 = scmp.eq.s32.totalorder %s34, 0
      %p397 = por %p395, %p396
      %s399 = sadd.s32 %s398, 1
      %p402 = scmp.eq.s32.totalorder %s28, 1
      %p403 = scmp.ne.s32.totalorder %s398, %s400
      %p404 = scmp.eq.s32.totalorder %s28, 0
      %p405 = por %p403, %p404
      %p406 = scmp.ne.s32.totalorder %s398, %s400
      %p407 = scmp.eq.s32.totalorder %s33, 1
      %p408 = por %p406, %p407
      %p409 = scmp.ne.s32.totalorder %s400, %s401
      %p410 = scmp.eq.s32.totalorder %s33, 0
      %p411 = por %p409, %p410
      %p412 = scmp.ne.s32.totalorder %s400, %s401
      %p413 = scmp.eq.s32.totalorder %s34, 1
      %p414 = por %p412, %p413
      %p416 = scmp.ne.s32.totalorder %s401, %s415
      %p417 = scmp.eq.s32.totalorder %s34, 0
      %p418 = por %p416, %p417
      %s420 = sadd.s32 %s419, 1
      %p423 = scmp.eq.s32.totalorder %s28, 1
      %p424 = scmp.ne.s32.totalorder %s419, %s421
      %p425 = scmp.eq.s32.totalorder %s28, 0
      %p426 = por %p424, %p425
      %p427 = scmp.ne.s32.totalorder %s419, %s421
      %p428 = scmp.eq.s32.totalorder %s33, 1
      %p429 = por %p427, %p428
      %p430 = scmp.ne.s32.totalorder %s421, %s422
      %p431 = scmp.eq.s32.totalorder %s33, 0
      %p432 = por %p430, %p431
      %p433 = scmp.ne.s32.totalorder %s421, %s422
      %p434 = scmp.eq.s32.totalorder %s34, 1
      %p435 = por %p433, %p434
      %p437 = scmp.ne.s32.totalorder %s422, %s436
      %p438 = scmp.eq.s32.totalorder %s34, 0
      %p439 = por %p437, %p438
      %s440 = ssub.s32 %s28, %s35
      %p441 = scmp.eq.s32.totalorder %s440, 0
      %s443 = sadd.s32 %s442, 1
      %s444 = scalar_select %p441, %s442, %s443
      %p447 = pneg %p441
      %p448 = scmp.eq.s32.totalorder %s28, 1
      %p449 = por %p447, %p448
      %p450 = scmp.ne.s32.totalorder %s442, %s445
      %p451 = scmp.eq.s32.totalorder %s28, 0
      %p452 = por %p450, %p451
      %p453 = scmp.ne.s32.totalorder %s442, %s445
      %p454 = scmp.eq.s32.totalorder %s33, 1
      %p455 = por %p453, %p454
      %p456 = scmp.ne.s32.totalorder %s445, %s446
      %p457 = scmp.eq.s32.totalorder %s33, 0
      %p458 = por %p456, %p457
      %p459 = scmp.ne.s32.totalorder %s445, %s446
      %p460 = scmp.eq.s32.totalorder %s34, 1
      %p461 = por %p459, %p460
      %p463 = scmp.ne.s32.totalorder %s446, %s462
      %p464 = scmp.eq.s32.totalorder %s34, 0
      %p465 = por %p463, %p464
      %p466 = scmp.le.s32.totalorder 1, %s28
      %p467 = scmp.lt.s32.totalorder %s28, 3
      %p468 = pnand %p466, %p467
      %p469 = pneg %p468
      // Predicated region
      $region9: #{ijepa_encoder_forward.1} parent=5 // pred_check
        _
      $region10: #{ijepa_encoder_forward.1} parent=5 // pred_check_branch
        %471 = sbr.rel (%p468) target = $region12
      $region11: #{ijepa_encoder_forward.1} parent=5 // pred_region
        %s472 = ssub.s32 %s28, 1
        // Predicated region
        $region13: #{ijepa_encoder_forward.1} parent=11 // pred_check
          %p473 = pneg %p75
        $region14: #{ijepa_encoder_forward.1} parent=11 // pred_check_branch
          %475 = sbr.rel (%p473) target = $region16
        $region15: #{ijepa_encoder_forward.1} parent=11 // pred_region
          _
        $region16: #{ijepa_encoder_forward.1} parent=11 // pred_fallthru
          _
        // Predicated region
        $region17: #{ijepa_encoder_forward.1} parent=11 // pred_check
          %p476 = pneg %p96
        $region18: #{ijepa_encoder_forward.1} parent=11 // pred_check_branch
          %478 = sbr.rel (%p476) target = $region20
        $region19: #{ijepa_encoder_forward.1} parent=11 // pred_region
          _
        $region20: #{ijepa_encoder_forward.1} parent=11 // pred_fallthru
          _
        // Predicated region
        $region21: #{ijepa_encoder_forward.1} parent=11 // pred_check
          %p479 = pneg %p117
        $region22: #{ijepa_encoder_forward.1} parent=11 // pred_check_branch
          %481 = sbr.rel (%p479) target = $region24
        $region23: #{ijepa_encoder_forward.1} parent=11 // pred_region
          _
        $region24: #{ijepa_encoder_forward.1} parent=11 // pred_fallthru
          _
        // Predicated region
        $region25: #{ijepa_encoder_forward.1} parent=11 // pred_check
          %p482 = pneg %p138
        $region26: #{ijepa_encoder_forward.1} parent=11 // pred_check_branch
          %484 = sbr.rel (%p482) target = $region28
        $region27: #{ijepa_encoder_forward.1} parent=11 // pred_region
          _
        $region28: #{ijepa_encoder_forward.1} parent=11 // pred_fallthru
          _
        // Predicated region
        $region29: #{ijepa_encoder_forward.1} parent=11 // pred_check
          %p485 = pneg %p159
        $region30: #{ijepa_encoder_forward.1} parent=11 // pred_check_branch
          %487 = sbr.rel (%p485) target = $region32
        $region31: #{ijepa_encoder_forward.1} parent=11 // pred_region
          _
        $region32: #{ijepa_encoder_forward.1} parent=11 // pred_fallthru
          _
        // Predicated region
        $region33: #{ijepa_encoder_forward.1} parent=11 // pred_check
          %p488 = pneg %p180
        $region34: #{ijepa_encoder_forward.1} parent=11 // pred_check_branch
          %490 = sbr.rel (%p488) target = $region36
        $region35: #{ijepa_encoder_forward.1} parent=11 // pred_region
          _
        $region36: #{ijepa_encoder_forward.1} parent=11 // pred_fallthru
          _
        // Predicated region
        $region37: #{ijepa_encoder_forward.1} parent=11 // pred_check
          %p491 = pneg %p201
        $region38: #{ijepa_encoder_forward.1} parent=11 // pred_check_branch
          %493 = sbr.rel (%p491) target = $region40
        $region39: #{ijepa_encoder_forward.1} parent=11 // pred_region
          _
        $region40: #{ijepa_encoder_forward.1} parent=11 // pred_fallthru
          _
        // Predicated region
        $region41: #{ijepa_encoder_forward.1} parent=11 // pred_check
          %p494 = pneg %p222
        $region42: #{ijepa_encoder_forward.1} parent=11 // pred_check_branch
          %496 = sbr.rel (%p494) target = $region44
        $region43: #{ijepa_encoder_forward.1} parent=11 // pred_region
          _
        $region44: #{ijepa_encoder_forward.1} parent=11 // pred_fallthru
          _
        // Predicated region
        $region45: #{ijepa_encoder_forward.1} parent=11 // pred_check
          %p497 = pneg %p243
        $region46: #{ijepa_encoder_forward.1} parent=11 // pred_check_branch
          %499 = sbr.rel (%p497) target = $region48
        $region47: #{ijepa_encoder_forward.1} parent=11 // pred_region
          _
        $region48: #{ijepa_encoder_forward.1} parent=11 // pred_fallthru
          _
        // Predicated region
        $region49: #{ijepa_encoder_forward.1} parent=11 // pred_check
          %p500 = pneg %p264
        $region50: #{ijepa_encoder_forward.1} parent=11 // pred_check_branch
          %502 = sbr.rel (%p500) target = $region52
        $region51: #{ijepa_encoder_forward.1} parent=11 // pred_region
          _
        $region52: #{ijepa_encoder_forward.1} parent=11 // pred_fallthru
          _
        // Predicated region
        $region53: #{ijepa_encoder_forward.1} parent=11 // pred_check
          %p503 = pneg %p285
        $region54: #{ijepa_encoder_forward.1} parent=11 // pred_check_branch
          %505 = sbr.rel (%p503) target = $region56
        $region55: #{ijepa_encoder_forward.1} parent=11 // pred_region
          _
        $region56: #{ijepa_encoder_forward.1} parent=11 // pred_fallthru
          _
        // Predicated region
        $region57: #{ijepa_encoder_forward.1} parent=11 // pred_check
          %p506 = pneg %p306
        $region58: #{ijepa_encoder_forward.1} parent=11 // pred_check_branch
          %508 = sbr.rel (%p506) target = $region60
        $region59: #{ijepa_encoder_forward.1} parent=11 // pred_region
          _
        $region60: #{ijepa_encoder_forward.1} parent=11 // pred_fallthru
          _
        // Predicated region
        $region61: #{ijepa_encoder_forward.1} parent=11 // pred_check
          %p509 = pneg %p327
        $region62: #{ijepa_encoder_forward.1} parent=11 // pred_check_branch
          %511 = sbr.rel (%p509) target = $region64
        $region63: #{ijepa_encoder_forward.1} parent=11 // pred_region
          _
        $region64: #{ijepa_encoder_forward.1} parent=11 // pred_fallthru
          _
        // Predicated region
        $region65: #{ijepa_encoder_forward.1} parent=11 // pred_check
          %p512 = pneg %p348
        $region66: #{ijepa_encoder_forward.1} parent=11 // pred_check_branch
          %514 = sbr.rel (%p512) target = $region68
        $region67: #{ijepa_encoder_forward.1} parent=11 // pred_region
          _
        $region68: #{ijepa_encoder_forward.1} parent=11 // pred_fallthru
          _
        // Predicated region
        $region69: #{ijepa_encoder_forward.1} parent=11 // pred_check
          %p515 = pneg %p369
        $region70: #{ijepa_encoder_forward.1} parent=11 // pred_check_branch
          %517 = sbr.rel (%p515) target = $region72
        $region71: #{ijepa_encoder_forward.1} parent=11 // pred_region
          _
        $region72: #{ijepa_encoder_forward.1} parent=11 // pred_fallthru
          _
        // Predicated region
        $region73: #{ijepa_encoder_forward.1} parent=11 // pred_check
          %p518 = pneg %p390
        $region74: #{ijepa_encoder_forward.1} parent=11 // pred_check_branch
          %520 = sbr.rel (%p518) target = $region76
        $region75: #{ijepa_encoder_forward.1} parent=11 // pred_region
          _
        $region76: #{ijepa_encoder_forward.1} parent=11 // pred_fallthru
          _
        // Predicated region
        $region77: #{ijepa_encoder_forward.1} parent=11 // pred_check
          %p521 = pneg %p411
        $region78: #{ijepa_encoder_forward.1} parent=11 // pred_check_branch
          %523 = sbr.rel (%p521) target = $region80
        $region79: #{ijepa_encoder_forward.1} parent=11 // pred_region
          _
        $region80: #{ijepa_encoder_forward.1} parent=11 // pred_fallthru
          _
        // Predicated region
        $region81: #{ijepa_encoder_forward.1} parent=11 // pred_check
          %p524 = pneg %p432
        $region82: #{ijepa_encoder_forward.1} parent=11 // pred_check_branch
          %526 = sbr.rel (%p524) target = $region84
        $region83: #{ijepa_encoder_forward.1} parent=11 // pred_region
          _
        $region84: #{ijepa_encoder_forward.1} parent=11 // pred_fallthru
          _
      $region12: #{ijepa_encoder_forward.1} parent=5 // pred_fallthru
        _
      %p527 = scmp.lt.s32.totalorder %s28, 2
      // Predicated region
      $region85: #{ijepa_encoder_forward.1} parent=5 // pred_check
        %p528 = pneg %p527
      $region86: #{ijepa_encoder_forward.1} parent=5 // pred_check_branch
        %530 = sbr.rel (%p528) target = $region88
      $region87: #{ijepa_encoder_forward.1} parent=5 // pred_region
        // Predicated region
        $region89: #{ijepa_encoder_forward.1} parent=87 // pred_check
          %p531 = pneg %p48
        $region90: #{ijepa_encoder_forward.1} parent=87 // pred_check_branch
          %533 = sbr.rel (%p531) target = $region92
        $region91: #{ijepa_encoder_forward.1} parent=87 // pred_region
          %s534 = smul.u32 16, %s28
          %p535 = scmp.lt.s32.totalorder %s534, 31
          %s536 = scalar_select %p535, %s534, 31
          %s537 = smul.addr %s536, 5
          %s538 = smul.addr %s537, 4
          %s539 = scalar_lea.vmem %s0, %s538
          %s540 = smul.u32 16, %s28
        $region92: #{ijepa_encoder_forward.1} parent=87 // pred_fallthru
          _
      $region88: #{ijepa_encoder_forward.1} parent=5 // pred_fallthru
        _
      %p541 = scmp.le.s32.totalorder 1, %s28
      %p542 = scmp.lt.s32.totalorder %s28, 3
      %p543 = pnand %p541, %p542
      %p544 = pneg %p543
      // Predicated region
      $region93: #{ijepa_encoder_forward.1} parent=5 // pred_check
        _
      $region94: #{ijepa_encoder_forward.1} parent=5 // pred_check_branch
        %546 = sbr.rel (%p543) target = $region96
      $region95: #{ijepa_encoder_forward.1} parent=5 // pred_region
        %s547 = ssub.s32 %s28, 1
        %s548 = smul.u32 16, %s33
        %p549 = scmp.lt.s32.totalorder %s548, 31
        %s550 = scalar_select %p549, %s548, 31
        %s551 = smul.addr %s550, 5
        %s552 = smul.addr %s551, 4
        %s553 = scalar_lea.vmem %s0, %s552
        %p554 = pneg %p54
        %p555 = pneg %p51
        %p556 = pneg %p75
        %p557 = pneg %p72
        %p558 = pneg %p96
        %p559 = pneg %p93
        %p560 = pneg %p117
        %p561 = pneg %p114
        %p562 = pneg %p138
        %p563 = pneg %p135
        %p564 = pneg %p159
        %p565 = pneg %p156
        %p566 = pneg %p180
        %p567 = pneg %p177
        %p568 = pneg %p201
        %p569 = pneg %p198
        %p570 = pneg %p222
        %p571 = pneg %p219
        %p572 = pneg %p243
        %p573 = pneg %p240
        %p574 = pneg %p264
        %p575 = pneg %p261
        %p576 = pneg %p285
        %p577 = pneg %p282
        %p578 = pneg %p306
        %p579 = pneg %p303
        %p580 = pneg %p327
        %p581 = pneg %p324
        %p582 = pneg %p348
        %p583 = pneg %p345
        %p584 = pneg %p369
        %p585 = pneg %p366
        %p586 = pneg %p390
        %p587 = pneg %p387
        %p588 = pneg %p411
        %p589 = pneg %p408
        %p590 = pneg %p432
        %p591 = pneg %p429
        %p592 = pneg %p458
        %p593 = pneg %p455
        %s594 = sand.u32 %s445, 1
        %s595 = scalar_lea.sflag [#allocation3], %s594
        %s596 = sand.u32 %s445, 1
        %s597 = smul.addr %s596, 128
        %s598 = scalar_lea.vmem [#allocation2], %s597
        %s599 = smul.u32 16, %s33
        %p600 = scmp.lt.s32.totalorder %s599, 31
        %s601 = scalar_select %p600, %s599, 31
        %s602 = smul.addr %s601, 5
        %s603 = smul.addr %s602, 4
        %s604 = scalar_lea.vmem %s0, %s603
        %s605 = smul.u32 16, %s33
        %s606 = smul.u32 16, %s33
        %v608 = vld [vmem:[%s604] sm:$0xff]
        %v609 = vld [vmem:[%s604 + $0x8] sm:$0xff]
        %v610 = vld [vmem:[%s604 + $0x10] sm:$0xf]
        %v611 = vld [vmem:[%s604 + $0x14] sm:$0xff]
        %v612 = vld [vmem:[%s604 + $0x1c] sm:$0xff]
        %v613 = vld [vmem:[%s604 + $0x24] sm:$0xf]
        %v614 = vld [vmem:[%s604 + $0x28] sm:$0xff]
        %v615 = vld [vmem:[%s604 + $0x30] sm:$0xff]
        %v616 = vld [vmem:[%s604 + $0x38] sm:$0xf]
        %v617 = vld [vmem:[%s604 + $0x3c] sm:$0xff]
        %v618 = vld [vmem:[%s604 + $0x44] sm:$0xff]
        %v619 = vld [vmem:[%s604 + $0x4c] sm:$0xf]
        %v620 = vld [vmem:[%s604 + $0x50] sm:$0xff]
        %v621 = vld [vmem:[%s604 + $0x58] sm:$0xff]
        %v622 = vld [vmem:[%s604 + $0x60] sm:$0xf]
        %v623 = vld [vmem:[%s604 + $0x64] sm:$0xff]
        %v624 = vld [vmem:[%s604 + $0x6c] sm:$0xff]
        %v625 = vld [vmem:[%s604 + $0x74] sm:$0xf]
        %v626 = vld [vmem:[%s604 + $0x78] sm:$0xff]
        %v627 = vld [vmem:[%s604 + $0x80] sm:$0xff]
        %v628 = vld [vmem:[%s604 + $0x88] sm:$0xf]
        %v629 = vld [vmem:[%s604 + $0x8c] sm:$0xff]
        %v630 = vld [vmem:[%s604 + $0x94] sm:$0xff]
        %v631 = vld [vmem:[%s604 + $0x9c] sm:$0xf]
        %v632 = vld [vmem:[%s604 + $0xa0] sm:$0xff]
        %v633 = vld [vmem:[%s604 + $0xa8] sm:$0xff]
        %v634 = vld [vmem:[%s604 + $0xb0] sm:$0xf]
        %v635 = vld [vmem:[%s604 + $0xb4] sm:$0xff]
        %v636 = vld [vmem:[%s604 + $0xbc] sm:$0xff]
        %v637 = vld [vmem:[%s604 + $0xc4] sm:$0xf]
        %v638 = vld [vmem:[%s604 + $0xc8] sm:$0xff]
        %v639 = vld [vmem:[%s604 + $0xd0] sm:$0xff]
        %v640 = vld [vmem:[%s604 + $0xd8] sm:$0xf]
        %v641 = vld [vmem:[%s604 + $0xdc] sm:$0xff]
        %v642 = vld [vmem:[%s604 + $0xe4] sm:$0xff]
        %v643 = vld [vmem:[%s604 + $0xec] sm:$0xf]
        %v644 = vld [vmem:[%s604 + $0xf0] sm:$0xff]
        %v645 = vld [vmem:[%s604 + $0xf8] sm:$0xff]
        %v646 = vld [vmem:[%s604 + $0x100] sm:$0xf]
        %v647 = vld [vmem:[%s604 + $0x104] sm:$0xff]
        %v648 = vld [vmem:[%s604 + $0x10c] sm:$0xff]
        %v649 = vld [vmem:[%s604 + $0x114] sm:$0xf]
        %v650 = vld [vmem:[%s604 + $0x118] sm:$0xff]
        %v651 = vld [vmem:[%s604 + $0x120] sm:$0xff]
        %v652 = vld [vmem:[%s604 + $0x128] sm:$0xf]
        %v653 = vld [vmem:[%s604 + $0x12c] sm:$0xff]
        %v654 = vld [vmem:[%s604 + $0x134] sm:$0xff]
        %v655 = vld [vmem:[%s604 + $0x13c] sm:$0xf]
        %v656 = vld [vmem:[%s1] sm:$0xf]
        %v657 = vld [vmem:[%s1 + $0x4] sm:$0xf]
        %v658 = vld [vmem:[%s1 + $0x8] sm:$0xf]
        %v659 = vld [vmem:[%s1 + $0xc] sm:$0xf]
        %v660 = vld [vmem:[%s1 + $0x10] sm:$0xf]
        %v661 = vld [vmem:[%s1 + $0x14] sm:$0xf]
        %v662 = vld [vmem:[%s1 + $0x18] sm:$0xf]
        %v663 = vld [vmem:[%s1 + $0x1c] sm:$0xf]
        %v664 = vld [vmem:[%s1 + $0x20] sm:$0xf]
        %v665 = vld [vmem:[%s1 + $0x24] sm:$0xf]
        %v666 = vld [vmem:[%s1 + $0x28] sm:$0xf]
        %v667 = vld [vmem:[%s1 + $0x2c] sm:$0xf]
        %v668 = vld [vmem:[%s1 + $0x30] sm:$0xf]
        %v669 = vld [vmem:[%s1 + $0x34] sm:$0xf]
        %v670 = vld [vmem:[%s1 + $0x38] sm:$0xf]
        %v671 = vld [vmem:[%s1 + $0x3c] sm:$0xf]
        %v672 = vld [vmem:[%s1 + $0x40] sm:$0xf]
        %v673 = vld [vmem:[%s1 + $0x44] sm:$0xf]
        %v674 = vld [vmem:[%s1 + $0x48] sm:$0xf]
        %v675 = vld [vmem:[%s1 + $0x4c] sm:$0xf]
        %v676 = vld [vmem:[%s1 + $0x50] sm:$0xf]
        %v677 = vld [vmem:[%s1 + $0x54] sm:$0xf]
        %v678 = vld [vmem:[%s1 + $0x58] sm:$0xf]
        %v679 = vld [vmem:[%s1 + $0x5c] sm:$0xf]
        %v680 = vld [vmem:[%s1 + $0x60] sm:$0xf]
        %v681 = vld [vmem:[%s1 + $0x64] sm:$0xf]
        %v682 = vld [vmem:[%s1 + $0x68] sm:$0xf]
        %v683 = vld [vmem:[%s1 + $0x6c] sm:$0xf]
        %v684 = vld [vmem:[%s1 + $0x70] sm:$0xf]
        %v685 = vld [vmem:[%s1 + $0x74] sm:$0xf]
        %v686 = vld [vmem:[%s1 + $0x78] sm:$0xf]
        %v687 = vld [vmem:[%s1 + $0x7c] sm:$0xf]
        %v688 = vld [vmem:[%s1 + $0x80] sm:$0xf]
        %v689 = vld [vmem:[%s1 + $0x84] sm:$0xf]
        %v690 = vld [vmem:[%s1 + $0x88] sm:$0xf]
        %v691 = vld [vmem:[%s1 + $0x8c] sm:$0xf]
        %v692 = vld [vmem:[%s1 + $0x90] sm:$0xf]
        %v693 = vld [vmem:[%s1 + $0x94] sm:$0xf]
        %v694 = vld [vmem:[%s1 + $0x98] sm:$0xf]
        %v695 = vld [vmem:[%s1 + $0x9c] sm:$0xf]
        %v696 = vld [vmem:[%s1 + $0xa0] sm:$0xf]
        %v697 = vld [vmem:[%s1 + $0xa4] sm:$0xf]
        %v698 = vld [vmem:[%s1 + $0xa8] sm:$0xf]
        %v699 = vld [vmem:[%s1 + $0xac] sm:$0xf]
        %v700 = vld [vmem:[%s1 + $0xb0] sm:$0xf]
        %v701 = vld [vmem:[%s1 + $0xb4] sm:$0xf]
        %v702 = vld [vmem:[%s1 + $0xb8] sm:$0xf]
        %v703 = vld [vmem:[%s1 + $0xbc] sm:$0xf]
        %v704 = vld [vmem:[%s1 + $0xc0] sm:$0xf]
        %v705 = vld [vmem:[%s1 + $0xc4] sm:$0xf]
        %v706 = vld [vmem:[%s1 + $0xc8] sm:$0xf]
        %v707 = vld [vmem:[%s1 + $0xcc] sm:$0xf]
        %v708 = vld [vmem:[%s1 + $0xd0] sm:$0xf]
        %v709 = vld [vmem:[%s1 + $0xd4] sm:$0xf]
        %v710 = vld [vmem:[%s1 + $0xd8] sm:$0xf]
        %v711 = vld [vmem:[%s1 + $0xdc] sm:$0xf]
        %v712 = vld [vmem:[%s1 + $0xe0] sm:$0xf]
        %v713 = vld [vmem:[%s1 + $0xe4] sm:$0xf]
        %v714 = vld [vmem:[%s1 + $0xe8] sm:$0xf]
        %v715 = vld [vmem:[%s1 + $0xec] sm:$0xf]
        %v716 = vld [vmem:[%s1 + $0xf0] sm:$0xf]
        %v717 = vld [vmem:[%s1 + $0xf4] sm:$0xf]
        %v718 = vld [vmem:[%s1 + $0xf8] sm:$0xf]
        %v719 = vld [vmem:[%s1 + $0xfc] sm:$0xf]
        %v720 = vld [vmem:[%s1 + $0x100] sm:$0xf]
        %v721 = vld [vmem:[%s1 + $0x104] sm:$0xf]
        %v722 = vld [vmem:[%s1 + $0x108] sm:$0xf]
        %v723 = vld [vmem:[%s1 + $0x10c] sm:$0xf]
        %v724 = vld [vmem:[%s1 + $0x110] sm:$0xf]
        %v725 = vld [vmem:[%s1 + $0x114] sm:$0xf]
        %v726 = vld [vmem:[%s1 + $0x118] sm:$0xf]
        %v727 = vld [vmem:[%s1 + $0x11c] sm:$0xf]
        %v728 = vld [vmem:[%s1 + $0x120] sm:$0xf]
        %v729 = vld [vmem:[%s1 + $0x124] sm:$0xf]
        %v730 = vld [vmem:[%s1 + $0x128] sm:$0xf]
        %v731 = vld [vmem:[%s1 + $0x12c] sm:$0xf]
        %v732 = vld [vmem:[%s1 + $0x130] sm:$0xf]
        %v733 = vld [vmem:[%s1 + $0x134] sm:$0xf]
        %v734 = vld [vmem:[%s1 + $0x138] sm:$0xf]
        %v735 = vld [vmem:[%s1 + $0x13c] sm:$0xf]
        %v736 = vld [vmem:[%s2] sm:$0x1]
        %v738 = vlaneseq
        %v739 = vshrl.u32 %v738, 7
        %v740 = vsub.s32 0, %v739
        %v741 = vrot.slane %v736, %v740
        %v791 = vunpack.c.l.b16 %v608
        %v792 = vunpack.c.h.b16 %v608
        %v793 = vunpack.c.l.b16 %v609
        %v794 = vunpack.c.h.b16 %v609
        %v795 = vunpack.c.l.b16 %v610
        %v796 = vunpack.c.l.b16 %v611
        %v797 = vunpack.c.h.b16 %v611
        %v798 = vunpack.c.l.b16 %v612
        %v799 = vunpack.c.h.b16 %v612
        %v800 = vunpack.c.l.b16 %v613
        %v801 = vunpack.c.l.b16 %v614
        %v802 = vunpack.c.h.b16 %v614
        %v803 = vunpack.c.l.b16 %v615
        %v804 = vunpack.c.h.b16 %v615
        %v805 = vunpack.c.l.b16 %v616
        %v806 = vunpack.c.l.b16 %v617
        %v807 = vunpack.c.h.b16 %v617
        %v808 = vunpack.c.l.b16 %v618
        %v809 = vunpack.c.h.b16 %v618
        %v810 = vunpack.c.l.b16 %v619
        %v811 = vunpack.c.l.b16 %v620
        %v812 = vunpack.c.h.b16 %v620
        %v813 = vunpack.c.l.b16 %v621
        %v814 = vunpack.c.h.b16 %v621
        %v815 = vunpack.c.l.b16 %v622
        %v816 = vunpack.c.l.b16 %v623
        %v817 = vunpack.c.h.b16 %v623
        %v818 = vunpack.c.l.b16 %v624
        %v819 = vunpack.c.h.b16 %v624
        %v820 = vunpack.c.l.b16 %v625
        %v821 = vunpack.c.l.b16 %v626
        %v822 = vunpack.c.h.b16 %v626
        %v823 = vunpack.c.l.b16 %v627
        %v824 = vunpack.c.h.b16 %v627
        %v825 = vunpack.c.l.b16 %v628
        %v826 = vunpack.c.l.b16 %v629
        %v827 = vunpack.c.h.b16 %v629
        %v828 = vunpack.c.l.b16 %v630
        %v829 = vunpack.c.h.b16 %v630
        %v830 = vunpack.c.l.b16 %v631
        %v831 = vunpack.c.l.b16 %v632
        %v832 = vunpack.c.h.b16 %v632
        %v833 = vunpack.c.l.b16 %v633
        %v834 = vunpack.c.h.b16 %v633
        %v835 = vunpack.c.l.b16 %v634
        %v836 = vunpack.c.l.b16 %v635
        %v837 = vunpack.c.h.b16 %v635
        %v838 = vunpack.c.l.b16 %v636
        %v839 = vunpack.c.h.b16 %v636
        %v840 = vunpack.c.l.b16 %v637
        %v841 = vunpack.c.l.b16 %v638
        %v842 = vunpack.c.h.b16 %v638
        %v843 = vunpack.c.l.b16 %v639
        %v844 = vunpack.c.h.b16 %v639
        %v845 = vunpack.c.l.b16 %v640
        %v846 = vunpack.c.l.b16 %v641
        %v847 = vunpack.c.h.b16 %v641
        %v848 = vunpack.c.l.b16 %v642
        %v849 = vunpack.c.h.b16 %v642
        %v850 = vunpack.c.l.b16 %v643
        %v851 = vunpack.c.l.b16 %v644
        %v852 = vunpack.c.h.b16 %v644
        %v853 = vunpack.c.l.b16 %v645
        %v854 = vunpack.c.h.b16 %v645
        %v855 = vunpack.c.l.b16 %v646
        %v856 = vunpack.c.l.b16 %v647
        %v857 = vunpack.c.h.b16 %v647
        %v858 = vunpack.c.l.b16 %v648
        %v859 = vunpack.c.h.b16 %v648
        %v860 = vunpack.c.l.b16 %v649
        %v861 = vunpack.c.l.b16 %v650
        %v862 = vunpack.c.h.b16 %v650
        %v863 = vunpack.c.l.b16 %v651
        %v864 = vunpack.c.h.b16 %v651
        %v865 = vunpack.c.l.b16 %v652
        %v866 = vunpack.c.l.b16 %v653
        %v867 = vunpack.c.h.b16 %v653
        %v868 = vunpack.c.l.b16 %v654
        %v869 = vunpack.c.h.b16 %v654
        %v870 = vunpack.c.l.b16 %v655
        %v871 = vpack.c.b16 %v796, %v791
        %v872 = vpack.c.b16 %v797, %v792
        %v873 = vpack.c.b16 %v798, %v793
        %v874 = vpack.c.b16 %v799, %v794
        %v875 = vpack.c.b16 %v800, %v795
        %v876 = vpack.c.b16 %v806, %v801
        %v877 = vpack.c.b16 %v807, %v802
        %v878 = vpack.c.b16 %v808, %v803
        %v879 = vpack.c.b16 %v809, %v804
        %v880 = vpack.c.b16 %v810, %v805
        %v881 = vpack.c.b16 %v816, %v811
        %v882 = vpack.c.b16 %v817, %v812
        %v883 = vpack.c.b16 %v818, %v813
        %v884 = vpack.c.b16 %v819, %v814
        %v885 = vpack.c.b16 %v820, %v815
        %v886 = vpack.c.b16 %v826, %v821
        %v887 = vpack.c.b16 %v827, %v822
        %v888 = vpack.c.b16 %v828, %v823
        %v889 = vpack.c.b16 %v829, %v824
        %v890 = vpack.c.b16 %v830, %v825
        %v891 = vpack.c.b16 %v836, %v831
        %v892 = vpack.c.b16 %v837, %v832
        %v893 = vpack.c.b16 %v838, %v833
        %v894 = vpack.c.b16 %v839, %v834
        %v895 = vpack.c.b16 %v840, %v835
        %v896 = vpack.c.b16 %v846, %v841
        %v897 = vpack.c.b16 %v847, %v842
        %v898 = vpack.c.b16 %v848, %v843
        %v899 = vpack.c.b16 %v849, %v844
        %v900 = vpack.c.b16 %v850, %v845
        %v901 = vpack.c.b16 %v856, %v851
        %v902 = vpack.c.b16 %v857, %v852
        %v903 = vpack.c.b16 %v858, %v853
        %v904 = vpack.c.b16 %v859, %v854
        %v905 = vpack.c.b16 %v860, %v855
        %v906 = vpack.c.b16 %v866, %v861
        %v907 = vpack.c.b16 %v867, %v862
        %v908 = vpack.c.b16 %v868, %v863
        %v909 = vpack.c.b16 %v869, %v864
        %v910 = vpack.c.b16 %v870, %v865
        %v1031 = vunpack.c.l.b16 %v656
        %v1032 = vunpack.c.l.b16 %v657
        %v1033 = vunpack.c.l.b16 %v658
        %v1034 = vunpack.c.l.b16 %v659
        %v1035 = vunpack.c.l.b16 %v660
        %v1036 = vunpack.c.l.b16 %v661
        %v1037 = vunpack.c.l.b16 %v662
        %v1038 = vunpack.c.l.b16 %v663
        %v1039 = vunpack.c.l.b16 %v664
        %v1040 = vunpack.c.l.b16 %v665
        %v1041 = vunpack.c.l.b16 %v666
        %v1042 = vunpack.c.l.b16 %v667
        %v1043 = vunpack.c.l.b16 %v668
        %v1044 = vunpack.c.l.b16 %v669
        %v1045 = vunpack.c.l.b16 %v670
        %v1046 = vunpack.c.l.b16 %v671
        %v1047 = vunpack.c.l.b16 %v672
        %v1048 = vunpack.c.l.b16 %v673
        %v1049 = vunpack.c.l.b16 %v674
        %v1050 = vunpack.c.l.b16 %v675
        %v1051 = vunpack.c.l.b16 %v676
        %v1052 = vunpack.c.l.b16 %v677
        %v1053 = vunpack.c.l.b16 %v678
        %v1054 = vunpack.c.l.b16 %v679
        %v1055 = vunpack.c.l.b16 %v680
        %v1056 = vunpack.c.l.b16 %v681
        %v1057 = vunpack.c.l.b16 %v682
        %v1058 = vunpack.c.l.b16 %v683
        %v1059 = vunpack.c.l.b16 %v684
        %v1060 = vunpack.c.l.b16 %v685
        %v1061 = vunpack.c.l.b16 %v686
        %v1062 = vunpack.c.l.b16 %v687
        %v1063 = vunpack.c.l.b16 %v688
        %v1064 = vunpack.c.l.b16 %v689
        %v1065 = vunpack.c.l.b16 %v690
        %v1066 = vunpack.c.l.b16 %v691
        %v1067 = vunpack.c.l.b16 %v692
        %v1068 = vunpack.c.l.b16 %v693
        %v1069 = vunpack.c.l.b16 %v694
        %v1070 = vunpack.c.l.b16 %v695
        %v1071 = vunpack.c.l.b16 %v696
        %v1072 = vunpack.c.l.b16 %v697
        %v1073 = vunpack.c.l.b16 %v698
        %v1074 = vunpack.c.l.b16 %v699
        %v1075 = vunpack.c.l.b16 %v700
        %v1076 = vunpack.c.l.b16 %v701
        %v1077 = vunpack.c.l.b16 %v702
        %v1078 = vunpack.c.l.b16 %v703
        %v1079 = vunpack.c.l.b16 %v704
        %v1080 = vunpack.c.l.b16 %v705
        %v1081 = vunpack.c.l.b16 %v706
        %v1082 = vunpack.c.l.b16 %v707
        %v1083 = vunpack.c.l.b16 %v708
        %v1084 = vunpack.c.l.b16 %v709
        %v1085 = vunpack.c.l.b16 %v710
        %v1086 = vunpack.c.l.b16 %v711
        %v1087 = vunpack.c.l.b16 %v712
        %v1088 = vunpack.c.l.b16 %v713
        %v1089 = vunpack.c.l.b16 %v714
        %v1090 = vunpack.c.l.b16 %v715
        %v1091 = vunpack.c.l.b16 %v716
        %v1092 = vunpack.c.l.b16 %v717
        %v1093 = vunpack.c.l.b16 %v718
        %v1094 = vunpack.c.l.b16 %v719
        %v1095 = vunpack.c.l.b16 %v720
        %v1096 = vunpack.c.l.b16 %v721
        %v1097 = vunpack.c.l.b16 %v722
        %v1098 = vunpack.c.l.b16 %v723
        %v1099 = vunpack.c.l.b16 %v724
        %v1100 = vunpack.c.l.b16 %v725
        %v1101 = vunpack.c.l.b16 %v726
        %v1102 = vunpack.c.l.b16 %v727
        %v1103 = vunpack.c.l.b16 %v728
        %v1104 = vunpack.c.l.b16 %v729
        %v1105 = vunpack.c.l.b16 %v730
        %v1106 = vunpack.c.l.b16 %v731
        %v1107 = vunpack.c.l.b16 %v732
        %v1108 = vunpack.c.l.b16 %v733
        %v1109 = vunpack.c.l.b16 %v734
        %v1110 = vunpack.c.l.b16 %v735
        %v1111 = vpack.c.b16 %v1032, %v1031
        %v1112 = vpack.c.b16 %v1034, %v1033
        %v1113 = vpack.c.b16 %v1036, %v1035
        %v1114 = vpack.c.b16 %v1038, %v1037
        %v1115 = vpack.c.b16 %v1040, %v1039
        %v1116 = vpack.c.b16 %v1042, %v1041
        %v1117 = vpack.c.b16 %v1044, %v1043
        %v1118 = vpack.c.b16 %v1046, %v1045
        %v1119 = vpack.c.b16 %v1048, %v1047
        %v1120 = vpack.c.b16 %v1050, %v1049
        %v1121 = vpack.c.b16 %v1052, %v1051
        %v1122 = vpack.c.b16 %v1054, %v1053
        %v1123 = vpack.c.b16 %v1056, %v1055
        %v1124 = vpack.c.b16 %v1058, %v1057
        %v1125 = vpack.c.b16 %v1060, %v1059
        %v1126 = vpack.c.b16 %v1062, %v1061
        %v1127 = vpack.c.b16 %v1064, %v1063
        %v1128 = vpack.c.b16 %v1066, %v1065
        %v1129 = vpack.c.b16 %v1068, %v1067
        %v1130 = vpack.c.b16 %v1070, %v1069
        %v1131 = vpack.c.b16 %v1072, %v1071
        %v1132 = vpack.c.b16 %v1074, %v1073
        %v1133 = vpack.c.b16 %v1076, %v1075
        %v1134 = vpack.c.b16 %v1078, %v1077
        %v1135 = vpack.c.b16 %v1080, %v1079
        %v1136 = vpack.c.b16 %v1082, %v1081
        %v1137 = vpack.c.b16 %v1084, %v1083
        %v1138 = vpack.c.b16 %v1086, %v1085
        %v1139 = vpack.c.b16 %v1088, %v1087
        %v1140 = vpack.c.b16 %v1090, %v1089
        %v1141 = vpack.c.b16 %v1092, %v1091
        %v1142 = vpack.c.b16 %v1094, %v1093
        %v1143 = vpack.c.b16 %v1096, %v1095
        %v1144 = vpack.c.b16 %v1098, %v1097
        %v1145 = vpack.c.b16 %v1100, %v1099
        %v1146 = vpack.c.b16 %v1102, %v1101
        %v1147 = vpack.c.b16 %v1104, %v1103
        %v1148 = vpack.c.b16 %v1106, %v1105
        %v1149 = vpack.c.b16 %v1108, %v1107
        %v1150 = vpack.c.b16 %v1110, %v1109
        %1191 = vmatprep.subr.bf16.mxu0 0
        %1192 = vmatpush1.bf16.msra.mxu0 %v1111
        %1193 = vmatprep.subr.bf16.mxu0 0
        %1194 = vmatpush1.bf16.msra.mxu0 %v1112
        %1195 = vmatprep.subr.bf16.mxu0 0
        %1196 = vmatpush1.bf16.msra.mxu0 %v1113
        %1197 = vmatprep.subr.bf16.mxu0 0
        %1198 = vmatpush1.bf16.msra.mxu0 %v1114
        %1199 = vmatprep.subr.bf16.mxu0 0
        %1200 = vmatpush1.bf16.msra.mxu0 %v1115
        %1201 = vmatprep.subr.bf16.mxu0 0
        %1202 = vmatpush1.bf16.msra.mxu0 %v1116
        %1203 = vmatprep.subr.bf16.mxu0 0
        %1204 = vmatpush1.bf16.msra.mxu0 %v1117
        %1205 = vmatprep.subr.bf16.mxu0 0
        %1206 = vmatpush1.bf16.msra.mxu0 %v1118
        %1207 = vmatprep.subr.bf16.mxu0 0
        %1208 = vmatpush1.bf16.msra.mxu0 %v1119
        %1209 = vmatprep.subr.bf16.mxu0 0
        %1210 = vmatpush1.bf16.msra.mxu0 %v1120
        %1211 = vmatprep.subr.bf16.mxu0 0
        %1212 = vmatpush1.bf16.msra.mxu0 %v1121
        %1213 = vmatprep.subr.bf16.mxu0 0
        %1214 = vmatpush1.bf16.msra.mxu0 %v1122
        %1215 = vmatprep.subr.bf16.mxu0 0
        %1216 = vmatpush1.bf16.msra.mxu0 %v1123
        %1217 = vmatprep.subr.bf16.mxu0 0
        %1218 = vmatpush1.bf16.msra.mxu0 %v1124
        %1219 = vmatprep.subr.bf16.mxu0 0
        %1220 = vmatpush1.bf16.msra.mxu0 %v1125
        %1221 = vmatprep.subr.bf16.mxu0 0
        %1222 = vmatpush1.bf16.msra.mxu0 %v1126
        %1223 = vmatprep.mubr.bf16.mxu0 %v872
        %1224 = vmatmul.mubr.bf16.gmra.mrb[0].mxu0 %v871
        %v1225 = vpop.f32.mrb[0].mxu0
        %v1226 = vadd.f32 %v741, %v1225
        %v1227 = vpop.f32.mrb[0].mxu0
        %v1228 = vpop.f32.mrb[0].mxu0
        %v1229 = vadd.f32 %v741, %v1228
        %v1230 = vpop.f32.mrb[0].mxu0
        %1231 = vmatprep.mubr.bf16.mxu0 %v877
        %1232 = vmatmul.mubr.bf16.gmra.mrb[0].mxu0 %v876
        %v1233 = vpop.f32.mrb[0].mxu0
        %v1234 = vadd.f32 %v741, %v1233
        %v1235 = vpop.f32.mrb[0].mxu0
        %v1236 = vpop.f32.mrb[0].mxu0
        %v1237 = vadd.f32 %v741, %v1236
        %v1238 = vpop.f32.mrb[0].mxu0
        %1239 = vmatprep.mubr.bf16.mxu0 %v882
        %1240 = vmatmul.mubr.bf16.gmra.mrb[0].mxu0 %v881
        %v1241 = vpop.f32.mrb[0].mxu0
        %v1242 = vadd.f32 %v741, %v1241
        %v1243 = vpop.f32.mrb[0].mxu0
        %v1244 = vpop.f32.mrb[0].mxu0
        %v1245 = vadd.f32 %v741, %v1244
        %v1246 = vpop.f32.mrb[0].mxu0
        %1247 = vmatprep.mubr.bf16.mxu0 %v887
        %1248 = vmatmul.mubr.bf16.gmra.mrb[0].mxu0 %v886
        %v1249 = vpop.f32.mrb[0].mxu0
        %v1250 = vadd.f32 %v741, %v1249
        %v1251 = vpop.f32.mrb[0].mxu0
        %v1252 = vpop.f32.mrb[0].mxu0
        %v1253 = vadd.f32 %v741, %v1252
        %v1254 = vpop.f32.mrb[0].mxu0
        %1255 = vmatprep.mubr.bf16.mxu0 %v892
        %1256 = vmatmul.mubr.bf16.gmra.mrb[0].mxu0 %v891
        %v1257 = vpop.f32.mrb[0].mxu0
        %v1258 = vadd.f32 %v741, %v1257
        %v1259 = vpop.f32.mrb[0].mxu0
        %v1260 = vpop.f32.mrb[0].mxu0
        %v1261 = vadd.f32 %v741, %v1260
        %v1262 = vpop.f32.mrb[0].mxu0
        %1263 = vmatprep.mubr.bf16.mxu0 %v897
        %1264 = vmatmul.mubr.bf16.gmra.mrb[0].mxu0 %v896
        %v1265 = vpop.f32.mrb[0].mxu0
        %v1266 = vadd.f32 %v741, %v1265
        %v1267 = vpop.f32.mrb[0].mxu0
        %v1268 = vpop.f32.mrb[0].mxu0
        %v1269 = vadd.f32 %v741, %v1268
        %v1270 = vpop.f32.mrb[0].mxu0
        %1271 = vmatprep.mubr.bf16.mxu0 %v902
        %1272 = vmatmul.mubr.bf16.gmra.mrb[0].mxu0 %v901
        %v1273 = vpop.f32.mrb[0].mxu0
        %v1274 = vadd.f32 %v741, %v1273
        %v1275 = vpop.f32.mrb[0].mxu0
        %v1276 = vpop.f32.mrb[0].mxu0
        %v1277 = vadd.f32 %v741, %v1276
        %v1278 = vpop.f32.mrb[0].mxu0
        %1279 = vmatprep.mubr.bf16.mxu0 %v907
        %1280 = vmatmul.mubr.bf16.gmra.mrb[0].mxu0 %v906
        %v1281 = vpop.f32.mrb[0].mxu0
        %v1282 = vadd.f32 %v741, %v1281
        %v1283 = vpop.f32.mrb[0].mxu0
        %v1284 = vpop.f32.mrb[0].mxu0
        %v1285 = vadd.f32 %v741, %v1284
        %v1286 = vpop.f32.mrb[0].mxu0
        %1287 = vdwg.mxu0
        %1288 = vmatprep.subr.bf16.mxu0 0
        %1289 = vmatpush1.bf16.msra.mxu0 %v1127
        %1290 = vmatprep.subr.bf16.mxu0 0
        %1291 = vmatpush1.bf16.msra.mxu0 %v1128
        %1292 = vmatprep.subr.bf16.mxu0 0
        %1293 = vmatpush1.bf16.msra.mxu0 %v1129
        %1294 = vmatprep.subr.bf16.mxu0 0
        %1295 = vmatpush1.bf16.msra.mxu0 %v1130
        %1296 = vmatprep.subr.bf16.mxu0 0
        %1297 = vmatpush1.bf16.msra.mxu0 %v1131
        %1298 = vmatprep.subr.bf16.mxu0 0
        %1299 = vmatpush1.bf16.msra.mxu0 %v1132
        %1300 = vmatprep.subr.bf16.mxu0 0
        %1301 = vmatpush1.bf16.msra.mxu0 %v1133
        %1302 = vmatprep.subr.bf16.mxu0 0
        %1303 = vmatpush1.bf16.msra.mxu0 %v1134
        %1304 = vmatprep.subr.bf16.mxu0 0
        %1305 = vmatpush1.bf16.msra.mxu0 %v1135
        %1306 = vmatprep.subr.bf16.mxu0 0
        %1307 = vmatpush1.bf16.msra.mxu0 %v1136
        %1308 = vmatprep.subr.bf16.mxu0 0
        %1309 = vmatpush1.bf16.msra.mxu0 %v1137
        %1310 = vmatprep.subr.bf16.mxu0 0
        %1311 = vmatpush1.bf16.msra.mxu0 %v1138
        %1312 = vmatprep.subr.bf16.mxu0 0
        %1313 = vmatpush1.bf16.msra.mxu0 %v1139
        %1314 = vmatprep.subr.bf16.mxu0 0
        %1315 = vmatpush1.bf16.msra.mxu0 %v1140
        %1316 = vmatprep.subr.bf16.mxu0 0
        %1317 = vmatpush1.bf16.msra.mxu0 %v1141
        %1318 = vmatprep.subr.bf16.mxu0 0
        %1319 = vmatpush1.bf16.msra.mxu0 %v1142
        %1320 = vmatprep.mubr.bf16.mxu0 %v874
        %1321 = vmatmul.mubr.bf16.gmra.mrb[0].mxu0 %v873
        %v1322 = vpop.f32.mrb[0].mxu0
        %v1323 = vadd.f32 %v1226, %v1322
        %v1324 = vpop.f32.mrb[0].mxu0
        %v1325 = vpop.f32.mrb[0].mxu0
        %v1326 = vadd.f32 %v1229, %v1325
        %v1327 = vpop.f32.mrb[0].mxu0
        %1328 = vmatprep.mubr.bf16.mxu0 %v879
        %1329 = vmatmul.mubr.bf16.gmra.mrb[0].mxu0 %v878
        %v1330 = vpop.f32.mrb[0].mxu0
        %v1331 = vadd.f32 %v1234, %v1330
        %v1332 = vpop.f32.mrb[0].mxu0
        %v1333 = vpop.f32.mrb[0].mxu0
        %v1334 = vadd.f32 %v1237, %v1333
        %v1335 = vpop.f32.mrb[0].mxu0
        %1336 = vmatprep.mubr.bf16.mxu0 %v884
        %1337 = vmatmul.mubr.bf16.gmra.mrb[0].mxu0 %v883
        %v1338 = vpop.f32.mrb[0].mxu0
        %v1339 = vadd.f32 %v1242, %v1338
        %v1340 = vpop.f32.mrb[0].mxu0
        %v1341 = vpop.f32.mrb[0].mxu0
        %v1342 = vadd.f32 %v1245, %v1341
        %v1343 = vpop.f32.mrb[0].mxu0
        %1344 = vmatprep.mubr.bf16.mxu0 %v889
        %1345 = vmatmul.mubr.bf16.gmra.mrb[0].mxu0 %v888
        %v1346 = vpop.f32.mrb[0].mxu0
        %v1347 = vadd.f32 %v1250, %v1346
        %v1348 = vpop.f32.mrb[0].mxu0
        %v1349 = vpop.f32.mrb[0].mxu0
        %v1350 = vadd.f32 %v1253, %v1349
        %v1351 = vpop.f32.mrb[0].mxu0
        %1352 = vmatprep.mubr.bf16.mxu0 %v894
        %1353 = vmatmul.mubr.bf16.gmra.mrb[0].mxu0 %v893
        %v1354 = vpop.f32.mrb[0].mxu0
        %v1355 = vadd.f32 %v1258, %v1354
        %v1356 = vpop.f32.mrb[0].mxu0
        %v1357 = vpop.f32.mrb[0].mxu0
        %v1358 = vadd.f32 %v1261, %v1357
        %v1359 = vpop.f32.mrb[0].mxu0
        %1360 = vmatprep.mubr.bf16.mxu0 %v899
        %1361 = vmatmul.mubr.bf16.gmra.mrb[0].mxu0 %v898
        %v1362 = vpop.f32.mrb[0].mxu0
        %v1363 = vadd.f32 %v1266, %v1362
        %v1364 = vpop.f32.mrb[0].mxu0
        %v1365 = vpop.f32.mrb[0].mxu0
        %v1366 = vadd.f32 %v1269, %v1365
        %v1367 = vpop.f32.mrb[0].mxu0
        %1368 = vmatprep.mubr.bf16.mxu0 %v904
        %1369 = vmatmul.mubr.bf16.gmra.mrb[0].mxu0 %v903
        %v1370 = vpop.f32.mrb[0].mxu0
        %v1371 = vadd.f32 %v1274, %v1370
        %v1372 = vpop.f32.mrb[0].mxu0
        %v1373 = vpop.f32.mrb[0].mxu0
        %v1374 = vadd.f32 %v1277, %v1373
        %v1375 = vpop.f32.mrb[0].mxu0
        %1376 = vmatprep.mubr.bf16.mxu0 %v909
        %1377 = vmatmul.mubr.bf16.gmra.mrb[0].mxu0 %v908
        %v1378 = vpop.f32.mrb[0].mxu0
        %v1379 = vadd.f32 %v1282, %v1378
        %v1380 = vpop.f32.mrb[0].mxu0
        %v1381 = vpop.f32.mrb[0].mxu0
        %v1382 = vadd.f32 %v1285, %v1381
        %v1383 = vpop.f32.mrb[0].mxu0
        %1384 = vdwg.mxu0
        %1385 = vmatprep.subr.bf16.mxu0 0
        %1386 = vmatpush1.bf16.msra.mxu0 %v1143
        %1387 = vmatprep.subr.bf16.mxu0 0
        %1388 = vmatpush1.bf16.msra.mxu0 %v1144
        %1389 = vmatprep.subr.bf16.mxu0 0
        %1390 = vmatpush1.bf16.msra.mxu0 %v1145
        %1391 = vmatprep.subr.bf16.mxu0 0
        %1392 = vmatpush1.bf16.msra.mxu0 %v1146
        %1393 = vmatprep.subr.bf16.mxu0 0
        %1394 = vmatpush1.bf16.msra.mxu0 %v1147
        %1395 = vmatprep.subr.bf16.mxu0 0
        %1396 = vmatpush1.bf16.msra.mxu0 %v1148
        %1397 = vmatprep.subr.bf16.mxu0 0
        %1398 = vmatpush1.bf16.msra.mxu0 %v1149
        %1399 = vmatprep.subr.bf16.mxu0 0
        %1400 = vmatpush1.bf16.msra.mxu0 %v1150
        %1401 = vmatprep.subr.bf16.mxu0 0
        %1402 = vmatpush1.bf16.msra.mxu0 0
        %1403 = vmatprep.subr.bf16.mxu0 0
        %1404 = vmatpush1.bf16.msra.mxu0 0
        %1405 = vmatprep.subr.bf16.mxu0 0
        %1406 = vmatpush1.bf16.msra.mxu0 0
        %1407 = vmatprep.subr.bf16.mxu0 0
        %1408 = vmatpush1.bf16.msra.mxu0 0
        %1409 = vmatprep.subr.bf16.mxu0 0
        %1410 = vmatpush1.bf16.msra.mxu0 0
        %1411 = vmatprep.subr.bf16.mxu0 0
        %1412 = vmatpush1.bf16.msra.mxu0 0
        %1413 = vmatprep.subr.bf16.mxu0 0
        %1414 = vmatpush1.bf16.msra.mxu0 0
        %1415 = vmatprep.subr.bf16.mxu0 0
        %1416 = vmatpush1.bf16.msra.mxu0 0
        %1417 = vmatprep.mubr.bf16.mxu0 0
        %1418 = vmatmul.mubr.bf16.gmra.mrb[0].mxu0 %v875
        %v1419 = vpop.f32.mrb[0].mxu0
        %v1420 = vadd.f32 %v1323, %v1419
        %v1421 = vpop.f32.mrb[0].mxu0
        %v1422 = vpop.f32.mrb[0].mxu0
        %v1423 = vadd.f32 %v1326, %v1422
        %v1424 = vpop.f32.mrb[0].mxu0
        %1425 = vmatprep.mubr.bf16.mxu0 0
        %1426 = vmatmul.mubr.bf16.gmra.mrb[0].mxu0 %v880
        %v1427 = vpop.f32.mrb[0].mxu0
        %v1428 = vadd.f32 %v1331, %v1427
        %v1429 = vpop.f32.mrb[0].mxu0
        %v1430 = vpop.f32.mrb[0].mxu0
        %v1431 = vadd.f32 %v1334, %v1430
        %v1432 = vpop.f32.mrb[0].mxu0
        %1433 = vmatprep.mubr.bf16.mxu0 0
        %1434 = vmatmul.mubr.bf16.gmra.mrb[0].mxu0 %v885
        %v1435 = vpop.f32.mrb[0].mxu0
        %v1436 = vadd.f32 %v1339, %v1435
        %v1437 = vpop.f32.mrb[0].mxu0
        %v1438 = vpop.f32.mrb[0].mxu0
        %v1439 = vadd.f32 %v1342, %v1438
        %v1440 = vpop.f32.mrb[0].mxu0
        %1441 = vmatprep.mubr.bf16.mxu0 0
        %1442 = vmatmul.mubr.bf16.gmra.mrb[0].mxu0 %v890
        %v1443 = vpop.f32.mrb[0].mxu0
        %v1444 = vadd.f32 %v1347, %v1443
        %v1445 = vpop.f32.mrb[0].mxu0
        %v1446 = vpop.f32.mrb[0].mxu0
        %v1447 = vadd.f32 %v1350, %v1446
        %v1448 = vpop.f32.mrb[0].mxu0
        %1449 = vmatprep.mubr.bf16.mxu0 0
        %1450 = vmatmul.mubr.bf16.gmra.mrb[0].mxu0 %v895
        %v1451 = vpop.f32.mrb[0].mxu0
        %v1452 = vadd.f32 %v1355, %v1451
        %v1453 = vpop.f32.mrb[0].mxu0
        %v1454 = vpop.f32.mrb[0].mxu0
        %v1455 = vadd.f32 %v1358, %v1454
        %v1456 = vpop.f32.mrb[0].mxu0
        %1457 = vmatprep.mubr.bf16.mxu0 0
        %1458 = vmatmul.mubr.bf16.gmra.mrb[0].mxu0 %v900
        %v1459 = vpop.f32.mrb[0].mxu0
        %v1460 = vadd.f32 %v1363, %v1459
        %v1461 = vpop.f32.mrb[0].mxu0
        %v1462 = vpop.f32.mrb[0].mxu0
        %v1463 = vadd.f32 %v1366, %v1462
        %v1464 = vpop.f32.mrb[0].mxu0
        %1465 = vmatprep.mubr.bf16.mxu0 0
        %1466 = vmatmul.mubr.bf16.gmra.mrb[0].mxu0 %v905
        %v1467 = vpop.f32.mrb[0].mxu0
        %v1468 = vadd.f32 %v1371, %v1467
        %v1469 = vpop.f32.mrb[0].mxu0
        %v1470 = vpop.f32.mrb[0].mxu0
        %v1471 = vadd.f32 %v1374, %v1470
        %v1472 = vpop.f32.mrb[0].mxu0
        %1473 = vmatprep.mubr.bf16.mxu0 0
        %1474 = vmatmul.mubr.bf16.gmra.mrb[0].mxu0 %v910
        %v1475 = vpop.f32.mrb[0].mxu0
        %v1476 = vadd.f32 %v1379, %v1475
        %v1477 = vpop.f32.mrb[0].mxu0
        %v1478 = vpop.f32.mrb[0].mxu0
        %v1479 = vadd.f32 %v1382, %v1478
        %v1480 = vpop.f32.mrb[0].mxu0
        %1481 = vdwg.mxu0
        %v1482 = vld [vmem:[%s3] sm:$0xff]
        %v1483 = vld [vmem:[%s3 + $0x8] sm:$0xff]
        %v1484 = vld [vmem:[%s3 + $0x10] sm:$0xff]
        %v1485 = vld [vmem:[%s3 + $0x18] sm:$0xff]
        %v1486 = vld [vmem:[%s3 + $0x20] sm:$0xff]
        %v1487 = vld [vmem:[%s3 + $0x28] sm:$0xff]
        %v1488 = vld [vmem:[%s3 + $0x30] sm:$0xff]
        %v1489 = vld [vmem:[%s3 + $0x38] sm:$0xff]
        %v1490 = vld [vmem:[%s3 + $0x40] sm:$0xff]
        %v1491 = vld [vmem:[%s3 + $0x48] sm:$0xff]
        %v1492 = vld [vmem:[%s3 + $0x50] sm:$0xff]
        %v1493 = vld [vmem:[%s3 + $0x58] sm:$0xff]
        %v1494 = vld [vmem:[%s3 + $0x60] sm:$0xff]
        %v1495 = vld [vmem:[%s3 + $0x68] sm:$0xff]
        %v1496 = vld [vmem:[%s3 + $0x70] sm:$0xff]
        %v1497 = vld [vmem:[%s3 + $0x78] sm:$0xff]
        %v1498 = vadd.f32 %v1420, %v1482
        %v1499 = vadd.f32 %v1423, %v1483
        %v1500 = vadd.f32 %v1428, %v1484
        %v1501 = vadd.f32 %v1431, %v1485
        %v1502 = vadd.f32 %v1436, %v1486
        %v1503 = vadd.f32 %v1439, %v1487
        %v1504 = vadd.f32 %v1444, %v1488
        %v1505 = vadd.f32 %v1447, %v1489
        %v1506 = vadd.f32 %v1452, %v1490
        %v1507 = vadd.f32 %v1455, %v1491
        %v1508 = vadd.f32 %v1460, %v1492
        %v1509 = vadd.f32 %v1463, %v1493
        %v1510 = vadd.f32 %v1468, %v1494
        %v1511 = vadd.f32 %v1471, %v1495
        %v1512 = vadd.f32 %v1476, %v1496
        %v1513 = vadd.f32 %v1479, %v1497
        %v1514 = vld [vmem:[%s4] sm:$0xff]
        %v1515 = vld [vmem:[%s4 + $0x8] sm:$0xff]
        %v1516 = vld [vmem:[%s4 + $0x10] sm:$0xff]
        %v1517 = vld [vmem:[%s4 + $0x18] sm:$0xff]
        %v1518 = vld [vmem:[%s4 + $0x20] sm:$0xff]
        %v1519 = vld [vmem:[%s4 + $0x28] sm:$0xff]
        %v1520 = vld [vmem:[%s4 + $0x30] sm:$0xff]
        %v1521 = vld [vmem:[%s4 + $0x38] sm:$0xff]
        %v1522 = vld [vmem:[%s4 + $0x40] sm:$0xff]
        %v1523 = vld [vmem:[%s4 + $0x48] sm:$0xff]
        %v1524 = vld [vmem:[%s4 + $0x50] sm:$0xff]
        %v1525 = vld [vmem:[%s4 + $0x58] sm:$0xff]
        %v1526 = vld [vmem:[%s4 + $0x60] sm:$0xff]
        %v1527 = vld [vmem:[%s4 + $0x68] sm:$0xff]
        %v1528 = vld [vmem:[%s4 + $0x70] sm:$0xff]
        %v1529 = vld [vmem:[%s4 + $0x78] sm:$0xff]
        %v1530 = vld [vmem:[%s5] sm:$0x1]
        %v1531 = vld [vmem:[%s6] sm:$0x1]
        %1532 = vadd.xlane.f32.xlu0 %v1498
        %v1533 = vpop.xlane.xlu0 %1532
        %1534 = vadd.xlane.f32.xlu0 %v1499
        %v1535 = vpop.xlane.xlu0 %1534
        %1536 = vadd.xlane.f32.xlu0 %v1500
        %v1537 = vpop.xlane.xlu0 %1536
        %1538 = vadd.xlane.f32.xlu0 %v1501
        %v1539 = vpop.xlane.xlu0 %1538
        %1540 = vadd.xlane.f32.xlu0 %v1502
        %v1541 = vpop.xlane.xlu0 %1540
        %1542 = vadd.xlane.f32.xlu0 %v1503
        %v1543 = vpop.xlane.xlu0 %1542
        %1544 = vadd.xlane.f32.xlu0 %v1504
        %v1545 = vpop.xlane.xlu0 %1544
        %1546 = vadd.xlane.f32.xlu0 %v1505
        %v1547 = vpop.xlane.xlu0 %1546
        %1548 = vadd.xlane.f32.xlu0 %v1506
        %v1549 = vpop.xlane.xlu0 %1548
        %1550 = vadd.xlane.f32.xlu0 %v1507
        %v1551 = vpop.xlane.xlu0 %1550
        %1552 = vadd.xlane.f32.xlu0 %v1508
        %v1553 = vpop.xlane.xlu0 %1552
        %1554 = vadd.xlane.f32.xlu0 %v1509
        %v1555 = vpop.xlane.xlu0 %1554
        %1556 = vadd.xlane.f32.xlu0 %v1510
        %v1557 = vpop.xlane.xlu0 %1556
        %1558 = vadd.xlane.f32.xlu0 %v1511
        %v1559 = vpop.xlane.xlu0 %1558
        %1560 = vadd.xlane.f32.xlu0 %v1512
        %v1561 = vpop.xlane.xlu0 %1560
        %1562 = vadd.xlane.f32.xlu0 %v1513
        %v1563 = vpop.xlane.xlu0 %1562
        %v1564 = vrcp.pop 128.0
        %v1565 = vmul.f32 %v1533, %v1564
        %v1566 = vmul.f32 %v1535, %v1564
        %v1567 = vmul.f32 %v1537, %v1564
        %v1568 = vmul.f32 %v1539, %v1564
        %v1569 = vmul.f32 %v1541, %v1564
        %v1570 = vmul.f32 %v1543, %v1564
        %v1571 = vmul.f32 %v1545, %v1564
        %v1572 = vmul.f32 %v1547, %v1564
        %v1573 = vmul.f32 %v1549, %v1564
        %v1574 = vmul.f32 %v1551, %v1564
        %v1575 = vmul.f32 %v1553, %v1564
        %v1576 = vmul.f32 %v1555, %v1564
        %v1577 = vmul.f32 %v1557, %v1564
        %v1578 = vmul.f32 %v1559, %v1564
        %v1579 = vmul.f32 %v1561, %v1564
        %v1580 = vmul.f32 %v1563, %v1564
        %v1581 = vmul.f32 %v1498, %v1498
        %v1582 = vmul.f32 %v1499, %v1499
        %v1583 = vmul.f32 %v1500, %v1500
        %v1584 = vmul.f32 %v1501, %v1501
        %v1585 = vmul.f32 %v1502, %v1502
        %v1586 = vmul.f32 %v1503, %v1503
        %v1587 = vmul.f32 %v1504, %v1504
        %v1588 = vmul.f32 %v1505, %v1505
        %v1589 = vmul.f32 %v1506, %v1506
        %v1590 = vmul.f32 %v1507, %v1507
        %v1591 = vmul.f32 %v1508, %v1508
        %v1592 = vmul.f32 %v1509, %v1509
        %v1593 = vmul.f32 %v1510, %v1510
        %v1594 = vmul.f32 %v1511, %v1511
        %v1595 = vmul.f32 %v1512, %v1512
        %v1596 = vmul.f32 %v1513, %v1513
        %1597 = vadd.xlane.f32.xlu0 %v1581
        %v1598 = vpop.xlane.xlu0 %1597
        %1599 = vadd.xlane.f32.xlu0 %v1582
        %v1600 = vpop.xlane.xlu0 %1599
        %1601 = vadd.xlane.f32.xlu0 %v1583
        %v1602 = vpop.xlane.xlu0 %1601
        %1603 = vadd.xlane.f32.xlu0 %v1584
        %v1604 = vpop.xlane.xlu0 %1603
        %1605 = vadd.xlane.f32.xlu0 %v1585
        %v1606 = vpop.xlane.xlu0 %1605
        %1607 = vadd.xlane.f32.xlu0 %v1586
        %v1608 = vpop.xlane.xlu0 %1607
        %1609 = vadd.xlane.f32.xlu0 %v1587
        %v1610 = vpop.xlane.xlu0 %1609
        %1611 = vadd.xlane.f32.xlu0 %v1588
        %v1612 = vpop.xlane.xlu0 %1611
        %1613 = vadd.xlane.f32.xlu0 %v1589
        %v1614 = vpop.xlane.xlu0 %1613
        %1615 = vadd.xlane.f32.xlu0 %v1590
        %v1616 = vpop.xlane.xlu0 %1615
        %1617 = vadd.xlane.f32.xlu0 %v1591
        %v1618 = vpop.xlane.xlu0 %1617
        %1619 = vadd.xlane.f32.xlu0 %v1592
        %v1620 = vpop.xlane.xlu0 %1619
        %1621 = vadd.xlane.f32.xlu0 %v1593
        %v1622 = vpop.xlane.xlu0 %1621
        %1623 = vadd.xlane.f32.xlu0 %v1594
        %v1624 = vpop.xlane.xlu0 %1623
        %1625 = vadd.xlane.f32.xlu0 %v1595
        %v1626 = vpop.xlane.xlu0 %1625
        %1627 = vadd.xlane.f32.xlu0 %v1596
        %v1628 = vpop.xlane.xlu0 %1627
        %v1629 = vmul.f32 %v1598, %v1564
        %v1630 = vmul.f32 %v1600, %v1564
        %v1631 = vmul.f32 %v1602, %v1564
        %v1632 = vmul.f32 %v1604, %v1564
        %v1633 = vmul.f32 %v1606, %v1564
        %v1634 = vmul.f32 %v1608, %v1564
        %v1635 = vmul.f32 %v1610, %v1564
        %v1636 = vmul.f32 %v1612, %v1564
        %v1637 = vmul.f32 %v1614, %v1564
        %v1638 = vmul.f32 %v1616, %v1564
        %v1639 = vmul.f32 %v1618, %v1564
        %v1640 = vmul.f32 %v1620, %v1564
        %v1641 = vmul.f32 %v1622, %v1564
        %v1642 = vmul.f32 %v1624, %v1564
        %v1643 = vmul.f32 %v1626, %v1564
        %v1644 = vmul.f32 %v1628, %v1564
        %v1645 = vmul.f32 %v1565, %v1565
        %v1646 = vmul.f32 %v1566, %v1566
        %v1647 = vmul.f32 %v1567, %v1567
        %v1648 = vmul.f32 %v1568, %v1568
        %v1649 = vmul.f32 %v1569, %v1569
        %v1650 = vmul.f32 %v1570, %v1570
        %v1651 = vmul.f32 %v1571, %v1571
        %v1652 = vmul.f32 %v1572, %v1572
        %v1653 = vmul.f32 %v1573, %v1573
        %v1654 = vmul.f32 %v1574, %v1574
        %v1655 = vmul.f32 %v1575, %v1575
        %v1656 = vmul.f32 %v1576, %v1576
        %v1657 = vmul.f32 %v1577, %v1577
        %v1658 = vmul.f32 %v1578, %v1578
        %v1659 = vmul.f32 %v1579, %v1579
        %v1660 = vmul.f32 %v1580, %v1580
        %v1661 = vsub.f32 %v1629, %v1645
        %v1662 = vsub.f32 %v1630, %v1646
        %v1663 = vsub.f32 %v1631, %v1647
        %v1664 = vsub.f32 %v1632, %v1648
        %v1665 = vsub.f32 %v1633, %v1649
        %v1666 = vsub.f32 %v1634, %v1650
        %v1667 = vsub.f32 %v1635, %v1651
        %v1668 = vsub.f32 %v1636, %v1652
        %v1669 = vsub.f32 %v1637, %v1653
        %v1670 = vsub.f32 %v1638, %v1654
        %v1671 = vsub.f32 %v1639, %v1655
        %v1672 = vsub.f32 %v1640, %v1656
        %v1673 = vsub.f32 %v1641, %v1657
        %v1674 = vsub.f32 %v1642, %v1658
        %v1675 = vsub.f32 %v1643, %v1659
        %v1676 = vsub.f32 %v1644, %v1660
        %v1677 = vmax.f32 %v1661, 0.0
        %v1678 = vmax.f32 %v1662, 0.0
        %v1679 = vmax.f32 %v1663, 0.0
        %v1680 = vmax.f32 %v1664, 0.0
        %v1681 = vmax.f32 %v1665, 0.0
        %v1682 = vmax.f32 %v1666, 0.0
        %v1683 = vmax.f32 %v1667, 0.0
        %v1684 = vmax.f32 %v1668, 0.0
        %v1685 = vmax.f32 %v1669, 0.0
        %v1686 = vmax.f32 %v1670, 0.0
        %v1687 = vmax.f32 %v1671, 0.0
        %v1688 = vmax.f32 %v1672, 0.0
        %v1689 = vmax.f32 %v1673, 0.0
        %v1690 = vmax.f32 %v1674, 0.0
        %v1691 = vmax.f32 %v1675, 0.0
        %v1692 = vmax.f32 %v1676, 0.0
        %v1693 = vsub.f32 %v1498, %v1565
        %v1694 = vsub.f32 %v1499, %v1566
        %v1695 = vsub.f32 %v1500, %v1567
        %v1696 = vsub.f32 %v1501, %v1568
        %v1697 = vsub.f32 %v1502, %v1569
        %v1698 = vsub.f32 %v1503, %v1570
        %v1699 = vsub.f32 %v1504, %v1571
        %v1700 = vsub.f32 %v1505, %v1572
        %v1701 = vsub.f32 %v1506, %v1573
        %v1702 = vsub.f32 %v1507, %v1574
        %v1703 = vsub.f32 %v1508, %v1575
        %v1704 = vsub.f32 %v1509, %v1576
        %v1705 = vsub.f32 %v1510, %v1577
        %v1706 = vsub.f32 %v1511, %v1578
        %v1707 = vsub.f32 %v1512, %v1579
        %v1708 = vsub.f32 %v1513, %v1580
        %v1709 = vadd.f32 %v1677, 1e-06
        %v1710 = vadd.f32 %v1678, 1e-06
        %v1711 = vadd.f32 %v1679, 1e-06
        %v1712 = vadd.f32 %v1680, 1e-06
        %v1713 = vadd.f32 %v1681, 1e-06
        %v1714 = vadd.f32 %v1682, 1e-06
        %v1715 = vadd.f32 %v1683, 1e-06
        %v1716 = vadd.f32 %v1684, 1e-06
        %v1717 = vadd.f32 %v1685, 1e-06
        %v1718 = vadd.f32 %v1686, 1e-06
        %v1719 = vadd.f32 %v1687, 1e-06
        %v1720 = vadd.f32 %v1688, 1e-06
        %v1721 = vadd.f32 %v1689, 1e-06
        %v1722 = vadd.f32 %v1690, 1e-06
        %v1723 = vadd.f32 %v1691, 1e-06
        %v1724 = vadd.f32 %v1692, 1e-06
        %v1725 = vrsqrt.pop %v1709
        %v1726 = vrsqrt.pop %v1710
        %v1727 = vrsqrt.pop %v1711
        %v1728 = vrsqrt.pop %v1712
        %v1729 = vrsqrt.pop %v1713
        %v1730 = vrsqrt.pop %v1714
        %v1731 = vrsqrt.pop %v1715
        %v1732 = vrsqrt.pop %v1716
        %v1733 = vrsqrt.pop %v1717
        %v1734 = vrsqrt.pop %v1718
        %v1735 = vrsqrt.pop %v1719
        %v1736 = vrsqrt.pop %v1720
        %v1737 = vrsqrt.pop %v1721
        %v1738 = vrsqrt.pop %v1722
        %v1739 = vrsqrt.pop %v1723
        %v1740 = vrsqrt.pop %v1724
        %v1741 = vmul.f32 %v1693, %v1725
        %v1742 = vmul.f32 %v1694, %v1726
        %v1743 = vmul.f32 %v1695, %v1727
        %v1744 = vmul.f32 %v1696, %v1728
        %v1745 = vmul.f32 %v1697, %v1729
        %v1746 = vmul.f32 %v1698, %v1730
        %v1747 = vmul.f32 %v1699, %v1731
        %v1748 = vmul.f32 %v1700, %v1732
        %v1749 = vmul.f32 %v1701, %v1733
        %v1750 = vmul.f32 %v1702, %v1734
        %v1751 = vmul.f32 %v1703, %v1735
        %v1752 = vmul.f32 %v1704, %v1736
        %v1753 = vmul.f32 %v1705, %v1737
        %v1754 = vmul.f32 %v1706, %v1738
        %v1755 = vmul.f32 %v1707, %v1739
        %v1756 = vmul.f32 %v1708, %v1740
        %v1758 = vlaneseq
        %v1759 = vshrl.u32 %v1758, 7
        %v1760 = vsub.s32 0, %v1759
        %v1761 = vrot.slane %v1530, %v1760
        %v1763 = vmul.f32 %v1741, %v1761
        %v1764 = vmul.f32 %v1742, %v1761
        %v1765 = vmul.f32 %v1743, %v1761
        %v1766 = vmul.f32 %v1744, %v1761
        %v1767 = vmul.f32 %v1745, %v1761
        %v1768 = vmul.f32 %v1746, %v1761
        %v1769 = vmul.f32 %v1747, %v1761
        %v1770 = vmul.f32 %v1748, %v1761
        %v1771 = vmul.f32 %v1749, %v1761
        %v1772 = vmul.f32 %v1750, %v1761
        %v1773 = vmul.f32 %v1751, %v1761
        %v1774 = vmul.f32 %v1752, %v1761
        %v1775 = vmul.f32 %v1753, %v1761
        %v1776 = vmul.f32 %v1754, %v1761
        %v1777 = vmul.f32 %v1755, %v1761
        %v1778 = vmul.f32 %v1756, %v1761
        %v1780 = vlaneseq
        %v1781 = vshrl.u32 %v1780, 7
        %v1782 = vsub.s32 0, %v1781
        %v1783 = vrot.slane %v1531, %v1782
        %v1785 = vadd.f32 %v1763, %v1783
        %v1786 = vadd.f32 %v1764, %v1783
        %v1787 = vadd.f32 %v1765, %v1783
        %v1788 = vadd.f32 %v1766, %v1783
        %v1789 = vadd.f32 %v1767, %v1783
        %v1790 = vadd.f32 %v1768, %v1783
        %v1791 = vadd.f32 %v1769, %v1783
        %v1792 = vadd.f32 %v1770, %v1783
        %v1793 = vadd.f32 %v1771, %v1783
        %v1794 = vadd.f32 %v1772, %v1783
        %v1795 = vadd.f32 %v1773, %v1783
        %v1796 = vadd.f32 %v1774, %v1783
        %v1797 = vadd.f32 %v1775, %v1783
        %v1798 = vadd.f32 %v1776, %v1783
        %v1799 = vadd.f32 %v1777, %v1783
        %v1800 = vadd.f32 %v1778, %v1783
        %v1801 = vpack.c.bf16 %v1786, %v1785
        %v1802 = vpack.c.bf16 %v1788, %v1787
        %v1803 = vpack.c.bf16 %v1790, %v1789
        %v1804 = vpack.c.bf16 %v1792, %v1791
        %v1805 = vpack.c.bf16 %v1794, %v1793
        %v1806 = vpack.c.bf16 %v1796, %v1795
        %v1807 = vpack.c.bf16 %v1798, %v1797
        %v1808 = vpack.c.bf16 %v1800, %v1799
        %v1809 = vld [vmem:[%s7] sm:$0xff]
        %v1810 = vld [vmem:[%s7 + $0x8] sm:$0xf]
        %v1811 = vld [vmem:[%s7 + $0xc] sm:$0xff]
        %v1812 = vld [vmem:[%s7 + $0x14] sm:$0xf]
        %v1813 = vld [vmem:[%s7 + $0x18] sm:$0xff]
        %v1814 = vld [vmem:[%s7 + $0x20] sm:$0xf]
        %v1815 = vld [vmem:[%s7 + $0x24] sm:$0xff]
        %v1816 = vld [vmem:[%s7 + $0x2c] sm:$0xf]
        %v1817 = vld [vmem:[%s7 + $0x30] sm:$0xff]
        %v1818 = vld [vmem:[%s7 + $0x38] sm:$0xf]
        %v1819 = vld [vmem:[%s7 + $0x3c] sm:$0xff]
        %v1820 = vld [vmem:[%s7 + $0x44] sm:$0xf]
        %v1821 = vld [vmem:[%s7 + $0x48] sm:$0xff]
        %v1822 = vld [vmem:[%s7 + $0x50] sm:$0xf]
        %v1823 = vld [vmem:[%s7 + $0x54] sm:$0xff]
        %v1824 = vld [vmem:[%s7 + $0x5c] sm:$0xf]
        %v1825 = vld [vmem:[%s7 + $0x60] sm:$0xff]
        %v1826 = vld [vmem:[%s7 + $0x68] sm:$0xf]
        %v1827 = vld [vmem:[%s7 + $0x6c] sm:$0xff]
        %v1828 = vld [vmem:[%s7 + $0x74] sm:$0xf]
        %v1829 = vld [vmem:[%s7 + $0x78] sm:$0xff]
        %v1830 = vld [vmem:[%s7 + $0x80] sm:$0xf]
        %v1831 = vld [vmem:[%s7 + $0x84] sm:$0xff]
        %v1832 = vld [vmem:[%s7 + $0x8c] sm:$0xf]
        %v1833 = vld [vmem:[%s7 + $0x90] sm:$0xff]
        %v1834 = vld [vmem:[%s7 + $0x98] sm:$0xf]
        %v1835 = vld [vmem:[%s7 + $0x9c] sm:$0xff]
        %v1836 = vld [vmem:[%s7 + $0xa4] sm:$0xf]
        %v1837 = vld [vmem:[%s7 + $0xa8] sm:$0xff]
        %v1838 = vld [vmem:[%s7 + $0xb0] sm:$0xf]
        %v1839 = vld [vmem:[%s7 + $0xb4] sm:$0xff]
        %v1840 = vld [vmem:[%s7 + $0xbc] sm:$0xf]
        %v1841 = vld [vmem:[%s8] sm:$0x7]
        %v1843 = vlaneseq
        %v1844 = vshrl.u32 %v1843, 7
        %v1845 = vsub.s32 0, %v1844
        %v1846 = vrot.slane %v1841, %v1845
        %v1847 = vlaneseq
        %v1848 = vshrl.u32 %v1847, 7
        %v1849 = vsub.s32 1, %v1848
        %v1850 = vrot.slane %v1841, %v1849
        %v1851 = vlaneseq
        %v1852 = vshrl.u32 %v1851, 7
        %v1853 = vsub.s32 2, %v1852
        %v1854 = vrot.slane %v1841, %v1853
        %v1890 = vunpack.c.l.b16 %v1809
        %v1891 = vunpack.c.h.b16 %v1809
        %v1892 = vunpack.c.l.b16 %v1810
        %v1893 = vunpack.c.l.b16 %v1811
        %v1894 = vunpack.c.h.b16 %v1811
        %v1895 = vunpack.c.l.b16 %v1812
        %v1896 = vunpack.c.l.b16 %v1813
        %v1897 = vunpack.c.h.b16 %v1813
        %v1898 = vunpack.c.l.b16 %v1814
        %v1899 = vunpack.c.l.b16 %v1815
        %v1900 = vunpack.c.h.b16 %v1815
        %v1901 = vunpack.c.l.b16 %v1816
        %v1902 = vunpack.c.l.b16 %v1817
        %v1903 = vunpack.c.h.b16 %v1817
        %v1904 = vunpack.c.l.b16 %v1818
        %v1905 = vunpack.c.l.b16 %v1819
        %v1906 = vunpack.c.h.b16 %v1819
        %v1907 = vunpack.c.l.b16 %v1820
        %v1908 = vunpack.c.l.b16 %v1821
        %v1909 = vunpack.c.h.b16 %v1821
        %v1910 = vunpack.c.l.b16 %v1822
        %v1911 = vunpack.c.l.b16 %v1823
        %v1912 = vunpack.c.h.b16 %v1823
        %v1913 = vunpack.c.l.b16 %v1824
        %v1914 = vunpack.c.l.b16 %v1825
        %v1915 = vunpack.c.h.b16 %v1825
        %v1916 = vunpack.c.l.b16 %v1826
        %v1917 = vunpack.c.l.b16 %v1827
        %v1918 = vunpack.c.h.b16 %v1827
        %v1919 = vunpack.c.l.b16 %v1828
        %v1920 = vunpack.c.l.b16 %v1829
        %v1921 = vunpack.c.h.b16 %v1829
        %v1922 = vunpack.c.l.b16 %v1830
        %v1923 = vunpack.c.l.b16 %v1831
        %v1924 = vunpack.c.h.b16 %v1831
        %v1925 = vunpack.c.l.b16 %v1832
        %v1926 = vunpack.c.l.b16 %v1833
        %v1927 = vunpack.c.h.b16 %v1833
        %v1928 = vunpack.c.l.b16 %v1834
        %v1929 = vunpack.c.l.b16 %v1835
        %v1930 = vunpack.c.h.b16 %v1835
        %v1931 = vunpack.c.l.b16 %v1836
        %v1932 = vunpack.c.l.b16 %v1837
        %v1933 = vunpack.c.h.b16 %v1837
        %v1934 = vunpack.c.l.b16 %v1838
        %v1935 = vunpack.c.l.b16 %v1839
        %v1936 = vunpack.c.h.b16 %v1839
        %v1937 = vunpack.c.l.b16 %v1840
        %v1938 = vpack.c.b16 %v1893, %v1890
        %v1939 = vpack.c.b16 %v1894, %v1891
        %v1940 = vpack.c.b16 %v1895, %v1892
        %v1941 = vpack.c.b16 %v1899, %v1896
        %v1942 = vpack.c.b16 %v1900, %v1897
        %v1943 = vpack.c.b16 %v1901, %v1898
        %v1944 = vpack.c.b16 %v1905, %v1902
        %v1945 = vpack.c.b16 %v1906, %v1903
        %v1946 = vpack.c.b16 %v1907, %v1904
        %v1947 = vpack.c.b16 %v1911, %v1908
        %v1948 = vpack.c.b16 %v1912, %v1909
        %v1949 = vpack.c.b16 %v1913, %v1910
        %v1950 = vpack.c.b16 %v1917, %v1914
        %v1951 = vpack.c.b16 %v1918, %v1915
        %v1952 = vpack.c.b16 %v1919, %v1916
        %v1953 = vpack.c.b16 %v1923, %v1920
        %v1954 = vpack.c.b16 %v1924, %v1921
        %v1955 = vpack.c.b16 %v1925, %v1922
        %v1956 = vpack.c.b16 %v1929, %v1926
        %v1957 = vpack.c.b16 %v1930, %v1927
        %v1958 = vpack.c.b16 %v1931, %v1928
        %v1959 = vpack.c.b16 %v1935, %v1932
        %v1960 = vpack.c.b16 %v1936, %v1933
        %v1961 = vpack.c.b16 %v1937, %v1934
        %1986 = vmatprep.subr.bf16.mxu0 %v1939
        %1987 = vmatpush1.bf16.msra.mxu0 %v1938
        %1988 = vmatprep.subr.bf16.mxu0 %v1942
        %1989 = vmatpush1.bf16.msra.mxu0 %v1941
        %1990 = vmatprep.subr.bf16.mxu0 %v1945
        %1991 = vmatpush1.bf16.msra.mxu0 %v1944
        %1992 = vmatprep.subr.bf16.mxu0 %v1948
        %1993 = vmatpush1.bf16.msra.mxu0 %v1947
        %1994 = vmatprep.subr.bf16.mxu0 %v1951
        %1995 = vmatpush1.bf16.msra.mxu0 %v1950
        %1996 = vmatprep.subr.bf16.mxu0 %v1954
        %1997 = vmatpush1.bf16.msra.mxu0 %v1953
        %1998 = vmatprep.subr.bf16.mxu0 %v1957
        %1999 = vmatpush1.bf16.msra.mxu0 %v1956
        %2000 = vmatprep.subr.bf16.mxu0 %v1960
        %2001 = vmatpush1.bf16.msra.mxu0 %v1959
        %2002 = vmatprep.subr.bf16.mxu0 0
        %2003 = vmatpush1.bf16.msra.mxu0 0
        %2004 = vmatprep.subr.bf16.mxu0 0
        %2005 = vmatpush1.bf16.msra.mxu0 0
        %2006 = vmatprep.subr.bf16.mxu0 0
        %2007 = vmatpush1.bf16.msra.mxu0 0
        %2008 = vmatprep.subr.bf16.mxu0 0
        %2009 = vmatpush1.bf16.msra.mxu0 0
        %2010 = vmatprep.subr.bf16.mxu0 0
        %2011 = vmatpush1.bf16.msra.mxu0 0
        %2012 = vmatprep.subr.bf16.mxu0 0
        %2013 = vmatpush1.bf16.msra.mxu0 0
        %2014 = vmatprep.subr.bf16.mxu0 0
        %2015 = vmatpush1.bf16.msra.mxu0 0
        %2016 = vmatprep.subr.bf16.mxu0 0
        %2017 = vmatpush1.bf16.msra.mxu0 0
        %2018 = vmatprep.mubr.bf16.mxu0 0
        %2019 = vmatmul.mubr.bf16.gmra.mrb[0].mxu0 %v1801
        %v2020 = vpop.f32.mrb[0].mxu0
        %v2021 = vadd.f32 %v1846, %v2020
        %v2022 = vpop.f32.mrb[0].mxu0
        %v2023 = vadd.f32 %v1850, %v2022
        %v2024 = vpop.f32.mrb[0].mxu0
        %v2025 = vadd.f32 %v1846, %v2024
        %v2026 = vpop.f32.mrb[0].mxu0
        %v2027 = vadd.f32 %v1850, %v2026
        %2028 = vmatprep.mubr.bf16.mxu0 0
        %2029 = vmatmul.mubr.bf16.gmra.mrb[0].mxu0 %v1802
        %v2030 = vpop.f32.mrb[0].mxu0
        %v2031 = vadd.f32 %v1846, %v2030
        %v2032 = vpop.f32.mrb[0].mxu0
        %v2033 = vadd.f32 %v1850, %v2032
        %v2034 = vpop.f32.mrb[0].mxu0
        %v2035 = vadd.f32 %v1846, %v2034
        %v2036 = vpop.f32.mrb[0].mxu0
        %v2037 = vadd.f32 %v1850, %v2036
        %2038 = vmatprep.mubr.bf16.mxu0 0
        %2039 = vmatmul.mubr.bf16.gmra.mrb[0].mxu0 %v1803
        %v2040 = vpop.f32.mrb[0].mxu0
        %v2041 = vadd.f32 %v1846, %v2040
        %v2042 = vpop.f32.mrb[0].mxu0
        %v2043 = vadd.f32 %v1850, %v2042
        %v2044 = vpop.f32.mrb[0].mxu0
        %v2045 = vadd.f32 %v1846, %v2044
        %v2046 = vpop.f32.mrb[0].mxu0
        %v2047 = vadd.f32 %v1850, %v2046
        %2048 = vmatprep.mubr.bf16.mxu0 0
        %2049 = vmatmul.mubr.bf16.gmra.mrb[0].mxu0 %v1804
        %v2050 = vpop.f32.mrb[0].mxu0
        %v2051 = vadd.f32 %v1846, %v2050
        %v2052 = vpop.f32.mrb[0].mxu0
        %v2053 = vadd.f32 %v1850, %v2052
        %v2054 = vpop.f32.mrb[0].mxu0
        %v2055 = vadd.f32 %v1846, %v2054
        %v2056 = vpop.f32.mrb[0].mxu0
        %v2057 = vadd.f32 %v1850, %v2056
        %2058 = vmatprep.mubr.bf16.mxu0 0
        %2059 = vmatmul.mubr.bf16.gmra.mrb[0].mxu0 %v1805
        %v2060 = vpop.f32.mrb[0].mxu0
        %v2061 = vadd.f32 %v1846, %v2060
        %v2062 = vpop.f32.mrb[0].mxu0
        %v2063 = vadd.f32 %v1850, %v2062
        %v2064 = vpop.f32.mrb[0].mxu0
        %v2065 = vadd.f32 %v1846, %v2064
        %v2066 = vpop.f32.mrb[0].mxu0
        %v2067 = vadd.f32 %v1850, %v2066
        %2068 = vmatprep.mubr.bf16.mxu0 0
        %2069 = vmatmul.mubr.bf16.gmra.mrb[0].mxu0 %v1806
        %v2070 = vpop.f32.mrb[0].mxu0
        %v2071 = vadd.f32 %v1846, %v2070
        %v2072 = vpop.f32.mrb[0].mxu0
        %v2073 = vadd.f32 %v1850, %v2072
        %v2074 = vpop.f32.mrb[0].mxu0
        %v2075 = vadd.f32 %v1846, %v2074
        %v2076 = vpop.f32.mrb[0].mxu0
        %v2077 = vadd.f32 %v1850, %v2076
        %2078 = vmatprep.mubr.bf16.mxu0 0
        %2079 = vmatmul.mubr.bf16.gmra.mrb[0].mxu0 %v1807
        %v2080 = vpop.f32.mrb[0].mxu0
        %v2081 = vadd.f32 %v1846, %v2080
        %v2082 = vpop.f32.mrb[0].mxu0
        %v2083 = vadd.f32 %v1850, %v2082
        %v2084 = vpop.f32.mrb[0].mxu0
        %v2085 = vadd.f32 %v1846, %v2084
        %v2086 = vpop.f32.mrb[0].mxu0
        %v2087 = vadd.f32 %v1850, %v2086
        %2088 = vmatprep.mubr.bf16.mxu0 0
        %2089 = vmatmul.mubr.bf16.gmra.mrb[0].mxu0 %v1808
        %v2090 = vpop.f32.mrb[0].mxu0
        %v2091 = vadd.f32 %v1846, %v2090
        %v2092 = vpop.f32.mrb[0].mxu0
        %v2093 = vadd.f32 %v1850, %v2092
        %v2094 = vpop.f32.mrb[0].mxu0
        %v2095 = vadd.f32 %v1846, %v2094
        %v2096 = vpop.f32.mrb[0].mxu0
        %v2097 = vadd.f32 %v1850, %v2096
        %2098 = vdwg.mxu0
        %2099 = vmatprep.subr.bf16.mxu0 0
        %2100 = vmatpush1.bf16.msra.mxu0 %v1940
        %2101 = vmatprep.subr.bf16.mxu0 0
        %2102 = vmatpush1.bf16.msra.mxu0 %v1943
        %2103 = vmatprep.subr.bf16.mxu0 0
        %2104 = vmatpush1.bf16.msra.mxu0 %v1946
        %2105 = vmatprep.subr.bf16.mxu0 0
        %2106 = vmatpush1.bf16.msra.mxu0 %v1949
        %2107 = vmatprep.subr.bf16.mxu0 0
        %2108 = vmatpush1.bf16.msra.mxu0 %v1952
        %2109 = vmatprep.subr.bf16.mxu0 0
        %2110 = vmatpush1.bf16.msra.mxu0 %v1955
        %2111 = vmatprep.subr.bf16.mxu0 0
        %2112 = vmatpush1.bf16.msra.mxu0 %v1958
        %2113 = vmatprep.subr.bf16.mxu0 0
        %2114 = vmatpush1.bf16.msra.mxu0 %v1961
        %2115 = vmatprep.subr.bf16.mxu0 0
        %2116 = vmatpush1.bf16.msra.mxu0 0
        %2117 = vmatprep.subr.bf16.mxu0 0
        %2118 = vmatpush1.bf16.msra.mxu0 0
        %2119 = vmatprep.subr.bf16.mxu0 0
        %2120 = vmatpush1.bf16.msra.mxu0 0
        %2121 = vmatprep.subr.bf16.mxu0 0
        %2122 = vmatpush1.bf16.msra.mxu0 0
        %2123 = vmatprep.subr.bf16.mxu0 0
        %2124 = vmatpush1.bf16.msra.mxu0 0
        %2125 = vmatprep.subr.bf16.mxu0 0
        %2126 = vmatpush1.bf16.msra.mxu0 0
        %2127 = vmatprep.subr.bf16.mxu0 0
        %2128 = vmatpush1.bf16.msra.mxu0 0
        %2129 = vmatprep.subr.bf16.mxu0 0
        %2130 = vmatpush1.bf16.msra.mxu0 0
        %2131 = vmatprep.mubr.bf16.mxu0 0
        %2132 = vmatmul.mubr.bf16.gmra.mrb[0].mxu0 %v1801
        %v2133 = vpop.f32.mrb[0].mxu0
        %v2134 = vadd.f32 %v1854, %v2133
        %v2135 = vpop.f32.mrb[0].mxu0
        %v2136 = vpop.f32.mrb[0].mxu0
        %v2137 = vadd.f32 %v1854, %v2136
        %v2138 = vpop.f32.mrb[0].mxu0
        %2139 = vmatprep.mubr.bf16.mxu0 0
        %2140 = vmatmul.mubr.bf16.gmra.mrb[0].mxu0 %v1802
        %v2141 = vpop.f32.mrb[0].mxu0
        %v2142 = vadd.f32 %v1854, %v2141
        %v2143 = vpop.f32.mrb[0].mxu0
        %v2144 = vpop.f32.mrb[0].mxu0
        %v2145 = vadd.f32 %v1854, %v2144
        %v2146 = vpop.f32.mrb[0].mxu0
        %2147 = vmatprep.mubr.bf16.mxu0 0
        %2148 = vmatmul.mubr.bf16.gmra.mrb[0].mxu0 %v1803
        %v2149 = vpop.f32.mrb[0].mxu0
        %v2150 = vadd.f32 %v1854, %v2149
        %v2151 = vpop.f32.mrb[0].mxu0
        %v2152 = vpop.f32.mrb[0].mxu0
        %v2153 = vadd.f32 %v1854, %v2152
        %v2154 = vpop.f32.mrb[0].mxu0
        %2155 = vmatprep.mubr.bf16.mxu0 0
        %2156 = vmatmul.mubr.bf16.gmra.mrb[0].mxu0 %v1804
        %v2157 = vpop.f32.mrb[0].mxu0
        %v2158 = vadd.f32 %v1854, %v2157
        %v2159 = vpop.f32.mrb[0].mxu0
        %v2160 = vpop.f32.mrb[0].mxu0
        %v2161 = vadd.f32 %v1854, %v2160
        %v2162 = vpop.f32.mrb[0].mxu0
        %2163 = vmatprep.mubr.bf16.mxu0 0
        %2164 = vmatmul.mubr.bf16.gmra.mrb[0].mxu0 %v1805
        %v2165 = vpop.f32.mrb[0].mxu0
        %v2166 = vadd.f32 %v1854, %v2165
        %v2167 = vpop.f32.mrb[0].mxu0
        %v2168 = vpop.f32.mrb[0].mxu0
        %v2169 = vadd.f32 %v1854, %v2168
        %v2170 = vpop.f32.mrb[0].mxu0
        %2171 = vmatprep.mubr.bf16.mxu0 0
        %2172 = vmatmul.mubr.bf16.gmra.mrb[0].mxu0 %v1806
        %v2173 = vpop.f32.mrb[0].mxu0
        %v2174 = vadd.f32 %v1854, %v2173
        %v2175 = vpop.f32.mrb[0].mxu0
        %v2176 = vpop.f32.mrb[0].mxu0
        %v2177 = vadd.f32 %v1854, %v2176
        %v2178 = vpop.f32.mrb[0].mxu0
        %2179 = vmatprep.mubr.bf16.mxu0 0
        %2180 = vmatmul.mubr.bf16.gmra.mrb[0].mxu0 %v1807
        %v2181 = vpop.f32.mrb[0].mxu0
        %v2182 = vadd.f32 %v1854, %v2181
        %v2183 = vpop.f32.mrb[0].mxu0
        %v2184 = vpop.f32.mrb[0].mxu0
        %v2185 = vadd.f32 %v1854, %v2184
        %v2186 = vpop.f32.mrb[0].mxu0
        %2187 = vmatprep.mubr.bf16.mxu0 0
        %2188 = vmatmul.mubr.bf16.gmra.mrb[0].mxu0 %v1808
        %v2189 = vpop.f32.mrb[0].mxu0
        %v2190 = vadd.f32 %v1854, %v2189
        %v2191 = vpop.f32.mrb[0].mxu0
        %v2192 = vpop.f32.mrb[0].mxu0
        %v2193 = vadd.f32 %v1854, %v2192
        %v2194 = vpop.f32.mrb[0].mxu0
        %2195 = vdwg.mxu0
        %v2196 = vld [vmem:[%s9] sm:$0xf]
        %v2197 = vld [vmem:[%s9 + $0x4] sm:$0xf]
        %v2198 = vld [vmem:[%s9 + $0x8] sm:$0xf]
        %v2199 = vld [vmem:[%s9 + $0xc] sm:$0xf]
        %v2200 = vld [vmem:[%s9 + $0x10] sm:$0xf]
        %v2201 = vld [vmem:[%s9 + $0x14] sm:$0xf]
        %v2202 = vld [vmem:[%s9 + $0x18] sm:$0xf]
        %v2203 = vld [vmem:[%s9 + $0x1c] sm:$0xf]
        %v2204 = vld [vmem:[%s9 + $0x20] sm:$0xf]
        %v2205 = vld [vmem:[%s9 + $0x24] sm:$0xf]
        %v2206 = vld [vmem:[%s9 + $0x28] sm:$0xf]
        %v2207 = vld [vmem:[%s9 + $0x2c] sm:$0xf]
        %v2208 = vld [vmem:[%s9 + $0x30] sm:$0xf]
        %v2209 = vld [vmem:[%s9 + $0x34] sm:$0xf]
        %v2210 = vld [vmem:[%s9 + $0x38] sm:$0xf]
        %v2211 = vld [vmem:[%s9 + $0x3c] sm:$0xf]
        %v2212 = vpack.c.bf16 %v2025, %v2021
        %v2213 = vpack.c.bf16 %v2035, %v2031
        %v2214 = vpack.c.bf16 %v2045, %v2041
        %v2215 = vpack.c.bf16 %v2055, %v2051
        %v2216 = vpack.c.bf16 %v2065, %v2061
        %v2217 = vpack.c.bf16 %v2075, %v2071
        %v2218 = vpack.c.bf16 %v2085, %v2081
        %v2219 = vpack.c.bf16 %v2095, %v2091
        %v2220 = vpack.c.bf16 %v2027, %v2023
        %v2221 = vpack.c.bf16 %v2037, %v2033
        %v2222 = vpack.c.bf16 %v2047, %v2043
        %v2223 = vpack.c.bf16 %v2057, %v2053
        %v2224 = vpack.c.bf16 %v2067, %v2063
        %v2225 = vpack.c.bf16 %v2077, %v2073
        %v2226 = vpack.c.bf16 %v2087, %v2083
        %v2227 = vpack.c.bf16 %v2097, %v2093
        %v2228 = vpack.c.bf16 %v2137, %v2134
        %v2229 = vpack.c.bf16 %v2145, %v2142
        %v2230 = vpack.c.bf16 %v2153, %v2150
        %v2231 = vpack.c.bf16 %v2161, %v2158
        %v2232 = vpack.c.bf16 %v2169, %v2166
        %v2233 = vpack.c.bf16 %v2177, %v2174
        %v2234 = vpack.c.bf16 %v2185, %v2182
        %v2235 = vpack.c.bf16 %v2193, %v2190
        %vm2236 = vcmask 261120
        %v2238 = vsel %vm2236, %v2212, 0
        %v2241 = vsel %vm2236, %v2213, 0
        %v2244 = vsel %vm2236, %v2214, 0
        %v2247 = vsel %vm2236, %v2215, 0
        %v2250 = vsel %vm2236, %v2216, 0
        %v2253 = vsel %vm2236, %v2217, 0
        %v2256 = vsel %vm2236, %v2218, 0
        %v2259 = vsel %vm2236, %v2219, 0
        %v2262 = vsel %vm2236, %v2220, 0
        %v2265 = vsel %vm2236, %v2221, 0
        %v2268 = vsel %vm2236, %v2222, 0
        %v2271 = vsel %vm2236, %v2223, 0
        %v2274 = vsel %vm2236, %v2224, 0
        %v2277 = vsel %vm2236, %v2225, 0
        %v2280 = vsel %vm2236, %v2226, 0
        %v2283 = vsel %vm2236, %v2227, 0
        %2285 = vmatprep.subr.bf16.mxu0 0
        %2286 = vmatpush1.bf16.xpose.msra.mxu0 %v2262
        %2287 = vmatprep.subr.bf16.mxu0 0
        %2288 = vmatpush1.bf16.xpose.msra.mxu0 %v2265
        %2289 = vmatprep.subr.bf16.mxu0 0
        %2290 = vmatpush1.bf16.xpose.msra.mxu0 %v2268
        %2291 = vmatprep.subr.bf16.mxu0 0
        %2292 = vmatpush1.bf16.xpose.msra.mxu0 %v2271
        %2293 = vmatprep.subr.bf16.mxu0 0
        %2294 = vmatpush1.bf16.xpose.msra.mxu0 %v2274
        %2295 = vmatprep.subr.bf16.mxu0 0
        %2296 = vmatpush1.bf16.xpose.msra.mxu0 %v2277
        %2297 = vmatprep.subr.bf16.mxu0 0
        %2298 = vmatpush1.bf16.xpose.msra.mxu0 %v2280
        %2299 = vmatprep.subr.bf16.mxu0 0
        %2300 = vmatpush1.bf16.xpose.msra.mxu0 %v2283
        %2301 = vmatprep.subr.bf16.mxu0 0
        %2302 = vmatpush1.bf16.xpose.msra.mxu0 0
        %2303 = vmatprep.subr.bf16.mxu0 0
        %2304 = vmatpush1.bf16.xpose.msra.mxu0 0
        %2305 = vmatprep.subr.bf16.mxu0 0
        %2306 = vmatpush1.bf16.xpose.msra.mxu0 0
        %2307 = vmatprep.subr.bf16.mxu0 0
        %2308 = vmatpush1.bf16.xpose.msra.mxu0 0
        %2309 = vmatprep.subr.bf16.mxu0 0
        %2310 = vmatpush1.bf16.xpose.msra.mxu0 0
        %2311 = vmatprep.subr.bf16.mxu0 0
        %2312 = vmatpush1.bf16.xpose.msra.mxu0 0
        %2313 = vmatprep.subr.bf16.mxu0 0
        %2314 = vmatpush1.bf16.xpose.msra.mxu0 0
        %2315 = vmatprep.subr.bf16.mxu0 0
        %2316 = vmatpush1.bf16.xpose.msra.mxu0 0
        %2317 = vmatprep.mubr.bf16.mxu0 0
        %2318 = vmatmul.mubr.bf16.gmra.mrb[0].mxu0 %v2238
        %v2319 = vpop.f32.mrb[0].mxu0
        %v2320 = vadd.f32 %v1514, %v2319
        %v2321 = vpop.f32.mrb[0].mxu0
        %v2322 = vpop.f32.mrb[0].mxu0
        %v2323 = vadd.f32 %v1515, %v2322
        %v2324 = vpop.f32.mrb[0].mxu0
        %2325 = vmatprep.mubr.bf16.mxu0 0
        %2326 = vmatmul.mubr.bf16.gmra.mrb[0].mxu0 %v2241
        %v2327 = vpop.f32.mrb[0].mxu0
        %v2328 = vadd.f32 %v1516, %v2327
        %v2329 = vpop.f32.mrb[0].mxu0
        %v2330 = vpop.f32.mrb[0].mxu0
        %v2331 = vadd.f32 %v1517, %v2330
        %v2332 = vpop.f32.mrb[0].mxu0
        %2333 = vmatprep.mubr.bf16.mxu0 0
        %2334 = vmatmul.mubr.bf16.gmra.mrb[0].mxu0 %v2244
        %v2335 = vpop.f32.mrb[0].mxu0
        %v2336 = vadd.f32 %v1518, %v2335
        %v2337 = vpop.f32.mrb[0].mxu0
        %v2338 = vpop.f32.mrb[0].mxu0
        %v2339 = vadd.f32 %v1519, %v2338
        %v2340 = vpop.f32.mrb[0].mxu0
        %2341 = vmatprep.mubr.bf16.mxu0 0
        %2342 = vmatmul.mubr.bf16.gmra.mrb[0].mxu0 %v2247
        %v2343 = vpop.f32.mrb[0].mxu0
        %v2344 = vadd.f32 %v1520, %v2343
        %v2345 = vpop.f32.mrb[0].mxu0
        %v2346 = vpop.f32.mrb[0].mxu0
        %v2347 = vadd.f32 %v1521, %v2346
        %v2348 = vpop.f32.mrb[0].mxu0
        %2349 = vmatprep.mubr.bf16.mxu0 0
        %2350 = vmatmul.mubr.bf16.gmra.mrb[0].mxu0 %v2250
        %v2351 = vpop.f32.mrb[0].mxu0
        %v2352 = vadd.f32 %v1522, %v2351
        %v2353 = vpop.f32.mrb[0].mxu0
        %v2354 = vpop.f32.mrb[0].mxu0
        %v2355 = vadd.f32 %v1523, %v2354
        %v2356 = vpop.f32.mrb[0].mxu0
        %2357 = vmatprep.mubr.bf16.mxu0 0
        %2358 = vmatmul.mubr.bf16.gmra.mrb[0].mxu0 %v2253
        %v2359 = vpop.f32.mrb[0].mxu0
        %v2360 = vadd.f32 %v1524, %v2359
        %v2361 = vpop.f32.mrb[0].mxu0
        %v2362 = vpop.f32.mrb[0].mxu0
        %v2363 = vadd.f32 %v1525, %v2362
        %v2364 = vpop.f32.mrb[0].mxu0
        %2365 = vmatprep.mubr.bf16.mxu0 0
        %2366 = vmatmul.mubr.bf16.gmra.mrb[0].mxu0 %v2256
        %v2367 = vpop.f32.mrb[0].mxu0
        %v2368 = vadd.f32 %v1526, %v2367
        %v2369 = vpop.f32.mrb[0].mxu0
        %v2370 = vpop.f32.mrb[0].mxu0
        %v2371 = vadd.f32 %v1527, %v2370
        %v2372 = vpop.f32.mrb[0].mxu0
        %2373 = vmatprep.mubr.bf16.mxu0 0
        %2374 = vmatmul.mubr.bf16.gmra.mrb[0].mxu0 %v2259
        %v2375 = vpop.f32.mrb[0].mxu0
        %v2376 = vadd.f32 %v1528, %v2375
        %v2377 = vpop.f32.mrb[0].mxu0
        %v2378 = vpop.f32.mrb[0].mxu0
        %v2379 = vadd.f32 %v1529, %v2378
        %v2380 = vpop.f32.mrb[0].mxu0
        %2381 = vdwg.mxu0
        %2382 = vmax.xlane.f32.xlu0 %v2320
        %v2383 = vpop.xlane.xlu0 %2382
        %2384 = vmax.xlane.f32.xlu0 %v2323
        %v2385 = vpop.xlane.xlu0 %2384
        %2386 = vmax.xlane.f32.xlu0 %v2328
        %v2387 = vpop.xlane.xlu0 %2386
        %2388 = vmax.xlane.f32.xlu0 %v2331
        %v2389 = vpop.xlane.xlu0 %2388
        %2390 = vmax.xlane.f32.xlu0 %v2336
        %v2391 = vpop.xlane.xlu0 %2390
        %2392 = vmax.xlane.f32.xlu0 %v2339
        %v2393 = vpop.xlane.xlu0 %2392
        %2394 = vmax.xlane.f32.xlu0 %v2344
        %v2395 = vpop.xlane.xlu0 %2394
        %2396 = vmax.xlane.f32.xlu0 %v2347
        %v2397 = vpop.xlane.xlu0 %2396
        %2398 = vmax.xlane.f32.xlu0 %v2352
        %v2399 = vpop.xlane.xlu0 %2398
        %2400 = vmax.xlane.f32.xlu0 %v2355
        %v2401 = vpop.xlane.xlu0 %2400
        %2402 = vmax.xlane.f32.xlu0 %v2360
        %v2403 = vpop.xlane.xlu0 %2402
        %2404 = vmax.xlane.f32.xlu0 %v2363
        %v2405 = vpop.xlane.xlu0 %2404
        %2406 = vmax.xlane.f32.xlu0 %v2368
        %v2407 = vpop.xlane.xlu0 %2406
        %2408 = vmax.xlane.f32.xlu0 %v2371
        %v2409 = vpop.xlane.xlu0 %2408
        %2410 = vmax.xlane.f32.xlu0 %v2376
        %v2411 = vpop.xlane.xlu0 %2410
        %2412 = vmax.xlane.f32.xlu0 %v2379
        %v2413 = vpop.xlane.xlu0 %2412
        %v2414 = vsub.f32 %v2320, %v2383
        %v2415 = vsub.f32 %v2323, %v2385
        %v2416 = vsub.f32 %v2328, %v2387
        %v2417 = vsub.f32 %v2331, %v2389
        %v2418 = vsub.f32 %v2336, %v2391
        %v2419 = vsub.f32 %v2339, %v2393
        %v2420 = vsub.f32 %v2344, %v2395
        %v2421 = vsub.f32 %v2347, %v2397
        %v2422 = vsub.f32 %v2352, %v2399
        %v2423 = vsub.f32 %v2355, %v2401
        %v2424 = vsub.f32 %v2360, %v2403
        %v2425 = vsub.f32 %v2363, %v2405
        %v2426 = vsub.f32 %v2368, %v2407
        %v2427 = vsub.f32 %v2371, %v2409
        %v2428 = vsub.f32 %v2376, %v2411
        %v2429 = vsub.f32 %v2379, %v2413
        %v2430 = vmul.f32 %v2414, 1.442695
        %v2431 = vpow.pop %v2430
        %v2432 = vmul.f32 %v2415, 1.442695
        %v2433 = vpow.pop %v2432
        %v2434 = vmul.f32 %v2416, 1.442695
        %v2435 = vpow.pop %v2434
        %v2436 = vmul.f32 %v2417, 1.442695
        %v2437 = vpow.pop %v2436
        %v2438 = vmul.f32 %v2418, 1.442695
        %v2439 = vpow.pop %v2438
        %v2440 = vmul.f32 %v2419, 1.442695
        %v2441 = vpow.pop %v2440
        %v2442 = vmul.f32 %v2420, 1.442695
        %v2443 = vpow.pop %v2442
        %v2444 = vmul.f32 %v2421, 1.442695
        %v2445 = vpow.pop %v2444
        %v2446 = vmul.f32 %v2422, 1.442695
        %v2447 = vpow.pop %v2446
        %v2448 = vmul.f32 %v2423, 1.442695
        %v2449 = vpow.pop %v2448
        %v2450 = vmul.f32 %v2424, 1.442695
        %v2451 = vpow.pop %v2450
        %v2452 = vmul.f32 %v2425, 1.442695
        %v2453 = vpow.pop %v2452
        %v2454 = vmul.f32 %v2426, 1.442695
        %v2455 = vpow.pop %v2454
        %v2456 = vmul.f32 %v2427, 1.442695
        %v2457 = vpow.pop %v2456
        %v2458 = vmul.f32 %v2428, 1.442695
        %v2459 = vpow.pop %v2458
        %v2460 = vmul.f32 %v2429, 1.442695
        %v2461 = vpow.pop %v2460
        %2462 = vadd.xlane.f32.xlu0 %v2431
        %v2463 = vpop.xlane.xlu0 %2462
        %2464 = vadd.xlane.f32.xlu0 %v2433
        %v2465 = vpop.xlane.xlu0 %2464
        %2466 = vadd.xlane.f32.xlu0 %v2435
        %v2467 = vpop.xlane.xlu0 %2466
        %2468 = vadd.xlane.f32.xlu0 %v2437
        %v2469 = vpop.xlane.xlu0 %2468
        %2470 = vadd.xlane.f32.xlu0 %v2439
        %v2471 = vpop.xlane.xlu0 %2470
        %2472 = vadd.xlane.f32.xlu0 %v2441
        %v2473 = vpop.xlane.xlu0 %2472
        %2474 = vadd.xlane.f32.xlu0 %v2443
        %v2475 = vpop.xlane.xlu0 %2474
        %2476 = vadd.xlane.f32.xlu0 %v2445
        %v2477 = vpop.xlane.xlu0 %2476
        %2478 = vadd.xlane.f32.xlu0 %v2447
        %v2479 = vpop.xlane.xlu0 %2478
        %2480 = vadd.xlane.f32.xlu0 %v2449
        %v2481 = vpop.xlane.xlu0 %2480
        %2482 = vadd.xlane.f32.xlu0 %v2451
        %v2483 = vpop.xlane.xlu0 %2482
        %2484 = vadd.xlane.f32.xlu0 %v2453
        %v2485 = vpop.xlane.xlu0 %2484
        %2486 = vadd.xlane.f32.xlu0 %v2455
        %v2487 = vpop.xlane.xlu0 %2486
        %2488 = vadd.xlane.f32.xlu0 %v2457
        %v2489 = vpop.xlane.xlu0 %2488
        %2490 = vadd.xlane.f32.xlu0 %v2459
        %v2491 = vpop.xlane.xlu0 %2490
        %2492 = vadd.xlane.f32.xlu0 %v2461
        %v2493 = vpop.xlane.xlu0 %2492
        %v2494 = vrcp.pop %v2463
        %v2495 = vrcp.pop %v2465
        %v2496 = vrcp.pop %v2467
        %v2497 = vrcp.pop %v2469
        %v2498 = vrcp.pop %v2471
        %v2499 = vrcp.pop %v2473
        %v2500 = vrcp.pop %v2475
        %v2501 = vrcp.pop %v2477
        %v2502 = vrcp.pop %v2479
        %v2503 = vrcp.pop %v2481
        %v2504 = vrcp.pop %v2483
        %v2505 = vrcp.pop %v2485
        %v2506 = vrcp.pop %v2487
        %v2507 = vrcp.pop %v2489
        %v2508 = vrcp.pop %v2491
        %v2509 = vrcp.pop %v2493
        %v2510 = vmul.f32 %v2431, %v2494
        %v2511 = vmul.f32 %v2433, %v2495
        %v2512 = vmul.f32 %v2435, %v2496
        %v2513 = vmul.f32 %v2437, %v2497
        %v2514 = vmul.f32 %v2439, %v2498
        %v2515 = vmul.f32 %v2441, %v2499
        %v2516 = vmul.f32 %v2443, %v2500
        %v2517 = vmul.f32 %v2445, %v2501
        %v2518 = vmul.f32 %v2447, %v2502
        %v2519 = vmul.f32 %v2449, %v2503
        %v2520 = vmul.f32 %v2451, %v2504
        %v2521 = vmul.f32 %v2453, %v2505
        %v2522 = vmul.f32 %v2455, %v2506
        %v2523 = vmul.f32 %v2457, %v2507
        %v2524 = vmul.f32 %v2459, %v2508
        %v2525 = vmul.f32 %v2461, %v2509
        %v2526 = vpack.c.bf16 %v2511, %v2510
        %v2527 = vpack.c.bf16 %v2513, %v2512
        %v2528 = vpack.c.bf16 %v2515, %v2514
        %v2529 = vpack.c.bf16 %v2517, %v2516
        %v2530 = vpack.c.bf16 %v2519, %v2518
        %v2531 = vpack.c.bf16 %v2521, %v2520
        %v2532 = vpack.c.bf16 %v2523, %v2522
        %v2533 = vpack.c.bf16 %v2525, %v2524
        %2534 = vmatprep.subr.bf16.mxu0 0
        %2535 = vmatpush1.bf16.msra.mxu0 %v2228
        %2536 = vmatprep.subr.bf16.mxu0 0
        %2537 = vmatpush1.bf16.msra.mxu0 %v2229
        %2538 = vmatprep.subr.bf16.mxu0 0
        %2539 = vmatpush1.bf16.msra.mxu0 %v2230
        %2540 = vmatprep.subr.bf16.mxu0 0
        %2541 = vmatpush1.bf16.msra.mxu0 %v2231
        %2542 = vmatprep.subr.bf16.mxu0 0
        %2543 = vmatpush1.bf16.msra.mxu0 %v2232
        %2544 = vmatprep.subr.bf16.mxu0 0
        %2545 = vmatpush1.bf16.msra.mxu0 %v2233
        %2546 = vmatprep.subr.bf16.mxu0 0
        %2547 = vmatpush1.bf16.msra.mxu0 %v2234
        %2548 = vmatprep.subr.bf16.mxu0 0
        %2549 = vmatpush1.bf16.msra.mxu0 %v2235
        %2550 = vmatprep.subr.bf16.mxu0 0
        %2551 = vmatpush1.bf16.msra.mxu0 0
        %2552 = vmatprep.subr.bf16.mxu0 0
        %2553 = vmatpush1.bf16.msra.mxu0 0
        %2554 = vmatprep.subr.bf16.mxu0 0
        %2555 = vmatpush1.bf16.msra.mxu0 0
        %2556 = vmatprep.subr.bf16.mxu0 0
        %2557 = vmatpush1.bf16.msra.mxu0 0
        %2558 = vmatprep.subr.bf16.mxu0 0
        %2559 = vmatpush1.bf16.msra.mxu0 0
        %2560 = vmatprep.subr.bf16.mxu0 0
        %2561 = vmatpush1.bf16.msra.mxu0 0
        %2562 = vmatprep.subr.bf16.mxu0 0
        %2563 = vmatpush1.bf16.msra.mxu0 0
        %2564 = vmatprep.subr.bf16.mxu0 0
        %2565 = vmatpush1.bf16.msra.mxu0 0
        %2566 = vmatprep.mubr.bf16.mxu0 0
        %2567 = vmatmul.mubr.bf16.gmra.mrb[0].mxu0 %v2526
        %v2568 = vpop.f32.mrb[0].mxu0
        %v2569 = vadd.f32 0.0, %v2568
        %v2570 = vpop.f32.mrb[0].mxu0
        %v2571 = vpop.f32.mrb[0].mxu0
        %v2572 = vadd.f32 0.0, %v2571
        %v2573 = vpop.f32.mrb[0].mxu0
        %2574 = vmatprep.mubr.bf16.mxu0 0
        %2575 = vmatmul.mubr.bf16.gmra.mrb[0].mxu0 %v2527
        %v2576 = vpop.f32.mrb[0].mxu0
        %v2577 = vadd.f32 0.0, %v2576
        %v2578 = vpop.f32.mrb[0].mxu0
        %v2579 = vpop.f32.mrb[0].mxu0
        %v2580 = vadd.f32 0.0, %v2579
        %v2581 = vpop.f32.mrb[0].mxu0
        %2582 = vmatprep.mubr.bf16.mxu0 0
        %2583 = vmatmul.mubr.bf16.gmra.mrb[0].mxu0 %v2528
        %v2584 = vpop.f32.mrb[0].mxu0
        %v2585 = vadd.f32 0.0, %v2584
        %v2586 = vpop.f32.mrb[0].mxu0
        %v2587 = vpop.f32.mrb[0].mxu0
        %v2588 = vadd.f32 0.0, %v2587
        %v2589 = vpop.f32.mrb[0].mxu0
        %2590 = vmatprep.mubr.bf16.mxu0 0
        %2591 = vmatmul.mubr.bf16.gmra.mrb[0].mxu0 %v2529
        %v2592 = vpop.f32.mrb[0].mxu0
        %v2593 = vadd.f32 0.0, %v2592
        %v2594 = vpop.f32.mrb[0].mxu0
        %v2595 = vpop.f32.mrb[0].mxu0
        %v2596 = vadd.f32 0.0, %v2595
        %v2597 = vpop.f32.mrb[0].mxu0
        %2598 = vmatprep.mubr.bf16.mxu0 0
        %2599 = vmatmul.mubr.bf16.gmra.mrb[0].mxu0 %v2530
        %v2600 = vpop.f32.mrb[0].mxu0
        %v2601 = vadd.f32 0.0, %v2600
        %v2602 = vpop.f32.mrb[0].mxu0
        %v2603 = vpop.f32.mrb[0].mxu0
        %v2604 = vadd.f32 0.0, %v2603
        %v2605 = vpop.f32.mrb[0].mxu0
        %2606 = vmatprep.mubr.bf16.mxu0 0
        %2607 = vmatmul.mubr.bf16.gmra.mrb[0].mxu0 %v2531
        %v2608 = vpop.f32.mrb[0].mxu0
        %v2609 = vadd.f32 0.0, %v2608
        %v2610 = vpop.f32.mrb[0].mxu0
        %v2611 = vpop.f32.mrb[0].mxu0
        %v2612 = vadd.f32 0.0, %v2611
        %v2613 = vpop.f32.mrb[0].mxu0
        %2614 = vmatprep.mubr.bf16.mxu0 0
        %2615 = vmatmul.mubr.bf16.gmra.mrb[0].mxu0 %v2532
        %v2616 = vpop.f32.mrb[0].mxu0
        %v2617 = vadd.f32 0.0, %v2616
        %v2618 = vpop.f32.mrb[0].mxu0
        %v2619 = vpop.f32.mrb[0].mxu0
        %v2620 = vadd.f32 0.0, %v2619
        %v2621 = vpop.f32.mrb[0].mxu0
        %2622 = vmatprep.mubr.bf16.mxu0 0
        %2623 = vmatmul.mubr.bf16.gmra.mrb[0].mxu0 %v2533
        %v2624 = vpop.f32.mrb[0].mxu0
        %v2625 = vadd.f32 0.0, %v2624
        %v2626 = vpop.f32.mrb[0].mxu0
        %v2627 = vpop.f32.mrb[0].mxu0
        %v2628 = vadd.f32 0.0, %v2627
        %v2629 = vpop.f32.mrb[0].mxu0
        %2630 = vdwg.mxu0
        %v2631 = vpack.c.bf16 %v2572, %v2569
        %v2632 = vpack.c.bf16 %v2580, %v2577
        %v2633 = vpack.c.bf16 %v2588, %v2585
        %v2634 = vpack.c.bf16 %v2596, %v2593
        %v2635 = vpack.c.bf16 %v2604, %v2601
        %v2636 = vpack.c.bf16 %v2612, %v2609
        %v2637 = vpack.c.bf16 %v2620, %v2617
        %v2638 = vpack.c.bf16 %v2628, %v2625
        %2647 = vrot.lane.b32.xlu0 %v2212, 96
        %v2648 = vpop.permute.xlu0 %2647
        %2649 = vrot.lane.b32.xlu0 %v2213, 96
        %v2650 = vpop.permute.xlu0 %2649
        %2651 = vrot.lane.b32.xlu0 %v2214, 96
        %v2652 = vpop.permute.xlu0 %2651
        %2653 = vrot.lane.b32.xlu0 %v2215, 96
        %v2654 = vpop.permute.xlu0 %2653
        %2655 = vrot.lane.b32.xlu0 %v2216, 96
        %v2656 = vpop.permute.xlu0 %2655
        %2657 = vrot.lane.b32.xlu0 %v2217, 96
        %v2658 = vpop.permute.xlu0 %2657
        %2659 = vrot.lane.b32.xlu0 %v2218, 96
        %v2660 = vpop.permute.xlu0 %2659
        %2661 = vrot.lane.b32.xlu0 %v2219, 96
        %v2662 = vpop.permute.xlu0 %2661
        %2671 = vrot.lane.b32.xlu0 %v2220, 96
        %v2672 = vpop.permute.xlu0 %2671
        %2673 = vrot.lane.b32.xlu0 %v2221, 96
        %v2674 = vpop.permute.xlu0 %2673
        %2675 = vrot.lane.b32.xlu0 %v2222, 96
        %v2676 = vpop.permute.xlu0 %2675
        %2677 = vrot.lane.b32.xlu0 %v2223, 96
        %v2678 = vpop.permute.xlu0 %2677
        %2679 = vrot.lane.b32.xlu0 %v2224, 96
        %v2680 = vpop.permute.xlu0 %2679
        %2681 = vrot.lane.b32.xlu0 %v2225, 96
        %v2682 = vpop.permute.xlu0 %2681
        %2683 = vrot.lane.b32.xlu0 %v2226, 96
        %v2684 = vpop.permute.xlu0 %2683
        %2685 = vrot.lane.b32.xlu0 %v2227, 96
        %v2686 = vpop.permute.xlu0 %2685
        %v2688 = vsel %vm2236, %v2648, 0
        %v2691 = vsel %vm2236, %v2650, 0
        %v2694 = vsel %vm2236, %v2652, 0
        %v2697 = vsel %vm2236, %v2654, 0
        %v2700 = vsel %vm2236, %v2656, 0
        %v2703 = vsel %vm2236, %v2658, 0
        %v2706 = vsel %vm2236, %v2660, 0
        %v2709 = vsel %vm2236, %v2662, 0
        %v2712 = vsel %vm2236, %v2672, 0
        %v2715 = vsel %vm2236, %v2674, 0
        %v2718 = vsel %vm2236, %v2676, 0
        %v2721 = vsel %vm2236, %v2678, 0
        %v2724 = vsel %vm2236, %v2680, 0
        %v2727 = vsel %vm2236, %v2682, 0
        %v2730 = vsel %vm2236, %v2684, 0
        %v2733 = vsel %vm2236, %v2686, 0
        %2735 = vmatprep.subr.bf16.mxu0 0
        %2736 = vmatpush1.bf16.xpose.msra.mxu0 %v2712
        %2737 = vmatprep.subr.bf16.mxu0 0
        %2738 = vmatpush1.bf16.xpose.msra.mxu0 %v2715
        %2739 = vmatprep.subr.bf16.mxu0 0
        %2740 = vmatpush1.bf16.xpose.msra.mxu0 %v2718
        %2741 = vmatprep.subr.bf16.mxu0 0
        %2742 = vmatpush1.bf16.xpose.msra.mxu0 %v2721
        %2743 = vmatprep.subr.bf16.mxu0 0
        %2744 = vmatpush1.bf16.xpose.msra.mxu0 %v2724
        %2745 = vmatprep.subr.bf16.mxu0 0
        %2746 = vmatpush1.bf16.xpose.msra.mxu0 %v2727
        %2747 = vmatprep.subr.bf16.mxu0 0
        %2748 = vmatpush1.bf16.xpose.msra.mxu0 %v2730
        %2749 = vmatprep.subr.bf16.mxu0 0
        %2750 = vmatpush1.bf16.xpose.msra.mxu0 %v2733
        %2751 = vmatprep.subr.bf16.mxu0 0
        %2752 = vmatpush1.bf16.xpose.msra.mxu0 0
        %2753 = vmatprep.subr.bf16.mxu0 0
        %2754 = vmatpush1.bf16.xpose.msra.mxu0 0
        %2755 = vmatprep.subr.bf16.mxu0 0
        %2756 = vmatpush1.bf16.xpose.msra.mxu0 0
        %2757 = vmatprep.subr.bf16.mxu0 0
        %2758 = vmatpush1.bf16.xpose.msra.mxu0 0
        %2759 = vmatprep.subr.bf16.mxu0 0
        %2760 = vmatpush1.bf16.xpose.msra.mxu0 0
        %2761 = vmatprep.subr.bf16.mxu0 0
        %2762 = vmatpush1.bf16.xpose.msra.mxu0 0
        %2763 = vmatprep.subr.bf16.mxu0 0
        %2764 = vmatpush1.bf16.xpose.msra.mxu0 0
        %2765 = vmatprep.subr.bf16.mxu0 0
        %2766 = vmatpush1.bf16.xpose.msra.mxu0 0
        %2767 = vmatprep.mubr.bf16.mxu0 0
        %2768 = vmatmul.mubr.bf16.gmra.mrb[0].mxu0 %v2688
        %v2769 = vpop.f32.mrb[0].mxu0
        %v2770 = vadd.f32 %v1514, %v2769
        %v2771 = vpop.f32.mrb[0].mxu0
        %v2772 = vpop.f32.mrb[0].mxu0
        %v2773 = vadd.f32 %v1515, %v2772
        %v2774 = vpop.f32.mrb[0].mxu0
        %2775 = vmatprep.mubr.bf16.mxu0 0
        %2776 = vmatmul.mubr.bf16.gmra.mrb[0].mxu0 %v2691
        %v2777 = vpop.f32.mrb[0].mxu0
        %v2778 = vadd.f32 %v1516, %v2777
        %v2779 = vpop.f32.mrb[0].mxu0
        %v2780 = vpop.f32.mrb[0].mxu0
        %v2781 = vadd.f32 %v1517, %v2780
        %v2782 = vpop.f32.mrb[0].mxu0
        %2783 = vmatprep.mubr.bf16.mxu0 0
        %2784 = vmatmul.mubr.bf16.gmra.mrb[0].mxu0 %v2694
        %v2785 = vpop.f32.mrb[0].mxu0
        %v2786 = vadd.f32 %v1518, %v2785
        %v2787 = vpop.f32.mrb[0].mxu0
        %v2788 = vpop.f32.mrb[0].mxu0
        %v2789 = vadd.f32 %v1519, %v2788
        %v2790 = vpop.f32.mrb[0].mxu0
        %2791 = vmatprep.mubr.bf16.mxu0 0
        %2792 = vmatmul.mubr.bf16.gmra.mrb[0].mxu0 %v2697
        %v2793 = vpop.f32.mrb[0].mxu0
        %v2794 = vadd.f32 %v1520, %v2793
        %v2795 = vpop.f32.mrb[0].mxu0
        %v2796 = vpop.f32.mrb[0].mxu0
        %v2797 = vadd.f32 %v1521, %v2796
        %v2798 = vpop.f32.mrb[0].mxu0
        %2799 = vmatprep.mubr.bf16.mxu0 0
        %2800 = vmatmul.mubr.bf16.gmra.mrb[0].mxu0 %v2700
        %v2801 = vpop.f32.mrb[0].mxu0
        %v2802 = vadd.f32 %v1522, %v2801
        %v2803 = vpop.f32.mrb[0].mxu0
        %v2804 = vpop.f32.mrb[0].mxu0
        %v2805 = vadd.f32 %v1523, %v2804
        %v2806 = vpop.f32.mrb[0].mxu0
        %2807 = vmatprep.mubr.bf16.mxu0 0
        %2808 = vmatmul.mubr.bf16.gmra.mrb[0].mxu0 %v2703
        %v2809 = vpop.f32.mrb[0].mxu0
        %v2810 = vadd.f32 %v1524, %v2809
        %v2811 = vpop.f32.mrb[0].mxu0
        %v2812 = vpop.f32.mrb[0].mxu0
        %v2813 = vadd.f32 %v1525, %v2812
        %v2814 = vpop.f32.mrb[0].mxu0
        %2815 = vmatprep.mubr.bf16.mxu0 0
        %2816 = vmatmul.mubr.bf16.gmra.mrb[0].mxu0 %v2706
        %v2817 = vpop.f32.mrb[0].mxu0
        %v2818 = vadd.f32 %v1526, %v2817
        %v2819 = vpop.f32.mrb[0].mxu0
        %v2820 = vpop.f32.mrb[0].mxu0
        %v2821 = vadd.f32 %v1527, %v2820
        %v2822 = vpop.f32.mrb[0].mxu0
        %2823 = vmatprep.mubr.bf16.mxu0 0
        %2824 = vmatmul.mubr.bf16.gmra.mrb[0].mxu0 %v2709
        %v2825 = vpop.f32.mrb[0].mxu0
        %v2826 = vadd.f32 %v1528, %v2825
        %v2827 = vpop.f32.mrb[0].mxu0
        %v2828 = vpop.f32.mrb[0].mxu0
        %v2829 = vadd.f32 %v1529, %v2828
        %v2830 = vpop.f32.mrb[0].mxu0
        %2831 = vdwg.mxu0
        %2832 = vmax.xlane.f32.xlu0 %v2770
        %v2833 = vpop.xlane.xlu0 %2832
        %2834 = vmax.xlane.f32.xlu0 %v2773
        %v2835 = vpop.xlane.xlu0 %2834
        %2836 = vmax.xlane.f32.xlu0 %v2778
        %v2837 = vpop.xlane.xlu0 %2836
        %2838 = vmax.xlane.f32.xlu0 %v2781
        %v2839 = vpop.xlane.xlu0 %2838
        %2840 = vmax.xlane.f32.xlu0 %v2786
        %v2841 = vpop.xlane.xlu0 %2840
        %2842 = vmax.xlane.f32.xlu0 %v2789
        %v2843 = vpop.xlane.xlu0 %2842
        %2844 = vmax.xlane.f32.xlu0 %v2794
        %v2845 = vpop.xlane.xlu0 %2844
        %2846 = vmax.xlane.f32.xlu0 %v2797
        %v2847 = vpop.xlane.xlu0 %2846
        %2848 = vmax.xlane.f32.xlu0 %v2802
        %v2849 = vpop.xlane.xlu0 %2848
        %2850 = vmax.xlane.f32.xlu0 %v2805
        %v2851 = vpop.xlane.xlu0 %2850
        %2852 = vmax.xlane.f32.xlu0 %v2810
        %v2853 = vpop.xlane.xlu0 %2852
        %2854 = vmax.xlane.f32.xlu0 %v2813
        %v2855 = vpop.xlane.xlu0 %2854
        %2856 = vmax.xlane.f32.xlu0 %v2818
        %v2857 = vpop.xlane.xlu0 %2856
        %2858 = vmax.xlane.f32.xlu0 %v2821
        %v2859 = vpop.xlane.xlu0 %2858
        %2860 = vmax.xlane.f32.xlu0 %v2826
        %v2861 = vpop.xlane.xlu0 %2860
        %2862 = vmax.xlane.f32.xlu0 %v2829
        %v2863 = vpop.xlane.xlu0 %2862
        %v2864 = vsub.f32 %v2770, %v2833
        %v2865 = vsub.f32 %v2773, %v2835
        %v2866 = vsub.f32 %v2778, %v2837
        %v2867 = vsub.f32 %v2781, %v2839
        %v2868 = vsub.f32 %v2786, %v2841
        %v2869 = vsub.f32 %v2789, %v2843
        %v2870 = vsub.f32 %v2794, %v2845
        %v2871 = vsub.f32 %v2797, %v2847
        %v2872 = vsub.f32 %v2802, %v2849
        %v2873 = vsub.f32 %v2805, %v2851
        %v2874 = vsub.f32 %v2810, %v2853
        %v2875 = vsub.f32 %v2813, %v2855
        %v2876 = vsub.f32 %v2818, %v2857
        %v2877 = vsub.f32 %v2821, %v2859
        %v2878 = vsub.f32 %v2826, %v2861
        %v2879 = vsub.f32 %v2829, %v2863
        %v2880 = vmul.f32 %v2864, 1.442695
        %v2881 = vpow.pop %v2880
        %v2882 = vmul.f32 %v2865, 1.442695
        %v2883 = vpow.pop %v2882
        %v2884 = vmul.f32 %v2866, 1.442695
        %v2885 = vpow.pop %v2884
        %v2886 = vmul.f32 %v2867, 1.442695
        %v2887 = vpow.pop %v2886
        %v2888 = vmul.f32 %v2868, 1.442695
        %v2889 = vpow.pop %v2888
        %v2890 = vmul.f32 %v2869, 1.442695
        %v2891 = vpow.pop %v2890
        %v2892 = vmul.f32 %v2870, 1.442695
        %v2893 = vpow.pop %v2892
        %v2894 = vmul.f32 %v2871, 1.442695
        %v2895 = vpow.pop %v2894
        %v2896 = vmul.f32 %v2872, 1.442695
        %v2897 = vpow.pop %v2896
        %v2898 = vmul.f32 %v2873, 1.442695
        %v2899 = vpow.pop %v2898
        %v2900 = vmul.f32 %v2874, 1.442695
        %v2901 = vpow.pop %v2900
        %v2902 = vmul.f32 %v2875, 1.442695
        %v2903 = vpow.pop %v2902
        %v2904 = vmul.f32 %v2876, 1.442695
        %v2905 = vpow.pop %v2904
        %v2906 = vmul.f32 %v2877, 1.442695
        %v2907 = vpow.pop %v2906
        %v2908 = vmul.f32 %v2878, 1.442695
        %v2909 = vpow.pop %v2908
        %v2910 = vmul.f32 %v2879, 1.442695
        %v2911 = vpow.pop %v2910
        %2912 = vadd.xlane.f32.xlu0 %v2881
        %v2913 = vpop.xlane.xlu0 %2912
        %2914 = vadd.xlane.f32.xlu0 %v2883
        %v2915 = vpop.xlane.xlu0 %2914
        %2916 = vadd.xlane.f32.xlu0 %v2885
        %v2917 = vpop.xlane.xlu0 %2916
        %2918 = vadd.xlane.f32.xlu0 %v2887
        %v2919 = vpop.xlane.xlu0 %2918
        %2920 = vadd.xlane.f32.xlu0 %v2889
        %v2921 = vpop.xlane.xlu0 %2920
        %2922 = vadd.xlane.f32.xlu0 %v2891
        %v2923 = vpop.xlane.xlu0 %2922
        %2924 = vadd.xlane.f32.xlu0 %v2893
        %v2925 = vpop.xlane.xlu0 %2924
        %2926 = vadd.xlane.f32.xlu0 %v2895
        %v2927 = vpop.xlane.xlu0 %2926
        %2928 = vadd.xlane.f32.xlu0 %v2897
        %v2929 = vpop.xlane.xlu0 %2928
        %2930 = vadd.xlane.f32.xlu0 %v2899
        %v2931 = vpop.xlane.xlu0 %2930
        %2932 = vadd.xlane.f32.xlu0 %v2901
        %v2933 = vpop.xlane.xlu0 %2932
        %2934 = vadd.xlane.f32.xlu0 %v2903
        %v2935 = vpop.xlane.xlu0 %2934
        %2936 = vadd.xlane.f32.xlu0 %v2905
        %v2937 = vpop.xlane.xlu0 %2936
        %2938 = vadd.xlane.f32.xlu0 %v2907
        %v2939 = vpop.xlane.xlu0 %2938
        %2940 = vadd.xlane.f32.xlu0 %v2909
        %v2941 = vpop.xlane.xlu0 %2940
        %2942 = vadd.xlane.f32.xlu0 %v2911
        %v2943 = vpop.xlane.xlu0 %2942
        %v2944 = vrcp.pop %v2913
        %v2945 = vrcp.pop %v2915
        %v2946 = vrcp.pop %v2917
        %v2947 = vrcp.pop %v2919
        %v2948 = vrcp.pop %v2921
        %v2949 = vrcp.pop %v2923
        %v2950 = vrcp.pop %v2925
        %v2951 = vrcp.pop %v2927
        %v2952 = vrcp.pop %v2929
        %v2953 = vrcp.pop %v2931
        %v2954 = vrcp.pop %v2933
        %v2955 = vrcp.pop %v2935
        %v2956 = vrcp.pop %v2937
        %v2957 = vrcp.pop %v2939
        %v2958 = vrcp.pop %v2941
        %v2959 = vrcp.pop %v2943
        %v2960 = vmul.f32 %v2881, %v2944
        %v2961 = vmul.f32 %v2883, %v2945
        %v2962 = vmul.f32 %v2885, %v2946
        %v2963 = vmul.f32 %v2887, %v2947
        %v2964 = vmul.f32 %v2889, %v2948
        %v2965 = vmul.f32 %v2891, %v2949
        %v2966 = vmul.f32 %v2893, %v2950
        %v2967 = vmul.f32 %v2895, %v2951
        %v2968 = vmul.f32 %v2897, %v2952
        %v2969 = vmul.f32 %v2899, %v2953
        %v2970 = vmul.f32 %v2901, %v2954
        %v2971 = vmul.f32 %v2903, %v2955
        %v2972 = vmul.f32 %v2905, %v2956
        %v2973 = vmul.f32 %v2907, %v2957
        %v2974 = vmul.f32 %v2909, %v2958
        %v2975 = vmul.f32 %v2911, %v2959
        %v2976 = vpack.c.bf16 %v2961, %v2960
        %v2977 = vpack.c.bf16 %v2963, %v2962
        %v2978 = vpack.c.bf16 %v2965, %v2964
        %v2979 = vpack.c.bf16 %v2967, %v2966
        %v2980 = vpack.c.bf16 %v2969, %v2968
        %v2981 = vpack.c.bf16 %v2971, %v2970
        %v2982 = vpack.c.bf16 %v2973, %v2972
        %v2983 = vpack.c.bf16 %v2975, %v2974
        %2992 = vrot.lane.b32.xlu0 %v2228, 96
        %v2993 = vpop.permute.xlu0 %2992
        %2994 = vrot.lane.b32.xlu0 %v2229, 96
        %v2995 = vpop.permute.xlu0 %2994
        %2996 = vrot.lane.b32.xlu0 %v2230, 96
        %v2997 = vpop.permute.xlu0 %2996
        %2998 = vrot.lane.b32.xlu0 %v2231, 96
        %v2999 = vpop.permute.xlu0 %2998
        %3000 = vrot.lane.b32.xlu0 %v2232, 96
        %v3001 = vpop.permute.xlu0 %3000
        %3002 = vrot.lane.b32.xlu0 %v2233, 96
        %v3003 = vpop.permute.xlu0 %3002
        %3004 = vrot.lane.b32.xlu0 %v2234, 96
        %v3005 = vpop.permute.xlu0 %3004
        %3006 = vrot.lane.b32.xlu0 %v2235, 96
        %v3007 = vpop.permute.xlu0 %3006
        %3016 = vmatprep.subr.bf16.mxu0 0
        %3017 = vmatpush1.bf16.msra.mxu0 %v2993
        %3018 = vmatprep.subr.bf16.mxu0 0
        %3019 = vmatpush1.bf16.msra.mxu0 %v2995
        %3020 = vmatprep.subr.bf16.mxu0 0
        %3021 = vmatpush1.bf16.msra.mxu0 %v2997
        %3022 = vmatprep.subr.bf16.mxu0 0
        %3023 = vmatpush1.bf16.msra.mxu0 %v2999
        %3024 = vmatprep.subr.bf16.mxu0 0
        %3025 = vmatpush1.bf16.msra.mxu0 %v3001
        %3026 = vmatprep.subr.bf16.mxu0 0
        %3027 = vmatpush1.bf16.msra.mxu0 %v3003
        %3028 = vmatprep.subr.bf16.mxu0 0
        %3029 = vmatpush1.bf16.msra.mxu0 %v3005
        %3030 = vmatprep.subr.bf16.mxu0 0
        %3031 = vmatpush1.bf16.msra.mxu0 %v3007
        %3032 = vmatprep.subr.bf16.mxu0 0
        %3033 = vmatpush1.bf16.msra.mxu0 0
        %3034 = vmatprep.subr.bf16.mxu0 0
        %3035 = vmatpush1.bf16.msra.mxu0 0
        %3036 = vmatprep.subr.bf16.mxu0 0
        %3037 = vmatpush1.bf16.msra.mxu0 0
        %3038 = vmatprep.subr.bf16.mxu0 0
        %3039 = vmatpush1.bf16.msra.mxu0 0
        %3040 = vmatprep.subr.bf16.mxu0 0
        %3041 = vmatpush1.bf16.msra.mxu0 0
        %3042 = vmatprep.subr.bf16.mxu0 0
        %3043 = vmatpush1.bf16.msra.mxu0 0
        %3044 = vmatprep.subr.bf16.mxu0 0
        %3045 = vmatpush1.bf16.msra.mxu0 0
        %3046 = vmatprep.subr.bf16.mxu0 0
        %3047 = vmatpush1.bf16.msra.mxu0 0
        %3048 = vmatprep.mubr.bf16.mxu0 0
        %3049 = vmatmul.mubr.bf16.gmra.mrb[0].mxu0 %v2976
        %v3050 = vpop.f32.mrb[0].mxu0
        %v3051 = vadd.f32 0.0, %v3050
        %v3052 = vpop.f32.mrb[0].mxu0
        %v3053 = vpop.f32.mrb[0].mxu0
        %v3054 = vadd.f32 0.0, %v3053
        %v3055 = vpop.f32.mrb[0].mxu0
        %3056 = vmatprep.mubr.bf16.mxu0 0
        %3057 = vmatmul.mubr.bf16.gmra.mrb[0].mxu0 %v2977
        %v3058 = vpop.f32.mrb[0].mxu0
        %v3059 = vadd.f32 0.0, %v3058
        %v3060 = vpop.f32.mrb[0].mxu0
        %v3061 = vpop.f32.mrb[0].mxu0
        %v3062 = vadd.f32 0.0, %v3061
        %v3063 = vpop.f32.mrb[0].mxu0
        %3064 = vmatprep.mubr.bf16.mxu0 0
        %3065 = vmatmul.mubr.bf16.gmra.mrb[0].mxu0 %v2978
        %v3066 = vpop.f32.mrb[0].mxu0
        %v3067 = vadd.f32 0.0, %v3066
        %v3068 = vpop.f32.mrb[0].mxu0
        %v3069 = vpop.f32.mrb[0].mxu0
        %v3070 = vadd.f32 0.0, %v3069
        %v3071 = vpop.f32.mrb[0].mxu0
        %3072 = vmatprep.mubr.bf16.mxu0 0
        %3073 = vmatmul.mubr.bf16.gmra.mrb[0].mxu0 %v2979
        %v3074 = vpop.f32.mrb[0].mxu0
        %v3075 = vadd.f32 0.0, %v3074
        %v3076 = vpop.f32.mrb[0].mxu0
        %v3077 = vpop.f32.mrb[0].mxu0
        %v3078 = vadd.f32 0.0, %v3077
        %v3079 = vpop.f32.mrb[0].mxu0
        %3080 = vmatprep.mubr.bf16.mxu0 0
        %3081 = vmatmul.mubr.bf16.gmra.mrb[0].mxu0 %v2980
        %v3082 = vpop.f32.mrb[0].mxu0
        %v3083 = vadd.f32 0.0, %v3082
        %v3084 = vpop.f32.mrb[0].mxu0
        %v3085 = vpop.f32.mrb[0].mxu0
        %v3086 = vadd.f32 0.0, %v3085
        %v3087 = vpop.f32.mrb[0].mxu0
        %3088 = vmatprep.mubr.bf16.mxu0 0
        %3089 = vmatmul.mubr.bf16.gmra.mrb[0].mxu0 %v2981
        %v3090 = vpop.f32.mrb[0].mxu0
        %v3091 = vadd.f32 0.0, %v3090
        %v3092 = vpop.f32.mrb[0].mxu0
        %v3093 = vpop.f32.mrb[0].mxu0
        %v3094 = vadd.f32 0.0, %v3093
        %v3095 = vpop.f32.mrb[0].mxu0
        %3096 = vmatprep.mubr.bf16.mxu0 0
        %3097 = vmatmul.mubr.bf16.gmra.mrb[0].mxu0 %v2982
        %v3098 = vpop.f32.mrb[0].mxu0
        %v3099 = vadd.f32 0.0, %v3098
        %v3100 = vpop.f32.mrb[0].mxu0
        %v3101 = vpop.f32.mrb[0].mxu0
        %v3102 = vadd.f32 0.0, %v3101
        %v3103 = vpop.f32.mrb[0].mxu0
        %3104 = vmatprep.mubr.bf16.mxu0 0
        %3105 = vmatmul.mubr.bf16.gmra.mrb[0].mxu0 %v2983
        %v3106 = vpop.f32.mrb[0].mxu0
        %v3107 = vadd.f32 0.0, %v3106
        %v3108 = vpop.f32.mrb[0].mxu0
        %v3109 = vpop.f32.mrb[0].mxu0
        %v3110 = vadd.f32 0.0, %v3109
        %v3111 = vpop.f32.mrb[0].mxu0
        %3112 = vdwg.mxu0
        %v3113 = vpack.c.bf16 %v3054, %v3051
        %v3114 = vpack.c.bf16 %v3062, %v3059
        %v3115 = vpack.c.bf16 %v3070, %v3067
        %v3116 = vpack.c.bf16 %v3078, %v3075
        %v3117 = vpack.c.bf16 %v3086, %v3083
        %v3118 = vpack.c.bf16 %v3094, %v3091
        %v3119 = vpack.c.bf16 %v3102, %v3099
        %v3120 = vpack.c.bf16 %v3110, %v3107
        %v3125 = vunpack.c.l.b16 %v2200
        %v3126 = vunpack.c.l.b16 %v2201
        %v3127 = vunpack.c.l.b16 %v2202
        %v3128 = vunpack.c.l.b16 %v2203
        %v3129 = vpack.c.b16 %v3126, %v3125
        %v3130 = vpack.c.b16 %v3128, %v3127
        %v3134 = vsel %vm2236, %v3113, 0
        %v3137 = vsel %vm2236, %v3114, 0
        %v3140 = vsel %vm2236, %v3115, 0
        %v3143 = vsel %vm2236, %v3116, 0
        %v3146 = vsel %vm2236, %v3117, 0
        %v3149 = vsel %vm2236, %v3118, 0
        %v3152 = vsel %vm2236, %v3119, 0
        %v3155 = vsel %vm2236, %v3120, 0
        %3157 = vmatprep.subr.bf16.mxu0 0
        %3158 = vmatpush1.bf16.msra.mxu0 %v3129
        %3159 = vmatprep.subr.bf16.mxu0 0
        %3160 = vmatpush1.bf16.msra.mxu0 %v3130
        %3161 = vmatprep.subr.bf16.mxu0 0
        %3162 = vmatpush1.bf16.msra.mxu0 0
        %3163 = vmatprep.subr.bf16.mxu0 0
        %3164 = vmatpush1.bf16.msra.mxu0 0
        %3165 = vmatprep.subr.bf16.mxu0 0
        %3166 = vmatpush1.bf16.msra.mxu0 0
        %3167 = vmatprep.subr.bf16.mxu0 0
        %3168 = vmatpush1.bf16.msra.mxu0 0
        %3169 = vmatprep.subr.bf16.mxu0 0
        %3170 = vmatpush1.bf16.msra.mxu0 0
        %3171 = vmatprep.subr.bf16.mxu0 0
        %3172 = vmatpush1.bf16.msra.mxu0 0
        %3173 = vmatprep.subr.bf16.mxu0 0
        %3174 = vmatpush1.bf16.msra.mxu0 0
        %3175 = vmatprep.subr.bf16.mxu0 0
        %3176 = vmatpush1.bf16.msra.mxu0 0
        %3177 = vmatprep.subr.bf16.mxu0 0
        %3178 = vmatpush1.bf16.msra.mxu0 0
        %3179 = vmatprep.subr.bf16.mxu0 0
        %3180 = vmatpush1.bf16.msra.mxu0 0
        %3181 = vmatprep.subr.bf16.mxu0 0
        %3182 = vmatpush1.bf16.msra.mxu0 0
        %3183 = vmatprep.subr.bf16.mxu0 0
        %3184 = vmatpush1.bf16.msra.mxu0 0
        %3185 = vmatprep.subr.bf16.mxu0 0
        %3186 = vmatpush1.bf16.msra.mxu0 0
        %3187 = vmatprep.subr.bf16.mxu0 0
        %3188 = vmatpush1.bf16.msra.mxu0 0
        %3189 = vmatprep.mubr.bf16.mxu0 0
        %3190 = vmatmul.mubr.bf16.gmra.mrb[0].mxu0 %v3134
        %v3191 = vpop.f32.mrb[0].mxu0
        %v3192 = vadd.f32 0.0, %v3191
        %v3193 = vpop.f32.mrb[0].mxu0
        %v3194 = vpop.f32.mrb[0].mxu0
        %v3195 = vadd.f32 0.0, %v3194
        %v3196 = vpop.f32.mrb[0].mxu0
        %3197 = vmatprep.mubr.bf16.mxu0 0
        %3198 = vmatmul.mubr.bf16.gmra.mrb[0].mxu0 %v3137
        %v3199 = vpop.f32.mrb[0].mxu0
        %v3200 = vadd.f32 0.0, %v3199
        %v3201 = vpop.f32.mrb[0].mxu0
        %v3202 = vpop.f32.mrb[0].mxu0
        %v3203 = vadd.f32 0.0, %v3202
        %v3204 = vpop.f32.mrb[0].mxu0
        %3205 = vmatprep.mubr.bf16.mxu0 0
        %3206 = vmatmul.mubr.bf16.gmra.mrb[0].mxu0 %v3140
        %v3207 = vpop.f32.mrb[0].mxu0
        %v3208 = vadd.f32 0.0, %v3207
        %v3209 = vpop.f32.mrb[0].mxu0
        %v3210 = vpop.f32.mrb[0].mxu0
        %v3211 = vadd.f32 0.0, %v3210
        %v3212 = vpop.f32.mrb[0].mxu0
        %3213 = vmatprep.mubr.bf16.mxu0 0
        %3214 = vmatmul.mubr.bf16.gmra.mrb[0].mxu0 %v3143
        %v3215 = vpop.f32.mrb[0].mxu0
        %v3216 = vadd.f32 0.0, %v3215
        %v3217 = vpop.f32.mrb[0].mxu0
        %v3218 = vpop.f32.mrb[0].mxu0
        %v3219 = vadd.f32 0.0, %v3218
        %v3220 = vpop.f32.mrb[0].mxu0
        %3221 = vmatprep.mubr.bf16.mxu0 0
        %3222 = vmatmul.mubr.bf16.gmra.mrb[0].mxu0 %v3146
        %v3223 = vpop.f32.mrb[0].mxu0
        %v3224 = vadd.f32 0.0, %v3223
        %v3225 = vpop.f32.mrb[0].mxu0
        %v3226 = vpop.f32.mrb[0].mxu0
        %v3227 = vadd.f32 0.0, %v3226
        %v3228 = vpop.f32.mrb[0].mxu0
        %3229 = vmatprep.mubr.bf16.mxu0 0
        %3230 = vmatmul.mubr.bf16.gmra.mrb[0].mxu0 %v3149
        %v3231 = vpop.f32.mrb[0].mxu0
        %v3232 = vadd.f32 0.0, %v3231
        %v3233 = vpop.f32.mrb[0].mxu0
        %v3234 = vpop.f32.mrb[0].mxu0
        %v3235 = vadd.f32 0.0, %v3234
        %v3236 = vpop.f32.mrb[0].mxu0
        %3237 = vmatprep.mubr.bf16.mxu0 0
        %3238 = vmatmul.mubr.bf16.gmra.mrb[0].mxu0 %v3152
        %v3239 = vpop.f32.mrb[0].mxu0
        %v3240 = vadd.f32 0.0, %v3239
        %v3241 = vpop.f32.mrb[0].mxu0
        %v3242 = vpop.f32.mrb[0].mxu0
        %v3243 = vadd.f32 0.0, %v3242
        %v3244 = vpop.f32.mrb[0].mxu0
        %3245 = vmatprep.mubr.bf16.mxu0 0
        %3246 = vmatmul.mubr.bf16.gmra.mrb[0].mxu0 %v3155
        %v3247 = vpop.f32.mrb[0].mxu0
        %v3248 = vadd.f32 0.0, %v3247
        %v3249 = vpop.f32.mrb[0].mxu0
        %v3250 = vpop.f32.mrb[0].mxu0
        %v3251 = vadd.f32 0.0, %v3250
        %v3252 = vpop.f32.mrb[0].mxu0
        %3253 = vdwg.mxu0
        %v3258 = vunpack.c.l.b16 %v2196
        %v3259 = vunpack.c.l.b16 %v2197
        %v3260 = vunpack.c.l.b16 %v2198
        %v3261 = vunpack.c.l.b16 %v2199
        %v3262 = vpack.c.b16 %v3259, %v3258
        %v3263 = vpack.c.b16 %v3261, %v3260
        %v3267 = vsel %vm2236, %v2631, 0
        %v3270 = vsel %vm2236, %v2632, 0
        %v3273 = vsel %vm2236, %v2633, 0
        %v3276 = vsel %vm2236, %v2634, 0
        %v3279 = vsel %vm2236, %v2635, 0
        %v3282 = vsel %vm2236, %v2636, 0
        %v3285 = vsel %vm2236, %v2637, 0
        %v3288 = vsel %vm2236, %v2638, 0
        %3290 = vmatprep.subr.bf16.mxu0 0
        %3291 = vmatpush1.bf16.msra.mxu0 %v3262
        %3292 = vmatprep.subr.bf16.mxu0 0
        %3293 = vmatpush1.bf16.msra.mxu0 %v3263
        %3294 = vmatprep.subr.bf16.mxu0 0
        %3295 = vmatpush1.bf16.msra.mxu0 0
        %3296 = vmatprep.subr.bf16.mxu0 0
        %3297 = vmatpush1.bf16.msra.mxu0 0
        %3298 = vmatprep.subr.bf16.mxu0 0
        %3299 = vmatpush1.bf16.msra.mxu0 0
        %3300 = vmatprep.subr.bf16.mxu0 0
        %3301 = vmatpush1.bf16.msra.mxu0 0
        %3302 = vmatprep.subr.bf16.mxu0 0
        %3303 = vmatpush1.bf16.msra.mxu0 0
        %3304 = vmatprep.subr.bf16.mxu0 0
        %3305 = vmatpush1.bf16.msra.mxu0 0
        %3306 = vmatprep.subr.bf16.mxu0 0
        %3307 = vmatpush1.bf16.msra.mxu0 0
        %3308 = vmatprep.subr.bf16.mxu0 0
        %3309 = vmatpush1.bf16.msra.mxu0 0
        %3310 = vmatprep.subr.bf16.mxu0 0
        %3311 = vmatpush1.bf16.msra.mxu0 0
        %3312 = vmatprep.subr.bf16.mxu0 0
        %3313 = vmatpush1.bf16.msra.mxu0 0
        %3314 = vmatprep.subr.bf16.mxu0 0
        %3315 = vmatpush1.bf16.msra.mxu0 0
        %3316 = vmatprep.subr.bf16.mxu0 0
        %3317 = vmatpush1.bf16.msra.mxu0 0
        %3318 = vmatprep.subr.bf16.mxu0 0
        %3319 = vmatpush1.bf16.msra.mxu0 0
        %3320 = vmatprep.subr.bf16.mxu0 0
        %3321 = vmatpush1.bf16.msra.mxu0 0
        %3322 = vmatprep.mubr.bf16.mxu0 0
        %3323 = vmatmul.mubr.bf16.gmra.mrb[0].mxu0 %v3267
        %v3324 = vpop.f32.mrb[0].mxu0
        %v3325 = vadd.f32 %v3192, %v3324
        %v3326 = vpop.f32.mrb[0].mxu0
        %v3327 = vpop.f32.mrb[0].mxu0
        %v3328 = vadd.f32 %v3195, %v3327
        %v3329 = vpop.f32.mrb[0].mxu0
        %3330 = vmatprep.mubr.bf16.mxu0 0
        %3331 = vmatmul.mubr.bf16.gmra.mrb[0].mxu0 %v3270
        %v3332 = vpop.f32.mrb[0].mxu0
        %v3333 = vadd.f32 %v3200, %v3332
        %v3334 = vpop.f32.mrb[0].mxu0
        %v3335 = vpop.f32.mrb[0].mxu0
        %v3336 = vadd.f32 %v3203, %v3335
        %v3337 = vpop.f32.mrb[0].mxu0
        %3338 = vmatprep.mubr.bf16.mxu0 0
        %3339 = vmatmul.mubr.bf16.gmra.mrb[0].mxu0 %v3273
        %v3340 = vpop.f32.mrb[0].mxu0
        %v3341 = vadd.f32 %v3208, %v3340
        %v3342 = vpop.f32.mrb[0].mxu0
        %v3343 = vpop.f32.mrb[0].mxu0
        %v3344 = vadd.f32 %v3211, %v3343
        %v3345 = vpop.f32.mrb[0].mxu0
        %3346 = vmatprep.mubr.bf16.mxu0 0
        %3347 = vmatmul.mubr.bf16.gmra.mrb[0].mxu0 %v3276
        %v3348 = vpop.f32.mrb[0].mxu0
        %v3349 = vadd.f32 %v3216, %v3348
        %v3350 = vpop.f32.mrb[0].mxu0
        %v3351 = vpop.f32.mrb[0].mxu0
        %v3352 = vadd.f32 %v3219, %v3351
        %v3353 = vpop.f32.mrb[0].mxu0
        %3354 = vmatprep.mubr.bf16.mxu0 0
        %3355 = vmatmul.mubr.bf16.gmra.mrb[0].mxu0 %v3279
        %v3356 = vpop.f32.mrb[0].mxu0
        %v3357 = vadd.f32 %v3224, %v3356
        %v3358 = vpop.f32.mrb[0].mxu0
        %v3359 = vpop.f32.mrb[0].mxu0
        %v3360 = vadd.f32 %v3227, %v3359
        %v3361 = vpop.f32.mrb[0].mxu0
        %3362 = vmatprep.mubr.bf16.mxu0 0
        %3363 = vmatmul.mubr.bf16.gmra.mrb[0].mxu0 %v3282
        %v3364 = vpop.f32.mrb[0].mxu0
        %v3365 = vadd.f32 %v3232, %v3364
        %v3366 = vpop.f32.mrb[0].mxu0
        %v3367 = vpop.f32.mrb[0].mxu0
        %v3368 = vadd.f32 %v3235, %v3367
        %v3369 = vpop.f32.mrb[0].mxu0
        %3370 = vmatprep.mubr.bf16.mxu0 0
        %3371 = vmatmul.mubr.bf16.gmra.mrb[0].mxu0 %v3285
        %v3372 = vpop.f32.mrb[0].mxu0
        %v3373 = vadd.f32 %v3240, %v3372
        %v3374 = vpop.f32.mrb[0].mxu0
        %v3375 = vpop.f32.mrb[0].mxu0
        %v3376 = vadd.f32 %v3243, %v3375
        %v3377 = vpop.f32.mrb[0].mxu0
        %3378 = vmatprep.mubr.bf16.mxu0 0
        %3379 = vmatmul.mubr.bf16.gmra.mrb[0].mxu0 %v3288
        %v3380 = vpop.f32.mrb[0].mxu0
        %v3381 = vadd.f32 %v3248, %v3380
        %v3382 = vpop.f32.mrb[0].mxu0
        %v3383 = vpop.f32.mrb[0].mxu0
        %v3384 = vadd.f32 %v3251, %v3383
        %v3385 = vpop.f32.mrb[0].mxu0
        %3386 = vdwg.mxu0
        %3387 = vrot.lane.b32.xlu0 %v2212, 64
        %v3388 = vpop.permute.xlu0 %3387
        %3389 = vrot.lane.b32.xlu0 %v2213, 64
        %v3390 = vpop.permute.xlu0 %3389
        %3391 = vrot.lane.b32.xlu0 %v2214, 64
        %v3392 = vpop.permute.xlu0 %3391
        %3393 = vrot.lane.b32.xlu0 %v2215, 64
        %v3394 = vpop.permute.xlu0 %3393
        %3395 = vrot.lane.b32.xlu0 %v2216, 64
        %v3396 = vpop.permute.xlu0 %3395
        %3397 = vrot.lane.b32.xlu0 %v2217, 64
        %v3398 = vpop.permute.xlu0 %3397
        %3399 = vrot.lane.b32.xlu0 %v2218, 64
        %v3400 = vpop.permute.xlu0 %3399
        %3401 = vrot.lane.b32.xlu0 %v2219, 64
        %v3402 = vpop.permute.xlu0 %3401
        %3403 = vrot.lane.b32.xlu0 %v2220, 64
        %v3404 = vpop.permute.xlu0 %3403
        %3405 = vrot.lane.b32.xlu0 %v2221, 64
        %v3406 = vpop.permute.xlu0 %3405
        %3407 = vrot.lane.b32.xlu0 %v2222, 64
        %v3408 = vpop.permute.xlu0 %3407
        %3409 = vrot.lane.b32.xlu0 %v2223, 64
        %v3410 = vpop.permute.xlu0 %3409
        %3411 = vrot.lane.b32.xlu0 %v2224, 64
        %v3412 = vpop.permute.xlu0 %3411
        %3413 = vrot.lane.b32.xlu0 %v2225, 64
        %v3414 = vpop.permute.xlu0 %3413
        %3415 = vrot.lane.b32.xlu0 %v2226, 64
        %v3416 = vpop.permute.xlu0 %3415
        %3417 = vrot.lane.b32.xlu0 %v2227, 64
        %v3418 = vpop.permute.xlu0 %3417
        %v3420 = vsel %vm2236, %v3388, 0
        %v3423 = vsel %vm2236, %v3390, 0
        %v3426 = vsel %vm2236, %v3392, 0
        %v3429 = vsel %vm2236, %v3394, 0
        %v3432 = vsel %vm2236, %v3396, 0
        %v3435 = vsel %vm2236, %v3398, 0
        %v3438 = vsel %vm2236, %v3400, 0
        %v3441 = vsel %vm2236, %v3402, 0
        %v3444 = vsel %vm2236, %v3404, 0
        %v3447 = vsel %vm2236, %v3406, 0
        %v3450 = vsel %vm2236, %v3408, 0
        %v3453 = vsel %vm2236, %v3410, 0
        %v3456 = vsel %vm2236, %v3412, 0
        %v3459 = vsel %vm2236, %v3414, 0
        %v3462 = vsel %vm2236, %v3416, 0
        %v3465 = vsel %vm2236, %v3418, 0
        %3467 = vmatprep.subr.bf16.mxu0 0
        %3468 = vmatpush1.bf16.xpose.msra.mxu0 %v3444
        %3469 = vmatprep.subr.bf16.mxu0 0
        %3470 = vmatpush1.bf16.xpose.msra.mxu0 %v3447
        %3471 = vmatprep.subr.bf16.mxu0 0
        %3472 = vmatpush1.bf16.xpose.msra.mxu0 %v3450
        %3473 = vmatprep.subr.bf16.mxu0 0
        %3474 = vmatpush1.bf16.xpose.msra.mxu0 %v3453
        %3475 = vmatprep.subr.bf16.mxu0 0
        %3476 = vmatpush1.bf16.xpose.msra.mxu0 %v3456
        %3477 = vmatprep.subr.bf16.mxu0 0
        %3478 = vmatpush1.bf16.xpose.msra.mxu0 %v3459
        %3479 = vmatprep.subr.bf16.mxu0 0
        %3480 = vmatpush1.bf16.xpose.msra.mxu0 %v3462
        %3481 = vmatprep.subr.bf16.mxu0 0
        %3482 = vmatpush1.bf16.xpose.msra.mxu0 %v3465
        %3483 = vmatprep.subr.bf16.mxu0 0
        %3484 = vmatpush1.bf16.xpose.msra.mxu0 0
        %3485 = vmatprep.subr.bf16.mxu0 0
        %3486 = vmatpush1.bf16.xpose.msra.mxu0 0
        %3487 = vmatprep.subr.bf16.mxu0 0
        %3488 = vmatpush1.bf16.xpose.msra.mxu0 0
        %3489 = vmatprep.subr.bf16.mxu0 0
        %3490 = vmatpush1.bf16.xpose.msra.mxu0 0
        %3491 = vmatprep.subr.bf16.mxu0 0
        %3492 = vmatpush1.bf16.xpose.msra.mxu0 0
        %3493 = vmatprep.subr.bf16.mxu0 0
        %3494 = vmatpush1.bf16.xpose.msra.mxu0 0
        %3495 = vmatprep.subr.bf16.mxu0 0
        %3496 = vmatpush1.bf16.xpose.msra.mxu0 0
        %3497 = vmatprep.subr.bf16.mxu0 0
        %3498 = vmatpush1.bf16.xpose.msra.mxu0 0
        %3499 = vmatprep.mubr.bf16.mxu0 0
        %3500 = vmatmul.mubr.bf16.gmra.mrb[0].mxu0 %v3420
        %v3501 = vpop.f32.mrb[0].mxu0
        %v3502 = vadd.f32 %v1514, %v3501
        %v3503 = vpop.f32.mrb[0].mxu0
        %v3504 = vpop.f32.mrb[0].mxu0
        %v3505 = vadd.f32 %v1515, %v3504
        %v3506 = vpop.f32.mrb[0].mxu0
        %3507 = vmatprep.mubr.bf16.mxu0 0
        %3508 = vmatmul.mubr.bf16.gmra.mrb[0].mxu0 %v3423
        %v3509 = vpop.f32.mrb[0].mxu0
        %v3510 = vadd.f32 %v1516, %v3509
        %v3511 = vpop.f32.mrb[0].mxu0
        %v3512 = vpop.f32.mrb[0].mxu0
        %v3513 = vadd.f32 %v1517, %v3512
        %v3514 = vpop.f32.mrb[0].mxu0
        %3515 = vmatprep.mubr.bf16.mxu0 0
        %3516 = vmatmul.mubr.bf16.gmra.mrb[0].mxu0 %v3426
        %v3517 = vpop.f32.mrb[0].mxu0
        %v3518 = vadd.f32 %v1518, %v3517
        %v3519 = vpop.f32.mrb[0].mxu0
        %v3520 = vpop.f32.mrb[0].mxu0
        %v3521 = vadd.f32 %v1519, %v3520
        %v3522 = vpop.f32.mrb[0].mxu0
        %3523 = vmatprep.mubr.bf16.mxu0 0
        %3524 = vmatmul.mubr.bf16.gmra.mrb[0].mxu0 %v3429
        %v3525 = vpop.f32.mrb[0].mxu0
        %v3526 = vadd.f32 %v1520, %v3525
        %v3527 = vpop.f32.mrb[0].mxu0
        %v3528 = vpop.f32.mrb[0].mxu0
        %v3529 = vadd.f32 %v1521, %v3528
        %v3530 = vpop.f32.mrb[0].mxu0
        %3531 = vmatprep.mubr.bf16.mxu0 0
        %3532 = vmatmul.mubr.bf16.gmra.mrb[0].mxu0 %v3432
        %v3533 = vpop.f32.mrb[0].mxu0
        %v3534 = vadd.f32 %v1522, %v3533
        %v3535 = vpop.f32.mrb[0].mxu0
        %v3536 = vpop.f32.mrb[0].mxu0
        %v3537 = vadd.f32 %v1523, %v3536
        %v3538 = vpop.f32.mrb[0].mxu0
        %3539 = vmatprep.mubr.bf16.mxu0 0
        %3540 = vmatmul.mubr.bf16.gmra.mrb[0].mxu0 %v3435
        %v3541 = vpop.f32.mrb[0].mxu0
        %v3542 = vadd.f32 %v1524, %v3541
        %v3543 = vpop.f32.mrb[0].mxu0
        %v3544 = vpop.f32.mrb[0].mxu0
        %v3545 = vadd.f32 %v1525, %v3544
        %v3546 = vpop.f32.mrb[0].mxu0
        %3547 = vmatprep.mubr.bf16.mxu0 0
        %3548 = vmatmul.mubr.bf16.gmra.mrb[0].mxu0 %v3438
        %v3549 = vpop.f32.mrb[0].mxu0
        %v3550 = vadd.f32 %v1526, %v3549
        %v3551 = vpop.f32.mrb[0].mxu0
        %v3552 = vpop.f32.mrb[0].mxu0
        %v3553 = vadd.f32 %v1527, %v3552
        %v3554 = vpop.f32.mrb[0].mxu0
        %3555 = vmatprep.mubr.bf16.mxu0 0
        %3556 = vmatmul.mubr.bf16.gmra.mrb[0].mxu0 %v3441
        %v3557 = vpop.f32.mrb[0].mxu0
        %v3558 = vadd.f32 %v1528, %v3557
        %v3559 = vpop.f32.mrb[0].mxu0
        %v3560 = vpop.f32.mrb[0].mxu0
        %v3561 = vadd.f32 %v1529, %v3560
        %v3562 = vpop.f32.mrb[0].mxu0
        %3563 = vdwg.mxu0
        %3564 = vmax.xlane.f32.xlu0 %v3502
        %v3565 = vpop.xlane.xlu0 %3564
        %3566 = vmax.xlane.f32.xlu0 %v3505
        %v3567 = vpop.xlane.xlu0 %3566
        %3568 = vmax.xlane.f32.xlu0 %v3510
        %v3569 = vpop.xlane.xlu0 %3568
        %3570 = vmax.xlane.f32.xlu0 %v3513
        %v3571 = vpop.xlane.xlu0 %3570
        %3572 = vmax.xlane.f32.xlu0 %v3518
        %v3573 = vpop.xlane.xlu0 %3572
        %3574 = vmax.xlane.f32.xlu0 %v3521
        %v3575 = vpop.xlane.xlu0 %3574
        %3576 = vmax.xlane.f32.xlu0 %v3526
        %v3577 = vpop.xlane.xlu0 %3576
        %3578 = vmax.xlane.f32.xlu0 %v3529
        %v3579 = vpop.xlane.xlu0 %3578
        %3580 = vmax.xlane.f32.xlu0 %v3534
        %v3581 = vpop.xlane.xlu0 %3580
        %3582 = vmax.xlane.f32.xlu0 %v3537
        %v3583 = vpop.xlane.xlu0 %3582
        %3584 = vmax.xlane.f32.xlu0 %v3542
        %v3585 = vpop.xlane.xlu0 %3584
        %3586 = vmax.xlane.f32.xlu0 %v3545
        %v3587 = vpop.xlane.xlu0 %3586
        %3588 = vmax.xlane.f32.xlu0 %v3550
        %v3589 = vpop.xlane.xlu0 %3588
        %3590 = vmax.xlane.f32.xlu0 %v3553
        %v3591 = vpop.xlane.xlu0 %3590
        %3592 = vmax.xlane.f32.xlu0 %v3558
        %v3593 = vpop.xlane.xlu0 %3592
        %3594 = vmax.xlane.f32.xlu0 %v3561
        %v3595 = vpop.xlane.xlu0 %3594
        %v3596 = vsub.f32 %v3502, %v3565
        %v3597 = vsub.f32 %v3505, %v3567
        %v3598 = vsub.f32 %v3510, %v3569
        %v3599 = vsub.f32 %v3513, %v3571
        %v3600 = vsub.f32 %v3518, %v3573
        %v3601 = vsub.f32 %v3521, %v3575
        %v3602 = vsub.f32 %v3526, %v3577
        %v3603 = vsub.f32 %v3529, %v3579
        %v3604 = vsub.f32 %v3534, %v3581
        %v3605 = vsub.f32 %v3537, %v3583
        %v3606 = vsub.f32 %v3542, %v3585
        %v3607 = vsub.f32 %v3545, %v3587
        %v3608 = vsub.f32 %v3550, %v3589
        %v3609 = vsub.f32 %v3553, %v3591
        %v3610 = vsub.f32 %v3558, %v3593
        %v3611 = vsub.f32 %v3561, %v3595
        %v3612 = vmul.f32 %v3596, 1.442695
        %v3613 = vpow.pop %v3612
        %v3614 = vmul.f32 %v3597, 1.442695
        %v3615 = vpow.pop %v3614
        %v3616 = vmul.f32 %v3598, 1.442695
        %v3617 = vpow.pop %v3616
        %v3618 = vmul.f32 %v3599, 1.442695
        %v3619 = vpow.pop %v3618
        %v3620 = vmul.f32 %v3600, 1.442695
        %v3621 = vpow.pop %v3620
        %v3622 = vmul.f32 %v3601, 1.442695
        %v3623 = vpow.pop %v3622
        %v3624 = vmul.f32 %v3602, 1.442695
        %v3625 = vpow.pop %v3624
        %v3626 = vmul.f32 %v3603, 1.442695
        %v3627 = vpow.pop %v3626
        %v3628 = vmul.f32 %v3604, 1.442695
        %v3629 = vpow.pop %v3628
        %v3630 = vmul.f32 %v3605, 1.442695
        %v3631 = vpow.pop %v3630
        %v3632 = vmul.f32 %v3606, 1.442695
        %v3633 = vpow.pop %v3632
        %v3634 = vmul.f32 %v3607, 1.442695
        %v3635 = vpow.pop %v3634
        %v3636 = vmul.f32 %v3608, 1.442695
        %v3637 = vpow.pop %v3636
        %v3638 = vmul.f32 %v3609, 1.442695
        %v3639 = vpow.pop %v3638
        %v3640 = vmul.f32 %v3610, 1.442695
        %v3641 = vpow.pop %v3640
        %v3642 = vmul.f32 %v3611, 1.442695
        %v3643 = vpow.pop %v3642
        %3644 = vadd.xlane.f32.xlu0 %v3613
        %v3645 = vpop.xlane.xlu0 %3644
        %3646 = vadd.xlane.f32.xlu0 %v3615
        %v3647 = vpop.xlane.xlu0 %3646
        %3648 = vadd.xlane.f32.xlu0 %v3617
        %v3649 = vpop.xlane.xlu0 %3648
        %3650 = vadd.xlane.f32.xlu0 %v3619
        %v3651 = vpop.xlane.xlu0 %3650
        %3652 = vadd.xlane.f32.xlu0 %v3621
        %v3653 = vpop.xlane.xlu0 %3652
        %3654 = vadd.xlane.f32.xlu0 %v3623
        %v3655 = vpop.xlane.xlu0 %3654
        %3656 = vadd.xlane.f32.xlu0 %v3625
        %v3657 = vpop.xlane.xlu0 %3656
        %3658 = vadd.xlane.f32.xlu0 %v3627
        %v3659 = vpop.xlane.xlu0 %3658
        %3660 = vadd.xlane.f32.xlu0 %v3629
        %v3661 = vpop.xlane.xlu0 %3660
        %3662 = vadd.xlane.f32.xlu0 %v3631
        %v3663 = vpop.xlane.xlu0 %3662
        %3664 = vadd.xlane.f32.xlu0 %v3633
        %v3665 = vpop.xlane.xlu0 %3664
        %3666 = vadd.xlane.f32.xlu0 %v3635
        %v3667 = vpop.xlane.xlu0 %3666
        %3668 = vadd.xlane.f32.xlu0 %v3637
        %v3669 = vpop.xlane.xlu0 %3668
        %3670 = vadd.xlane.f32.xlu0 %v3639
        %v3671 = vpop.xlane.xlu0 %3670
        %3672 = vadd.xlane.f32.xlu0 %v3641
        %v3673 = vpop.xlane.xlu0 %3672
        %3674 = vadd.xlane.f32.xlu0 %v3643
        %v3675 = vpop.xlane.xlu0 %3674
        %v3676 = vrcp.pop %v3645
        %v3677 = vrcp.pop %v3647
        %v3678 = vrcp.pop %v3649
        %v3679 = vrcp.pop %v3651
        %v3680 = vrcp.pop %v3653
        %v3681 = vrcp.pop %v3655
        %v3682 = vrcp.pop %v3657
        %v3683 = vrcp.pop %v3659
        %v3684 = vrcp.pop %v3661
        %v3685 = vrcp.pop %v3663
        %v3686 = vrcp.pop %v3665
        %v3687 = vrcp.pop %v3667
        %v3688 = vrcp.pop %v3669
        %v3689 = vrcp.pop %v3671
        %v3690 = vrcp.pop %v3673
        %v3691 = vrcp.pop %v3675
        %v3692 = vmul.f32 %v3613, %v3676
        %v3693 = vmul.f32 %v3615, %v3677
        %v3694 = vmul.f32 %v3617, %v3678
        %v3695 = vmul.f32 %v3619, %v3679
        %v3696 = vmul.f32 %v3621, %v3680
        %v3697 = vmul.f32 %v3623, %v3681
        %v3698 = vmul.f32 %v3625, %v3682
        %v3699 = vmul.f32 %v3627, %v3683
        %v3700 = vmul.f32 %v3629, %v3684
        %v3701 = vmul.f32 %v3631, %v3685
        %v3702 = vmul.f32 %v3633, %v3686
        %v3703 = vmul.f32 %v3635, %v3687
        %v3704 = vmul.f32 %v3637, %v3688
        %v3705 = vmul.f32 %v3639, %v3689
        %v3706 = vmul.f32 %v3641, %v3690
        %v3707 = vmul.f32 %v3643, %v3691
        %v3708 = vpack.c.bf16 %v3693, %v3692
        %v3709 = vpack.c.bf16 %v3695, %v3694
        %v3710 = vpack.c.bf16 %v3697, %v3696
        %v3711 = vpack.c.bf16 %v3699, %v3698
        %v3712 = vpack.c.bf16 %v3701, %v3700
        %v3713 = vpack.c.bf16 %v3703, %v3702
        %v3714 = vpack.c.bf16 %v3705, %v3704
        %v3715 = vpack.c.bf16 %v3707, %v3706
        %3716 = vrot.lane.b32.xlu0 %v2228, 64
        %v3717 = vpop.permute.xlu0 %3716
        %3718 = vrot.lane.b32.xlu0 %v2229, 64
        %v3719 = vpop.permute.xlu0 %3718
        %3720 = vrot.lane.b32.xlu0 %v2230, 64
        %v3721 = vpop.permute.xlu0 %3720
        %3722 = vrot.lane.b32.xlu0 %v2231, 64
        %v3723 = vpop.permute.xlu0 %3722
        %3724 = vrot.lane.b32.xlu0 %v2232, 64
        %v3725 = vpop.permute.xlu0 %3724
        %3726 = vrot.lane.b32.xlu0 %v2233, 64
        %v3727 = vpop.permute.xlu0 %3726
        %3728 = vrot.lane.b32.xlu0 %v2234, 64
        %v3729 = vpop.permute.xlu0 %3728
        %3730 = vrot.lane.b32.xlu0 %v2235, 64
        %v3731 = vpop.permute.xlu0 %3730
        %3740 = vmatprep.subr.bf16.mxu0 0
        %3741 = vmatpush1.bf16.msra.mxu0 %v3717
        %3742 = vmatprep.subr.bf16.mxu0 0
        %3743 = vmatpush1.bf16.msra.mxu0 %v3719
        %3744 = vmatprep.subr.bf16.mxu0 0
        %3745 = vmatpush1.bf16.msra.mxu0 %v3721
        %3746 = vmatprep.subr.bf16.mxu0 0
        %3747 = vmatpush1.bf16.msra.mxu0 %v3723
        %3748 = vmatprep.subr.bf16.mxu0 0
        %3749 = vmatpush1.bf16.msra.mxu0 %v3725
        %3750 = vmatprep.subr.bf16.mxu0 0
        %3751 = vmatpush1.bf16.msra.mxu0 %v3727
        %3752 = vmatprep.subr.bf16.mxu0 0
        %3753 = vmatpush1.bf16.msra.mxu0 %v3729
        %3754 = vmatprep.subr.bf16.mxu0 0
        %3755 = vmatpush1.bf16.msra.mxu0 %v3731
        %3756 = vmatprep.subr.bf16.mxu0 0
        %3757 = vmatpush1.bf16.msra.mxu0 0
        %3758 = vmatprep.subr.bf16.mxu0 0
        %3759 = vmatpush1.bf16.msra.mxu0 0
        %3760 = vmatprep.subr.bf16.mxu0 0
        %3761 = vmatpush1.bf16.msra.mxu0 0
        %3762 = vmatprep.subr.bf16.mxu0 0
        %3763 = vmatpush1.bf16.msra.mxu0 0
        %3764 = vmatprep.subr.bf16.mxu0 0
        %3765 = vmatpush1.bf16.msra.mxu0 0
        %3766 = vmatprep.subr.bf16.mxu0 0
        %3767 = vmatpush1.bf16.msra.mxu0 0
        %3768 = vmatprep.subr.bf16.mxu0 0
        %3769 = vmatpush1.bf16.msra.mxu0 0
        %3770 = vmatprep.subr.bf16.mxu0 0
        %3771 = vmatpush1.bf16.msra.mxu0 0
        %3772 = vmatprep.mubr.bf16.mxu0 0
        %3773 = vmatmul.mubr.bf16.gmra.mrb[0].mxu0 %v3708
        %v3774 = vpop.f32.mrb[0].mxu0
        %v3775 = vadd.f32 0.0, %v3774
        %v3776 = vpop.f32.mrb[0].mxu0
        %v3777 = vpop.f32.mrb[0].mxu0
        %v3778 = vadd.f32 0.0, %v3777
        %v3779 = vpop.f32.mrb[0].mxu0
        %3780 = vmatprep.mubr.bf16.mxu0 0
        %3781 = vmatmul.mubr.bf16.gmra.mrb[0].mxu0 %v3709
        %v3782 = vpop.f32.mrb[0].mxu0
        %v3783 = vadd.f32 0.0, %v3782
        %v3784 = vpop.f32.mrb[0].mxu0
        %v3785 = vpop.f32.mrb[0].mxu0
        %v3786 = vadd.f32 0.0, %v3785
        %v3787 = vpop.f32.mrb[0].mxu0
        %3788 = vmatprep.mubr.bf16.mxu0 0
        %3789 = vmatmul.mubr.bf16.gmra.mrb[0].mxu0 %v3710
        %v3790 = vpop.f32.mrb[0].mxu0
        %v3791 = vadd.f32 0.0, %v3790
        %v3792 = vpop.f32.mrb[0].mxu0
        %v3793 = vpop.f32.mrb[0].mxu0
        %v3794 = vadd.f32 0.0, %v3793
        %v3795 = vpop.f32.mrb[0].mxu0
        %3796 = vmatprep.mubr.bf16.mxu0 0
        %3797 = vmatmul.mubr.bf16.gmra.mrb[0].mxu0 %v3711
        %v3798 = vpop.f32.mrb[0].mxu0
        %v3799 = vadd.f32 0.0, %v3798
        %v3800 = vpop.f32.mrb[0].mxu0
        %v3801 = vpop.f32.mrb[0].mxu0
        %v3802 = vadd.f32 0.0, %v3801
        %v3803 = vpop.f32.mrb[0].mxu0
        %3804 = vmatprep.mubr.bf16.mxu0 0
        %3805 = vmatmul.mubr.bf16.gmra.mrb[0].mxu0 %v3712
        %v3806 = vpop.f32.mrb[0].mxu0
        %v3807 = vadd.f32 0.0, %v3806
        %v3808 = vpop.f32.mrb[0].mxu0
        %v3809 = vpop.f32.mrb[0].mxu0
        %v3810 = vadd.f32 0.0, %v3809
        %v3811 = vpop.f32.mrb[0].mxu0
        %3812 = vmatprep.mubr.bf16.mxu0 0
        %3813 = vmatmul.mubr.bf16.gmra.mrb[0].mxu0 %v3713
        %v3814 = vpop.f32.mrb[0].mxu0
        %v3815 = vadd.f32 0.0, %v3814
        %v3816 = vpop.f32.mrb[0].mxu0
        %v3817 = vpop.f32.mrb[0].mxu0
        %v3818 = vadd.f32 0.0, %v3817
        %v3819 = vpop.f32.mrb[0].mxu0
        %3820 = vmatprep.mubr.bf16.mxu0 0
        %3821 = vmatmul.mubr.bf16.gmra.mrb[0].mxu0 %v3714
        %v3822 = vpop.f32.mrb[0].mxu0
        %v3823 = vadd.f32 0.0, %v3822
        %v3824 = vpop.f32.mrb[0].mxu0
        %v3825 = vpop.f32.mrb[0].mxu0
        %v3826 = vadd.f32 0.0, %v3825
        %v3827 = vpop.f32.mrb[0].mxu0
        %3828 = vmatprep.mubr.bf16.mxu0 0
        %3829 = vmatmul.mubr.bf16.gmra.mrb[0].mxu0 %v3715
        %v3830 = vpop.f32.mrb[0].mxu0
        %v3831 = vadd.f32 0.0, %v3830
        %v3832 = vpop.f32.mrb[0].mxu0
        %v3833 = vpop.f32.mrb[0].mxu0
        %v3834 = vadd.f32 0.0, %v3833
        %v3835 = vpop.f32.mrb[0].mxu0
        %3836 = vdwg.mxu0
        %v3837 = vpack.c.bf16 %v3778, %v3775
        %v3838 = vpack.c.bf16 %v3786, %v3783
        %v3839 = vpack.c.bf16 %v3794, %v3791
        %v3840 = vpack.c.bf16 %v3802, %v3799
        %v3841 = vpack.c.bf16 %v3810, %v3807
        %v3842 = vpack.c.bf16 %v3818, %v3815
        %v3843 = vpack.c.bf16 %v3826, %v3823
        %v3844 = vpack.c.bf16 %v3834, %v3831
        %v3849 = vunpack.c.l.b16 %v2204
        %v3850 = vunpack.c.l.b16 %v2205
        %v3851 = vunpack.c.l.b16 %v2206
        %v3852 = vunpack.c.l.b16 %v2207
        %v3853 = vpack.c.b16 %v3850, %v3849
        %v3854 = vpack.c.b16 %v3852, %v3851
        %v3858 = vsel %vm2236, %v3837, 0
        %v3861 = vsel %vm2236, %v3838, 0
        %v3864 = vsel %vm2236, %v3839, 0
        %v3867 = vsel %vm2236, %v3840, 0
        %v3870 = vsel %vm2236, %v3841, 0
        %v3873 = vsel %vm2236, %v3842, 0
        %v3876 = vsel %vm2236, %v3843, 0
        %v3879 = vsel %vm2236, %v3844, 0
        %3881 = vmatprep.subr.bf16.mxu0 0
        %3882 = vmatpush1.bf16.msra.mxu0 %v3853
        %3883 = vmatprep.subr.bf16.mxu0 0
        %3884 = vmatpush1.bf16.msra.mxu0 %v3854
        %3885 = vmatprep.subr.bf16.mxu0 0
        %3886 = vmatpush1.bf16.msra.mxu0 0
        %3887 = vmatprep.subr.bf16.mxu0 0
        %3888 = vmatpush1.bf16.msra.mxu0 0
        %3889 = vmatprep.subr.bf16.mxu0 0
        %3890 = vmatpush1.bf16.msra.mxu0 0
        %3891 = vmatprep.subr.bf16.mxu0 0
        %3892 = vmatpush1.bf16.msra.mxu0 0
        %3893 = vmatprep.subr.bf16.mxu0 0
        %3894 = vmatpush1.bf16.msra.mxu0 0
        %3895 = vmatprep.subr.bf16.mxu0 0
        %3896 = vmatpush1.bf16.msra.mxu0 0
        %3897 = vmatprep.subr.bf16.mxu0 0
        %3898 = vmatpush1.bf16.msra.mxu0 0
        %3899 = vmatprep.subr.bf16.mxu0 0
        %3900 = vmatpush1.bf16.msra.mxu0 0
        %3901 = vmatprep.subr.bf16.mxu0 0
        %3902 = vmatpush1.bf16.msra.mxu0 0
        %3903 = vmatprep.subr.bf16.mxu0 0
        %3904 = vmatpush1.bf16.msra.mxu0 0
        %3905 = vmatprep.subr.bf16.mxu0 0
        %3906 = vmatpush1.bf16.msra.mxu0 0
        %3907 = vmatprep.subr.bf16.mxu0 0
        %3908 = vmatpush1.bf16.msra.mxu0 0
        %3909 = vmatprep.subr.bf16.mxu0 0
        %3910 = vmatpush1.bf16.msra.mxu0 0
        %3911 = vmatprep.subr.bf16.mxu0 0
        %3912 = vmatpush1.bf16.msra.mxu0 0
        %3913 = vmatprep.mubr.bf16.mxu0 0
        %3914 = vmatmul.mubr.bf16.gmra.mrb[0].mxu0 %v3858
        %v3915 = vpop.f32.mrb[0].mxu0
        %v3916 = vadd.f32 0.0, %v3915
        %v3917 = vpop.f32.mrb[0].mxu0
        %v3918 = vpop.f32.mrb[0].mxu0
        %v3919 = vadd.f32 0.0, %v3918
        %v3920 = vpop.f32.mrb[0].mxu0
        %3921 = vmatprep.mubr.bf16.mxu0 0
        %3922 = vmatmul.mubr.bf16.gmra.mrb[0].mxu0 %v3861
        %v3923 = vpop.f32.mrb[0].mxu0
        %v3924 = vadd.f32 0.0, %v3923
        %v3925 = vpop.f32.mrb[0].mxu0
        %v3926 = vpop.f32.mrb[0].mxu0
        %v3927 = vadd.f32 0.0, %v3926
        %v3928 = vpop.f32.mrb[0].mxu0
        %3929 = vmatprep.mubr.bf16.mxu0 0
        %3930 = vmatmul.mubr.bf16.gmra.mrb[0].mxu0 %v3864
        %v3931 = vpop.f32.mrb[0].mxu0
        %v3932 = vadd.f32 0.0, %v3931
        %v3933 = vpop.f32.mrb[0].mxu0
        %v3934 = vpop.f32.mrb[0].mxu0
        %v3935 = vadd.f32 0.0, %v3934
        %v3936 = vpop.f32.mrb[0].mxu0
        %3937 = vmatprep.mubr.bf16.mxu0 0
        %3938 = vmatmul.mubr.bf16.gmra.mrb[0].mxu0 %v3867
        %v3939 = vpop.f32.mrb[0].mxu0
        %v3940 = vadd.f32 0.0, %v3939
        %v3941 = vpop.f32.mrb[0].mxu0
        %v3942 = vpop.f32.mrb[0].mxu0
        %v3943 = vadd.f32 0.0, %v3942
        %v3944 = vpop.f32.mrb[0].mxu0
        %3945 = vmatprep.mubr.bf16.mxu0 0
        %3946 = vmatmul.mubr.bf16.gmra.mrb[0].mxu0 %v3870
        %v3947 = vpop.f32.mrb[0].mxu0
        %v3948 = vadd.f32 0.0, %v3947
        %v3949 = vpop.f32.mrb[0].mxu0
        %v3950 = vpop.f32.mrb[0].mxu0
        %v3951 = vadd.f32 0.0, %v3950
        %v3952 = vpop.f32.mrb[0].mxu0
        %3953 = vmatprep.mubr.bf16.mxu0 0
        %3954 = vmatmul.mubr.bf16.gmra.mrb[0].mxu0 %v3873
        %v3955 = vpop.f32.mrb[0].mxu0
        %v3956 = vadd.f32 0.0, %v3955
        %v3957 = vpop.f32.mrb[0].mxu0
        %v3958 = vpop.f32.mrb[0].mxu0
        %v3959 = vadd.f32 0.0, %v3958
        %v3960 = vpop.f32.mrb[0].mxu0
        %3961 = vmatprep.mubr.bf16.mxu0 0
        %3962 = vmatmul.mubr.bf16.gmra.mrb[0].mxu0 %v3876
        %v3963 = vpop.f32.mrb[0].mxu0
        %v3964 = vadd.f32 0.0, %v3963
        %v3965 = vpop.f32.mrb[0].mxu0
        %v3966 = vpop.f32.mrb[0].mxu0
        %v3967 = vadd.f32 0.0, %v3966
        %v3968 = vpop.f32.mrb[0].mxu0
        %3969 = vmatprep.mubr.bf16.mxu0 0
        %3970 = vmatmul.mubr.bf16.gmra.mrb[0].mxu0 %v3879
        %v3971 = vpop.f32.mrb[0].mxu0
        %v3972 = vadd.f32 0.0, %v3971
        %v3973 = vpop.f32.mrb[0].mxu0
        %v3974 = vpop.f32.mrb[0].mxu0
        %v3975 = vadd.f32 0.0, %v3974
        %v3976 = vpop.f32.mrb[0].mxu0
        %3977 = vdwg.mxu0
        %v3978 = vadd.f32 %v3325, %v3916
        %v3979 = vadd.f32 %v3328, %v3919
        %v3980 = vadd.f32 %v3333, %v3924
        %v3981 = vadd.f32 %v3336, %v3927
        %v3982 = vadd.f32 %v3341, %v3932
        %v3983 = vadd.f32 %v3344, %v3935
        %v3984 = vadd.f32 %v3349, %v3940
        %v3985 = vadd.f32 %v3352, %v3943
        %v3986 = vadd.f32 %v3357, %v3948
        %v3987 = vadd.f32 %v3360, %v3951
        %v3988 = vadd.f32 %v3365, %v3956
        %v3989 = vadd.f32 %v3368, %v3959
        %v3990 = vadd.f32 %v3373, %v3964
        %v3991 = vadd.f32 %v3376, %v3967
        %v3992 = vadd.f32 %v3381, %v3972
        %v3993 = vadd.f32 %v3384, %v3975
        %3994 = vrot.lane.b32.xlu0 %v2212, 32
        %v3995 = vpop.permute.xlu0 %3994
        %3996 = vrot.lane.b32.xlu0 %v2213, 32
        %v3997 = vpop.permute.xlu0 %3996
        %3998 = vrot.lane.b32.xlu0 %v2214, 32
        %v3999 = vpop.permute.xlu0 %3998
        %4000 = vrot.lane.b32.xlu0 %v2215, 32
        %v4001 = vpop.permute.xlu0 %4000
        %4002 = vrot.lane.b32.xlu0 %v2216, 32
        %v4003 = vpop.permute.xlu0 %4002
        %4004 = vrot.lane.b32.xlu0 %v2217, 32
        %v4005 = vpop.permute.xlu0 %4004
        %4006 = vrot.lane.b32.xlu0 %v2218, 32
        %v4007 = vpop.permute.xlu0 %4006
        %4008 = vrot.lane.b32.xlu0 %v2219, 32
        %v4009 = vpop.permute.xlu0 %4008
        %4010 = vrot.lane.b32.xlu0 %v2220, 32
        %v4011 = vpop.permute.xlu0 %4010
        %4012 = vrot.lane.b32.xlu0 %v2221, 32
        %v4013 = vpop.permute.xlu0 %4012
        %4014 = vrot.lane.b32.xlu0 %v2222, 32
        %v4015 = vpop.permute.xlu0 %4014
        %4016 = vrot.lane.b32.xlu0 %v2223, 32
        %v4017 = vpop.permute.xlu0 %4016
        %4018 = vrot.lane.b32.xlu0 %v2224, 32
        %v4019 = vpop.permute.xlu0 %4018
        %4020 = vrot.lane.b32.xlu0 %v2225, 32
        %v4021 = vpop.permute.xlu0 %4020
        %4022 = vrot.lane.b32.xlu0 %v2226, 32
        %v4023 = vpop.permute.xlu0 %4022
        %4024 = vrot.lane.b32.xlu0 %v2227, 32
        %v4025 = vpop.permute.xlu0 %4024
        %v4027 = vsel %vm2236, %v3995, 0
        %v4030 = vsel %vm2236, %v3997, 0
        %v4033 = vsel %vm2236, %v3999, 0
        %v4036 = vsel %vm2236, %v4001, 0
        %v4039 = vsel %vm2236, %v4003, 0
        %v4042 = vsel %vm2236, %v4005, 0
        %v4045 = vsel %vm2236, %v4007, 0
        %v4048 = vsel %vm2236, %v4009, 0
        %v4051 = vsel %vm2236, %v4011, 0
        %v4054 = vsel %vm2236, %v4013, 0
        %v4057 = vsel %vm2236, %v4015, 0
        %v4060 = vsel %vm2236, %v4017, 0
        %v4063 = vsel %vm2236, %v4019, 0
        %v4066 = vsel %vm2236, %v4021, 0
        %v4069 = vsel %vm2236, %v4023, 0
        %v4072 = vsel %vm2236, %v4025, 0
        %4074 = vmatprep.subr.bf16.mxu0 0
        %4075 = vmatpush1.bf16.xpose.msra.mxu0 %v4051
        %4076 = vmatprep.subr.bf16.mxu0 0
        %4077 = vmatpush1.bf16.xpose.msra.mxu0 %v4054
        %4078 = vmatprep.subr.bf16.mxu0 0
        %4079 = vmatpush1.bf16.xpose.msra.mxu0 %v4057
        %4080 = vmatprep.subr.bf16.mxu0 0
        %4081 = vmatpush1.bf16.xpose.msra.mxu0 %v4060
        %4082 = vmatprep.subr.bf16.mxu0 0
        %4083 = vmatpush1.bf16.xpose.msra.mxu0 %v4063
        %4084 = vmatprep.subr.bf16.mxu0 0
        %4085 = vmatpush1.bf16.xpose.msra.mxu0 %v4066
        %4086 = vmatprep.subr.bf16.mxu0 0
        %4087 = vmatpush1.bf16.xpose.msra.mxu0 %v4069
        %4088 = vmatprep.subr.bf16.mxu0 0
        %4089 = vmatpush1.bf16.xpose.msra.mxu0 %v4072
        %4090 = vmatprep.subr.bf16.mxu0 0
        %4091 = vmatpush1.bf16.xpose.msra.mxu0 0
        %4092 = vmatprep.subr.bf16.mxu0 0
        %4093 = vmatpush1.bf16.xpose.msra.mxu0 0
        %4094 = vmatprep.subr.bf16.mxu0 0
        %4095 = vmatpush1.bf16.xpose.msra.mxu0 0
        %4096 = vmatprep.subr.bf16.mxu0 0
        %4097 = vmatpush1.bf16.xpose.msra.mxu0 0
        %4098 = vmatprep.subr.bf16.mxu0 0
        %4099 = vmatpush1.bf16.xpose.msra.mxu0 0
        %4100 = vmatprep.subr.bf16.mxu0 0
        %4101 = vmatpush1.bf16.xpose.msra.mxu0 0
        %4102 = vmatprep.subr.bf16.mxu0 0
        %4103 = vmatpush1.bf16.xpose.msra.mxu0 0
        %4104 = vmatprep.subr.bf16.mxu0 0
        %4105 = vmatpush1.bf16.xpose.msra.mxu0 0
        %4106 = vmatprep.mubr.bf16.mxu0 0
        %4107 = vmatmul.mubr.bf16.gmra.mrb[0].mxu0 %v4027
        %v4108 = vpop.f32.mrb[0].mxu0
        %v4109 = vadd.f32 %v1514, %v4108
        %v4110 = vpop.f32.mrb[0].mxu0
        %v4111 = vpop.f32.mrb[0].mxu0
        %v4112 = vadd.f32 %v1515, %v4111
        %v4113 = vpop.f32.mrb[0].mxu0
        %4114 = vmatprep.mubr.bf16.mxu0 0
        %4115 = vmatmul.mubr.bf16.gmra.mrb[0].mxu0 %v4030
        %v4116 = vpop.f32.mrb[0].mxu0
        %v4117 = vadd.f32 %v1516, %v4116
        %v4118 = vpop.f32.mrb[0].mxu0
        %v4119 = vpop.f32.mrb[0].mxu0
        %v4120 = vadd.f32 %v1517, %v4119
        %v4121 = vpop.f32.mrb[0].mxu0
        %4122 = vmatprep.mubr.bf16.mxu0 0
        %4123 = vmatmul.mubr.bf16.gmra.mrb[0].mxu0 %v4033
        %v4124 = vpop.f32.mrb[0].mxu0
        %v4125 = vadd.f32 %v1518, %v4124
        %v4126 = vpop.f32.mrb[0].mxu0
        %v4127 = vpop.f32.mrb[0].mxu0
        %v4128 = vadd.f32 %v1519, %v4127
        %v4129 = vpop.f32.mrb[0].mxu0
        %4130 = vmatprep.mubr.bf16.mxu0 0
        %4131 = vmatmul.mubr.bf16.gmra.mrb[0].mxu0 %v4036
        %v4132 = vpop.f32.mrb[0].mxu0
        %v4133 = vadd.f32 %v1520, %v4132
        %v4134 = vpop.f32.mrb[0].mxu0
        %v4135 = vpop.f32.mrb[0].mxu0
        %v4136 = vadd.f32 %v1521, %v4135
        %v4137 = vpop.f32.mrb[0].mxu0
        %4138 = vmatprep.mubr.bf16.mxu0 0
        %4139 = vmatmul.mubr.bf16.gmra.mrb[0].mxu0 %v4039
        %v4140 = vpop.f32.mrb[0].mxu0
        %v4141 = vadd.f32 %v1522, %v4140
        %v4142 = vpop.f32.mrb[0].mxu0
        %v4143 = vpop.f32.mrb[0].mxu0
        %v4144 = vadd.f32 %v1523, %v4143
        %v4145 = vpop.f32.mrb[0].mxu0
        %4146 = vmatprep.mubr.bf16.mxu0 0
        %4147 = vmatmul.mubr.bf16.gmra.mrb[0].mxu0 %v4042
        %v4148 = vpop.f32.mrb[0].mxu0
        %v4149 = vadd.f32 %v1524, %v4148
        %v4150 = vpop.f32.mrb[0].mxu0
        %v4151 = vpop.f32.mrb[0].mxu0
        %v4152 = vadd.f32 %v1525, %v4151
        %v4153 = vpop.f32.mrb[0].mxu0
        %4154 = vmatprep.mubr.bf16.mxu0 0
        %4155 = vmatmul.mubr.bf16.gmra.mrb[0].mxu0 %v4045
        %v4156 = vpop.f32.mrb[0].mxu0
        %v4157 = vadd.f32 %v1526, %v4156
        %v4158 = vpop.f32.mrb[0].mxu0
        %v4159 = vpop.f32.mrb[0].mxu0
        %v4160 = vadd.f32 %v1527, %v4159
        %v4161 = vpop.f32.mrb[0].mxu0
        %4162 = vmatprep.mubr.bf16.mxu0 0
        %4163 = vmatmul.mubr.bf16.gmra.mrb[0].mxu0 %v4048
        %v4164 = vpop.f32.mrb[0].mxu0
        %v4165 = vadd.f32 %v1528, %v4164
        %v4166 = vpop.f32.mrb[0].mxu0
        %v4167 = vpop.f32.mrb[0].mxu0
        %v4168 = vadd.f32 %v1529, %v4167
        %v4169 = vpop.f32.mrb[0].mxu0
        %4170 = vdwg.mxu0
        %4171 = vmax.xlane.f32.xlu0 %v4109
        %v4172 = vpop.xlane.xlu0 %4171
        %4173 = vmax.xlane.f32.xlu0 %v4112
        %v4174 = vpop.xlane.xlu0 %4173
        %4175 = vmax.xlane.f32.xlu0 %v4117
        %v4176 = vpop.xlane.xlu0 %4175
        %4177 = vmax.xlane.f32.xlu0 %v4120
        %v4178 = vpop.xlane.xlu0 %4177
        %4179 = vmax.xlane.f32.xlu0 %v4125
        %v4180 = vpop.xlane.xlu0 %4179
        %4181 = vmax.xlane.f32.xlu0 %v4128
        %v4182 = vpop.xlane.xlu0 %4181
        %4183 = vmax.xlane.f32.xlu0 %v4133
        %v4184 = vpop.xlane.xlu0 %4183
        %4185 = vmax.xlane.f32.xlu0 %v4136
        %v4186 = vpop.xlane.xlu0 %4185
        %4187 = vmax.xlane.f32.xlu0 %v4141
        %v4188 = vpop.xlane.xlu0 %4187
        %4189 = vmax.xlane.f32.xlu0 %v4144
        %v4190 = vpop.xlane.xlu0 %4189
        %4191 = vmax.xlane.f32.xlu0 %v4149
        %v4192 = vpop.xlane.xlu0 %4191
        %4193 = vmax.xlane.f32.xlu0 %v4152
        %v4194 = vpop.xlane.xlu0 %4193
        %4195 = vmax.xlane.f32.xlu0 %v4157
        %v4196 = vpop.xlane.xlu0 %4195
        %4197 = vmax.xlane.f32.xlu0 %v4160
        %v4198 = vpop.xlane.xlu0 %4197
        %4199 = vmax.xlane.f32.xlu0 %v4165
        %v4200 = vpop.xlane.xlu0 %4199
        %4201 = vmax.xlane.f32.xlu0 %v4168
        %v4202 = vpop.xlane.xlu0 %4201
        %v4203 = vsub.f32 %v4109, %v4172
        %v4204 = vsub.f32 %v4112, %v4174
        %v4205 = vsub.f32 %v4117, %v4176
        %v4206 = vsub.f32 %v4120, %v4178
        %v4207 = vsub.f32 %v4125, %v4180
        %v4208 = vsub.f32 %v4128, %v4182
        %v4209 = vsub.f32 %v4133, %v4184
        %v4210 = vsub.f32 %v4136, %v4186
        %v4211 = vsub.f32 %v4141, %v4188
        %v4212 = vsub.f32 %v4144, %v4190
        %v4213 = vsub.f32 %v4149, %v4192
        %v4214 = vsub.f32 %v4152, %v4194
        %v4215 = vsub.f32 %v4157, %v4196
        %v4216 = vsub.f32 %v4160, %v4198
        %v4217 = vsub.f32 %v4165, %v4200
        %v4218 = vsub.f32 %v4168, %v4202
        %v4219 = vmul.f32 %v4203, 1.442695
        %v4220 = vpow.pop %v4219
        %v4221 = vmul.f32 %v4204, 1.442695
        %v4222 = vpow.pop %v4221
        %v4223 = vmul.f32 %v4205, 1.442695
        %v4224 = vpow.pop %v4223
        %v4225 = vmul.f32 %v4206, 1.442695
        %v4226 = vpow.pop %v4225
        %v4227 = vmul.f32 %v4207, 1.442695
        %v4228 = vpow.pop %v4227
        %v4229 = vmul.f32 %v4208, 1.442695
        %v4230 = vpow.pop %v4229
        %v4231 = vmul.f32 %v4209, 1.442695
        %v4232 = vpow.pop %v4231
        %v4233 = vmul.f32 %v4210, 1.442695
        %v4234 = vpow.pop %v4233
        %v4235 = vmul.f32 %v4211, 1.442695
        %v4236 = vpow.pop %v4235
        %v4237 = vmul.f32 %v4212, 1.442695
        %v4238 = vpow.pop %v4237
        %v4239 = vmul.f32 %v4213, 1.442695
        %v4240 = vpow.pop %v4239
        %v4241 = vmul.f32 %v4214, 1.442695
        %v4242 = vpow.pop %v4241
        %v4243 = vmul.f32 %v4215, 1.442695
        %v4244 = vpow.pop %v4243
        %v4245 = vmul.f32 %v4216, 1.442695
        %v4246 = vpow.pop %v4245
        %v4247 = vmul.f32 %v4217, 1.442695
        %v4248 = vpow.pop %v4247
        %v4249 = vmul.f32 %v4218, 1.442695
        %v4250 = vpow.pop %v4249
        %4251 = vadd.xlane.f32.xlu0 %v4220
        %v4252 = vpop.xlane.xlu0 %4251
        %4253 = vadd.xlane.f32.xlu0 %v4222
        %v4254 = vpop.xlane.xlu0 %4253
        %4255 = vadd.xlane.f32.xlu0 %v4224
        %v4256 = vpop.xlane.xlu0 %4255
        %4257 = vadd.xlane.f32.xlu0 %v4226
        %v4258 = vpop.xlane.xlu0 %4257
        %4259 = vadd.xlane.f32.xlu0 %v4228
        %v4260 = vpop.xlane.xlu0 %4259
        %4261 = vadd.xlane.f32.xlu0 %v4230
        %v4262 = vpop.xlane.xlu0 %4261
        %4263 = vadd.xlane.f32.xlu0 %v4232
        %v4264 = vpop.xlane.xlu0 %4263
        %4265 = vadd.xlane.f32.xlu0 %v4234
        %v4266 = vpop.xlane.xlu0 %4265
        %4267 = vadd.xlane.f32.xlu0 %v4236
        %v4268 = vpop.xlane.xlu0 %4267
        %4269 = vadd.xlane.f32.xlu0 %v4238
        %v4270 = vpop.xlane.xlu0 %4269
        %4271 = vadd.xlane.f32.xlu0 %v4240
        %v4272 = vpop.xlane.xlu0 %4271
        %4273 = vadd.xlane.f32.xlu0 %v4242
        %v4274 = vpop.xlane.xlu0 %4273
        %4275 = vadd.xlane.f32.xlu0 %v4244
        %v4276 = vpop.xlane.xlu0 %4275
        %4277 = vadd.xlane.f32.xlu0 %v4246
        %v4278 = vpop.xlane.xlu0 %4277
        %4279 = vadd.xlane.f32.xlu0 %v4248
        %v4280 = vpop.xlane.xlu0 %4279
        %4281 = vadd.xlane.f32.xlu0 %v4250
        %v4282 = vpop.xlane.xlu0 %4281
        %v4283 = vrcp.pop %v4252
        %v4284 = vrcp.pop %v4254
        %v4285 = vrcp.pop %v4256
        %v4286 = vrcp.pop %v4258
        %v4287 = vrcp.pop %v4260
        %v4288 = vrcp.pop %v4262
        %v4289 = vrcp.pop %v4264
        %v4290 = vrcp.pop %v4266
        %v4291 = vrcp.pop %v4268
        %v4292 = vrcp.pop %v4270
        %v4293 = vrcp.pop %v4272
        %v4294 = vrcp.pop %v4274
        %v4295 = vrcp.pop %v4276
        %v4296 = vrcp.pop %v4278
        %v4297 = vrcp.pop %v4280
        %v4298 = vrcp.pop %v4282
        %v4299 = vmul.f32 %v4220, %v4283
        %v4300 = vmul.f32 %v4222, %v4284
        %v4301 = vmul.f32 %v4224, %v4285
        %v4302 = vmul.f32 %v4226, %v4286
        %v4303 = vmul.f32 %v4228, %v4287
        %v4304 = vmul.f32 %v4230, %v4288
        %v4305 = vmul.f32 %v4232, %v4289
        %v4306 = vmul.f32 %v4234, %v4290
        %v4307 = vmul.f32 %v4236, %v4291
        %v4308 = vmul.f32 %v4238, %v4292
        %v4309 = vmul.f32 %v4240, %v4293
        %v4310 = vmul.f32 %v4242, %v4294
        %v4311 = vmul.f32 %v4244, %v4295
        %v4312 = vmul.f32 %v4246, %v4296
        %v4313 = vmul.f32 %v4248, %v4297
        %v4314 = vmul.f32 %v4250, %v4298
        %v4315 = vpack.c.bf16 %v4300, %v4299
        %v4316 = vpack.c.bf16 %v4302, %v4301
        %v4317 = vpack.c.bf16 %v4304, %v4303
        %v4318 = vpack.c.bf16 %v4306, %v4305
        %v4319 = vpack.c.bf16 %v4308, %v4307
        %v4320 = vpack.c.bf16 %v4310, %v4309
        %v4321 = vpack.c.bf16 %v4312, %v4311
        %v4322 = vpack.c.bf16 %v4314, %v4313
        %4323 = vrot.lane.b32.xlu0 %v2228, 32
        %v4324 = vpop.permute.xlu0 %4323
        %4325 = vrot.lane.b32.xlu0 %v2229, 32
        %v4326 = vpop.permute.xlu0 %4325
        %4327 = vrot.lane.b32.xlu0 %v2230, 32
        %v4328 = vpop.permute.xlu0 %4327
        %4329 = vrot.lane.b32.xlu0 %v2231, 32
        %v4330 = vpop.permute.xlu0 %4329
        %4331 = vrot.lane.b32.xlu0 %v2232, 32
        %v4332 = vpop.permute.xlu0 %4331
        %4333 = vrot.lane.b32.xlu0 %v2233, 32
        %v4334 = vpop.permute.xlu0 %4333
        %4335 = vrot.lane.b32.xlu0 %v2234, 32
        %v4336 = vpop.permute.xlu0 %4335
        %4337 = vrot.lane.b32.xlu0 %v2235, 32
        %v4338 = vpop.permute.xlu0 %4337
        %4347 = vmatprep.subr.bf16.mxu0 0
        %4348 = vmatpush1.bf16.msra.mxu0 %v4324
        %4349 = vmatprep.subr.bf16.mxu0 0
        %4350 = vmatpush1.bf16.msra.mxu0 %v4326
        %4351 = vmatprep.subr.bf16.mxu0 0
        %4352 = vmatpush1.bf16.msra.mxu0 %v4328
        %4353 = vmatprep.subr.bf16.mxu0 0
        %4354 = vmatpush1.bf16.msra.mxu0 %v4330
        %4355 = vmatprep.subr.bf16.mxu0 0
        %4356 = vmatpush1.bf16.msra.mxu0 %v4332
        %4357 = vmatprep.subr.bf16.mxu0 0
        %4358 = vmatpush1.bf16.msra.mxu0 %v4334
        %4359 = vmatprep.subr.bf16.mxu0 0
        %4360 = vmatpush1.bf16.msra.mxu0 %v4336
        %4361 = vmatprep.subr.bf16.mxu0 0
        %4362 = vmatpush1.bf16.msra.mxu0 %v4338
        %4363 = vmatprep.subr.bf16.mxu0 0
        %4364 = vmatpush1.bf16.msra.mxu0 0
        %4365 = vmatprep.subr.bf16.mxu0 0
        %4366 = vmatpush1.bf16.msra.mxu0 0
        %4367 = vmatprep.subr.bf16.mxu0 0
        %4368 = vmatpush1.bf16.msra.mxu0 0
        %4369 = vmatprep.subr.bf16.mxu0 0
        %4370 = vmatpush1.bf16.msra.mxu0 0
        %4371 = vmatprep.subr.bf16.mxu0 0
        %4372 = vmatpush1.bf16.msra.mxu0 0
        %4373 = vmatprep.subr.bf16.mxu0 0
        %4374 = vmatpush1.bf16.msra.mxu0 0
        %4375 = vmatprep.subr.bf16.mxu0 0
        %4376 = vmatpush1.bf16.msra.mxu0 0
        %4377 = vmatprep.subr.bf16.mxu0 0
        %4378 = vmatpush1.bf16.msra.mxu0 0
        %4379 = vmatprep.mubr.bf16.mxu0 0
        %4380 = vmatmul.mubr.bf16.gmra.mrb[0].mxu0 %v4315
        %v4381 = vpop.f32.mrb[0].mxu0
        %v4382 = vadd.f32 0.0, %v4381
        %v4383 = vpop.f32.mrb[0].mxu0
        %v4384 = vpop.f32.mrb[0].mxu0
        %v4385 = vadd.f32 0.0, %v4384
        %v4386 = vpop.f32.mrb[0].mxu0
        %4387 = vmatprep.mubr.bf16.mxu0 0
        %4388 = vmatmul.mubr.bf16.gmra.mrb[0].mxu0 %v4316
        %v4389 = vpop.f32.mrb[0].mxu0
        %v4390 = vadd.f32 0.0, %v4389
        %v4391 = vpop.f32.mrb[0].mxu0
        %v4392 = vpop.f32.mrb[0].mxu0
        %v4393 = vadd.f32 0.0, %v4392
        %v4394 = vpop.f32.mrb[0].mxu0
        %4395 = vmatprep.mubr.bf16.mxu0 0
        %4396 = vmatmul.mubr.bf16.gmra.mrb[0].mxu0 %v4317
        %v4397 = vpop.f32.mrb[0].mxu0
        %v4398 = vadd.f32 0.0, %v4397
        %v4399 = vpop.f32.mrb[0].mxu0
        %v4400 = vpop.f32.mrb[0].mxu0
        %v4401 = vadd.f32 0.0, %v4400
        %v4402 = vpop.f32.mrb[0].mxu0
        %4403 = vmatprep.mubr.bf16.mxu0 0
        %4404 = vmatmul.mubr.bf16.gmra.mrb[0].mxu0 %v4318
        %v4405 = vpop.f32.mrb[0].mxu0
        %v4406 = vadd.f32 0.0, %v4405
        %v4407 = vpop.f32.mrb[0].mxu0
        %v4408 = vpop.f32.mrb[0].mxu0
        %v4409 = vadd.f32 0.0, %v4408
        %v4410 = vpop.f32.mrb[0].mxu0
        %4411 = vmatprep.mubr.bf16.mxu0 0
        %4412 = vmatmul.mubr.bf16.gmra.mrb[0].mxu0 %v4319
        %v4413 = vpop.f32.mrb[0].mxu0
        %v4414 = vadd.f32 0.0, %v4413
        %v4415 = vpop.f32.mrb[0].mxu0
        %v4416 = vpop.f32.mrb[0].mxu0
        %v4417 = vadd.f32 0.0, %v4416
        %v4418 = vpop.f32.mrb[0].mxu0
        %4419 = vmatprep.mubr.bf16.mxu0 0
        %4420 = vmatmul.mubr.bf16.gmra.mrb[0].mxu0 %v4320
        %v4421 = vpop.f32.mrb[0].mxu0
        %v4422 = vadd.f32 0.0, %v4421
        %v4423 = vpop.f32.mrb[0].mxu0
        %v4424 = vpop.f32.mrb[0].mxu0
        %v4425 = vadd.f32 0.0, %v4424
        %v4426 = vpop.f32.mrb[0].mxu0
        %4427 = vmatprep.mubr.bf16.mxu0 0
        %4428 = vmatmul.mubr.bf16.gmra.mrb[0].mxu0 %v4321
        %v4429 = vpop.f32.mrb[0].mxu0
        %v4430 = vadd.f32 0.0, %v4429
        %v4431 = vpop.f32.mrb[0].mxu0
        %v4432 = vpop.f32.mrb[0].mxu0
        %v4433 = vadd.f32 0.0, %v4432
        %v4434 = vpop.f32.mrb[0].mxu0
        %4435 = vmatprep.mubr.bf16.mxu0 0
        %4436 = vmatmul.mubr.bf16.gmra.mrb[0].mxu0 %v4322
        %v4437 = vpop.f32.mrb[0].mxu0
        %v4438 = vadd.f32 0.0, %v4437
        %v4439 = vpop.f32.mrb[0].mxu0
        %v4440 = vpop.f32.mrb[0].mxu0
        %v4441 = vadd.f32 0.0, %v4440
        %v4442 = vpop.f32.mrb[0].mxu0
        %4443 = vdwg.mxu0
        %v4444 = vpack.c.bf16 %v4385, %v4382
        %v4445 = vpack.c.bf16 %v4393, %v4390
        %v4446 = vpack.c.bf16 %v4401, %v4398
        %v4447 = vpack.c.bf16 %v4409, %v4406
        %v4448 = vpack.c.bf16 %v4417, %v4414
        %v4449 = vpack.c.bf16 %v4425, %v4422
        %v4450 = vpack.c.bf16 %v4433, %v4430
        %v4451 = vpack.c.bf16 %v4441, %v4438
        %v4456 = vunpack.c.l.b16 %v2208
        %v4457 = vunpack.c.l.b16 %v2209
        %v4458 = vunpack.c.l.b16 %v2210
        %v4459 = vunpack.c.l.b16 %v2211
        %v4460 = vpack.c.b16 %v4457, %v4456
        %v4461 = vpack.c.b16 %v4459, %v4458
        %v4465 = vsel %vm2236, %v4444, 0
        %v4468 = vsel %vm2236, %v4445, 0
        %v4471 = vsel %vm2236, %v4446, 0
        %v4474 = vsel %vm2236, %v4447, 0
        %v4477 = vsel %vm2236, %v4448, 0
        %v4480 = vsel %vm2236, %v4449, 0
        %v4483 = vsel %vm2236, %v4450, 0
        %v4486 = vsel %vm2236, %v4451, 0
        %4488 = vmatprep.subr.bf16.mxu0 0
        %4489 = vmatpush1.bf16.msra.mxu0 %v4460
        %4490 = vmatprep.subr.bf16.mxu0 0
        %4491 = vmatpush1.bf16.msra.mxu0 %v4461
        %4492 = vmatprep.subr.bf16.mxu0 0
        %4493 = vmatpush1.bf16.msra.mxu0 0
        %4494 = vmatprep.subr.bf16.mxu0 0
        %4495 = vmatpush1.bf16.msra.mxu0 0
        %4496 = vmatprep.subr.bf16.mxu0 0
        %4497 = vmatpush1.bf16.msra.mxu0 0
        %4498 = vmatprep.subr.bf16.mxu0 0
        %4499 = vmatpush1.bf16.msra.mxu0 0
        %4500 = vmatprep.subr.bf16.mxu0 0
        %4501 = vmatpush1.bf16.msra.mxu0 0
        %4502 = vmatprep.subr.bf16.mxu0 0
        %4503 = vmatpush1.bf16.msra.mxu0 0
        %4504 = vmatprep.subr.bf16.mxu0 0
        %4505 = vmatpush1.bf16.msra.mxu0 0
        %4506 = vmatprep.subr.bf16.mxu0 0
        %4507 = vmatpush1.bf16.msra.mxu0 0
        %4508 = vmatprep.subr.bf16.mxu0 0
        %4509 = vmatpush1.bf16.msra.mxu0 0
        %4510 = vmatprep.subr.bf16.mxu0 0
        %4511 = vmatpush1.bf16.msra.mxu0 0
        %4512 = vmatprep.subr.bf16.mxu0 0
        %4513 = vmatpush1.bf16.msra.mxu0 0
        %4514 = vmatprep.subr.bf16.mxu0 0
        %4515 = vmatpush1.bf16.msra.mxu0 0
        %4516 = vmatprep.subr.bf16.mxu0 0
        %4517 = vmatpush1.bf16.msra.mxu0 0
        %4518 = vmatprep.subr.bf16.mxu0 0
        %4519 = vmatpush1.bf16.msra.mxu0 0
        %4520 = vmatprep.mubr.bf16.mxu0 0
        %4521 = vmatmul.mubr.bf16.gmra.mrb[0].mxu0 %v4465
        %v4522 = vpop.f32.mrb[0].mxu0
        %v4523 = vadd.f32 0.0, %v4522
        %v4524 = vpop.f32.mrb[0].mxu0
        %v4525 = vpop.f32.mrb[0].mxu0
        %v4526 = vadd.f32 0.0, %v4525
        %v4527 = vpop.f32.mrb[0].mxu0
        %4528 = vmatprep.mubr.bf16.mxu0 0
        %4529 = vmatmul.mubr.bf16.gmra.mrb[0].mxu0 %v4468
        %v4530 = vpop.f32.mrb[0].mxu0
        %v4531 = vadd.f32 0.0, %v4530
        %v4532 = vpop.f32.mrb[0].mxu0
        %v4533 = vpop.f32.mrb[0].mxu0
        %v4534 = vadd.f32 0.0, %v4533
        %v4535 = vpop.f32.mrb[0].mxu0
        %4536 = vmatprep.mubr.bf16.mxu0 0
        %4537 = vmatmul.mubr.bf16.gmra.mrb[0].mxu0 %v4471
        %v4538 = vpop.f32.mrb[0].mxu0
        %v4539 = vadd.f32 0.0, %v4538
        %v4540 = vpop.f32.mrb[0].mxu0
        %v4541 = vpop.f32.mrb[0].mxu0
        %v4542 = vadd.f32 0.0, %v4541
        %v4543 = vpop.f32.mrb[0].mxu0
        %4544 = vmatprep.mubr.bf16.mxu0 0
        %4545 = vmatmul.mubr.bf16.gmra.mrb[0].mxu0 %v4474
        %v4546 = vpop.f32.mrb[0].mxu0
        %v4547 = vadd.f32 0.0, %v4546
        %v4548 = vpop.f32.mrb[0].mxu0
        %v4549 = vpop.f32.mrb[0].mxu0
        %v4550 = vadd.f32 0.0, %v4549
        %v4551 = vpop.f32.mrb[0].mxu0
        %4552 = vmatprep.mubr.bf16.mxu0 0
        %4553 = vmatmul.mubr.bf16.gmra.mrb[0].mxu0 %v4477
        %v4554 = vpop.f32.mrb[0].mxu0
        %v4555 = vadd.f32 0.0, %v4554
        %v4556 = vpop.f32.mrb[0].mxu0
        %v4557 = vpop.f32.mrb[0].mxu0
        %v4558 = vadd.f32 0.0, %v4557
        %v4559 = vpop.f32.mrb[0].mxu0
        %4560 = vmatprep.mubr.bf16.mxu0 0
        %4561 = vmatmul.mubr.bf16.gmra.mrb[0].mxu0 %v4480
        %v4562 = vpop.f32.mrb[0].mxu0
        %v4563 = vadd.f32 0.0, %v4562
        %v4564 = vpop.f32.mrb[0].mxu0
        %v4565 = vpop.f32.mrb[0].mxu0
        %v4566 = vadd.f32 0.0, %v4565
        %v4567 = vpop.f32.mrb[0].mxu0
        %4568 = vmatprep.mubr.bf16.mxu0 0
        %4569 = vmatmul.mubr.bf16.gmra.mrb[0].mxu0 %v4483
        %v4570 = vpop.f32.mrb[0].mxu0
        %v4571 = vadd.f32 0.0, %v4570
        %v4572 = vpop.f32.mrb[0].mxu0
        %v4573 = vpop.f32.mrb[0].mxu0
        %v4574 = vadd.f32 0.0, %v4573
        %v4575 = vpop.f32.mrb[0].mxu0
        %4576 = vmatprep.mubr.bf16.mxu0 0
        %4577 = vmatmul.mubr.bf16.gmra.mrb[0].mxu0 %v4486
        %v4578 = vpop.f32.mrb[0].mxu0
        %v4579 = vadd.f32 0.0, %v4578
        %v4580 = vpop.f32.mrb[0].mxu0
        %v4581 = vpop.f32.mrb[0].mxu0
        %v4582 = vadd.f32 0.0, %v4581
        %v4583 = vpop.f32.mrb[0].mxu0
        %4584 = vdwg.mxu0
        %v4585 = vadd.f32 %v3978, %v4523
        %v4586 = vadd.f32 %v3979, %v4526
        %v4587 = vadd.f32 %v3980, %v4531
        %v4588 = vadd.f32 %v3981, %v4534
        %v4589 = vadd.f32 %v3982, %v4539
        %v4590 = vadd.f32 %v3983, %v4542
        %v4591 = vadd.f32 %v3984, %v4547
        %v4592 = vadd.f32 %v3985, %v4550
        %v4593 = vadd.f32 %v3986, %v4555
        %v4594 = vadd.f32 %v3987, %v4558
        %v4595 = vadd.f32 %v3988, %v4563
        %v4596 = vadd.f32 %v3989, %v4566
        %v4597 = vadd.f32 %v3990, %v4571
        %v4598 = vadd.f32 %v3991, %v4574
        %v4599 = vadd.f32 %v3992, %v4579
        %v4600 = vadd.f32 %v3993, %v4582
        %v4601 = vadd.f32 %v1498, %v4585
        %v4602 = vadd.f32 %v1499, %v4586
        %v4603 = vadd.f32 %v1500, %v4587
        %v4604 = vadd.f32 %v1501, %v4588
        %v4605 = vadd.f32 %v1502, %v4589
        %v4606 = vadd.f32 %v1503, %v4590
        %v4607 = vadd.f32 %v1504, %v4591
        %v4608 = vadd.f32 %v1505, %v4592
        %v4609 = vadd.f32 %v1506, %v4593
        %v4610 = vadd.f32 %v1507, %v4594
        %v4611 = vadd.f32 %v1508, %v4595
        %v4612 = vadd.f32 %v1509, %v4596
        %v4613 = vadd.f32 %v1510, %v4597
        %v4614 = vadd.f32 %v1511, %v4598
        %v4615 = vadd.f32 %v1512, %v4599
        %v4616 = vadd.f32 %v1513, %v4600
        %v4617 = vld [vmem:[%s10] sm:$0x1]
        %v4619 = vlaneseq
        %v4620 = vshrl.u32 %v4619, 7
        %v4621 = vsub.s32 0, %v4620
        %v4622 = vrot.slane %v4617, %v4621
        %v4624 = vadd.f32 %v4601, %v4622
        %v4625 = vadd.f32 %v4602, %v4622
        %v4626 = vadd.f32 %v4603, %v4622
        %v4627 = vadd.f32 %v4604, %v4622
        %v4628 = vadd.f32 %v4605, %v4622
        %v4629 = vadd.f32 %v4606, %v4622
        %v4630 = vadd.f32 %v4607, %v4622
        %v4631 = vadd.f32 %v4608, %v4622
        %v4632 = vadd.f32 %v4609, %v4622
        %v4633 = vadd.f32 %v4610, %v4622
        %v4634 = vadd.f32 %v4611, %v4622
        %v4635 = vadd.f32 %v4612, %v4622
        %v4636 = vadd.f32 %v4613, %v4622
        %v4637 = vadd.f32 %v4614, %v4622
        %v4638 = vadd.f32 %v4615, %v4622
        %v4639 = vadd.f32 %v4616, %v4622
        %v4640 = vld [vmem:[%s11] sm:$0x1]
        %v4641 = vld [vmem:[%s12] sm:$0x1]
        %4642 = vadd.xlane.f32.xlu0 %v4624
        %v4643 = vpop.xlane.xlu0 %4642
        %4644 = vadd.xlane.f32.xlu0 %v4625
        %v4645 = vpop.xlane.xlu0 %4644
        %4646 = vadd.xlane.f32.xlu0 %v4626
        %v4647 = vpop.xlane.xlu0 %4646
        %4648 = vadd.xlane.f32.xlu0 %v4627
        %v4649 = vpop.xlane.xlu0 %4648
        %4650 = vadd.xlane.f32.xlu0 %v4628
        %v4651 = vpop.xlane.xlu0 %4650
        %4652 = vadd.xlane.f32.xlu0 %v4629
        %v4653 = vpop.xlane.xlu0 %4652
        %4654 = vadd.xlane.f32.xlu0 %v4630
        %v4655 = vpop.xlane.xlu0 %4654
        %4656 = vadd.xlane.f32.xlu0 %v4631
        %v4657 = vpop.xlane.xlu0 %4656
        %4658 = vadd.xlane.f32.xlu0 %v4632
        %v4659 = vpop.xlane.xlu0 %4658
        %4660 = vadd.xlane.f32.xlu0 %v4633
        %v4661 = vpop.xlane.xlu0 %4660
        %4662 = vadd.xlane.f32.xlu0 %v4634
        %v4663 = vpop.xlane.xlu0 %4662
        %4664 = vadd.xlane.f32.xlu0 %v4635
        %v4665 = vpop.xlane.xlu0 %4664
        %4666 = vadd.xlane.f32.xlu0 %v4636
        %v4667 = vpop.xlane.xlu0 %4666
        %4668 = vadd.xlane.f32.xlu0 %v4637
        %v4669 = vpop.xlane.xlu0 %4668
        %4670 = vadd.xlane.f32.xlu0 %v4638
        %v4671 = vpop.xlane.xlu0 %4670
        %4672 = vadd.xlane.f32.xlu0 %v4639
        %v4673 = vpop.xlane.xlu0 %4672
        %v4674 = vmul.f32 %v4643, %v1564
        %v4675 = vmul.f32 %v4645, %v1564
        %v4676 = vmul.f32 %v4647, %v1564
        %v4677 = vmul.f32 %v4649, %v1564
        %v4678 = vmul.f32 %v4651, %v1564
        %v4679 = vmul.f32 %v4653, %v1564
        %v4680 = vmul.f32 %v4655, %v1564
        %v4681 = vmul.f32 %v4657, %v1564
        %v4682 = vmul.f32 %v4659, %v1564
        %v4683 = vmul.f32 %v4661, %v1564
        %v4684 = vmul.f32 %v4663, %v1564
        %v4685 = vmul.f32 %v4665, %v1564
        %v4686 = vmul.f32 %v4667, %v1564
        %v4687 = vmul.f32 %v4669, %v1564
        %v4688 = vmul.f32 %v4671, %v1564
        %v4689 = vmul.f32 %v4673, %v1564
        %v4690 = vmul.f32 %v4624, %v4624
        %v4691 = vmul.f32 %v4625, %v4625
        %v4692 = vmul.f32 %v4626, %v4626
        %v4693 = vmul.f32 %v4627, %v4627
        %v4694 = vmul.f32 %v4628, %v4628
        %v4695 = vmul.f32 %v4629, %v4629
        %v4696 = vmul.f32 %v4630, %v4630
        %v4697 = vmul.f32 %v4631, %v4631
        %v4698 = vmul.f32 %v4632, %v4632
        %v4699 = vmul.f32 %v4633, %v4633
        %v4700 = vmul.f32 %v4634, %v4634
        %v4701 = vmul.f32 %v4635, %v4635
        %v4702 = vmul.f32 %v4636, %v4636
        %v4703 = vmul.f32 %v4637, %v4637
        %v4704 = vmul.f32 %v4638, %v4638
        %v4705 = vmul.f32 %v4639, %v4639
        %4706 = vadd.xlane.f32.xlu0 %v4690
        %v4707 = vpop.xlane.xlu0 %4706
        %4708 = vadd.xlane.f32.xlu0 %v4691
        %v4709 = vpop.xlane.xlu0 %4708
        %4710 = vadd.xlane.f32.xlu0 %v4692
        %v4711 = vpop.xlane.xlu0 %4710
        %4712 = vadd.xlane.f32.xlu0 %v4693
        %v4713 = vpop.xlane.xlu0 %4712
        %4714 = vadd.xlane.f32.xlu0 %v4694
        %v4715 = vpop.xlane.xlu0 %4714
        %4716 = vadd.xlane.f32.xlu0 %v4695
        %v4717 = vpop.xlane.xlu0 %4716
        %4718 = vadd.xlane.f32.xlu0 %v4696
        %v4719 = vpop.xlane.xlu0 %4718
        %4720 = vadd.xlane.f32.xlu0 %v4697
        %v4721 = vpop.xlane.xlu0 %4720
        %4722 = vadd.xlane.f32.xlu0 %v4698
        %v4723 = vpop.xlane.xlu0 %4722
        %4724 = vadd.xlane.f32.xlu0 %v4699
        %v4725 = vpop.xlane.xlu0 %4724
        %4726 = vadd.xlane.f32.xlu0 %v4700
        %v4727 = vpop.xlane.xlu0 %4726
        %4728 = vadd.xlane.f32.xlu0 %v4701
        %v4729 = vpop.xlane.xlu0 %4728
        %4730 = vadd.xlane.f32.xlu0 %v4702
        %v4731 = vpop.xlane.xlu0 %4730
        %4732 = vadd.xlane.f32.xlu0 %v4703
        %v4733 = vpop.xlane.xlu0 %4732
        %4734 = vadd.xlane.f32.xlu0 %v4704
        %v4735 = vpop.xlane.xlu0 %4734
        %4736 = vadd.xlane.f32.xlu0 %v4705
        %v4737 = vpop.xlane.xlu0 %4736
        %v4738 = vmul.f32 %v4707, %v1564
        %v4739 = vmul.f32 %v4709, %v1564
        %v4740 = vmul.f32 %v4711, %v1564
        %v4741 = vmul.f32 %v4713, %v1564
        %v4742 = vmul.f32 %v4715, %v1564
        %v4743 = vmul.f32 %v4717, %v1564
        %v4744 = vmul.f32 %v4719, %v1564
        %v4745 = vmul.f32 %v4721, %v1564
        %v4746 = vmul.f32 %v4723, %v1564
        %v4747 = vmul.f32 %v4725, %v1564
        %v4748 = vmul.f32 %v4727, %v1564
        %v4749 = vmul.f32 %v4729, %v1564
        %v4750 = vmul.f32 %v4731, %v1564
        %v4751 = vmul.f32 %v4733, %v1564
        %v4752 = vmul.f32 %v4735, %v1564
        %v4753 = vmul.f32 %v4737, %v1564
        %v4754 = vmul.f32 %v4674, %v4674
        %v4755 = vmul.f32 %v4675, %v4675
        %v4756 = vmul.f32 %v4676, %v4676
        %v4757 = vmul.f32 %v4677, %v4677
        %v4758 = vmul.f32 %v4678, %v4678
        %v4759 = vmul.f32 %v4679, %v4679
        %v4760 = vmul.f32 %v4680, %v4680
        %v4761 = vmul.f32 %v4681, %v4681
        %v4762 = vmul.f32 %v4682, %v4682
        %v4763 = vmul.f32 %v4683, %v4683
        %v4764 = vmul.f32 %v4684, %v4684
        %v4765 = vmul.f32 %v4685, %v4685
        %v4766 = vmul.f32 %v4686, %v4686
        %v4767 = vmul.f32 %v4687, %v4687
        %v4768 = vmul.f32 %v4688, %v4688
        %v4769 = vmul.f32 %v4689, %v4689
        %v4770 = vsub.f32 %v4738, %v4754
        %v4771 = vsub.f32 %v4739, %v4755
        %v4772 = vsub.f32 %v4740, %v4756
        %v4773 = vsub.f32 %v4741, %v4757
        %v4774 = vsub.f32 %v4742, %v4758
        %v4775 = vsub.f32 %v4743, %v4759
        %v4776 = vsub.f32 %v4744, %v4760
        %v4777 = vsub.f32 %v4745, %v4761
        %v4778 = vsub.f32 %v4746, %v4762
        %v4779 = vsub.f32 %v4747, %v4763
        %v4780 = vsub.f32 %v4748, %v4764
        %v4781 = vsub.f32 %v4749, %v4765
        %v4782 = vsub.f32 %v4750, %v4766
        %v4783 = vsub.f32 %v4751, %v4767
        %v4784 = vsub.f32 %v4752, %v4768
        %v4785 = vsub.f32 %v4753, %v4769
        %v4786 = vmax.f32 %v4770, 0.0
        %v4787 = vmax.f32 %v4771, 0.0
        %v4788 = vmax.f32 %v4772, 0.0
        %v4789 = vmax.f32 %v4773, 0.0
        %v4790 = vmax.f32 %v4774, 0.0
        %v4791 = vmax.f32 %v4775, 0.0
        %v4792 = vmax.f32 %v4776, 0.0
        %v4793 = vmax.f32 %v4777, 0.0
        %v4794 = vmax.f32 %v4778, 0.0
        %v4795 = vmax.f32 %v4779, 0.0
        %v4796 = vmax.f32 %v4780, 0.0
        %v4797 = vmax.f32 %v4781, 0.0
        %v4798 = vmax.f32 %v4782, 0.0
        %v4799 = vmax.f32 %v4783, 0.0
        %v4800 = vmax.f32 %v4784, 0.0
        %v4801 = vmax.f32 %v4785, 0.0
        %v4802 = vsub.f32 %v4624, %v4674
        %v4803 = vsub.f32 %v4625, %v4675
        %v4804 = vsub.f32 %v4626, %v4676
        %v4805 = vsub.f32 %v4627, %v4677
        %v4806 = vsub.f32 %v4628, %v4678
        %v4807 = vsub.f32 %v4629, %v4679
        %v4808 = vsub.f32 %v4630, %v4680
        %v4809 = vsub.f32 %v4631, %v4681
        %v4810 = vsub.f32 %v4632, %v4682
        %v4811 = vsub.f32 %v4633, %v4683
        %v4812 = vsub.f32 %v4634, %v4684
        %v4813 = vsub.f32 %v4635, %v4685
        %v4814 = vsub.f32 %v4636, %v4686
        %v4815 = vsub.f32 %v4637, %v4687
        %v4816 = vsub.f32 %v4638, %v4688
        %v4817 = vsub.f32 %v4639, %v4689
        %v4818 = vadd.f32 %v4786, 1e-06
        %v4819 = vadd.f32 %v4787, 1e-06
        %v4820 = vadd.f32 %v4788, 1e-06
        %v4821 = vadd.f32 %v4789, 1e-06
        %v4822 = vadd.f32 %v4790, 1e-06
        %v4823 = vadd.f32 %v4791, 1e-06
        %v4824 = vadd.f32 %v4792, 1e-06
        %v4825 = vadd.f32 %v4793, 1e-06
        %v4826 = vadd.f32 %v4794, 1e-06
        %v4827 = vadd.f32 %v4795, 1e-06
        %v4828 = vadd.f32 %v4796, 1e-06
        %v4829 = vadd.f32 %v4797, 1e-06
        %v4830 = vadd.f32 %v4798, 1e-06
        %v4831 = vadd.f32 %v4799, 1e-06
        %v4832 = vadd.f32 %v4800, 1e-06
        %v4833 = vadd.f32 %v4801, 1e-06
        %v4834 = vrsqrt.pop %v4818
        %v4835 = vrsqrt.pop %v4819
        %v4836 = vrsqrt.pop %v4820
        %v4837 = vrsqrt.pop %v4821
        %v4838 = vrsqrt.pop %v4822
        %v4839 = vrsqrt.pop %v4823
        %v4840 = vrsqrt.pop %v4824
        %v4841 = vrsqrt.pop %v4825
        %v4842 = vrsqrt.pop %v4826
        %v4843 = vrsqrt.pop %v4827
        %v4844 = vrsqrt.pop %v4828
        %v4845 = vrsqrt.pop %v4829
        %v4846 = vrsqrt.pop %v4830
        %v4847 = vrsqrt.pop %v4831
        %v4848 = vrsqrt.pop %v4832
        %v4849 = vrsqrt.pop %v4833
        %v4850 = vmul.f32 %v4802, %v4834
        %v4851 = vmul.f32 %v4803, %v4835
        %v4852 = vmul.f32 %v4804, %v4836
        %v4853 = vmul.f32 %v4805, %v4837
        %v4854 = vmul.f32 %v4806, %v4838
        %v4855 = vmul.f32 %v4807, %v4839
        %v4856 = vmul.f32 %v4808, %v4840
        %v4857 = vmul.f32 %v4809, %v4841
        %v4858 = vmul.f32 %v4810, %v4842
        %v4859 = vmul.f32 %v4811, %v4843
        %v4860 = vmul.f32 %v4812, %v4844
        %v4861 = vmul.f32 %v4813, %v4845
        %v4862 = vmul.f32 %v4814, %v4846
        %v4863 = vmul.f32 %v4815, %v4847
        %v4864 = vmul.f32 %v4816, %v4848
        %v4865 = vmul.f32 %v4817, %v4849
        %v4867 = vlaneseq
        %v4868 = vshrl.u32 %v4867, 7
        %v4869 = vsub.s32 0, %v4868
        %v4870 = vrot.slane %v4640, %v4869
        %v4872 = vmul.f32 %v4850, %v4870
        %v4873 = vmul.f32 %v4851, %v4870
        %v4874 = vmul.f32 %v4852, %v4870
        %v4875 = vmul.f32 %v4853, %v4870
        %v4876 = vmul.f32 %v4854, %v4870
        %v4877 = vmul.f32 %v4855, %v4870
        %v4878 = vmul.f32 %v4856, %v4870
        %v4879 = vmul.f32 %v4857, %v4870
        %v4880 = vmul.f32 %v4858, %v4870
        %v4881 = vmul.f32 %v4859, %v4870
        %v4882 = vmul.f32 %v4860, %v4870
        %v4883 = vmul.f32 %v4861, %v4870
        %v4884 = vmul.f32 %v4862, %v4870
        %v4885 = vmul.f32 %v4863, %v4870
        %v4886 = vmul.f32 %v4864, %v4870
        %v4887 = vmul.f32 %v4865, %v4870
        %v4889 = vlaneseq
        %v4890 = vshrl.u32 %v4889, 7
        %v4891 = vsub.s32 0, %v4890
        %v4892 = vrot.slane %v4641, %v4891
        %v4894 = vadd.f32 %v4872, %v4892
        %v4895 = vadd.f32 %v4873, %v4892
        %v4896 = vadd.f32 %v4874, %v4892
        %v4897 = vadd.f32 %v4875, %v4892
        %v4898 = vadd.f32 %v4876, %v4892
        %v4899 = vadd.f32 %v4877, %v4892
        %v4900 = vadd.f32 %v4878, %v4892
        %v4901 = vadd.f32 %v4879, %v4892
        %v4902 = vadd.f32 %v4880, %v4892
        %v4903 = vadd.f32 %v4881, %v4892
        %v4904 = vadd.f32 %v4882, %v4892
        %v4905 = vadd.f32 %v4883, %v4892
        %v4906 = vadd.f32 %v4884, %v4892
        %v4907 = vadd.f32 %v4885, %v4892
        %v4908 = vadd.f32 %v4886, %v4892
        %v4909 = vadd.f32 %v4887, %v4892
        %v4910 = vpack.c.bf16 %v4895, %v4894
        %v4911 = vpack.c.bf16 %v4897, %v4896
        %v4912 = vpack.c.bf16 %v4899, %v4898
        %v4913 = vpack.c.bf16 %v4901, %v4900
        %v4914 = vpack.c.bf16 %v4903, %v4902
        %v4915 = vpack.c.bf16 %v4905, %v4904
        %v4916 = vpack.c.bf16 %v4907, %v4906
        %v4917 = vpack.c.bf16 %v4909, %v4908
        %v4918 = vld [vmem:[%s13] sm:$0xff]
        %v4919 = vld [vmem:[%s13 + $0x8] sm:$0xff]
        %v4920 = vld [vmem:[%s13 + $0x10] sm:$0xff]
        %v4921 = vld [vmem:[%s13 + $0x18] sm:$0xff]
        %v4922 = vld [vmem:[%s13 + $0x20] sm:$0xff]
        %v4923 = vld [vmem:[%s13 + $0x28] sm:$0xff]
        %v4924 = vld [vmem:[%s13 + $0x30] sm:$0xff]
        %v4925 = vld [vmem:[%s13 + $0x38] sm:$0xff]
        %v4926 = vld [vmem:[%s13 + $0x40] sm:$0xff]
        %v4927 = vld [vmem:[%s13 + $0x48] sm:$0xff]
        %v4928 = vld [vmem:[%s13 + $0x50] sm:$0xff]
        %v4929 = vld [vmem:[%s13 + $0x58] sm:$0xff]
        %v4930 = vld [vmem:[%s13 + $0x60] sm:$0xff]
        %v4931 = vld [vmem:[%s13 + $0x68] sm:$0xff]
        %v4932 = vld [vmem:[%s13 + $0x70] sm:$0xff]
        %v4933 = vld [vmem:[%s13 + $0x78] sm:$0xff]
        %v4934 = vld [vmem:[%s13 + $0x80] sm:$0xff]
        %v4935 = vld [vmem:[%s13 + $0x88] sm:$0xff]
        %v4936 = vld [vmem:[%s13 + $0x90] sm:$0xff]
        %v4937 = vld [vmem:[%s13 + $0x98] sm:$0xff]
        %v4938 = vld [vmem:[%s13 + $0xa0] sm:$0xff]
        %v4939 = vld [vmem:[%s13 + $0xa8] sm:$0xff]
        %v4940 = vld [vmem:[%s13 + $0xb0] sm:$0xff]
        %v4941 = vld [vmem:[%s13 + $0xb8] sm:$0xff]
        %v4942 = vld [vmem:[%s13 + $0xc0] sm:$0xff]
        %v4943 = vld [vmem:[%s13 + $0xc8] sm:$0xff]
        %v4944 = vld [vmem:[%s13 + $0xd0] sm:$0xff]
        %v4945 = vld [vmem:[%s13 + $0xd8] sm:$0xff]
        %v4946 = vld [vmem:[%s13 + $0xe0] sm:$0xff]
        %v4947 = vld [vmem:[%s13 + $0xe8] sm:$0xff]
        %v4948 = vld [vmem:[%s13 + $0xf0] sm:$0xff]
        %v4949 = vld [vmem:[%s13 + $0xf8] sm:$0xff]
        %v4950 = vld [vmem:[%s14] sm:$0xf]
        %v4952 = vlaneseq
        %v4953 = vshrl.u32 %v4952, 7
        %v4954 = vsub.s32 0, %v4953
        %v4955 = vrot.slane %v4950, %v4954
        %v4956 = vlaneseq
        %v4957 = vshrl.u32 %v4956, 7
        %v4958 = vsub.s32 1, %v4957
        %v4959 = vrot.slane %v4950, %v4958
        %v4960 = vlaneseq
        %v4961 = vshrl.u32 %v4960, 7
        %v4962 = vsub.s32 2, %v4961
        %v4963 = vrot.slane %v4950, %v4962
        %v4964 = vlaneseq
        %v4965 = vshrl.u32 %v4964, 7
        %v4966 = vsub.s32 3, %v4965
        %v4967 = vrot.slane %v4950, %v4966
        %v5004 = vunpack.c.l.b16 %v4918
        %v5005 = vunpack.c.h.b16 %v4918
        %v5006 = vunpack.c.l.b16 %v4919
        %v5007 = vunpack.c.h.b16 %v4919
        %v5008 = vunpack.c.l.b16 %v4920
        %v5009 = vunpack.c.h.b16 %v4920
        %v5010 = vunpack.c.l.b16 %v4921
        %v5011 = vunpack.c.h.b16 %v4921
        %v5012 = vunpack.c.l.b16 %v4922
        %v5013 = vunpack.c.h.b16 %v4922
        %v5014 = vunpack.c.l.b16 %v4923
        %v5015 = vunpack.c.h.b16 %v4923
        %v5016 = vunpack.c.l.b16 %v4924
        %v5017 = vunpack.c.h.b16 %v4924
        %v5018 = vunpack.c.l.b16 %v4925
        %v5019 = vunpack.c.h.b16 %v4925
        %v5020 = vunpack.c.l.b16 %v4926
        %v5021 = vunpack.c.h.b16 %v4926
        %v5022 = vunpack.c.l.b16 %v4927
        %v5023 = vunpack.c.h.b16 %v4927
        %v5024 = vunpack.c.l.b16 %v4928
        %v5025 = vunpack.c.h.b16 %v4928
        %v5026 = vunpack.c.l.b16 %v4929
        %v5027 = vunpack.c.h.b16 %v4929
        %v5028 = vunpack.c.l.b16 %v4930
        %v5029 = vunpack.c.h.b16 %v4930
        %v5030 = vunpack.c.l.b16 %v4931
        %v5031 = vunpack.c.h.b16 %v4931
        %v5032 = vunpack.c.l.b16 %v4932
        %v5033 = vunpack.c.h.b16 %v4932
        %v5034 = vunpack.c.l.b16 %v4933
        %v5035 = vunpack.c.h.b16 %v4933
        %v5036 = vunpack.c.l.b16 %v4934
        %v5037 = vunpack.c.h.b16 %v4934
        %v5038 = vunpack.c.l.b16 %v4935
        %v5039 = vunpack.c.h.b16 %v4935
        %v5040 = vunpack.c.l.b16 %v4936
        %v5041 = vunpack.c.h.b16 %v4936
        %v5042 = vunpack.c.l.b16 %v4937
        %v5043 = vunpack.c.h.b16 %v4937
        %v5044 = vunpack.c.l.b16 %v4938
        %v5045 = vunpack.c.h.b16 %v4938
        %v5046 = vunpack.c.l.b16 %v4939
        %v5047 = vunpack.c.h.b16 %v4939
        %v5048 = vunpack.c.l.b16 %v4940
        %v5049 = vunpack.c.h.b16 %v4940
        %v5050 = vunpack.c.l.b16 %v4941
        %v5051 = vunpack.c.h.b16 %v4941
        %v5052 = vunpack.c.l.b16 %v4942
        %v5053 = vunpack.c.h.b16 %v4942
        %v5054 = vunpack.c.l.b16 %v4943
        %v5055 = vunpack.c.h.b16 %v4943
        %v5056 = vunpack.c.l.b16 %v4944
        %v5057 = vunpack.c.h.b16 %v4944
        %v5058 = vunpack.c.l.b16 %v4945
        %v5059 = vunpack.c.h.b16 %v4945
        %v5060 = vunpack.c.l.b16 %v4946
        %v5061 = vunpack.c.h.b16 %v4946
        %v5062 = vunpack.c.l.b16 %v4947
        %v5063 = vunpack.c.h.b16 %v4947
        %v5064 = vunpack.c.l.b16 %v4948
        %v5065 = vunpack.c.h.b16 %v4948
        %v5066 = vunpack.c.l.b16 %v4949
        %v5067 = vunpack.c.h.b16 %v4949
        %v5068 = vpack.c.b16 %v5008, %v5004
        %v5069 = vpack.c.b16 %v5009, %v5005
        %v5070 = vpack.c.b16 %v5010, %v5006
        %v5071 = vpack.c.b16 %v5011, %v5007
        %v5072 = vpack.c.b16 %v5016, %v5012
        %v5073 = vpack.c.b16 %v5017, %v5013
        %v5074 = vpack.c.b16 %v5018, %v5014
        %v5075 = vpack.c.b16 %v5019, %v5015
        %v5076 = vpack.c.b16 %v5024, %v5020
        %v5077 = vpack.c.b16 %v5025, %v5021
        %v5078 = vpack.c.b16 %v5026, %v5022
        %v5079 = vpack.c.b16 %v5027, %v5023
        %v5080 = vpack.c.b16 %v5032, %v5028
        %v5081 = vpack.c.b16 %v5033, %v5029
        %v5082 = vpack.c.b16 %v5034, %v5030
        %v5083 = vpack.c.b16 %v5035, %v5031
        %v5084 = vpack.c.b16 %v5040, %v5036
        %v5085 = vpack.c.b16 %v5041, %v5037
        %v5086 = vpack.c.b16 %v5042, %v5038
        %v5087 = vpack.c.b16 %v5043, %v5039
        %v5088 = vpack.c.b16 %v5048, %v5044
        %v5089 = vpack.c.b16 %v5049, %v5045
        %v5090 = vpack.c.b16 %v5050, %v5046
        %v5091 = vpack.c.b16 %v5051, %v5047
        %v5092 = vpack.c.b16 %v5056, %v5052
        %v5093 = vpack.c.b16 %v5057, %v5053
        %v5094 = vpack.c.b16 %v5058, %v5054
        %v5095 = vpack.c.b16 %v5059, %v5055
        %v5096 = vpack.c.b16 %v5064, %v5060
        %v5097 = vpack.c.b16 %v5065, %v5061
        %v5098 = vpack.c.b16 %v5066, %v5062
        %v5099 = vpack.c.b16 %v5067, %v5063
        %5132 = vmatprep.subr.bf16.mxu0 %v5069
        %5133 = vmatpush1.bf16.msra.mxu0 %v5068
        %5134 = vmatprep.subr.bf16.mxu0 %v5073
        %5135 = vmatpush1.bf16.msra.mxu0 %v5072
        %5136 = vmatprep.subr.bf16.mxu0 %v5077
        %5137 = vmatpush1.bf16.msra.mxu0 %v5076
        %5138 = vmatprep.subr.bf16.mxu0 %v5081
        %5139 = vmatpush1.bf16.msra.mxu0 %v5080
        %5140 = vmatprep.subr.bf16.mxu0 %v5085
        %5141 = vmatpush1.bf16.msra.mxu0 %v5084
        %5142 = vmatprep.subr.bf16.mxu0 %v5089
        %5143 = vmatpush1.bf16.msra.mxu0 %v5088
        %5144 = vmatprep.subr.bf16.mxu0 %v5093
        %5145 = vmatpush1.bf16.msra.mxu0 %v5092
        %5146 = vmatprep.subr.bf16.mxu0 %v5097
        %5147 = vmatpush1.bf16.msra.mxu0 %v5096
        %5148 = vmatprep.subr.bf16.mxu0 0
        %5149 = vmatpush1.bf16.msra.mxu0 0
        %5150 = vmatprep.subr.bf16.mxu0 0
        %5151 = vmatpush1.bf16.msra.mxu0 0
        %5152 = vmatprep.subr.bf16.mxu0 0
        %5153 = vmatpush1.bf16.msra.mxu0 0
        %5154 = vmatprep.subr.bf16.mxu0 0
        %5155 = vmatpush1.bf16.msra.mxu0 0
        %5156 = vmatprep.subr.bf16.mxu0 0
        %5157 = vmatpush1.bf16.msra.mxu0 0
        %5158 = vmatprep.subr.bf16.mxu0 0
        %5159 = vmatpush1.bf16.msra.mxu0 0
        %5160 = vmatprep.subr.bf16.mxu0 0
        %5161 = vmatpush1.bf16.msra.mxu0 0
        %5162 = vmatprep.subr.bf16.mxu0 0
        %5163 = vmatpush1.bf16.msra.mxu0 0
        %5164 = vmatprep.mubr.bf16.mxu0 0
        %5165 = vmatmul.mubr.bf16.gmra.mrb[0].mxu0 %v4910
        %v5166 = vpop.f32.mrb[0].mxu0
        %v5167 = vadd.f32 %v4955, %v5166
        %v5168 = vpop.f32.mrb[0].mxu0
        %v5169 = vadd.f32 %v4959, %v5168
        %v5170 = vpop.f32.mrb[0].mxu0
        %v5171 = vadd.f32 %v4955, %v5170
        %v5172 = vpop.f32.mrb[0].mxu0
        %v5173 = vadd.f32 %v4959, %v5172
        %5174 = vmatprep.mubr.bf16.mxu0 0
        %5175 = vmatmul.mubr.bf16.gmra.mrb[0].mxu0 %v4911
        %v5176 = vpop.f32.mrb[0].mxu0
        %v5177 = vadd.f32 %v4955, %v5176
        %v5178 = vpop.f32.mrb[0].mxu0
        %v5179 = vadd.f32 %v4959, %v5178
        %v5180 = vpop.f32.mrb[0].mxu0
        %v5181 = vadd.f32 %v4955, %v5180
        %v5182 = vpop.f32.mrb[0].mxu0
        %v5183 = vadd.f32 %v4959, %v5182
        %5184 = vmatprep.mubr.bf16.mxu0 0
        %5185 = vmatmul.mubr.bf16.gmra.mrb[0].mxu0 %v4912
        %v5186 = vpop.f32.mrb[0].mxu0
        %v5187 = vadd.f32 %v4955, %v5186
        %v5188 = vpop.f32.mrb[0].mxu0
        %v5189 = vadd.f32 %v4959, %v5188
        %v5190 = vpop.f32.mrb[0].mxu0
        %v5191 = vadd.f32 %v4955, %v5190
        %v5192 = vpop.f32.mrb[0].mxu0
        %v5193 = vadd.f32 %v4959, %v5192
        %5194 = vmatprep.mubr.bf16.mxu0 0
        %5195 = vmatmul.mubr.bf16.gmra.mrb[0].mxu0 %v4913
        %v5196 = vpop.f32.mrb[0].mxu0
        %v5197 = vadd.f32 %v4955, %v5196
        %v5198 = vpop.f32.mrb[0].mxu0
        %v5199 = vadd.f32 %v4959, %v5198
        %v5200 = vpop.f32.mrb[0].mxu0
        %v5201 = vadd.f32 %v4955, %v5200
        %v5202 = vpop.f32.mrb[0].mxu0
        %v5203 = vadd.f32 %v4959, %v5202
        %5204 = vmatprep.mubr.bf16.mxu0 0
        %5205 = vmatmul.mubr.bf16.gmra.mrb[0].mxu0 %v4914
        %v5206 = vpop.f32.mrb[0].mxu0
        %v5207 = vadd.f32 %v4955, %v5206
        %v5208 = vpop.f32.mrb[0].mxu0
        %v5209 = vadd.f32 %v4959, %v5208
        %v5210 = vpop.f32.mrb[0].mxu0
        %v5211 = vadd.f32 %v4955, %v5210
        %v5212 = vpop.f32.mrb[0].mxu0
        %v5213 = vadd.f32 %v4959, %v5212
        %5214 = vmatprep.mubr.bf16.mxu0 0
        %5215 = vmatmul.mubr.bf16.gmra.mrb[0].mxu0 %v4915
        %v5216 = vpop.f32.mrb[0].mxu0
        %v5217 = vadd.f32 %v4955, %v5216
        %v5218 = vpop.f32.mrb[0].mxu0
        %v5219 = vadd.f32 %v4959, %v5218
        %v5220 = vpop.f32.mrb[0].mxu0
        %v5221 = vadd.f32 %v4955, %v5220
        %v5222 = vpop.f32.mrb[0].mxu0
        %v5223 = vadd.f32 %v4959, %v5222
        %5224 = vmatprep.mubr.bf16.mxu0 0
        %5225 = vmatmul.mubr.bf16.gmra.mrb[0].mxu0 %v4916
        %v5226 = vpop.f32.mrb[0].mxu0
        %v5227 = vadd.f32 %v4955, %v5226
        %v5228 = vpop.f32.mrb[0].mxu0
        %v5229 = vadd.f32 %v4959, %v5228
        %v5230 = vpop.f32.mrb[0].mxu0
        %v5231 = vadd.f32 %v4955, %v5230
        %v5232 = vpop.f32.mrb[0].mxu0
        %v5233 = vadd.f32 %v4959, %v5232
        %5234 = vmatprep.mubr.bf16.mxu0 0
        %5235 = vmatmul.mubr.bf16.gmra.mrb[0].mxu0 %v4917
        %v5236 = vpop.f32.mrb[0].mxu0
        %v5237 = vadd.f32 %v4955, %v5236
        %v5238 = vpop.f32.mrb[0].mxu0
        %v5239 = vadd.f32 %v4959, %v5238
        %v5240 = vpop.f32.mrb[0].mxu0
        %v5241 = vadd.f32 %v4955, %v5240
        %v5242 = vpop.f32.mrb[0].mxu0
        %v5243 = vadd.f32 %v4959, %v5242
        %5244 = vdwg.mxu0
        %5245 = vmatprep.subr.bf16.mxu0 %v5071
        %5246 = vmatpush1.bf16.msra.mxu0 %v5070
        %5247 = vmatprep.subr.bf16.mxu0 %v5075
        %5248 = vmatpush1.bf16.msra.mxu0 %v5074
        %5249 = vmatprep.subr.bf16.mxu0 %v5079
        %5250 = vmatpush1.bf16.msra.mxu0 %v5078
        %5251 = vmatprep.subr.bf16.mxu0 %v5083
        %5252 = vmatpush1.bf16.msra.mxu0 %v5082
        %5253 = vmatprep.subr.bf16.mxu0 %v5087
        %5254 = vmatpush1.bf16.msra.mxu0 %v5086
        %5255 = vmatprep.subr.bf16.mxu0 %v5091
        %5256 = vmatpush1.bf16.msra.mxu0 %v5090
        %5257 = vmatprep.subr.bf16.mxu0 %v5095
        %5258 = vmatpush1.bf16.msra.mxu0 %v5094
        %5259 = vmatprep.subr.bf16.mxu0 %v5099
        %5260 = vmatpush1.bf16.msra.mxu0 %v5098
        %5261 = vmatprep.subr.bf16.mxu0 0
        %5262 = vmatpush1.bf16.msra.mxu0 0
        %5263 = vmatprep.subr.bf16.mxu0 0
        %5264 = vmatpush1.bf16.msra.mxu0 0
        %5265 = vmatprep.subr.bf16.mxu0 0
        %5266 = vmatpush1.bf16.msra.mxu0 0
        %5267 = vmatprep.subr.bf16.mxu0 0
        %5268 = vmatpush1.bf16.msra.mxu0 0
        %5269 = vmatprep.subr.bf16.mxu0 0
        %5270 = vmatpush1.bf16.msra.mxu0 0
        %5271 = vmatprep.subr.bf16.mxu0 0
        %5272 = vmatpush1.bf16.msra.mxu0 0
        %5273 = vmatprep.subr.bf16.mxu0 0
        %5274 = vmatpush1.bf16.msra.mxu0 0
        %5275 = vmatprep.subr.bf16.mxu0 0
        %5276 = vmatpush1.bf16.msra.mxu0 0
        %5277 = vmatprep.mubr.bf16.mxu0 0
        %5278 = vmatmul.mubr.bf16.gmra.mrb[0].mxu0 %v4910
        %v5279 = vpop.f32.mrb[0].mxu0
        %v5280 = vadd.f32 %v4963, %v5279
        %v5281 = vpop.f32.mrb[0].mxu0
        %v5282 = vadd.f32 %v4967, %v5281
        %v5283 = vpop.f32.mrb[0].mxu0
        %v5284 = vadd.f32 %v4963, %v5283
        %v5285 = vpop.f32.mrb[0].mxu0
        %v5286 = vadd.f32 %v4967, %v5285
        %5287 = vmatprep.mubr.bf16.mxu0 0
        %5288 = vmatmul.mubr.bf16.gmra.mrb[0].mxu0 %v4911
        %v5289 = vpop.f32.mrb[0].mxu0
        %v5290 = vadd.f32 %v4963, %v5289
        %v5291 = vpop.f32.mrb[0].mxu0
        %v5292 = vadd.f32 %v4967, %v5291
        %v5293 = vpop.f32.mrb[0].mxu0
        %v5294 = vadd.f32 %v4963, %v5293
        %v5295 = vpop.f32.mrb[0].mxu0
        %v5296 = vadd.f32 %v4967, %v5295
        %5297 = vmatprep.mubr.bf16.mxu0 0
        %5298 = vmatmul.mubr.bf16.gmra.mrb[0].mxu0 %v4912
        %v5299 = vpop.f32.mrb[0].mxu0
        %v5300 = vadd.f32 %v4963, %v5299
        %v5301 = vpop.f32.mrb[0].mxu0
        %v5302 = vadd.f32 %v4967, %v5301
        %v5303 = vpop.f32.mrb[0].mxu0
        %v5304 = vadd.f32 %v4963, %v5303
        %v5305 = vpop.f32.mrb[0].mxu0
        %v5306 = vadd.f32 %v4967, %v5305
        %5307 = vmatprep.mubr.bf16.mxu0 0
        %5308 = vmatmul.mubr.bf16.gmra.mrb[0].mxu0 %v4913
        %v5309 = vpop.f32.mrb[0].mxu0
        %v5310 = vadd.f32 %v4963, %v5309
        %v5311 = vpop.f32.mrb[0].mxu0
        %v5312 = vadd.f32 %v4967, %v5311
        %v5313 = vpop.f32.mrb[0].mxu0
        %v5314 = vadd.f32 %v4963, %v5313
        %v5315 = vpop.f32.mrb[0].mxu0
        %v5316 = vadd.f32 %v4967, %v5315
        %5317 = vmatprep.mubr.bf16.mxu0 0
        %5318 = vmatmul.mubr.bf16.gmra.mrb[0].mxu0 %v4914
        %v5319 = vpop.f32.mrb[0].mxu0
        %v5320 = vadd.f32 %v4963, %v5319
        %v5321 = vpop.f32.mrb[0].mxu0
        %v5322 = vadd.f32 %v4967, %v5321
        %v5323 = vpop.f32.mrb[0].mxu0
        %v5324 = vadd.f32 %v4963, %v5323
        %v5325 = vpop.f32.mrb[0].mxu0
        %v5326 = vadd.f32 %v4967, %v5325
        %5327 = vmatprep.mubr.bf16.mxu0 0
        %5328 = vmatmul.mubr.bf16.gmra.mrb[0].mxu0 %v4915
        %v5329 = vpop.f32.mrb[0].mxu0
        %v5330 = vadd.f32 %v4963, %v5329
        %v5331 = vpop.f32.mrb[0].mxu0
        %v5332 = vadd.f32 %v4967, %v5331
        %v5333 = vpop.f32.mrb[0].mxu0
        %v5334 = vadd.f32 %v4963, %v5333
        %v5335 = vpop.f32.mrb[0].mxu0
        %v5336 = vadd.f32 %v4967, %v5335
        %5337 = vmatprep.mubr.bf16.mxu0 0
        %5338 = vmatmul.mubr.bf16.gmra.mrb[0].mxu0 %v4916
        %v5339 = vpop.f32.mrb[0].mxu0
        %v5340 = vadd.f32 %v4963, %v5339
        %v5341 = vpop.f32.mrb[0].mxu0
        %v5342 = vadd.f32 %v4967, %v5341
        %v5343 = vpop.f32.mrb[0].mxu0
        %v5344 = vadd.f32 %v4963, %v5343
        %v5345 = vpop.f32.mrb[0].mxu0
        %v5346 = vadd.f32 %v4967, %v5345
        %5347 = vmatprep.mubr.bf16.mxu0 0
        %5348 = vmatmul.mubr.bf16.gmra.mrb[0].mxu0 %v4917
        %v5349 = vpop.f32.mrb[0].mxu0
        %v5350 = vadd.f32 %v4963, %v5349
        %v5351 = vpop.f32.mrb[0].mxu0
        %v5352 = vadd.f32 %v4967, %v5351
        %v5353 = vpop.f32.mrb[0].mxu0
        %v5354 = vadd.f32 %v4963, %v5353
        %v5355 = vpop.f32.mrb[0].mxu0
        %v5356 = vadd.f32 %v4967, %v5355
        %5357 = vdwg.mxu0
        %v5358 = vmul.f32 %v5167, 0.5
        %v5359 = vmul.f32 %v5169, 0.5
        %v5360 = vmul.f32 %v5280, 0.5
        %v5361 = vmul.f32 %v5282, 0.5
        %v5362 = vmul.f32 %v5171, 0.5
        %v5363 = vmul.f32 %v5173, 0.5
        %v5364 = vmul.f32 %v5284, 0.5
        %v5365 = vmul.f32 %v5286, 0.5
        %v5366 = vmul.f32 %v5177, 0.5
        %v5367 = vmul.f32 %v5179, 0.5
        %v5368 = vmul.f32 %v5290, 0.5
        %v5369 = vmul.f32 %v5292, 0.5
        %v5370 = vmul.f32 %v5181, 0.5
        %v5371 = vmul.f32 %v5183, 0.5
        %v5372 = vmul.f32 %v5294, 0.5
        %v5373 = vmul.f32 %v5296, 0.5
        %v5374 = vmul.f32 %v5187, 0.5
        %v5375 = vmul.f32 %v5189, 0.5
        %v5376 = vmul.f32 %v5300, 0.5
        %v5377 = vmul.f32 %v5302, 0.5
        %v5378 = vmul.f32 %v5191, 0.5
        %v5379 = vmul.f32 %v5193, 0.5
        %v5380 = vmul.f32 %v5304, 0.5
        %v5381 = vmul.f32 %v5306, 0.5
        %v5382 = vmul.f32 %v5197, 0.5
        %v5383 = vmul.f32 %v5199, 0.5
        %v5384 = vmul.f32 %v5310, 0.5
        %v5385 = vmul.f32 %v5312, 0.5
        %v5386 = vmul.f32 %v5201, 0.5
        %v5387 = vmul.f32 %v5203, 0.5
        %v5388 = vmul.f32 %v5314, 0.5
        %v5389 = vmul.f32 %v5316, 0.5
        %v5390 = vmul.f32 %v5207, 0.5
        %v5391 = vmul.f32 %v5209, 0.5
        %v5392 = vmul.f32 %v5320, 0.5
        %v5393 = vmul.f32 %v5322, 0.5
        %v5394 = vmul.f32 %v5211, 0.5
        %v5395 = vmul.f32 %v5213, 0.5
        %v5396 = vmul.f32 %v5324, 0.5
        %v5397 = vmul.f32 %v5326, 0.5
        %v5398 = vmul.f32 %v5217, 0.5
        %v5399 = vmul.f32 %v5219, 0.5
        %v5400 = vmul.f32 %v5330, 0.5
        %v5401 = vmul.f32 %v5332, 0.5
        %v5402 = vmul.f32 %v5221, 0.5
        %v5403 = vmul.f32 %v5223, 0.5
        %v5404 = vmul.f32 %v5334, 0.5
        %v5405 = vmul.f32 %v5336, 0.5
        %v5406 = vmul.f32 %v5227, 0.5
        %v5407 = vmul.f32 %v5229, 0.5
        %v5408 = vmul.f32 %v5340, 0.5
        %v5409 = vmul.f32 %v5342, 0.5
        %v5410 = vmul.f32 %v5231, 0.5
        %v5411 = vmul.f32 %v5233, 0.5
        %v5412 = vmul.f32 %v5344, 0.5
        %v5413 = vmul.f32 %v5346, 0.5
        %v5414 = vmul.f32 %v5237, 0.5
        %v5415 = vmul.f32 %v5239, 0.5
        %v5416 = vmul.f32 %v5350, 0.5
        %v5417 = vmul.f32 %v5352, 0.5
        %v5418 = vmul.f32 %v5241, 0.5
        %v5419 = vmul.f32 %v5243, 0.5
        %v5420 = vmul.f32 %v5354, 0.5
        %v5421 = vmul.f32 %v5356, 0.5
        %v5422 = vmul.f32 %v5167, 0.70710677
        %v5423 = vmul.f32 %v5169, 0.70710677
        %v5424 = vmul.f32 %v5280, 0.70710677
        %v5425 = vmul.f32 %v5282, 0.70710677
        %v5426 = vmul.f32 %v5171, 0.70710677
        %v5427 = vmul.f32 %v5173, 0.70710677
        %v5428 = vmul.f32 %v5284, 0.70710677
        %v5429 = vmul.f32 %v5286, 0.70710677
        %v5430 = vmul.f32 %v5177, 0.70710677
        %v5431 = vmul.f32 %v5179, 0.70710677
        %v5432 = vmul.f32 %v5290, 0.70710677
        %v5433 = vmul.f32 %v5292, 0.70710677
        %v5434 = vmul.f32 %v5181, 0.70710677
        %v5435 = vmul.f32 %v5183, 0.70710677
        %v5436 = vmul.f32 %v5294, 0.70710677
        %v5437 = vmul.f32 %v5296, 0.70710677
        %v5438 = vmul.f32 %v5187, 0.70710677
        %v5439 = vmul.f32 %v5189, 0.70710677
        %v5440 = vmul.f32 %v5300, 0.70710677
        %v5441 = vmul.f32 %v5302, 0.70710677
        %v5442 = vmul.f32 %v5191, 0.70710677
        %v5443 = vmul.f32 %v5193, 0.70710677
        %v5444 = vmul.f32 %v5304, 0.70710677
        %v5445 = vmul.f32 %v5306, 0.70710677
        %v5446 = vmul.f32 %v5197, 0.70710677
        %v5447 = vmul.f32 %v5199, 0.70710677
        %v5448 = vmul.f32 %v5310, 0.70710677
        %v5449 = vmul.f32 %v5312, 0.70710677
        %v5450 = vmul.f32 %v5201, 0.70710677
        %v5451 = vmul.f32 %v5203, 0.70710677
        %v5452 = vmul.f32 %v5314, 0.70710677
        %v5453 = vmul.f32 %v5316, 0.70710677
        %v5454 = vmul.f32 %v5207, 0.70710677
        %v5455 = vmul.f32 %v5209, 0.70710677
        %v5456 = vmul.f32 %v5320, 0.70710677
        %v5457 = vmul.f32 %v5322, 0.70710677
        %v5458 = vmul.f32 %v5211, 0.70710677
        %v5459 = vmul.f32 %v5213, 0.70710677
        %v5460 = vmul.f32 %v5324, 0.70710677
        %v5461 = vmul.f32 %v5326, 0.70710677
        %v5462 = vmul.f32 %v5217, 0.70710677
        %v5463 = vmul.f32 %v5219, 0.70710677
        %v5464 = vmul.f32 %v5330, 0.70710677
        %v5465 = vmul.f32 %v5332, 0.70710677
        %v5466 = vmul.f32 %v5221, 0.70710677
        %v5467 = vmul.f32 %v5223, 0.70710677
        %v5468 = vmul.f32 %v5334, 0.70710677
        %v5469 = vmul.f32 %v5336, 0.70710677
        %v5470 = vmul.f32 %v5227, 0.70710677
        %v5471 = vmul.f32 %v5229, 0.70710677
        %v5472 = vmul.f32 %v5340, 0.70710677
        %v5473 = vmul.f32 %v5342, 0.70710677
        %v5474 = vmul.f32 %v5231, 0.70710677
        %v5475 = vmul.f32 %v5233, 0.70710677
        %v5476 = vmul.f32 %v5344, 0.70710677
        %v5477 = vmul.f32 %v5346, 0.70710677
        %v5478 = vmul.f32 %v5237, 0.70710677
        %v5479 = vmul.f32 %v5239, 0.70710677
        %v5480 = vmul.f32 %v5350, 0.70710677
        %v5481 = vmul.f32 %v5352, 0.70710677
        %v5482 = vmul.f32 %v5241, 0.70710677
        %v5483 = vmul.f32 %v5243, 0.70710677
        %v5484 = vmul.f32 %v5354, 0.70710677
        %v5485 = vmul.f32 %v5356, 0.70710677
        %v5486 = verf.f32.pop %v5422
        %v5487 = verf.f32.pop %v5423
        %v5488 = verf.f32.pop %v5424
        %v5489 = verf.f32.pop %v5425
        %v5490 = verf.f32.pop %v5426
        %v5491 = verf.f32.pop %v5427
        %v5492 = verf.f32.pop %v5428
        %v5493 = verf.f32.pop %v5429
        %v5494 = verf.f32.pop %v5430
        %v5495 = verf.f32.pop %v5431
        %v5496 = verf.f32.pop %v5432
        %v5497 = verf.f32.pop %v5433
        %v5498 = verf.f32.pop %v5434
        %v5499 = verf.f32.pop %v5435
        %v5500 = verf.f32.pop %v5436
        %v5501 = verf.f32.pop %v5437
        %v5502 = verf.f32.pop %v5438
        %v5503 = verf.f32.pop %v5439
        %v5504 = verf.f32.pop %v5440
        %v5505 = verf.f32.pop %v5441
        %v5506 = verf.f32.pop %v5442
        %v5507 = verf.f32.pop %v5443
        %v5508 = verf.f32.pop %v5444
        %v5509 = verf.f32.pop %v5445
        %v5510 = verf.f32.pop %v5446
        %v5511 = verf.f32.pop %v5447
        %v5512 = verf.f32.pop %v5448
        %v5513 = verf.f32.pop %v5449
        %v5514 = verf.f32.pop %v5450
        %v5515 = verf.f32.pop %v5451
        %v5516 = verf.f32.pop %v5452
        %v5517 = verf.f32.pop %v5453
        %v5518 = verf.f32.pop %v5454
        %v5519 = verf.f32.pop %v5455
        %v5520 = verf.f32.pop %v5456
        %v5521 = verf.f32.pop %v5457
        %v5522 = verf.f32.pop %v5458
        %v5523 = verf.f32.pop %v5459
        %v5524 = verf.f32.pop %v5460
        %v5525 = verf.f32.pop %v5461
        %v5526 = verf.f32.pop %v5462
        %v5527 = verf.f32.pop %v5463
        %v5528 = verf.f32.pop %v5464
        %v5529 = verf.f32.pop %v5465
        %v5530 = verf.f32.pop %v5466
        %v5531 = verf.f32.pop %v5467
        %v5532 = verf.f32.pop %v5468
        %v5533 = verf.f32.pop %v5469
        %v5534 = verf.f32.pop %v5470
        %v5535 = verf.f32.pop %v5471
        %v5536 = verf.f32.pop %v5472
        %v5537 = verf.f32.pop %v5473
        %v5538 = verf.f32.pop %v5474
        %v5539 = verf.f32.pop %v5475
        %v5540 = verf.f32.pop %v5476
        %v5541 = verf.f32.pop %v5477
        %v5542 = verf.f32.pop %v5478
        %v5543 = verf.f32.pop %v5479
        %v5544 = verf.f32.pop %v5480
        %v5545 = verf.f32.pop %v5481
        %v5546 = verf.f32.pop %v5482
        %v5547 = verf.f32.pop %v5483
        %v5548 = verf.f32.pop %v5484
        %v5549 = verf.f32.pop %v5485
        %v5550 = vadd.f32 %v5486, 1.0
        %v5551 = vadd.f32 %v5487, 1.0
        %v5552 = vadd.f32 %v5488, 1.0
        %v5553 = vadd.f32 %v5489, 1.0
        %v5554 = vadd.f32 %v5490, 1.0
        %v5555 = vadd.f32 %v5491, 1.0
        %v5556 = vadd.f32 %v5492, 1.0
        %v5557 = vadd.f32 %v5493, 1.0
        %v5558 = vadd.f32 %v5494, 1.0
        %v5559 = vadd.f32 %v5495, 1.0
        %v5560 = vadd.f32 %v5496, 1.0
        %v5561 = vadd.f32 %v5497, 1.0
        %v5562 = vadd.f32 %v5498, 1.0
        %v5563 = vadd.f32 %v5499, 1.0
        %v5564 = vadd.f32 %v5500, 1.0
        %v5565 = vadd.f32 %v5501, 1.0
        %v5566 = vadd.f32 %v5502, 1.0
        %v5567 = vadd.f32 %v5503, 1.0
        %v5568 = vadd.f32 %v5504, 1.0
        %v5569 = vadd.f32 %v5505, 1.0
        %v5570 = vadd.f32 %v5506, 1.0
        %v5571 = vadd.f32 %v5507, 1.0
        %v5572 = vadd.f32 %v5508, 1.0
        %v5573 = vadd.f32 %v5509, 1.0
        %v5574 = vadd.f32 %v5510, 1.0
        %v5575 = vadd.f32 %v5511, 1.0
        %v5576 = vadd.f32 %v5512, 1.0
        %v5577 = vadd.f32 %v5513, 1.0
        %v5578 = vadd.f32 %v5514, 1.0
        %v5579 = vadd.f32 %v5515, 1.0
        %v5580 = vadd.f32 %v5516, 1.0
        %v5581 = vadd.f32 %v5517, 1.0
        %v5582 = vadd.f32 %v5518, 1.0
        %v5583 = vadd.f32 %v5519, 1.0
        %v5584 = vadd.f32 %v5520, 1.0
        %v5585 = vadd.f32 %v5521, 1.0
        %v5586 = vadd.f32 %v5522, 1.0
        %v5587 = vadd.f32 %v5523, 1.0
        %v5588 = vadd.f32 %v5524, 1.0
        %v5589 = vadd.f32 %v5525, 1.0
        %v5590 = vadd.f32 %v5526, 1.0
        %v5591 = vadd.f32 %v5527, 1.0
        %v5592 = vadd.f32 %v5528, 1.0
        %v5593 = vadd.f32 %v5529, 1.0
        %v5594 = vadd.f32 %v5530, 1.0
        %v5595 = vadd.f32 %v5531, 1.0
        %v5596 = vadd.f32 %v5532, 1.0
        %v5597 = vadd.f32 %v5533, 1.0
        %v5598 = vadd.f32 %v5534, 1.0
        %v5599 = vadd.f32 %v5535, 1.0
        %v5600 = vadd.f32 %v5536, 1.0
        %v5601 = vadd.f32 %v5537, 1.0
        %v5602 = vadd.f32 %v5538, 1.0
        %v5603 = vadd.f32 %v5539, 1.0
        %v5604 = vadd.f32 %v5540, 1.0
        %v5605 = vadd.f32 %v5541, 1.0
        %v5606 = vadd.f32 %v5542, 1.0
        %v5607 = vadd.f32 %v5543, 1.0
        %v5608 = vadd.f32 %v5544, 1.0
        %v5609 = vadd.f32 %v5545, 1.0
        %v5610 = vadd.f32 %v5546, 1.0
        %v5611 = vadd.f32 %v5547, 1.0
        %v5612 = vadd.f32 %v5548, 1.0
        %v5613 = vadd.f32 %v5549, 1.0
        %v5614 = vmul.f32 %v5358, %v5550
        %v5615 = vmul.f32 %v5359, %v5551
        %v5616 = vmul.f32 %v5360, %v5552
        %v5617 = vmul.f32 %v5361, %v5553
        %v5618 = vmul.f32 %v5362, %v5554
        %v5619 = vmul.f32 %v5363, %v5555
        %v5620 = vmul.f32 %v5364, %v5556
        %v5621 = vmul.f32 %v5365, %v5557
        %v5622 = vmul.f32 %v5366, %v5558
        %v5623 = vmul.f32 %v5367, %v5559
        %v5624 = vmul.f32 %v5368, %v5560
        %v5625 = vmul.f32 %v5369, %v5561
        %v5626 = vmul.f32 %v5370, %v5562
        %v5627 = vmul.f32 %v5371, %v5563
        %v5628 = vmul.f32 %v5372, %v5564
        %v5629 = vmul.f32 %v5373, %v5565
        %v5630 = vmul.f32 %v5374, %v5566
        %v5631 = vmul.f32 %v5375, %v5567
        %v5632 = vmul.f32 %v5376, %v5568
        %v5633 = vmul.f32 %v5377, %v5569
        %v5634 = vmul.f32 %v5378, %v5570
        %v5635 = vmul.f32 %v5379, %v5571
        %v5636 = vmul.f32 %v5380, %v5572
        %v5637 = vmul.f32 %v5381, %v5573
        %v5638 = vmul.f32 %v5382, %v5574
        %v5639 = vmul.f32 %v5383, %v5575
        %v5640 = vmul.f32 %v5384, %v5576
        %v5641 = vmul.f32 %v5385, %v5577
        %v5642 = vmul.f32 %v5386, %v5578
        %v5643 = vmul.f32 %v5387, %v5579
        %v5644 = vmul.f32 %v5388, %v5580
        %v5645 = vmul.f32 %v5389, %v5581
        %v5646 = vmul.f32 %v5390, %v5582
        %v5647 = vmul.f32 %v5391, %v5583
        %v5648 = vmul.f32 %v5392, %v5584
        %v5649 = vmul.f32 %v5393, %v5585
        %v5650 = vmul.f32 %v5394, %v5586
        %v5651 = vmul.f32 %v5395, %v5587
        %v5652 = vmul.f32 %v5396, %v5588
        %v5653 = vmul.f32 %v5397, %v5589
        %v5654 = vmul.f32 %v5398, %v5590
        %v5655 = vmul.f32 %v5399, %v5591
        %v5656 = vmul.f32 %v5400, %v5592
        %v5657 = vmul.f32 %v5401, %v5593
        %v5658 = vmul.f32 %v5402, %v5594
        %v5659 = vmul.f32 %v5403, %v5595
        %v5660 = vmul.f32 %v5404, %v5596
        %v5661 = vmul.f32 %v5405, %v5597
        %v5662 = vmul.f32 %v5406, %v5598
        %v5663 = vmul.f32 %v5407, %v5599
        %v5664 = vmul.f32 %v5408, %v5600
        %v5665 = vmul.f32 %v5409, %v5601
        %v5666 = vmul.f32 %v5410, %v5602
        %v5667 = vmul.f32 %v5411, %v5603
        %v5668 = vmul.f32 %v5412, %v5604
        %v5669 = vmul.f32 %v5413, %v5605
        %v5670 = vmul.f32 %v5414, %v5606
        %v5671 = vmul.f32 %v5415, %v5607
        %v5672 = vmul.f32 %v5416, %v5608
        %v5673 = vmul.f32 %v5417, %v5609
        %v5674 = vmul.f32 %v5418, %v5610
        %v5675 = vmul.f32 %v5419, %v5611
        %v5676 = vmul.f32 %v5420, %v5612
        %v5677 = vmul.f32 %v5421, %v5613
        %v5678 = vpack.c.bf16 %v5618, %v5614
        %v5679 = vpack.c.bf16 %v5619, %v5615
        %v5680 = vpack.c.bf16 %v5620, %v5616
        %v5681 = vpack.c.bf16 %v5621, %v5617
        %v5682 = vpack.c.bf16 %v5626, %v5622
        %v5683 = vpack.c.bf16 %v5627, %v5623
        %v5684 = vpack.c.bf16 %v5628, %v5624
        %v5685 = vpack.c.bf16 %v5629, %v5625
        %v5686 = vpack.c.bf16 %v5634, %v5630
        %v5687 = vpack.c.bf16 %v5635, %v5631
        %v5688 = vpack.c.bf16 %v5636, %v5632
        %v5689 = vpack.c.bf16 %v5637, %v5633
        %v5690 = vpack.c.bf16 %v5642, %v5638
        %v5691 = vpack.c.bf16 %v5643, %v5639
        %v5692 = vpack.c.bf16 %v5644, %v5640
        %v5693 = vpack.c.bf16 %v5645, %v5641
        %v5694 = vpack.c.bf16 %v5650, %v5646
        %v5695 = vpack.c.bf16 %v5651, %v5647
        %v5696 = vpack.c.bf16 %v5652, %v5648
        %v5697 = vpack.c.bf16 %v5653, %v5649
        %v5698 = vpack.c.bf16 %v5658, %v5654
        %v5699 = vpack.c.bf16 %v5659, %v5655
        %v5700 = vpack.c.bf16 %v5660, %v5656
        %v5701 = vpack.c.bf16 %v5661, %v5657
        %v5702 = vpack.c.bf16 %v5666, %v5662
        %v5703 = vpack.c.bf16 %v5667, %v5663
        %v5704 = vpack.c.bf16 %v5668, %v5664
        %v5705 = vpack.c.bf16 %v5669, %v5665
        %v5706 = vpack.c.bf16 %v5674, %v5670
        %v5707 = vpack.c.bf16 %v5675, %v5671
        %v5708 = vpack.c.bf16 %v5676, %v5672
        %v5709 = vpack.c.bf16 %v5677, %v5673
        %v5710 = vld [vmem:[%s15] sm:$0xf]
        %v5711 = vld [vmem:[%s15 + $0x4] sm:$0xf]
        %v5712 = vld [vmem:[%s15 + $0x8] sm:$0xf]
        %v5713 = vld [vmem:[%s15 + $0xc] sm:$0xf]
        %v5714 = vld [vmem:[%s15 + $0x10] sm:$0xf]
        %v5715 = vld [vmem:[%s15 + $0x14] sm:$0xf]
        %v5716 = vld [vmem:[%s15 + $0x18] sm:$0xf]
        %v5717 = vld [vmem:[%s15 + $0x1c] sm:$0xf]
        %v5718 = vld [vmem:[%s15 + $0x20] sm:$0xf]
        %v5719 = vld [vmem:[%s15 + $0x24] sm:$0xf]
        %v5720 = vld [vmem:[%s15 + $0x28] sm:$0xf]
        %v5721 = vld [vmem:[%s15 + $0x2c] sm:$0xf]
        %v5722 = vld [vmem:[%s15 + $0x30] sm:$0xf]
        %v5723 = vld [vmem:[%s15 + $0x34] sm:$0xf]
        %v5724 = vld [vmem:[%s15 + $0x38] sm:$0xf]
        %v5725 = vld [vmem:[%s15 + $0x3c] sm:$0xf]
        %v5726 = vld [vmem:[%s15 + $0x40] sm:$0xf]
        %v5727 = vld [vmem:[%s15 + $0x44] sm:$0xf]
        %v5728 = vld [vmem:[%s15 + $0x48] sm:$0xf]
        %v5729 = vld [vmem:[%s15 + $0x4c] sm:$0xf]
        %v5730 = vld [vmem:[%s15 + $0x50] sm:$0xf]
        %v5731 = vld [vmem:[%s15 + $0x54] sm:$0xf]
        %v5732 = vld [vmem:[%s15 + $0x58] sm:$0xf]
        %v5733 = vld [vmem:[%s15 + $0x5c] sm:$0xf]
        %v5734 = vld [vmem:[%s15 + $0x60] sm:$0xf]
        %v5735 = vld [vmem:[%s15 + $0x64] sm:$0xf]
        %v5736 = vld [vmem:[%s15 + $0x68] sm:$0xf]
        %v5737 = vld [vmem:[%s15 + $0x6c] sm:$0xf]
        %v5738 = vld [vmem:[%s15 + $0x70] sm:$0xf]
        %v5739 = vld [vmem:[%s15 + $0x74] sm:$0xf]
        %v5740 = vld [vmem:[%s15 + $0x78] sm:$0xf]
        %v5741 = vld [vmem:[%s15 + $0x7c] sm:$0xf]
        %v5742 = vld [vmem:[%s15 + $0x80] sm:$0xf]
        %v5743 = vld [vmem:[%s15 + $0x84] sm:$0xf]
        %v5744 = vld [vmem:[%s15 + $0x88] sm:$0xf]
        %v5745 = vld [vmem:[%s15 + $0x8c] sm:$0xf]
        %v5746 = vld [vmem:[%s15 + $0x90] sm:$0xf]
        %v5747 = vld [vmem:[%s15 + $0x94] sm:$0xf]
        %v5748 = vld [vmem:[%s15 + $0x98] sm:$0xf]
        %v5749 = vld [vmem:[%s15 + $0x9c] sm:$0xf]
        %v5750 = vld [vmem:[%s15 + $0xa0] sm:$0xf]
        %v5751 = vld [vmem:[%s15 + $0xa4] sm:$0xf]
        %v5752 = vld [vmem:[%s15 + $0xa8] sm:$0xf]
        %v5753 = vld [vmem:[%s15 + $0xac] sm:$0xf]
        %v5754 = vld [vmem:[%s15 + $0xb0] sm:$0xf]
        %v5755 = vld [vmem:[%s15 + $0xb4] sm:$0xf]
        %v5756 = vld [vmem:[%s15 + $0xb8] sm:$0xf]
        %v5757 = vld [vmem:[%s15 + $0xbc] sm:$0xf]
        %v5758 = vld [vmem:[%s15 + $0xc0] sm:$0xf]
        %v5759 = vld [vmem:[%s15 + $0xc4] sm:$0xf]
        %v5760 = vld [vmem:[%s15 + $0xc8] sm:$0xf]
        %v5761 = vld [vmem:[%s15 + $0xcc] sm:$0xf]
        %v5762 = vld [vmem:[%s15 + $0xd0] sm:$0xf]
        %v5763 = vld [vmem:[%s15 + $0xd4] sm:$0xf]
        %v5764 = vld [vmem:[%s15 + $0xd8] sm:$0xf]
        %v5765 = vld [vmem:[%s15 + $0xdc] sm:$0xf]
        %v5766 = vld [vmem:[%s15 + $0xe0] sm:$0xf]
        %v5767 = vld [vmem:[%s15 + $0xe4] sm:$0xf]
        %v5768 = vld [vmem:[%s15 + $0xe8] sm:$0xf]
        %v5769 = vld [vmem:[%s15 + $0xec] sm:$0xf]
        %v5770 = vld [vmem:[%s15 + $0xf0] sm:$0xf]
        %v5771 = vld [vmem:[%s15 + $0xf4] sm:$0xf]
        %v5772 = vld [vmem:[%s15 + $0xf8] sm:$0xf]
        %v5773 = vld [vmem:[%s15 + $0xfc] sm:$0xf]
        %v5774 = vld [vmem:[%s16] sm:$0x1]
        %v5776 = vlaneseq
        %v5777 = vshrl.u32 %v5776, 7
        %v5778 = vsub.s32 0, %v5777
        %v5779 = vrot.slane %v5774, %v5778
        %v5845 = vunpack.c.l.b16 %v5710
        %v5846 = vunpack.c.l.b16 %v5711
        %v5847 = vunpack.c.l.b16 %v5712
        %v5848 = vunpack.c.l.b16 %v5713
        %v5849 = vunpack.c.l.b16 %v5714
        %v5850 = vunpack.c.l.b16 %v5715
        %v5851 = vunpack.c.l.b16 %v5716
        %v5852 = vunpack.c.l.b16 %v5717
        %v5853 = vunpack.c.l.b16 %v5718
        %v5854 = vunpack.c.l.b16 %v5719
        %v5855 = vunpack.c.l.b16 %v5720
        %v5856 = vunpack.c.l.b16 %v5721
        %v5857 = vunpack.c.l.b16 %v5722
        %v5858 = vunpack.c.l.b16 %v5723
        %v5859 = vunpack.c.l.b16 %v5724
        %v5860 = vunpack.c.l.b16 %v5725
        %v5861 = vunpack.c.l.b16 %v5726
        %v5862 = vunpack.c.l.b16 %v5727
        %v5863 = vunpack.c.l.b16 %v5728
        %v5864 = vunpack.c.l.b16 %v5729
        %v5865 = vunpack.c.l.b16 %v5730
        %v5866 = vunpack.c.l.b16 %v5731
        %v5867 = vunpack.c.l.b16 %v5732
        %v5868 = vunpack.c.l.b16 %v5733
        %v5869 = vunpack.c.l.b16 %v5734
        %v5870 = vunpack.c.l.b16 %v5735
        %v5871 = vunpack.c.l.b16 %v5736
        %v5872 = vunpack.c.l.b16 %v5737
        %v5873 = vunpack.c.l.b16 %v5738
        %v5874 = vunpack.c.l.b16 %v5739
        %v5875 = vunpack.c.l.b16 %v5740
        %v5876 = vunpack.c.l.b16 %v5741
        %v5877 = vunpack.c.l.b16 %v5742
        %v5878 = vunpack.c.l.b16 %v5743
        %v5879 = vunpack.c.l.b16 %v5744
        %v5880 = vunpack.c.l.b16 %v5745
        %v5881 = vunpack.c.l.b16 %v5746
        %v5882 = vunpack.c.l.b16 %v5747
        %v5883 = vunpack.c.l.b16 %v5748
        %v5884 = vunpack.c.l.b16 %v5749
        %v5885 = vunpack.c.l.b16 %v5750
        %v5886 = vunpack.c.l.b16 %v5751
        %v5887 = vunpack.c.l.b16 %v5752
        %v5888 = vunpack.c.l.b16 %v5753
        %v5889 = vunpack.c.l.b16 %v5754
        %v5890 = vunpack.c.l.b16 %v5755
        %v5891 = vunpack.c.l.b16 %v5756
        %v5892 = vunpack.c.l.b16 %v5757
        %v5893 = vunpack.c.l.b16 %v5758
        %v5894 = vunpack.c.l.b16 %v5759
        %v5895 = vunpack.c.l.b16 %v5760
        %v5896 = vunpack.c.l.b16 %v5761
        %v5897 = vunpack.c.l.b16 %v5762
        %v5898 = vunpack.c.l.b16 %v5763
        %v5899 = vunpack.c.l.b16 %v5764
        %v5900 = vunpack.c.l.b16 %v5765
        %v5901 = vunpack.c.l.b16 %v5766
        %v5902 = vunpack.c.l.b16 %v5767
        %v5903 = vunpack.c.l.b16 %v5768
        %v5904 = vunpack.c.l.b16 %v5769
        %v5905 = vunpack.c.l.b16 %v5770
        %v5906 = vunpack.c.l.b16 %v5771
        %v5907 = vunpack.c.l.b16 %v5772
        %v5908 = vunpack.c.l.b16 %v5773
        %v5909 = vpack.c.b16 %v5846, %v5845
        %v5910 = vpack.c.b16 %v5848, %v5847
        %v5911 = vpack.c.b16 %v5850, %v5849
        %v5912 = vpack.c.b16 %v5852, %v5851
        %v5913 = vpack.c.b16 %v5854, %v5853
        %v5914 = vpack.c.b16 %v5856, %v5855
        %v5915 = vpack.c.b16 %v5858, %v5857
        %v5916 = vpack.c.b16 %v5860, %v5859
        %v5917 = vpack.c.b16 %v5862, %v5861
        %v5918 = vpack.c.b16 %v5864, %v5863
        %v5919 = vpack.c.b16 %v5866, %v5865
        %v5920 = vpack.c.b16 %v5868, %v5867
        %v5921 = vpack.c.b16 %v5870, %v5869
        %v5922 = vpack.c.b16 %v5872, %v5871
        %v5923 = vpack.c.b16 %v5874, %v5873
        %v5924 = vpack.c.b16 %v5876, %v5875
        %v5925 = vpack.c.b16 %v5878, %v5877
        %v5926 = vpack.c.b16 %v5880, %v5879
        %v5927 = vpack.c.b16 %v5882, %v5881
        %v5928 = vpack.c.b16 %v5884, %v5883
        %v5929 = vpack.c.b16 %v5886, %v5885
        %v5930 = vpack.c.b16 %v5888, %v5887
        %v5931 = vpack.c.b16 %v5890, %v5889
        %v5932 = vpack.c.b16 %v5892, %v5891
        %v5933 = vpack.c.b16 %v5894, %v5893
        %v5934 = vpack.c.b16 %v5896, %v5895
        %v5935 = vpack.c.b16 %v5898, %v5897
        %v5936 = vpack.c.b16 %v5900, %v5899
        %v5937 = vpack.c.b16 %v5902, %v5901
        %v5938 = vpack.c.b16 %v5904, %v5903
        %v5939 = vpack.c.b16 %v5906, %v5905
        %v5940 = vpack.c.b16 %v5908, %v5907
        %5973 = vmatprep.subr.bf16.mxu0 0
        %5974 = vmatpush1.bf16.msra.mxu0 %v5909
        %5975 = vmatprep.subr.bf16.mxu0 0
        %5976 = vmatpush1.bf16.msra.mxu0 %v5910
        %5977 = vmatprep.subr.bf16.mxu0 0
        %5978 = vmatpush1.bf16.msra.mxu0 %v5911
        %5979 = vmatprep.subr.bf16.mxu0 0
        %5980 = vmatpush1.bf16.msra.mxu0 %v5912
        %5981 = vmatprep.subr.bf16.mxu0 0
        %5982 = vmatpush1.bf16.msra.mxu0 %v5913
        %5983 = vmatprep.subr.bf16.mxu0 0
        %5984 = vmatpush1.bf16.msra.mxu0 %v5914
        %5985 = vmatprep.subr.bf16.mxu0 0
        %5986 = vmatpush1.bf16.msra.mxu0 %v5915
        %5987 = vmatprep.subr.bf16.mxu0 0
        %5988 = vmatpush1.bf16.msra.mxu0 %v5916
        %5989 = vmatprep.subr.bf16.mxu0 0
        %5990 = vmatpush1.bf16.msra.mxu0 %v5917
        %5991 = vmatprep.subr.bf16.mxu0 0
        %5992 = vmatpush1.bf16.msra.mxu0 %v5918
        %5993 = vmatprep.subr.bf16.mxu0 0
        %5994 = vmatpush1.bf16.msra.mxu0 %v5919
        %5995 = vmatprep.subr.bf16.mxu0 0
        %5996 = vmatpush1.bf16.msra.mxu0 %v5920
        %5997 = vmatprep.subr.bf16.mxu0 0
        %5998 = vmatpush1.bf16.msra.mxu0 %v5921
        %5999 = vmatprep.subr.bf16.mxu0 0
        %6000 = vmatpush1.bf16.msra.mxu0 %v5922
        %6001 = vmatprep.subr.bf16.mxu0 0
        %6002 = vmatpush1.bf16.msra.mxu0 %v5923
        %6003 = vmatprep.subr.bf16.mxu0 0
        %6004 = vmatpush1.bf16.msra.mxu0 %v5924
        %6005 = vmatprep.mubr.bf16.mxu0 %v5679
        %6006 = vmatmul.mubr.bf16.gmra.mrb[0].mxu0 %v5678
        %v6007 = vpop.f32.mrb[0].mxu0
        %v6008 = vadd.f32 %v5779, %v6007
        %v6009 = vpop.f32.mrb[0].mxu0
        %v6010 = vpop.f32.mrb[0].mxu0
        %v6011 = vadd.f32 %v5779, %v6010
        %v6012 = vpop.f32.mrb[0].mxu0
        %6013 = vmatprep.mubr.bf16.mxu0 %v5683
        %6014 = vmatmul.mubr.bf16.gmra.mrb[0].mxu0 %v5682
        %v6015 = vpop.f32.mrb[0].mxu0
        %v6016 = vadd.f32 %v5779, %v6015
        %v6017 = vpop.f32.mrb[0].mxu0
        %v6018 = vpop.f32.mrb[0].mxu0
        %v6019 = vadd.f32 %v5779, %v6018
        %v6020 = vpop.f32.mrb[0].mxu0
        %6021 = vmatprep.mubr.bf16.mxu0 %v5687
        %6022 = vmatmul.mubr.bf16.gmra.mrb[0].mxu0 %v5686
        %v6023 = vpop.f32.mrb[0].mxu0
        %v6024 = vadd.f32 %v5779, %v6023
        %v6025 = vpop.f32.mrb[0].mxu0
        %v6026 = vpop.f32.mrb[0].mxu0
        %v6027 = vadd.f32 %v5779, %v6026
        %v6028 = vpop.f32.mrb[0].mxu0
        %6029 = vmatprep.mubr.bf16.mxu0 %v5691
        %6030 = vmatmul.mubr.bf16.gmra.mrb[0].mxu0 %v5690
        %v6031 = vpop.f32.mrb[0].mxu0
        %v6032 = vadd.f32 %v5779, %v6031
        %v6033 = vpop.f32.mrb[0].mxu0
        %v6034 = vpop.f32.mrb[0].mxu0
        %v6035 = vadd.f32 %v5779, %v6034
        %v6036 = vpop.f32.mrb[0].mxu0
        %6037 = vmatprep.mubr.bf16.mxu0 %v5695
        %6038 = vmatmul.mubr.bf16.gmra.mrb[0].mxu0 %v5694
        %v6039 = vpop.f32.mrb[0].mxu0
        %v6040 = vadd.f32 %v5779, %v6039
        %v6041 = vpop.f32.mrb[0].mxu0
        %v6042 = vpop.f32.mrb[0].mxu0
        %v6043 = vadd.f32 %v5779, %v6042
        %v6044 = vpop.f32.mrb[0].mxu0
        %6045 = vmatprep.mubr.bf16.mxu0 %v5699
        %6046 = vmatmul.mubr.bf16.gmra.mrb[0].mxu0 %v5698
        %v6047 = vpop.f32.mrb[0].mxu0
        %v6048 = vadd.f32 %v5779, %v6047
        %v6049 = vpop.f32.mrb[0].mxu0
        %v6050 = vpop.f32.mrb[0].mxu0
        %v6051 = vadd.f32 %v5779, %v6050
        %v6052 = vpop.f32.mrb[0].mxu0
        %6053 = vmatprep.mubr.bf16.mxu0 %v5703
        %6054 = vmatmul.mubr.bf16.gmra.mrb[0].mxu0 %v5702
        %v6055 = vpop.f32.mrb[0].mxu0
        %v6056 = vadd.f32 %v5779, %v6055
        %v6057 = vpop.f32.mrb[0].mxu0
        %v6058 = vpop.f32.mrb[0].mxu0
        %v6059 = vadd.f32 %v5779, %v6058
        %v6060 = vpop.f32.mrb[0].mxu0
        %6061 = vmatprep.mubr.bf16.mxu0 %v5707
        %6062 = vmatmul.mubr.bf16.gmra.mrb[0].mxu0 %v5706
        %v6063 = vpop.f32.mrb[0].mxu0
        %v6064 = vadd.f32 %v5779, %v6063
        %v6065 = vpop.f32.mrb[0].mxu0
        %v6066 = vpop.f32.mrb[0].mxu0
        %v6067 = vadd.f32 %v5779, %v6066
        %v6068 = vpop.f32.mrb[0].mxu0
        %6069 = vdwg.mxu0
        %6070 = vmatprep.subr.bf16.mxu0 0
        %6071 = vmatpush1.bf16.msra.mxu0 %v5925
        %6072 = vmatprep.subr.bf16.mxu0 0
        %6073 = vmatpush1.bf16.msra.mxu0 %v5926
        %6074 = vmatprep.subr.bf16.mxu0 0
        %6075 = vmatpush1.bf16.msra.mxu0 %v5927
        %6076 = vmatprep.subr.bf16.mxu0 0
        %6077 = vmatpush1.bf16.msra.mxu0 %v5928
        %6078 = vmatprep.subr.bf16.mxu0 0
        %6079 = vmatpush1.bf16.msra.mxu0 %v5929
        %6080 = vmatprep.subr.bf16.mxu0 0
        %6081 = vmatpush1.bf16.msra.mxu0 %v5930
        %6082 = vmatprep.subr.bf16.mxu0 0
        %6083 = vmatpush1.bf16.msra.mxu0 %v5931
        %6084 = vmatprep.subr.bf16.mxu0 0
        %6085 = vmatpush1.bf16.msra.mxu0 %v5932
        %6086 = vmatprep.subr.bf16.mxu0 0
        %6087 = vmatpush1.bf16.msra.mxu0 %v5933
        %6088 = vmatprep.subr.bf16.mxu0 0
        %6089 = vmatpush1.bf16.msra.mxu0 %v5934
        %6090 = vmatprep.subr.bf16.mxu0 0
        %6091 = vmatpush1.bf16.msra.mxu0 %v5935
        %6092 = vmatprep.subr.bf16.mxu0 0
        %6093 = vmatpush1.bf16.msra.mxu0 %v5936
        %6094 = vmatprep.subr.bf16.mxu0 0
        %6095 = vmatpush1.bf16.msra.mxu0 %v5937
        %6096 = vmatprep.subr.bf16.mxu0 0
        %6097 = vmatpush1.bf16.msra.mxu0 %v5938
        %6098 = vmatprep.subr.bf16.mxu0 0
        %6099 = vmatpush1.bf16.msra.mxu0 %v5939
        %6100 = vmatprep.subr.bf16.mxu0 0
        %6101 = vmatpush1.bf16.msra.mxu0 %v5940
        %6102 = vmatprep.mubr.bf16.mxu0 %v5681
        %6103 = vmatmul.mubr.bf16.gmra.mrb[0].mxu0 %v5680
        %v6104 = vpop.f32.mrb[0].mxu0
        %v6105 = vadd.f32 %v6008, %v6104
        %v6106 = vpop.f32.mrb[0].mxu0
        %v6107 = vpop.f32.mrb[0].mxu0
        %v6108 = vadd.f32 %v6011, %v6107
        %v6109 = vpop.f32.mrb[0].mxu0
        %6110 = vmatprep.mubr.bf16.mxu0 %v5685
        %6111 = vmatmul.mubr.bf16.gmra.mrb[0].mxu0 %v5684
        %v6112 = vpop.f32.mrb[0].mxu0
        %v6113 = vadd.f32 %v6016, %v6112
        %v6114 = vpop.f32.mrb[0].mxu0
        %v6115 = vpop.f32.mrb[0].mxu0
        %v6116 = vadd.f32 %v6019, %v6115
        %v6117 = vpop.f32.mrb[0].mxu0
        %6118 = vmatprep.mubr.bf16.mxu0 %v5689
        %6119 = vmatmul.mubr.bf16.gmra.mrb[0].mxu0 %v5688
        %v6120 = vpop.f32.mrb[0].mxu0
        %v6121 = vadd.f32 %v6024, %v6120
        %v6122 = vpop.f32.mrb[0].mxu0
        %v6123 = vpop.f32.mrb[0].mxu0
        %v6124 = vadd.f32 %v6027, %v6123
        %v6125 = vpop.f32.mrb[0].mxu0
        %6126 = vmatprep.mubr.bf16.mxu0 %v5693
        %6127 = vmatmul.mubr.bf16.gmra.mrb[0].mxu0 %v5692
        %v6128 = vpop.f32.mrb[0].mxu0
        %v6129 = vadd.f32 %v6032, %v6128
        %v6130 = vpop.f32.mrb[0].mxu0
        %v6131 = vpop.f32.mrb[0].mxu0
        %v6132 = vadd.f32 %v6035, %v6131
        %v6133 = vpop.f32.mrb[0].mxu0
        %6134 = vmatprep.mubr.bf16.mxu0 %v5697
        %6135 = vmatmul.mubr.bf16.gmra.mrb[0].mxu0 %v5696
        %v6136 = vpop.f32.mrb[0].mxu0
        %v6137 = vadd.f32 %v6040, %v6136
        %v6138 = vpop.f32.mrb[0].mxu0
        %v6139 = vpop.f32.mrb[0].mxu0
        %v6140 = vadd.f32 %v6043, %v6139
        %v6141 = vpop.f32.mrb[0].mxu0
        %6142 = vmatprep.mubr.bf16.mxu0 %v5701
        %6143 = vmatmul.mubr.bf16.gmra.mrb[0].mxu0 %v5700
        %v6144 = vpop.f32.mrb[0].mxu0
        %v6145 = vadd.f32 %v6048, %v6144
        %v6146 = vpop.f32.mrb[0].mxu0
        %v6147 = vpop.f32.mrb[0].mxu0
        %v6148 = vadd.f32 %v6051, %v6147
        %v6149 = vpop.f32.mrb[0].mxu0
        %6150 = vmatprep.mubr.bf16.mxu0 %v5705
        %6151 = vmatmul.mubr.bf16.gmra.mrb[0].mxu0 %v5704
        %v6152 = vpop.f32.mrb[0].mxu0
        %v6153 = vadd.f32 %v6056, %v6152
        %v6154 = vpop.f32.mrb[0].mxu0
        %v6155 = vpop.f32.mrb[0].mxu0
        %v6156 = vadd.f32 %v6059, %v6155
        %v6157 = vpop.f32.mrb[0].mxu0
        %6158 = vmatprep.mubr.bf16.mxu0 %v5709
        %6159 = vmatmul.mubr.bf16.gmra.mrb[0].mxu0 %v5708
        %v6160 = vpop.f32.mrb[0].mxu0
        %v6161 = vadd.f32 %v6064, %v6160
        %v6162 = vpop.f32.mrb[0].mxu0
        %v6163 = vpop.f32.mrb[0].mxu0
        %v6164 = vadd.f32 %v6067, %v6163
        %v6165 = vpop.f32.mrb[0].mxu0
        %6166 = vdwg.mxu0
        %v6167 = vadd.f32 %v4624, %v6105
        %v6168 = vadd.f32 %v4625, %v6108
        %v6169 = vadd.f32 %v4626, %v6113
        %v6170 = vadd.f32 %v4627, %v6116
        %v6171 = vadd.f32 %v4628, %v6121
        %v6172 = vadd.f32 %v4629, %v6124
        %v6173 = vadd.f32 %v4630, %v6129
        %v6174 = vadd.f32 %v4631, %v6132
        %v6175 = vadd.f32 %v4632, %v6137
        %v6176 = vadd.f32 %v4633, %v6140
        %v6177 = vadd.f32 %v4634, %v6145
        %v6178 = vadd.f32 %v4635, %v6148
        %v6179 = vadd.f32 %v4636, %v6153
        %v6180 = vadd.f32 %v4637, %v6156
        %v6181 = vadd.f32 %v4638, %v6161
        %v6182 = vadd.f32 %v4639, %v6164
        %s6183 = scalar_lea.vmem %s5, 1
        %v6184 = vld [vmem:[%s6183] sm:$0x1]
        %s6185 = scalar_lea.vmem %s6, 1
        %v6186 = vld [vmem:[%s6185] sm:$0x1]
        %6187 = vadd.xlane.f32.xlu0 %v6167
        %v6188 = vpop.xlane.xlu0 %6187
        %6189 = vadd.xlane.f32.xlu0 %v6168
        %v6190 = vpop.xlane.xlu0 %6189
        %6191 = vadd.xlane.f32.xlu0 %v6169
        %v6192 = vpop.xlane.xlu0 %6191
        %6193 = vadd.xlane.f32.xlu0 %v6170
        %v6194 = vpop.xlane.xlu0 %6193
        %6195 = vadd.xlane.f32.xlu0 %v6171
        %v6196 = vpop.xlane.xlu0 %6195
        %6197 = vadd.xlane.f32.xlu0 %v6172
        %v6198 = vpop.xlane.xlu0 %6197
        %6199 = vadd.xlane.f32.xlu0 %v6173
        %v6200 = vpop.xlane.xlu0 %6199
        %6201 = vadd.xlane.f32.xlu0 %v6174
        %v6202 = vpop.xlane.xlu0 %6201
        %6203 = vadd.xlane.f32.xlu0 %v6175
        %v6204 = vpop.xlane.xlu0 %6203
        %6205 = vadd.xlane.f32.xlu0 %v6176
        %v6206 = vpop.xlane.xlu0 %6205
        %6207 = vadd.xlane.f32.xlu0 %v6177
        %v6208 = vpop.xlane.xlu0 %6207
        %6209 = vadd.xlane.f32.xlu0 %v6178
        %v6210 = vpop.xlane.xlu0 %6209
        %6211 = vadd.xlane.f32.xlu0 %v6179
        %v6212 = vpop.xlane.xlu0 %6211
        %6213 = vadd.xlane.f32.xlu0 %v6180
        %v6214 = vpop.xlane.xlu0 %6213
        %6215 = vadd.xlane.f32.xlu0 %v6181
        %v6216 = vpop.xlane.xlu0 %6215
        %6217 = vadd.xlane.f32.xlu0 %v6182
        %v6218 = vpop.xlane.xlu0 %6217
        %v6219 = vmul.f32 %v6188, %v1564
        %v6220 = vmul.f32 %v6190, %v1564
        %v6221 = vmul.f32 %v6192, %v1564
        %v6222 = vmul.f32 %v6194, %v1564
        %v6223 = vmul.f32 %v6196, %v1564
        %v6224 = vmul.f32 %v6198, %v1564
        %v6225 = vmul.f32 %v6200, %v1564
        %v6226 = vmul.f32 %v6202, %v1564
        %v6227 = vmul.f32 %v6204, %v1564
        %v6228 = vmul.f32 %v6206, %v1564
        %v6229 = vmul.f32 %v6208, %v1564
        %v6230 = vmul.f32 %v6210, %v1564
        %v6231 = vmul.f32 %v6212, %v1564
        %v6232 = vmul.f32 %v6214, %v1564
        %v6233 = vmul.f32 %v6216, %v1564
        %v6234 = vmul.f32 %v6218, %v1564
        %v6235 = vmul.f32 %v6167, %v6167
        %v6236 = vmul.f32 %v6168, %v6168
        %v6237 = vmul.f32 %v6169, %v6169
        %v6238 = vmul.f32 %v6170, %v6170
        %v6239 = vmul.f32 %v6171, %v6171
        %v6240 = vmul.f32 %v6172, %v6172
        %v6241 = vmul.f32 %v6173, %v6173
        %v6242 = vmul.f32 %v6174, %v6174
        %v6243 = vmul.f32 %v6175, %v6175
        %v6244 = vmul.f32 %v6176, %v6176
        %v6245 = vmul.f32 %v6177, %v6177
        %v6246 = vmul.f32 %v6178, %v6178
        %v6247 = vmul.f32 %v6179, %v6179
        %v6248 = vmul.f32 %v6180, %v6180
        %v6249 = vmul.f32 %v6181, %v6181
        %v6250 = vmul.f32 %v6182, %v6182
        %6251 = vadd.xlane.f32.xlu0 %v6235
        %v6252 = vpop.xlane.xlu0 %6251
        %6253 = vadd.xlane.f32.xlu0 %v6236
        %v6254 = vpop.xlane.xlu0 %6253
        %6255 = vadd.xlane.f32.xlu0 %v6237
        %v6256 = vpop.xlane.xlu0 %6255
        %6257 = vadd.xlane.f32.xlu0 %v6238
        %v6258 = vpop.xlane.xlu0 %6257
        %6259 = vadd.xlane.f32.xlu0 %v6239
        %v6260 = vpop.xlane.xlu0 %6259
        %6261 = vadd.xlane.f32.xlu0 %v6240
        %v6262 = vpop.xlane.xlu0 %6261
        %6263 = vadd.xlane.f32.xlu0 %v6241
        %v6264 = vpop.xlane.xlu0 %6263
        %6265 = vadd.xlane.f32.xlu0 %v6242
        %v6266 = vpop.xlane.xlu0 %6265
        %6267 = vadd.xlane.f32.xlu0 %v6243
        %v6268 = vpop.xlane.xlu0 %6267
        %6269 = vadd.xlane.f32.xlu0 %v6244
        %v6270 = vpop.xlane.xlu0 %6269
        %6271 = vadd.xlane.f32.xlu0 %v6245
        %v6272 = vpop.xlane.xlu0 %6271
        %6273 = vadd.xlane.f32.xlu0 %v6246
        %v6274 = vpop.xlane.xlu0 %6273
        %6275 = vadd.xlane.f32.xlu0 %v6247
        %v6276 = vpop.xlane.xlu0 %6275
        %6277 = vadd.xlane.f32.xlu0 %v6248
        %v6278 = vpop.xlane.xlu0 %6277
        %6279 = vadd.xlane.f32.xlu0 %v6249
        %v6280 = vpop.xlane.xlu0 %6279
        %6281 = vadd.xlane.f32.xlu0 %v6250
        %v6282 = vpop.xlane.xlu0 %6281
        %v6283 = vmul.f32 %v6252, %v1564
        %v6284 = vmul.f32 %v6254, %v1564
        %v6285 = vmul.f32 %v6256, %v1564
        %v6286 = vmul.f32 %v6258, %v1564
        %v6287 = vmul.f32 %v6260, %v1564
        %v6288 = vmul.f32 %v6262, %v1564
        %v6289 = vmul.f32 %v6264, %v1564
        %v6290 = vmul.f32 %v6266, %v1564
        %v6291 = vmul.f32 %v6268, %v1564
        %v6292 = vmul.f32 %v6270, %v1564
        %v6293 = vmul.f32 %v6272, %v1564
        %v6294 = vmul.f32 %v6274, %v1564
        %v6295 = vmul.f32 %v6276, %v1564
        %v6296 = vmul.f32 %v6278, %v1564
        %v6297 = vmul.f32 %v6280, %v1564
        %v6298 = vmul.f32 %v6282, %v1564
        %v6299 = vmul.f32 %v6219, %v6219
        %v6300 = vmul.f32 %v6220, %v6220
        %v6301 = vmul.f32 %v6221, %v6221
        %v6302 = vmul.f32 %v6222, %v6222
        %v6303 = vmul.f32 %v6223, %v6223
        %v6304 = vmul.f32 %v6224, %v6224
        %v6305 = vmul.f32 %v6225, %v6225
        %v6306 = vmul.f32 %v6226, %v6226
        %v6307 = vmul.f32 %v6227, %v6227
        %v6308 = vmul.f32 %v6228, %v6228
        %v6309 = vmul.f32 %v6229, %v6229
        %v6310 = vmul.f32 %v6230, %v6230
        %v6311 = vmul.f32 %v6231, %v6231
        %v6312 = vmul.f32 %v6232, %v6232
        %v6313 = vmul.f32 %v6233, %v6233
        %v6314 = vmul.f32 %v6234, %v6234
        %v6315 = vsub.f32 %v6283, %v6299
        %v6316 = vsub.f32 %v6284, %v6300
        %v6317 = vsub.f32 %v6285, %v6301
        %v6318 = vsub.f32 %v6286, %v6302
        %v6319 = vsub.f32 %v6287, %v6303
        %v6320 = vsub.f32 %v6288, %v6304
        %v6321 = vsub.f32 %v6289, %v6305
        %v6322 = vsub.f32 %v6290, %v6306
        %v6323 = vsub.f32 %v6291, %v6307
        %v6324 = vsub.f32 %v6292, %v6308
        %v6325 = vsub.f32 %v6293, %v6309
        %v6326 = vsub.f32 %v6294, %v6310
        %v6327 = vsub.f32 %v6295, %v6311
        %v6328 = vsub.f32 %v6296, %v6312
        %v6329 = vsub.f32 %v6297, %v6313
        %v6330 = vsub.f32 %v6298, %v6314
        %v6331 = vmax.f32 %v6315, 0.0
        %v6332 = vmax.f32 %v6316, 0.0
        %v6333 = vmax.f32 %v6317, 0.0
        %v6334 = vmax.f32 %v6318, 0.0
        %v6335 = vmax.f32 %v6319, 0.0
        %v6336 = vmax.f32 %v6320, 0.0
        %v6337 = vmax.f32 %v6321, 0.0
        %v6338 = vmax.f32 %v6322, 0.0
        %v6339 = vmax.f32 %v6323, 0.0
        %v6340 = vmax.f32 %v6324, 0.0
        %v6341 = vmax.f32 %v6325, 0.0
        %v6342 = vmax.f32 %v6326, 0.0
        %v6343 = vmax.f32 %v6327, 0.0
        %v6344 = vmax.f32 %v6328, 0.0
        %v6345 = vmax.f32 %v6329, 0.0
        %v6346 = vmax.f32 %v6330, 0.0
        %v6347 = vsub.f32 %v6167, %v6219
        %v6348 = vsub.f32 %v6168, %v6220
        %v6349 = vsub.f32 %v6169, %v6221
        %v6350 = vsub.f32 %v6170, %v6222
        %v6351 = vsub.f32 %v6171, %v6223
        %v6352 = vsub.f32 %v6172, %v6224
        %v6353 = vsub.f32 %v6173, %v6225
        %v6354 = vsub.f32 %v6174, %v6226
        %v6355 = vsub.f32 %v6175, %v6227
        %v6356 = vsub.f32 %v6176, %v6228
        %v6357 = vsub.f32 %v6177, %v6229
        %v6358 = vsub.f32 %v6178, %v6230
        %v6359 = vsub.f32 %v6179, %v6231
        %v6360 = vsub.f32 %v6180, %v6232
        %v6361 = vsub.f32 %v6181, %v6233
        %v6362 = vsub.f32 %v6182, %v6234
        %v6363 = vadd.f32 %v6331, 1e-06
        %v6364 = vadd.f32 %v6332, 1e-06
        %v6365 = vadd.f32 %v6333, 1e-06
        %v6366 = vadd.f32 %v6334, 1e-06
        %v6367 = vadd.f32 %v6335, 1e-06
        %v6368 = vadd.f32 %v6336, 1e-06
        %v6369 = vadd.f32 %v6337, 1e-06
        %v6370 = vadd.f32 %v6338, 1e-06
        %v6371 = vadd.f32 %v6339, 1e-06
        %v6372 = vadd.f32 %v6340, 1e-06
        %v6373 = vadd.f32 %v6341, 1e-06
        %v6374 = vadd.f32 %v6342, 1e-06
        %v6375 = vadd.f32 %v6343, 1e-06
        %v6376 = vadd.f32 %v6344, 1e-06
        %v6377 = vadd.f32 %v6345, 1e-06
        %v6378 = vadd.f32 %v6346, 1e-06
        %v6379 = vrsqrt.pop %v6363
        %v6380 = vrsqrt.pop %v6364
        %v6381 = vrsqrt.pop %v6365
        %v6382 = vrsqrt.pop %v6366
        %v6383 = vrsqrt.pop %v6367
        %v6384 = vrsqrt.pop %v6368
        %v6385 = vrsqrt.pop %v6369
        %v6386 = vrsqrt.pop %v6370
        %v6387 = vrsqrt.pop %v6371
        %v6388 = vrsqrt.pop %v6372
        %v6389 = vrsqrt.pop %v6373
        %v6390 = vrsqrt.pop %v6374
        %v6391 = vrsqrt.pop %v6375
        %v6392 = vrsqrt.pop %v6376
        %v6393 = vrsqrt.pop %v6377
        %v6394 = vrsqrt.pop %v6378
        %v6395 = vmul.f32 %v6347, %v6379
        %v6396 = vmul.f32 %v6348, %v6380
        %v6397 = vmul.f32 %v6349, %v6381
        %v6398 = vmul.f32 %v6350, %v6382
        %v6399 = vmul.f32 %v6351, %v6383
        %v6400 = vmul.f32 %v6352, %v6384
        %v6401 = vmul.f32 %v6353, %v6385
        %v6402 = vmul.f32 %v6354, %v6386
        %v6403 = vmul.f32 %v6355, %v6387
        %v6404 = vmul.f32 %v6356, %v6388
        %v6405 = vmul.f32 %v6357, %v6389
        %v6406 = vmul.f32 %v6358, %v6390
        %v6407 = vmul.f32 %v6359, %v6391
        %v6408 = vmul.f32 %v6360, %v6392
        %v6409 = vmul.f32 %v6361, %v6393
        %v6410 = vmul.f32 %v6362, %v6394
        %v6412 = vlaneseq
        %v6413 = vshrl.u32 %v6412, 7
        %v6414 = vsub.s32 0, %v6413
        %v6415 = vrot.slane %v6184, %v6414
        %v6417 = vmul.f32 %v6395, %v6415
        %v6418 = vmul.f32 %v6396, %v6415
        %v6419 = vmul.f32 %v6397, %v6415
        %v6420 = vmul.f32 %v6398, %v6415
        %v6421 = vmul.f32 %v6399, %v6415
        %v6422 = vmul.f32 %v6400, %v6415
        %v6423 = vmul.f32 %v6401, %v6415
        %v6424 = vmul.f32 %v6402, %v6415
        %v6425 = vmul.f32 %v6403, %v6415
        %v6426 = vmul.f32 %v6404, %v6415
        %v6427 = vmul.f32 %v6405, %v6415
        %v6428 = vmul.f32 %v6406, %v6415
        %v6429 = vmul.f32 %v6407, %v6415
        %v6430 = vmul.f32 %v6408, %v6415
        %v6431 = vmul.f32 %v6409, %v6415
        %v6432 = vmul.f32 %v6410, %v6415
        %v6434 = vlaneseq
        %v6435 = vshrl.u32 %v6434, 7
        %v6436 = vsub.s32 0, %v6435
        %v6437 = vrot.slane %v6186, %v6436
        %v6439 = vadd.f32 %v6417, %v6437
        %v6440 = vadd.f32 %v6418, %v6437
        %v6441 = vadd.f32 %v6419, %v6437
        %v6442 = vadd.f32 %v6420, %v6437
        %v6443 = vadd.f32 %v6421, %v6437
        %v6444 = vadd.f32 %v6422, %v6437
        %v6445 = vadd.f32 %v6423, %v6437
        %v6446 = vadd.f32 %v6424, %v6437
        %v6447 = vadd.f32 %v6425, %v6437
        %v6448 = vadd.f32 %v6426, %v6437
        %v6449 = vadd.f32 %v6427, %v6437
        %v6450 = vadd.f32 %v6428, %v6437
        %v6451 = vadd.f32 %v6429, %v6437
        %v6452 = vadd.f32 %v6430, %v6437
        %v6453 = vadd.f32 %v6431, %v6437
        %v6454 = vadd.f32 %v6432, %v6437
        %v6455 = vpack.c.bf16 %v6440, %v6439
        %v6456 = vpack.c.bf16 %v6442, %v6441
        %v6457 = vpack.c.bf16 %v6444, %v6443
        %v6458 = vpack.c.bf16 %v6446, %v6445
        %v6459 = vpack.c.bf16 %v6448, %v6447
        %v6460 = vpack.c.bf16 %v6450, %v6449
        %v6461 = vpack.c.bf16 %v6452, %v6451
        %v6462 = vpack.c.bf16 %v6454, %v6453
        %s6463 = scalar_lea.vmem %s7, 192
        %v6464 = vld [vmem:[%s6463] sm:$0xff]
        %v6465 = vld [vmem:[%s6463 + $0x8] sm:$0xf]
        %v6466 = vld [vmem:[%s6463 + $0xc] sm:$0xff]
        %v6467 = vld [vmem:[%s6463 + $0x14] sm:$0xf]
        %v6468 = vld [vmem:[%s6463 + $0x18] sm:$0xff]
        %v6469 = vld [vmem:[%s6463 + $0x20] sm:$0xf]
        %v6470 = vld [vmem:[%s6463 + $0x24] sm:$0xff]
        %v6471 = vld [vmem:[%s6463 + $0x2c] sm:$0xf]
        %v6472 = vld [vmem:[%s6463 + $0x30] sm:$0xff]
        %v6473 = vld [vmem:[%s6463 + $0x38] sm:$0xf]
        %v6474 = vld [vmem:[%s6463 + $0x3c] sm:$0xff]
        %v6475 = vld [vmem:[%s6463 + $0x44] sm:$0xf]
        %v6476 = vld [vmem:[%s6463 + $0x48] sm:$0xff]
        %v6477 = vld [vmem:[%s6463 + $0x50] sm:$0xf]
        %v6478 = vld [vmem:[%s6463 + $0x54] sm:$0xff]
        %v6479 = vld [vmem:[%s6463 + $0x5c] sm:$0xf]
        %v6480 = vld [vmem:[%s6463 + $0x60] sm:$0xff]
        %v6481 = vld [vmem:[%s6463 + $0x68] sm:$0xf]
        %v6482 = vld [vmem:[%s6463 + $0x6c] sm:$0xff]
        %v6483 = vld [vmem:[%s6463 + $0x74] sm:$0xf]
        %v6484 = vld [vmem:[%s6463 + $0x78] sm:$0xff]
        %v6485 = vld [vmem:[%s6463 + $0x80] sm:$0xf]
        %v6486 = vld [vmem:[%s6463 + $0x84] sm:$0xff]
        %v6487 = vld [vmem:[%s6463 + $0x8c] sm:$0xf]
        %v6488 = vld [vmem:[%s6463 + $0x90] sm:$0xff]
        %v6489 = vld [vmem:[%s6463 + $0x98] sm:$0xf]
        %v6490 = vld [vmem:[%s6463 + $0x9c] sm:$0xff]
        %v6491 = vld [vmem:[%s6463 + $0xa4] sm:$0xf]
        %v6492 = vld [vmem:[%s6463 + $0xa8] sm:$0xff]
        %v6493 = vld [vmem:[%s6463 + $0xb0] sm:$0xf]
        %v6494 = vld [vmem:[%s6463 + $0xb4] sm:$0xff]
        %v6495 = vld [vmem:[%s6463 + $0xbc] sm:$0xf]
        %s6496 = scalar_lea.vmem %s8, 3
        %v6497 = vld [vmem:[%s6496] sm:$0x7]
        %v6499 = vlaneseq
        %v6500 = vshrl.u32 %v6499, 7
        %v6501 = vsub.s32 0, %v6500
        %v6502 = vrot.slane %v6497, %v6501
        %v6503 = vlaneseq
        %v6504 = vshrl.u32 %v6503, 7
        %v6505 = vsub.s32 1, %v6504
        %v6506 = vrot.slane %v6497, %v6505
        %v6507 = vlaneseq
        %v6508 = vshrl.u32 %v6507, 7
        %v6509 = vsub.s32 2, %v6508
        %v6510 = vrot.slane %v6497, %v6509
        %v6546 = vunpack.c.l.b16 %v6464
        %v6547 = vunpack.c.h.b16 %v6464
        %v6548 = vunpack.c.l.b16 %v6465
        %v6549 = vunpack.c.l.b16 %v6466
        %v6550 = vunpack.c.h.b16 %v6466
        %v6551 = vunpack.c.l.b16 %v6467
        %v6552 = vunpack.c.l.b16 %v6468
        %v6553 = vunpack.c.h.b16 %v6468
        %v6554 = vunpack.c.l.b16 %v6469
        %v6555 = vunpack.c.l.b16 %v6470
        %v6556 = vunpack.c.h.b16 %v6470
        %v6557 = vunpack.c.l.b16 %v6471
        %v6558 = vunpack.c.l.b16 %v6472
        %v6559 = vunpack.c.h.b16 %v6472
        %v6560 = vunpack.c.l.b16 %v6473
        %v6561 = vunpack.c.l.b16 %v6474
        %v6562 = vunpack.c.h.b16 %v6474
        %v6563 = vunpack.c.l.b16 %v6475
        %v6564 = vunpack.c.l.b16 %v6476
        %v6565 = vunpack.c.h.b16 %v6476
        %v6566 = vunpack.c.l.b16 %v6477
        %v6567 = vunpack.c.l.b16 %v6478
        %v6568 = vunpack.c.h.b16 %v6478
        %v6569 = vunpack.c.l.b16 %v6479
        %v6570 = vunpack.c.l.b16 %v6480
        %v6571 = vunpack.c.h.b16 %v6480
        %v6572 = vunpack.c.l.b16 %v6481
        %v6573 = vunpack.c.l.b16 %v6482
        %v6574 = vunpack.c.h.b16 %v6482
        %v6575 = vunpack.c.l.b16 %v6483
        %v6576 = vunpack.c.l.b16 %v6484
        %v6577 = vunpack.c.h.b16 %v6484
        %v6578 = vunpack.c.l.b16 %v6485
        %v6579 = vunpack.c.l.b16 %v6486
        %v6580 = vunpack.c.h.b16 %v6486
        %v6581 = vunpack.c.l.b16 %v6487
        %v6582 = vunpack.c.l.b16 %v6488
        %v6583 = vunpack.c.h.b16 %v6488
        %v6584 = vunpack.c.l.b16 %v6489
        %v6585 = vunpack.c.l.b16 %v6490
        %v6586 = vunpack.c.h.b16 %v6490
        %v6587 = vunpack.c.l.b16 %v6491
        %v6588 = vunpack.c.l.b16 %v6492
        %v6589 = vunpack.c.h.b16 %v6492
        %v6590 = vunpack.c.l.b16 %v6493
        %v6591 = vunpack.c.l.b16 %v6494
        %v6592 = vunpack.c.h.b16 %v6494
        %v6593 = vunpack.c.l.b16 %v6495
        %v6594 = vpack.c.b16 %v6549, %v6546
        %v6595 = vpack.c.b16 %v6550, %v6547
        %v6596 = vpack.c.b16 %v6551, %v6548
        %v6597 = vpack.c.b16 %v6555, %v6552
        %v6598 = vpack.c.b16 %v6556, %v6553
        %v6599 = vpack.c.b16 %v6557, %v6554
        %v6600 = vpack.c.b16 %v6561, %v6558
        %v6601 = vpack.c.b16 %v6562, %v6559
        %v6602 = vpack.c.b16 %v6563, %v6560
        %v6603 = vpack.c.b16 %v6567, %v6564
        %v6604 = vpack.c.b16 %v6568, %v6565
        %v6605 = vpack.c.b16 %v6569, %v6566
        %v6606 = vpack.c.b16 %v6573, %v6570
        %v6607 = vpack.c.b16 %v6574, %v6571
        %v6608 = vpack.c.b16 %v6575, %v6572
        %v6609 = vpack.c.b16 %v6579, %v6576
        %v6610 = vpack.c.b16 %v6580, %v6577
        %v6611 = vpack.c.b16 %v6581, %v6578
        %v6612 = vpack.c.b16 %v6585, %v6582
        %v6613 = vpack.c.b16 %v6586, %v6583
        %v6614 = vpack.c.b16 %v6587, %v6584
        %v6615 = vpack.c.b16 %v6591, %v6588
        %v6616 = vpack.c.b16 %v6592, %v6589
        %v6617 = vpack.c.b16 %v6593, %v6590
        %6642 = vmatprep.subr.bf16.mxu0 %v6595
        %6643 = vmatpush1.bf16.msra.mxu0 %v6594
        %6644 = vmatprep.subr.bf16.mxu0 %v6598
        %6645 = vmatpush1.bf16.msra.mxu0 %v6597
        %6646 = vmatprep.subr.bf16.mxu0 %v6601
        %6647 = vmatpush1.bf16.msra.mxu0 %v6600
        %6648 = vmatprep.subr.bf16.mxu0 %v6604
        %6649 = vmatpush1.bf16.msra.mxu0 %v6603
        %6650 = vmatprep.subr.bf16.mxu0 %v6607
        %6651 = vmatpush1.bf16.msra.mxu0 %v6606
        %6652 = vmatprep.subr.bf16.mxu0 %v6610
        %6653 = vmatpush1.bf16.msra.mxu0 %v6609
        %6654 = vmatprep.subr.bf16.mxu0 %v6613
        %6655 = vmatpush1.bf16.msra.mxu0 %v6612
        %6656 = vmatprep.subr.bf16.mxu0 %v6616
        %6657 = vmatpush1.bf16.msra.mxu0 %v6615
        %6658 = vmatprep.subr.bf16.mxu0 0
        %6659 = vmatpush1.bf16.msra.mxu0 0
        %6660 = vmatprep.subr.bf16.mxu0 0
        %6661 = vmatpush1.bf16.msra.mxu0 0
        %6662 = vmatprep.subr.bf16.mxu0 0
        %6663 = vmatpush1.bf16.msra.mxu0 0
        %6664 = vmatprep.subr.bf16.mxu0 0
        %6665 = vmatpush1.bf16.msra.mxu0 0
        %6666 = vmatprep.subr.bf16.mxu0 0
        %6667 = vmatpush1.bf16.msra.mxu0 0
        %6668 = vmatprep.subr.bf16.mxu0 0
        %6669 = vmatpush1.bf16.msra.mxu0 0
        %6670 = vmatprep.subr.bf16.mxu0 0
        %6671 = vmatpush1.bf16.msra.mxu0 0
        %6672 = vmatprep.subr.bf16.mxu0 0
        %6673 = vmatpush1.bf16.msra.mxu0 0
        %6674 = vmatprep.mubr.bf16.mxu0 0
        %6675 = vmatmul.mubr.bf16.gmra.mrb[0].mxu0 %v6455
        %v6676 = vpop.f32.mrb[0].mxu0
        %v6677 = vadd.f32 %v6502, %v6676
        %v6678 = vpop.f32.mrb[0].mxu0
        %v6679 = vadd.f32 %v6506, %v6678
        %v6680 = vpop.f32.mrb[0].mxu0
        %v6681 = vadd.f32 %v6502, %v6680
        %v6682 = vpop.f32.mrb[0].mxu0
        %v6683 = vadd.f32 %v6506, %v6682
        %6684 = vmatprep.mubr.bf16.mxu0 0
        %6685 = vmatmul.mubr.bf16.gmra.mrb[0].mxu0 %v6456
        %v6686 = vpop.f32.mrb[0].mxu0
        %v6687 = vadd.f32 %v6502, %v6686
        %v6688 = vpop.f32.mrb[0].mxu0
        %v6689 = vadd.f32 %v6506, %v6688
        %v6690 = vpop.f32.mrb[0].mxu0
        %v6691 = vadd.f32 %v6502, %v6690
        %v6692 = vpop.f32.mrb[0].mxu0
        %v6693 = vadd.f32 %v6506, %v6692
        %6694 = vmatprep.mubr.bf16.mxu0 0
        %6695 = vmatmul.mubr.bf16.gmra.mrb[0].mxu0 %v6457
        %v6696 = vpop.f32.mrb[0].mxu0
        %v6697 = vadd.f32 %v6502, %v6696
        %v6698 = vpop.f32.mrb[0].mxu0
        %v6699 = vadd.f32 %v6506, %v6698
        %v6700 = vpop.f32.mrb[0].mxu0
        %v6701 = vadd.f32 %v6502, %v6700
        %v6702 = vpop.f32.mrb[0].mxu0
        %v6703 = vadd.f32 %v6506, %v6702
        %6704 = vmatprep.mubr.bf16.mxu0 0
        %6705 = vmatmul.mubr.bf16.gmra.mrb[0].mxu0 %v6458
        %v6706 = vpop.f32.mrb[0].mxu0
        %v6707 = vadd.f32 %v6502, %v6706
        %v6708 = vpop.f32.mrb[0].mxu0
        %v6709 = vadd.f32 %v6506, %v6708
        %v6710 = vpop.f32.mrb[0].mxu0
        %v6711 = vadd.f32 %v6502, %v6710
        %v6712 = vpop.f32.mrb[0].mxu0
        %v6713 = vadd.f32 %v6506, %v6712
        %6714 = vmatprep.mubr.bf16.mxu0 0
        %6715 = vmatmul.mubr.bf16.gmra.mrb[0].mxu0 %v6459
        %v6716 = vpop.f32.mrb[0].mxu0
        %v6717 = vadd.f32 %v6502, %v6716
        %v6718 = vpop.f32.mrb[0].mxu0
        %v6719 = vadd.f32 %v6506, %v6718
        %v6720 = vpop.f32.mrb[0].mxu0
        %v6721 = vadd.f32 %v6502, %v6720
        %v6722 = vpop.f32.mrb[0].mxu0
        %v6723 = vadd.f32 %v6506, %v6722
        %6724 = vmatprep.mubr.bf16.mxu0 0
        %6725 = vmatmul.mubr.bf16.gmra.mrb[0].mxu0 %v6460
        %v6726 = vpop.f32.mrb[0].mxu0
        %v6727 = vadd.f32 %v6502, %v6726
        %v6728 = vpop.f32.mrb[0].mxu0
        %v6729 = vadd.f32 %v6506, %v6728
        %v6730 = vpop.f32.mrb[0].mxu0
        %v6731 = vadd.f32 %v6502, %v6730
        %v6732 = vpop.f32.mrb[0].mxu0
        %v6733 = vadd.f32 %v6506, %v6732
        %6734 = vmatprep.mubr.bf16.mxu0 0
        %6735 = vmatmul.mubr.bf16.gmra.mrb[0].mxu0 %v6461
        %v6736 = vpop.f32.mrb[0].mxu0
        %v6737 = vadd.f32 %v6502, %v6736
        %v6738 = vpop.f32.mrb[0].mxu0
        %v6739 = vadd.f32 %v6506, %v6738
        %v6740 = vpop.f32.mrb[0].mxu0
        %v6741 = vadd.f32 %v6502, %v6740
        %v6742 = vpop.f32.mrb[0].mxu0
        %v6743 = vadd.f32 %v6506, %v6742
        %6744 = vmatprep.mubr.bf16.mxu0 0
        %6745 = vmatmul.mubr.bf16.gmra.mrb[0].mxu0 %v6462
        %v6746 = vpop.f32.mrb[0].mxu0
        %v6747 = vadd.f32 %v6502, %v6746
        %v6748 = vpop.f32.mrb[0].mxu0
        %v6749 = vadd.f32 %v6506, %v6748
        %v6750 = vpop.f32.mrb[0].mxu0
        %v6751 = vadd.f32 %v6502, %v6750
        %v6752 = vpop.f32.mrb[0].mxu0
        %v6753 = vadd.f32 %v6506, %v6752
        %6754 = vdwg.mxu0
        %6755 = vmatprep.subr.bf16.mxu0 0
        %6756 = vmatpush1.bf16.msra.mxu0 %v6596
        %6757 = vmatprep.subr.bf16.mxu0 0
        %6758 = vmatpush1.bf16.msra.mxu0 %v6599
        %6759 = vmatprep.subr.bf16.mxu0 0
        %6760 = vmatpush1.bf16.msra.mxu0 %v6602
        %6761 = vmatprep.subr.bf16.mxu0 0
        %6762 = vmatpush1.bf16.msra.mxu0 %v6605
        %6763 = vmatprep.subr.bf16.mxu0 0
        %6764 = vmatpush1.bf16.msra.mxu0 %v6608
        %6765 = vmatprep.subr.bf16.mxu0 0
        %6766 = vmatpush1.bf16.msra.mxu0 %v6611
        %6767 = vmatprep.subr.bf16.mxu0 0
        %6768 = vmatpush1.bf16.msra.mxu0 %v6614
        %6769 = vmatprep.subr.bf16.mxu0 0
        %6770 = vmatpush1.bf16.msra.mxu0 %v6617
        %6771 = vmatprep.subr.bf16.mxu0 0
        %6772 = vmatpush1.bf16.msra.mxu0 0
        %6773 = vmatprep.subr.bf16.mxu0 0
        %6774 = vmatpush1.bf16.msra.mxu0 0
        %6775 = vmatprep.subr.bf16.mxu0 0
        %6776 = vmatpush1.bf16.msra.mxu0 0
        %6777 = vmatprep.subr.bf16.mxu0 0
        %6778 = vmatpush1.bf16.msra.mxu0 0
        %6779 = vmatprep.subr.bf16.mxu0 0
        %6780 = vmatpush1.bf16.msra.mxu0 0
        %6781 = vmatprep.subr.bf16.mxu0 0
        %6782 = vmatpush1.bf16.msra.mxu0 0
        %6783 = vmatprep.subr.bf16.mxu0 0
        %6784 = vmatpush1.bf16.msra.mxu0 0
        %6785 = vmatprep.subr.bf16.mxu0 0
        %6786 = vmatpush1.bf16.msra.mxu0 0
        %6787 = vmatprep.mubr.bf16.mxu0 0
        %6788 = vmatmul.mubr.bf16.gmra.mrb[0].mxu0 %v6455
        %v6789 = vpop.f32.mrb[0].mxu0
        %v6790 = vadd.f32 %v6510, %v6789
        %v6791 = vpop.f32.mrb[0].mxu0
        %v6792 = vpop.f32.mrb[0].mxu0
        %v6793 = vadd.f32 %v6510, %v6792
        %v6794 = vpop.f32.mrb[0].mxu0
        %6795 = vmatprep.mubr.bf16.mxu0 0
        %6796 = vmatmul.mubr.bf16.gmra.mrb[0].mxu0 %v6456
        %v6797 = vpop.f32.mrb[0].mxu0
        %v6798 = vadd.f32 %v6510, %v6797
        %v6799 = vpop.f32.mrb[0].mxu0
        %v6800 = vpop.f32.mrb[0].mxu0
        %v6801 = vadd.f32 %v6510, %v6800
        %v6802 = vpop.f32.mrb[0].mxu0
        %6803 = vmatprep.mubr.bf16.mxu0 0
        %6804 = vmatmul.mubr.bf16.gmra.mrb[0].mxu0 %v6457
        %v6805 = vpop.f32.mrb[0].mxu0
        %v6806 = vadd.f32 %v6510, %v6805
        %v6807 = vpop.f32.mrb[0].mxu0
        %v6808 = vpop.f32.mrb[0].mxu0
        %v6809 = vadd.f32 %v6510, %v6808
        %v6810 = vpop.f32.mrb[0].mxu0
        %6811 = vmatprep.mubr.bf16.mxu0 0
        %6812 = vmatmul.mubr.bf16.gmra.mrb[0].mxu0 %v6458
        %v6813 = vpop.f32.mrb[0].mxu0
        %v6814 = vadd.f32 %v6510, %v6813
        %v6815 = vpop.f32.mrb[0].mxu0
        %v6816 = vpop.f32.mrb[0].mxu0
        %v6817 = vadd.f32 %v6510, %v6816
        %v6818 = vpop.f32.mrb[0].mxu0
        %6819 = vmatprep.mubr.bf16.mxu0 0
        %6820 = vmatmul.mubr.bf16.gmra.mrb[0].mxu0 %v6459
        %v6821 = vpop.f32.mrb[0].mxu0
        %v6822 = vadd.f32 %v6510, %v6821
        %v6823 = vpop.f32.mrb[0].mxu0
        %v6824 = vpop.f32.mrb[0].mxu0
        %v6825 = vadd.f32 %v6510, %v6824
        %v6826 = vpop.f32.mrb[0].mxu0
        %6827 = vmatprep.mubr.bf16.mxu0 0
        %6828 = vmatmul.mubr.bf16.gmra.mrb[0].mxu0 %v6460
        %v6829 = vpop.f32.mrb[0].mxu0
        %v6830 = vadd.f32 %v6510, %v6829
        %v6831 = vpop.f32.mrb[0].mxu0
        %v6832 = vpop.f32.mrb[0].mxu0
        %v6833 = vadd.f32 %v6510, %v6832
        %v6834 = vpop.f32.mrb[0].mxu0
        %6835 = vmatprep.mubr.bf16.mxu0 0
        %6836 = vmatmul.mubr.bf16.gmra.mrb[0].mxu0 %v6461
        %v6837 = vpop.f32.mrb[0].mxu0
        %v6838 = vadd.f32 %v6510, %v6837
        %v6839 = vpop.f32.mrb[0].mxu0
        %v6840 = vpop.f32.mrb[0].mxu0
        %v6841 = vadd.f32 %v6510, %v6840
        %v6842 = vpop.f32.mrb[0].mxu0
        %6843 = vmatprep.mubr.bf16.mxu0 0
        %6844 = vmatmul.mubr.bf16.gmra.mrb[0].mxu0 %v6462
        %v6845 = vpop.f32.mrb[0].mxu0
        %v6846 = vadd.f32 %v6510, %v6845
        %v6847 = vpop.f32.mrb[0].mxu0
        %v6848 = vpop.f32.mrb[0].mxu0
        %v6849 = vadd.f32 %v6510, %v6848
        %v6850 = vpop.f32.mrb[0].mxu0
        %6851 = vdwg.mxu0
        %s6852 = scalar_lea.vmem %s9, 64
        %v6853 = vld [vmem:[%s6852] sm:$0xf]
        %v6854 = vld [vmem:[%s6852 + $0x4] sm:$0xf]
        %v6855 = vld [vmem:[%s6852 + $0x8] sm:$0xf]
        %v6856 = vld [vmem:[%s6852 + $0xc] sm:$0xf]
        %v6857 = vld [vmem:[%s6852 + $0x10] sm:$0xf]
        %v6858 = vld [vmem:[%s6852 + $0x14] sm:$0xf]
        %v6859 = vld [vmem:[%s6852 + $0x18] sm:$0xf]
        %v6860 = vld [vmem:[%s6852 + $0x1c] sm:$0xf]
        %v6861 = vld [vmem:[%s6852 + $0x20] sm:$0xf]
        %v6862 = vld [vmem:[%s6852 + $0x24] sm:$0xf]
        %v6863 = vld [vmem:[%s6852 + $0x28] sm:$0xf]
        %v6864 = vld [vmem:[%s6852 + $0x2c] sm:$0xf]
        %v6865 = vld [vmem:[%s6852 + $0x30] sm:$0xf]
        %v6866 = vld [vmem:[%s6852 + $0x34] sm:$0xf]
        %v6867 = vld [vmem:[%s6852 + $0x38] sm:$0xf]
        %v6868 = vld [vmem:[%s6852 + $0x3c] sm:$0xf]
        %v6869 = vpack.c.bf16 %v6681, %v6677
        %v6870 = vpack.c.bf16 %v6691, %v6687
        %v6871 = vpack.c.bf16 %v6701, %v6697
        %v6872 = vpack.c.bf16 %v6711, %v6707
        %v6873 = vpack.c.bf16 %v6721, %v6717
        %v6874 = vpack.c.bf16 %v6731, %v6727
        %v6875 = vpack.c.bf16 %v6741, %v6737
        %v6876 = vpack.c.bf16 %v6751, %v6747
        %v6877 = vpack.c.bf16 %v6683, %v6679
        %v6878 = vpack.c.bf16 %v6693, %v6689
        %v6879 = vpack.c.bf16 %v6703, %v6699
        %v6880 = vpack.c.bf16 %v6713, %v6709
        %v6881 = vpack.c.bf16 %v6723, %v6719
        %v6882 = vpack.c.bf16 %v6733, %v6729
        %v6883 = vpack.c.bf16 %v6743, %v6739
        %v6884 = vpack.c.bf16 %v6753, %v6749
        %v6885 = vpack.c.bf16 %v6793, %v6790
        %v6886 = vpack.c.bf16 %v6801, %v6798
        %v6887 = vpack.c.bf16 %v6809, %v6806
        %v6888 = vpack.c.bf16 %v6817, %v6814
        %v6889 = vpack.c.bf16 %v6825, %v6822
        %v6890 = vpack.c.bf16 %v6833, %v6830
        %v6891 = vpack.c.bf16 %v6841, %v6838
        %v6892 = vpack.c.bf16 %v6849, %v6846
        %v6894 = vsel %vm2236, %v6869, 0
        %v6897 = vsel %vm2236, %v6870, 0
        %v6900 = vsel %vm2236, %v6871, 0
        %v6903 = vsel %vm2236, %v6872, 0
        %v6906 = vsel %vm2236, %v6873, 0
        %v6909 = vsel %vm2236, %v6874, 0
        %v6912 = vsel %vm2236, %v6875, 0
        %v6915 = vsel %vm2236, %v6876, 0
        %v6918 = vsel %vm2236, %v6877, 0
        %v6921 = vsel %vm2236, %v6878, 0
        %v6924 = vsel %vm2236, %v6879, 0
        %v6927 = vsel %vm2236, %v6880, 0
        %v6930 = vsel %vm2236, %v6881, 0
        %v6933 = vsel %vm2236, %v6882, 0
        %v6936 = vsel %vm2236, %v6883, 0
        %v6939 = vsel %vm2236, %v6884, 0
        %6941 = vmatprep.subr.bf16.mxu0 0
        %6942 = vmatpush1.bf16.xpose.msra.mxu0 %v6918
        %6943 = vmatprep.subr.bf16.mxu0 0
        %6944 = vmatpush1.bf16.xpose.msra.mxu0 %v6921
        %6945 = vmatprep.subr.bf16.mxu0 0
        %6946 = vmatpush1.bf16.xpose.msra.mxu0 %v6924
        %6947 = vmatprep.subr.bf16.mxu0 0
        %6948 = vmatpush1.bf16.xpose.msra.mxu0 %v6927
        %6949 = vmatprep.subr.bf16.mxu0 0
        %6950 = vmatpush1.bf16.xpose.msra.mxu0 %v6930
        %6951 = vmatprep.subr.bf16.mxu0 0
        %6952 = vmatpush1.bf16.xpose.msra.mxu0 %v6933
        %6953 = vmatprep.subr.bf16.mxu0 0
        %6954 = vmatpush1.bf16.xpose.msra.mxu0 %v6936
        %6955 = vmatprep.subr.bf16.mxu0 0
        %6956 = vmatpush1.bf16.xpose.msra.mxu0 %v6939
        %6957 = vmatprep.subr.bf16.mxu0 0
        %6958 = vmatpush1.bf16.xpose.msra.mxu0 0
        %6959 = vmatprep.subr.bf16.mxu0 0
        %6960 = vmatpush1.bf16.xpose.msra.mxu0 0
        %6961 = vmatprep.subr.bf16.mxu0 0
        %6962 = vmatpush1.bf16.xpose.msra.mxu0 0
        %6963 = vmatprep.subr.bf16.mxu0 0
        %6964 = vmatpush1.bf16.xpose.msra.mxu0 0
        %6965 = vmatprep.subr.bf16.mxu0 0
        %6966 = vmatpush1.bf16.xpose.msra.mxu0 0
        %6967 = vmatprep.subr.bf16.mxu0 0
        %6968 = vmatpush1.bf16.xpose.msra.mxu0 0
        %6969 = vmatprep.subr.bf16.mxu0 0
        %6970 = vmatpush1.bf16.xpose.msra.mxu0 0
        %6971 = vmatprep.subr.bf16.mxu0 0
        %6972 = vmatpush1.bf16.xpose.msra.mxu0 0
        %6973 = vmatprep.mubr.bf16.mxu0 0
        %6974 = vmatmul.mubr.bf16.gmra.mrb[0].mxu0 %v6894
        %v6975 = vpop.f32.mrb[0].mxu0
        %v6976 = vadd.f32 %v1514, %v6975
        %v6977 = vpop.f32.mrb[0].mxu0
        %v6978 = vpop.f32.mrb[0].mxu0
        %v6979 = vadd.f32 %v1515, %v6978
        %v6980 = vpop.f32.mrb[0].mxu0
        %6981 = vmatprep.mubr.bf16.mxu0 0
        %6982 = vmatmul.mubr.bf16.gmra.mrb[0].mxu0 %v6897
        %v6983 = vpop.f32.mrb[0].mxu0
        %v6984 = vadd.f32 %v1516, %v6983
        %v6985 = vpop.f32.mrb[0].mxu0
        %v6986 = vpop.f32.mrb[0].mxu0
        %v6987 = vadd.f32 %v1517, %v6986
        %v6988 = vpop.f32.mrb[0].mxu0
        %6989 = vmatprep.mubr.bf16.mxu0 0
        %6990 = vmatmul.mubr.bf16.gmra.mrb[0].mxu0 %v6900
        %v6991 = vpop.f32.mrb[0].mxu0
        %v6992 = vadd.f32 %v1518, %v6991
        %v6993 = vpop.f32.mrb[0].mxu0
        %v6994 = vpop.f32.mrb[0].mxu0
        %v6995 = vadd.f32 %v1519, %v6994
        %v6996 = vpop.f32.mrb[0].mxu0
        %6997 = vmatprep.mubr.bf16.mxu0 0
        %6998 = vmatmul.mubr.bf16.gmra.mrb[0].mxu0 %v6903
        %v6999 = vpop.f32.mrb[0].mxu0
        %v7000 = vadd.f32 %v1520, %v6999
        %v7001 = vpop.f32.mrb[0].mxu0
        %v7002 = vpop.f32.mrb[0].mxu0
        %v7003 = vadd.f32 %v1521, %v7002
        %v7004 = vpop.f32.mrb[0].mxu0
        %7005 = vmatprep.mubr.bf16.mxu0 0
        %7006 = vmatmul.mubr.bf16.gmra.mrb[0].mxu0 %v6906
        %v7007 = vpop.f32.mrb[0].mxu0
        %v7008 = vadd.f32 %v1522, %v7007
        %v7009 = vpop.f32.mrb[0].mxu0
        %v7010 = vpop.f32.mrb[0].mxu0
        %v7011 = vadd.f32 %v1523, %v7010
        %v7012 = vpop.f32.mrb[0].mxu0
        %7013 = vmatprep.mubr.bf16.mxu0 0
        %7014 = vmatmul.mubr.bf16.gmra.mrb[0].mxu0 %v6909
        %v7015 = vpop.f32.mrb[0].mxu0
        %v7016 = vadd.f32 %v1524, %v7015
        %v7017 = vpop.f32.mrb[0].mxu0
        %v7018 = vpop.f32.mrb[0].mxu0
        %v7019 = vadd.f32 %v1525, %v7018
        %v7020 = vpop.f32.mrb[0].mxu0
        %7021 = vmatprep.mubr.bf16.mxu0 0
        %7022 = vmatmul.mubr.bf16.gmra.mrb[0].mxu0 %v6912
        %v7023 = vpop.f32.mrb[0].mxu0
        %v7024 = vadd.f32 %v1526, %v7023
        %v7025 = vpop.f32.mrb[0].mxu0
        %v7026 = vpop.f32.mrb[0].mxu0
        %v7027 = vadd.f32 %v1527, %v7026
        %v7028 = vpop.f32.mrb[0].mxu0
        %7029 = vmatprep.mubr.bf16.mxu0 0
        %7030 = vmatmul.mubr.bf16.gmra.mrb[0].mxu0 %v6915
        %v7031 = vpop.f32.mrb[0].mxu0
        %v7032 = vadd.f32 %v1528, %v7031
        %v7033 = vpop.f32.mrb[0].mxu0
        %v7034 = vpop.f32.mrb[0].mxu0
        %v7035 = vadd.f32 %v1529, %v7034
        %v7036 = vpop.f32.mrb[0].mxu0
        %7037 = vdwg.mxu0
        %7038 = vmax.xlane.f32.xlu0 %v6976
        %v7039 = vpop.xlane.xlu0 %7038
        %7040 = vmax.xlane.f32.xlu0 %v6979
        %v7041 = vpop.xlane.xlu0 %7040
        %7042 = vmax.xlane.f32.xlu0 %v6984
        %v7043 = vpop.xlane.xlu0 %7042
        %7044 = vmax.xlane.f32.xlu0 %v6987
        %v7045 = vpop.xlane.xlu0 %7044
        %7046 = vmax.xlane.f32.xlu0 %v6992
        %v7047 = vpop.xlane.xlu0 %7046
        %7048 = vmax.xlane.f32.xlu0 %v6995
        %v7049 = vpop.xlane.xlu0 %7048
        %7050 = vmax.xlane.f32.xlu0 %v7000
        %v7051 = vpop.xlane.xlu0 %7050
        %7052 = vmax.xlane.f32.xlu0 %v7003
        %v7053 = vpop.xlane.xlu0 %7052
        %7054 = vmax.xlane.f32.xlu0 %v7008
        %v7055 = vpop.xlane.xlu0 %7054
        %7056 = vmax.xlane.f32.xlu0 %v7011
        %v7057 = vpop.xlane.xlu0 %7056
        %7058 = vmax.xlane.f32.xlu0 %v7016
        %v7059 = vpop.xlane.xlu0 %7058
        %7060 = vmax.xlane.f32.xlu0 %v7019
        %v7061 = vpop.xlane.xlu0 %7060
        %7062 = vmax.xlane.f32.xlu0 %v7024
        %v7063 = vpop.xlane.xlu0 %7062
        %7064 = vmax.xlane.f32.xlu0 %v7027
        %v7065 = vpop.xlane.xlu0 %7064
        %7066 = vmax.xlane.f32.xlu0 %v7032
        %v7067 = vpop.xlane.xlu0 %7066
        %7068 = vmax.xlane.f32.xlu0 %v7035
        %v7069 = vpop.xlane.xlu0 %7068
        %v7070 = vsub.f32 %v6976, %v7039
        %v7071 = vsub.f32 %v6979, %v7041
        %v7072 = vsub.f32 %v6984, %v7043
        %v7073 = vsub.f32 %v6987, %v7045
        %v7074 = vsub.f32 %v6992, %v7047
        %v7075 = vsub.f32 %v6995, %v7049
        %v7076 = vsub.f32 %v7000, %v7051
        %v7077 = vsub.f32 %v7003, %v7053
        %v7078 = vsub.f32 %v7008, %v7055
        %v7079 = vsub.f32 %v7011, %v7057
        %v7080 = vsub.f32 %v7016, %v7059
        %v7081 = vsub.f32 %v7019, %v7061
        %v7082 = vsub.f32 %v7024, %v7063
        %v7083 = vsub.f32 %v7027, %v7065
        %v7084 = vsub.f32 %v7032, %v7067
        %v7085 = vsub.f32 %v7035, %v7069
        %v7086 = vmul.f32 %v7070, 1.442695
        %v7087 = vpow.pop %v7086
        %v7088 = vmul.f32 %v7071, 1.442695
        %v7089 = vpow.pop %v7088
        %v7090 = vmul.f32 %v7072, 1.442695
        %v7091 = vpow.pop %v7090
        %v7092 = vmul.f32 %v7073, 1.442695
        %v7093 = vpow.pop %v7092
        %v7094 = vmul.f32 %v7074, 1.442695
        %v7095 = vpow.pop %v7094
        %v7096 = vmul.f32 %v7075, 1.442695
        %v7097 = vpow.pop %v7096
        %v7098 = vmul.f32 %v7076, 1.442695
        %v7099 = vpow.pop %v7098
        %v7100 = vmul.f32 %v7077, 1.442695
        %v7101 = vpow.pop %v7100
        %v7102 = vmul.f32 %v7078, 1.442695
        %v7103 = vpow.pop %v7102
        %v7104 = vmul.f32 %v7079, 1.442695
        %v7105 = vpow.pop %v7104
        %v7106 = vmul.f32 %v7080, 1.442695
        %v7107 = vpow.pop %v7106
        %v7108 = vmul.f32 %v7081, 1.442695
        %v7109 = vpow.pop %v7108
        %v7110 = vmul.f32 %v7082, 1.442695
        %v7111 = vpow.pop %v7110
        %v7112 = vmul.f32 %v7083, 1.442695
        %v7113 = vpow.pop %v7112
        %v7114 = vmul.f32 %v7084, 1.442695
        %v7115 = vpow.pop %v7114
        %v7116 = vmul.f32 %v7085, 1.442695
        %v7117 = vpow.pop %v7116
        %7118 = vadd.xlane.f32.xlu0 %v7087
        %v7119 = vpop.xlane.xlu0 %7118
        %7120 = vadd.xlane.f32.xlu0 %v7089
        %v7121 = vpop.xlane.xlu0 %7120
        %7122 = vadd.xlane.f32.xlu0 %v7091
        %v7123 = vpop.xlane.xlu0 %7122
        %7124 = vadd.xlane.f32.xlu0 %v7093
        %v7125 = vpop.xlane.xlu0 %7124
        %7126 = vadd.xlane.f32.xlu0 %v7095
        %v7127 = vpop.xlane.xlu0 %7126
        %7128 = vadd.xlane.f32.xlu0 %v7097
        %v7129 = vpop.xlane.xlu0 %7128
        %7130 = vadd.xlane.f32.xlu0 %v7099
        %v7131 = vpop.xlane.xlu0 %7130
        %7132 = vadd.xlane.f32.xlu0 %v7101
        %v7133 = vpop.xlane.xlu0 %7132
        %7134 = vadd.xlane.f32.xlu0 %v7103
        %v7135 = vpop.xlane.xlu0 %7134
        %7136 = vadd.xlane.f32.xlu0 %v7105
        %v7137 = vpop.xlane.xlu0 %7136
        %7138 = vadd.xlane.f32.xlu0 %v7107
        %v7139 = vpop.xlane.xlu0 %7138
        %7140 = vadd.xlane.f32.xlu0 %v7109
        %v7141 = vpop.xlane.xlu0 %7140
        %7142 = vadd.xlane.f32.xlu0 %v7111
        %v7143 = vpop.xlane.xlu0 %7142
        %7144 = vadd.xlane.f32.xlu0 %v7113
        %v7145 = vpop.xlane.xlu0 %7144
        %7146 = vadd.xlane.f32.xlu0 %v7115
        %v7147 = vpop.xlane.xlu0 %7146
        %7148 = vadd.xlane.f32.xlu0 %v7117
        %v7149 = vpop.xlane.xlu0 %7148
        %v7150 = vrcp.pop %v7119
        %v7151 = vrcp.pop %v7121
        %v7152 = vrcp.pop %v7123
        %v7153 = vrcp.pop %v7125
        %v7154 = vrcp.pop %v7127
        %v7155 = vrcp.pop %v7129
        %v7156 = vrcp.pop %v7131
        %v7157 = vrcp.pop %v7133
        %v7158 = vrcp.pop %v7135
        %v7159 = vrcp.pop %v7137
        %v7160 = vrcp.pop %v7139
        %v7161 = vrcp.pop %v7141
        %v7162 = vrcp.pop %v7143
        %v7163 = vrcp.pop %v7145
        %v7164 = vrcp.pop %v7147
        %v7165 = vrcp.pop %v7149
        %v7166 = vmul.f32 %v7087, %v7150
        %v7167 = vmul.f32 %v7089, %v7151
        %v7168 = vmul.f32 %v7091, %v7152
        %v7169 = vmul.f32 %v7093, %v7153
        %v7170 = vmul.f32 %v7095, %v7154
        %v7171 = vmul.f32 %v7097, %v7155
        %v7172 = vmul.f32 %v7099, %v7156
        %v7173 = vmul.f32 %v7101, %v7157
        %v7174 = vmul.f32 %v7103, %v7158
        %v7175 = vmul.f32 %v7105, %v7159
        %v7176 = vmul.f32 %v7107, %v7160
        %v7177 = vmul.f32 %v7109, %v7161
        %v7178 = vmul.f32 %v7111, %v7162
        %v7179 = vmul.f32 %v7113, %v7163
        %v7180 = vmul.f32 %v7115, %v7164
        %v7181 = vmul.f32 %v7117, %v7165
        %v7182 = vpack.c.bf16 %v7167, %v7166
        %v7183 = vpack.c.bf16 %v7169, %v7168
        %v7184 = vpack.c.bf16 %v7171, %v7170
        %v7185 = vpack.c.bf16 %v7173, %v7172
        %v7186 = vpack.c.bf16 %v7175, %v7174
        %v7187 = vpack.c.bf16 %v7177, %v7176
        %v7188 = vpack.c.bf16 %v7179, %v7178
        %v7189 = vpack.c.bf16 %v7181, %v7180
        %7190 = vmatprep.subr.bf16.mxu0 0
        %7191 = vmatpush1.bf16.msra.mxu0 %v6885
        %7192 = vmatprep.subr.bf16.mxu0 0
        %7193 = vmatpush1.bf16.msra.mxu0 %v6886
        %7194 = vmatprep.subr.bf16.mxu0 0
        %7195 = vmatpush1.bf16.msra.mxu0 %v6887
        %7196 = vmatprep.subr.bf16.mxu0 0
        %7197 = vmatpush1.bf16.msra.mxu0 %v6888
        %7198 = vmatprep.subr.bf16.mxu0 0
        %7199 = vmatpush1.bf16.msra.mxu0 %v6889
        %7200 = vmatprep.subr.bf16.mxu0 0
        %7201 = vmatpush1.bf16.msra.mxu0 %v6890
        %7202 = vmatprep.subr.bf16.mxu0 0
        %7203 = vmatpush1.bf16.msra.mxu0 %v6891
        %7204 = vmatprep.subr.bf16.mxu0 0
        %7205 = vmatpush1.bf16.msra.mxu0 %v6892
        %7206 = vmatprep.subr.bf16.mxu0 0
        %7207 = vmatpush1.bf16.msra.mxu0 0
        %7208 = vmatprep.subr.bf16.mxu0 0
        %7209 = vmatpush1.bf16.msra.mxu0 0
        %7210 = vmatprep.subr.bf16.mxu0 0
        %7211 = vmatpush1.bf16.msra.mxu0 0
        %7212 = vmatprep.subr.bf16.mxu0 0
        %7213 = vmatpush1.bf16.msra.mxu0 0
        %7214 = vmatprep.subr.bf16.mxu0 0
        %7215 = vmatpush1.bf16.msra.mxu0 0
        %7216 = vmatprep.subr.bf16.mxu0 0
        %7217 = vmatpush1.bf16.msra.mxu0 0
        %7218 = vmatprep.subr.bf16.mxu0 0
        %7219 = vmatpush1.bf16.msra.mxu0 0
        %7220 = vmatprep.subr.bf16.mxu0 0
        %7221 = vmatpush1.bf16.msra.mxu0 0
        %7222 = vmatprep.mubr.bf16.mxu0 0
        %7223 = vmatmul.mubr.bf16.gmra.mrb[0].mxu0 %v7182
        %v7224 = vpop.f32.mrb[0].mxu0
        %v7225 = vadd.f32 0.0, %v7224
        %v7226 = vpop.f32.mrb[0].mxu0
        %v7227 = vpop.f32.mrb[0].mxu0
        %v7228 = vadd.f32 0.0, %v7227
        %v7229 = vpop.f32.mrb[0].mxu0
        %7230 = vmatprep.mubr.bf16.mxu0 0
        %7231 = vmatmul.mubr.bf16.gmra.mrb[0].mxu0 %v7183
        %v7232 = vpop.f32.mrb[0].mxu0
        %v7233 = vadd.f32 0.0, %v7232
        %v7234 = vpop.f32.mrb[0].mxu0
        %v7235 = vpop.f32.mrb[0].mxu0
        %v7236 = vadd.f32 0.0, %v7235
        %v7237 = vpop.f32.mrb[0].mxu0
        %7238 = vmatprep.mubr.bf16.mxu0 0
        %7239 = vmatmul.mubr.bf16.gmra.mrb[0].mxu0 %v7184
        %v7240 = vpop.f32.mrb[0].mxu0
        %v7241 = vadd.f32 0.0, %v7240
        %v7242 = vpop.f32.mrb[0].mxu0
        %v7243 = vpop.f32.mrb[0].mxu0
        %v7244 = vadd.f32 0.0, %v7243
        %v7245 = vpop.f32.mrb[0].mxu0
        %7246 = vmatprep.mubr.bf16.mxu0 0
        %7247 = vmatmul.mubr.bf16.gmra.mrb[0].mxu0 %v7185
        %v7248 = vpop.f32.mrb[0].mxu0
        %v7249 = vadd.f32 0.0, %v7248
        %v7250 = vpop.f32.mrb[0].mxu0
        %v7251 = vpop.f32.mrb[0].mxu0
        %v7252 = vadd.f32 0.0, %v7251
        %v7253 = vpop.f32.mrb[0].mxu0
        %7254 = vmatprep.mubr.bf16.mxu0 0
        %7255 = vmatmul.mubr.bf16.gmra.mrb[0].mxu0 %v7186
        %v7256 = vpop.f32.mrb[0].mxu0
        %v7257 = vadd.f32 0.0, %v7256
        %v7258 = vpop.f32.mrb[0].mxu0
        %v7259 = vpop.f32.mrb[0].mxu0
        %v7260 = vadd.f32 0.0, %v7259
        %v7261 = vpop.f32.mrb[0].mxu0
        %7262 = vmatprep.mubr.bf16.mxu0 0
        %7263 = vmatmul.mubr.bf16.gmra.mrb[0].mxu0 %v7187
        %v7264 = vpop.f32.mrb[0].mxu0
        %v7265 = vadd.f32 0.0, %v7264
        %v7266 = vpop.f32.mrb[0].mxu0
        %v7267 = vpop.f32.mrb[0].mxu0
        %v7268 = vadd.f32 0.0, %v7267
        %v7269 = vpop.f32.mrb[0].mxu0
        %7270 = vmatprep.mubr.bf16.mxu0 0
        %7271 = vmatmul.mubr.bf16.gmra.mrb[0].mxu0 %v7188
        %v7272 = vpop.f32.mrb[0].mxu0
        %v7273 = vadd.f32 0.0, %v7272
        %v7274 = vpop.f32.mrb[0].mxu0
        %v7275 = vpop.f32.mrb[0].mxu0
        %v7276 = vadd.f32 0.0, %v7275
        %v7277 = vpop.f32.mrb[0].mxu0
        %7278 = vmatprep.mubr.bf16.mxu0 0
        %7279 = vmatmul.mubr.bf16.gmra.mrb[0].mxu0 %v7189
        %v7280 = vpop.f32.mrb[0].mxu0
        %v7281 = vadd.f32 0.0, %v7280
        %v7282 = vpop.f32.mrb[0].mxu0
        %v7283 = vpop.f32.mrb[0].mxu0
        %v7284 = vadd.f32 0.0, %v7283
        %v7285 = vpop.f32.mrb[0].mxu0
        %7286 = vdwg.mxu0
        %v7287 = vpack.c.bf16 %v7228, %v7225
        %v7288 = vpack.c.bf16 %v7236, %v7233
        %v7289 = vpack.c.bf16 %v7244, %v7241
        %v7290 = vpack.c.bf16 %v7252, %v7249
        %v7291 = vpack.c.bf16 %v7260, %v7257
        %v7292 = vpack.c.bf16 %v7268, %v7265
        %v7293 = vpack.c.bf16 %v7276, %v7273
        %v7294 = vpack.c.bf16 %v7284, %v7281
        %7303 = vrot.lane.b32.xlu0 %v6869, 96
        %v7304 = vpop.permute.xlu0 %7303
        %7305 = vrot.lane.b32.xlu0 %v6870, 96
        %v7306 = vpop.permute.xlu0 %7305
        %7307 = vrot.lane.b32.xlu0 %v6871, 96
        %v7308 = vpop.permute.xlu0 %7307
        %7309 = vrot.lane.b32.xlu0 %v6872, 96
        %v7310 = vpop.permute.xlu0 %7309
        %7311 = vrot.lane.b32.xlu0 %v6873, 96
        %v7312 = vpop.permute.xlu0 %7311
        %7313 = vrot.lane.b32.xlu0 %v6874, 96
        %v7314 = vpop.permute.xlu0 %7313
        %7315 = vrot.lane.b32.xlu0 %v6875, 96
        %v7316 = vpop.permute.xlu0 %7315
        %7317 = vrot.lane.b32.xlu0 %v6876, 96
        %v7318 = vpop.permute.xlu0 %7317
        %7327 = vrot.lane.b32.xlu0 %v6877, 96
        %v7328 = vpop.permute.xlu0 %7327
        %7329 = vrot.lane.b32.xlu0 %v6878, 96
        %v7330 = vpop.permute.xlu0 %7329
        %7331 = vrot.lane.b32.xlu0 %v6879, 96
        %v7332 = vpop.permute.xlu0 %7331
        %7333 = vrot.lane.b32.xlu0 %v6880, 96
        %v7334 = vpop.permute.xlu0 %7333
        %7335 = vrot.lane.b32.xlu0 %v6881, 96
        %v7336 = vpop.permute.xlu0 %7335
        %7337 = vrot.lane.b32.xlu0 %v6882, 96
        %v7338 = vpop.permute.xlu0 %7337
        %7339 = vrot.lane.b32.xlu0 %v6883, 96
        %v7340 = vpop.permute.xlu0 %7339
        %7341 = vrot.lane.b32.xlu0 %v6884, 96
        %v7342 = vpop.permute.xlu0 %7341
        %v7344 = vsel %vm2236, %v7304, 0
        %v7347 = vsel %vm2236, %v7306, 0
        %v7350 = vsel %vm2236, %v7308, 0
        %v7353 = vsel %vm2236, %v7310, 0
        %v7356 = vsel %vm2236, %v7312, 0
        %v7359 = vsel %vm2236, %v7314, 0
        %v7362 = vsel %vm2236, %v7316, 0
        %v7365 = vsel %vm2236, %v7318, 0
        %v7368 = vsel %vm2236, %v7328, 0
        %v7371 = vsel %vm2236, %v7330, 0
        %v7374 = vsel %vm2236, %v7332, 0
        %v7377 = vsel %vm2236, %v7334, 0
        %v7380 = vsel %vm2236, %v7336, 0
        %v7383 = vsel %vm2236, %v7338, 0
        %v7386 = vsel %vm2236, %v7340, 0
        %v7389 = vsel %vm2236, %v7342, 0
        %7391 = vmatprep.subr.bf16.mxu0 0
        %7392 = vmatpush1.bf16.xpose.msra.mxu0 %v7368
        %7393 = vmatprep.subr.bf16.mxu0 0
        %7394 = vmatpush1.bf16.xpose.msra.mxu0 %v7371
        %7395 = vmatprep.subr.bf16.mxu0 0
        %7396 = vmatpush1.bf16.xpose.msra.mxu0 %v7374
        %7397 = vmatprep.subr.bf16.mxu0 0
        %7398 = vmatpush1.bf16.xpose.msra.mxu0 %v7377
        %7399 = vmatprep.subr.bf16.mxu0 0
        %7400 = vmatpush1.bf16.xpose.msra.mxu0 %v7380
        %7401 = vmatprep.subr.bf16.mxu0 0
        %7402 = vmatpush1.bf16.xpose.msra.mxu0 %v7383
        %7403 = vmatprep.subr.bf16.mxu0 0
        %7404 = vmatpush1.bf16.xpose.msra.mxu0 %v7386
        %7405 = vmatprep.subr.bf16.mxu0 0
        %7406 = vmatpush1.bf16.xpose.msra.mxu0 %v7389
        %7407 = vmatprep.subr.bf16.mxu0 0
        %7408 = vmatpush1.bf16.xpose.msra.mxu0 0
        %7409 = vmatprep.subr.bf16.mxu0 0
        %7410 = vmatpush1.bf16.xpose.msra.mxu0 0
        %7411 = vmatprep.subr.bf16.mxu0 0
        %7412 = vmatpush1.bf16.xpose.msra.mxu0 0
        %7413 = vmatprep.subr.bf16.mxu0 0
        %7414 = vmatpush1.bf16.xpose.msra.mxu0 0
        %7415 = vmatprep.subr.bf16.mxu0 0
        %7416 = vmatpush1.bf16.xpose.msra.mxu0 0
        %7417 = vmatprep.subr.bf16.mxu0 0
        %7418 = vmatpush1.bf16.xpose.msra.mxu0 0
        %7419 = vmatprep.subr.bf16.mxu0 0
        %7420 = vmatpush1.bf16.xpose.msra.mxu0 0
        %7421 = vmatprep.subr.bf16.mxu0 0
        %7422 = vmatpush1.bf16.xpose.msra.mxu0 0
        %7423 = vmatprep.mubr.bf16.mxu0 0
        %7424 = vmatmul.mubr.bf16.gmra.mrb[0].mxu0 %v7344
        %v7425 = vpop.f32.mrb[0].mxu0
        %v7426 = vadd.f32 %v1514, %v7425
        %v7427 = vpop.f32.mrb[0].mxu0
        %v7428 = vpop.f32.mrb[0].mxu0
        %v7429 = vadd.f32 %v1515, %v7428
        %v7430 = vpop.f32.mrb[0].mxu0
        %7431 = vmatprep.mubr.bf16.mxu0 0
        %7432 = vmatmul.mubr.bf16.gmra.mrb[0].mxu0 %v7347
        %v7433 = vpop.f32.mrb[0].mxu0
        %v7434 = vadd.f32 %v1516, %v7433
        %v7435 = vpop.f32.mrb[0].mxu0
        %v7436 = vpop.f32.mrb[0].mxu0
        %v7437 = vadd.f32 %v1517, %v7436
        %v7438 = vpop.f32.mrb[0].mxu0
        %7439 = vmatprep.mubr.bf16.mxu0 0
        %7440 = vmatmul.mubr.bf16.gmra.mrb[0].mxu0 %v7350
        %v7441 = vpop.f32.mrb[0].mxu0
        %v7442 = vadd.f32 %v1518, %v7441
        %v7443 = vpop.f32.mrb[0].mxu0
        %v7444 = vpop.f32.mrb[0].mxu0
        %v7445 = vadd.f32 %v1519, %v7444
        %v7446 = vpop.f32.mrb[0].mxu0
        %7447 = vmatprep.mubr.bf16.mxu0 0
        %7448 = vmatmul.mubr.bf16.gmra.mrb[0].mxu0 %v7353
        %v7449 = vpop.f32.mrb[0].mxu0
        %v7450 = vadd.f32 %v1520, %v7449
        %v7451 = vpop.f32.mrb[0].mxu0
        %v7452 = vpop.f32.mrb[0].mxu0
        %v7453 = vadd.f32 %v1521, %v7452
        %v7454 = vpop.f32.mrb[0].mxu0
        %7455 = vmatprep.mubr.bf16.mxu0 0
        %7456 = vmatmul.mubr.bf16.gmra.mrb[0].mxu0 %v7356
        %v7457 = vpop.f32.mrb[0].mxu0
        %v7458 = vadd.f32 %v1522, %v7457
        %v7459 = vpop.f32.mrb[0].mxu0
        %v7460 = vpop.f32.mrb[0].mxu0
        %v7461 = vadd.f32 %v1523, %v7460
        %v7462 = vpop.f32.mrb[0].mxu0
        %7463 = vmatprep.mubr.bf16.mxu0 0
        %7464 = vmatmul.mubr.bf16.gmra.mrb[0].mxu0 %v7359
        %v7465 = vpop.f32.mrb[0].mxu0
        %v7466 = vadd.f32 %v1524, %v7465
        %v7467 = vpop.f32.mrb[0].mxu0
        %v7468 = vpop.f32.mrb[0].mxu0
        %v7469 = vadd.f32 %v1525, %v7468
        %v7470 = vpop.f32.mrb[0].mxu0
        %7471 = vmatprep.mubr.bf16.mxu0 0
        %7472 = vmatmul.mubr.bf16.gmra.mrb[0].mxu0 %v7362
        %v7473 = vpop.f32.mrb[0].mxu0
        %v7474 = vadd.f32 %v1526, %v7473
        %v7475 = vpop.f32.mrb[0].mxu0
        %v7476 = vpop.f32.mrb[0].mxu0
        %v7477 = vadd.f32 %v1527, %v7476
        %v7478 = vpop.f32.mrb[0].mxu0
        %7479 = vmatprep.mubr.bf16.mxu0 0
        %7480 = vmatmul.mubr.bf16.gmra.mrb[0].mxu0 %v7365
        %v7481 = vpop.f32.mrb[0].mxu0
        %v7482 = vadd.f32 %v1528, %v7481
        %v7483 = vpop.f32.mrb[0].mxu0
        %v7484 = vpop.f32.mrb[0].mxu0
        %v7485 = vadd.f32 %v1529, %v7484
        %v7486 = vpop.f32.mrb[0].mxu0
        %7487 = vdwg.mxu0
        %7488 = vmax.xlane.f32.xlu0 %v7426
        %v7489 = vpop.xlane.xlu0 %7488
        %7490 = vmax.xlane.f32.xlu0 %v7429
        %v7491 = vpop.xlane.xlu0 %7490
        %7492 = vmax.xlane.f32.xlu0 %v7434
        %v7493 = vpop.xlane.xlu0 %7492
        %7494 = vmax.xlane.f32.xlu0 %v7437
        %v7495 = vpop.xlane.xlu0 %7494
        %7496 = vmax.xlane.f32.xlu0 %v7442
        %v7497 = vpop.xlane.xlu0 %7496
        %7498 = vmax.xlane.f32.xlu0 %v7445
        %v7499 = vpop.xlane.xlu0 %7498
        %7500 = vmax.xlane.f32.xlu0 %v7450
        %v7501 = vpop.xlane.xlu0 %7500
        %7502 = vmax.xlane.f32.xlu0 %v7453
        %v7503 = vpop.xlane.xlu0 %7502
        %7504 = vmax.xlane.f32.xlu0 %v7458
        %v7505 = vpop.xlane.xlu0 %7504
        %7506 = vmax.xlane.f32.xlu0 %v7461
        %v7507 = vpop.xlane.xlu0 %7506
        %7508 = vmax.xlane.f32.xlu0 %v7466
        %v7509 = vpop.xlane.xlu0 %7508
        %7510 = vmax.xlane.f32.xlu0 %v7469
        %v7511 = vpop.xlane.xlu0 %7510
        %7512 = vmax.xlane.f32.xlu0 %v7474
        %v7513 = vpop.xlane.xlu0 %7512
        %7514 = vmax.xlane.f32.xlu0 %v7477
        %v7515 = vpop.xlane.xlu0 %7514
        %7516 = vmax.xlane.f32.xlu0 %v7482
        %v7517 = vpop.xlane.xlu0 %7516
        %7518 = vmax.xlane.f32.xlu0 %v7485
        %v7519 = vpop.xlane.xlu0 %7518
        %v7520 = vsub.f32 %v7426, %v7489
        %v7521 = vsub.f32 %v7429, %v7491
        %v7522 = vsub.f32 %v7434, %v7493
        %v7523 = vsub.f32 %v7437, %v7495
        %v7524 = vsub.f32 %v7442, %v7497
        %v7525 = vsub.f32 %v7445, %v7499
        %v7526 = vsub.f32 %v7450, %v7501
        %v7527 = vsub.f32 %v7453, %v7503
        %v7528 = vsub.f32 %v7458, %v7505
        %v7529 = vsub.f32 %v7461, %v7507
        %v7530 = vsub.f32 %v7466, %v7509
        %v7531 = vsub.f32 %v7469, %v7511
        %v7532 = vsub.f32 %v7474, %v7513
        %v7533 = vsub.f32 %v7477, %v7515
        %v7534 = vsub.f32 %v7482, %v7517
        %v7535 = vsub.f32 %v7485, %v7519
        %v7536 = vmul.f32 %v7520, 1.442695
        %v7537 = vpow.pop %v7536
        %v7538 = vmul.f32 %v7521, 1.442695
        %v7539 = vpow.pop %v7538
        %v7540 = vmul.f32 %v7522, 1.442695
        %v7541 = vpow.pop %v7540
        %v7542 = vmul.f32 %v7523, 1.442695
        %v7543 = vpow.pop %v7542
        %v7544 = vmul.f32 %v7524, 1.442695
        %v7545 = vpow.pop %v7544
        %v7546 = vmul.f32 %v7525, 1.442695
        %v7547 = vpow.pop %v7546
        %v7548 = vmul.f32 %v7526, 1.442695
        %v7549 = vpow.pop %v7548
        %v7550 = vmul.f32 %v7527, 1.442695
        %v7551 = vpow.pop %v7550
        %v7552 = vmul.f32 %v7528, 1.442695
        %v7553 = vpow.pop %v7552
        %v7554 = vmul.f32 %v7529, 1.442695
        %v7555 = vpow.pop %v7554
        %v7556 = vmul.f32 %v7530, 1.442695
        %v7557 = vpow.pop %v7556
        %v7558 = vmul.f32 %v7531, 1.442695
        %v7559 = vpow.pop %v7558
        %v7560 = vmul.f32 %v7532, 1.442695
        %v7561 = vpow.pop %v7560
        %v7562 = vmul.f32 %v7533, 1.442695
        %v7563 = vpow.pop %v7562
        %v7564 = vmul.f32 %v7534, 1.442695
        %v7565 = vpow.pop %v7564
        %v7566 = vmul.f32 %v7535, 1.442695
        %v7567 = vpow.pop %v7566
        %7568 = vadd.xlane.f32.xlu0 %v7537
        %v7569 = vpop.xlane.xlu0 %7568
        %7570 = vadd.xlane.f32.xlu0 %v7539
        %v7571 = vpop.xlane.xlu0 %7570
        %7572 = vadd.xlane.f32.xlu0 %v7541
        %v7573 = vpop.xlane.xlu0 %7572
        %7574 = vadd.xlane.f32.xlu0 %v7543
        %v7575 = vpop.xlane.xlu0 %7574
        %7576 = vadd.xlane.f32.xlu0 %v7545
        %v7577 = vpop.xlane.xlu0 %7576
        %7578 = vadd.xlane.f32.xlu0 %v7547
        %v7579 = vpop.xlane.xlu0 %7578
        %7580 = vadd.xlane.f32.xlu0 %v7549
        %v7581 = vpop.xlane.xlu0 %7580
        %7582 = vadd.xlane.f32.xlu0 %v7551
        %v7583 = vpop.xlane.xlu0 %7582
        %7584 = vadd.xlane.f32.xlu0 %v7553
        %v7585 = vpop.xlane.xlu0 %7584
        %7586 = vadd.xlane.f32.xlu0 %v7555
        %v7587 = vpop.xlane.xlu0 %7586
        %7588 = vadd.xlane.f32.xlu0 %v7557
        %v7589 = vpop.xlane.xlu0 %7588
        %7590 = vadd.xlane.f32.xlu0 %v7559
        %v7591 = vpop.xlane.xlu0 %7590
        %7592 = vadd.xlane.f32.xlu0 %v7561
        %v7593 = vpop.xlane.xlu0 %7592
        %7594 = vadd.xlane.f32.xlu0 %v7563
        %v7595 = vpop.xlane.xlu0 %7594
        %7596 = vadd.xlane.f32.xlu0 %v7565
        %v7597 = vpop.xlane.xlu0 %7596
        %7598 = vadd.xlane.f32.xlu0 %v7567
        %v7599 = vpop.xlane.xlu0 %7598
        %v7600 = vrcp.pop %v7569
        %v7601 = vrcp.pop %v7571
        %v7602 = vrcp.pop %v7573
        %v7603 = vrcp.pop %v7575
        %v7604 = vrcp.pop %v7577
        %v7605 = vrcp.pop %v7579
        %v7606 = vrcp.pop %v7581
        %v7607 = vrcp.pop %v7583
        %v7608 = vrcp.pop %v7585
        %v7609 = vrcp.pop %v7587
        %v7610 = vrcp.pop %v7589
        %v7611 = vrcp.pop %v7591
        %v7612 = vrcp.pop %v7593
        %v7613 = vrcp.pop %v7595
        %v7614 = vrcp.pop %v7597
        %v7615 = vrcp.pop %v7599
        %v7616 = vmul.f32 %v7537, %v7600
        %v7617 = vmul.f32 %v7539, %v7601
        %v7618 = vmul.f32 %v7541, %v7602
        %v7619 = vmul.f32 %v7543, %v7603
        %v7620 = vmul.f32 %v7545, %v7604
        %v7621 = vmul.f32 %v7547, %v7605
        %v7622 = vmul.f32 %v7549, %v7606
        %v7623 = vmul.f32 %v7551, %v7607
        %v7624 = vmul.f32 %v7553, %v7608
        %v7625 = vmul.f32 %v7555, %v7609
        %v7626 = vmul.f32 %v7557, %v7610
        %v7627 = vmul.f32 %v7559, %v7611
        %v7628 = vmul.f32 %v7561, %v7612
        %v7629 = vmul.f32 %v7563, %v7613
        %v7630 = vmul.f32 %v7565, %v7614
        %v7631 = vmul.f32 %v7567, %v7615
        %v7632 = vpack.c.bf16 %v7617, %v7616
        %v7633 = vpack.c.bf16 %v7619, %v7618
        %v7634 = vpack.c.bf16 %v7621, %v7620
        %v7635 = vpack.c.bf16 %v7623, %v7622
        %v7636 = vpack.c.bf16 %v7625, %v7624
        %v7637 = vpack.c.bf16 %v7627, %v7626
        %v7638 = vpack.c.bf16 %v7629, %v7628
        %v7639 = vpack.c.bf16 %v7631, %v7630
        %7648 = vrot.lane.b32.xlu0 %v6885, 96
        %v7649 = vpop.permute.xlu0 %7648
        %7650 = vrot.lane.b32.xlu0 %v6886, 96
        %v7651 = vpop.permute.xlu0 %7650
        %7652 = vrot.lane.b32.xlu0 %v6887, 96
        %v7653 = vpop.permute.xlu0 %7652
        %7654 = vrot.lane.b32.xlu0 %v6888, 96
        %v7655 = vpop.permute.xlu0 %7654
        %7656 = vrot.lane.b32.xlu0 %v6889, 96
        %v7657 = vpop.permute.xlu0 %7656
        %7658 = vrot.lane.b32.xlu0 %v6890, 96
        %v7659 = vpop.permute.xlu0 %7658
        %7660 = vrot.lane.b32.xlu0 %v6891, 96
        %v7661 = vpop.permute.xlu0 %7660
        %7662 = vrot.lane.b32.xlu0 %v6892, 96
        %v7663 = vpop.permute.xlu0 %7662
        %7672 = vmatprep.subr.bf16.mxu0 0
        %7673 = vmatpush1.bf16.msra.mxu0 %v7649
        %7674 = vmatprep.subr.bf16.mxu0 0
        %7675 = vmatpush1.bf16.msra.mxu0 %v7651
        %7676 = vmatprep.subr.bf16.mxu0 0
        %7677 = vmatpush1.bf16.msra.mxu0 %v7653
        %7678 = vmatprep.subr.bf16.mxu0 0
        %7679 = vmatpush1.bf16.msra.mxu0 %v7655
        %7680 = vmatprep.subr.bf16.mxu0 0
        %7681 = vmatpush1.bf16.msra.mxu0 %v7657
        %7682 = vmatprep.subr.bf16.mxu0 0
        %7683 = vmatpush1.bf16.msra.mxu0 %v7659
        %7684 = vmatprep.subr.bf16.mxu0 0
        %7685 = vmatpush1.bf16.msra.mxu0 %v7661
        %7686 = vmatprep.subr.bf16.mxu0 0
        %7687 = vmatpush1.bf16.msra.mxu0 %v7663
        %7688 = vmatprep.subr.bf16.mxu0 0
        %7689 = vmatpush1.bf16.msra.mxu0 0
        %7690 = vmatprep.subr.bf16.mxu0 0
        %7691 = vmatpush1.bf16.msra.mxu0 0
        %7692 = vmatprep.subr.bf16.mxu0 0
        %7693 = vmatpush1.bf16.msra.mxu0 0
        %7694 = vmatprep.subr.bf16.mxu0 0
        %7695 = vmatpush1.bf16.msra.mxu0 0
        %7696 = vmatprep.subr.bf16.mxu0 0
        %7697 = vmatpush1.bf16.msra.mxu0 0
        %7698 = vmatprep.subr.bf16.mxu0 0
        %7699 = vmatpush1.bf16.msra.mxu0 0
        %7700 = vmatprep.subr.bf16.mxu0 0
        %7701 = vmatpush1.bf16.msra.mxu0 0
        %7702 = vmatprep.subr.bf16.mxu0 0
        %7703 = vmatpush1.bf16.msra.mxu0 0
        %7704 = vmatprep.mubr.bf16.mxu0 0
        %7705 = vmatmul.mubr.bf16.gmra.mrb[0].mxu0 %v7632
        %v7706 = vpop.f32.mrb[0].mxu0
        %v7707 = vadd.f32 0.0, %v7706
        %v7708 = vpop.f32.mrb[0].mxu0
        %v7709 = vpop.f32.mrb[0].mxu0
        %v7710 = vadd.f32 0.0, %v7709
        %v7711 = vpop.f32.mrb[0].mxu0
        %7712 = vmatprep.mubr.bf16.mxu0 0
        %7713 = vmatmul.mubr.bf16.gmra.mrb[0].mxu0 %v7633
        %v7714 = vpop.f32.mrb[0].mxu0
        %v7715 = vadd.f32 0.0, %v7714
        %v7716 = vpop.f32.mrb[0].mxu0
        %v7717 = vpop.f32.mrb[0].mxu0
        %v7718 = vadd.f32 0.0, %v7717
        %v7719 = vpop.f32.mrb[0].mxu0
        %7720 = vmatprep.mubr.bf16.mxu0 0
        %7721 = vmatmul.mubr.bf16.gmra.mrb[0].mxu0 %v7634
        %v7722 = vpop.f32.mrb[0].mxu0
        %v7723 = vadd.f32 0.0, %v7722
        %v7724 = vpop.f32.mrb[0].mxu0
        %v7725 = vpop.f32.mrb[0].mxu0
        %v7726 = vadd.f32 0.0, %v7725
        %v7727 = vpop.f32.mrb[0].mxu0
        %7728 = vmatprep.mubr.bf16.mxu0 0
        %7729 = vmatmul.mubr.bf16.gmra.mrb[0].mxu0 %v7635
        %v7730 = vpop.f32.mrb[0].mxu0
        %v7731 = vadd.f32 0.0, %v7730
        %v7732 = vpop.f32.mrb[0].mxu0
        %v7733 = vpop.f32.mrb[0].mxu0
        %v7734 = vadd.f32 0.0, %v7733
        %v7735 = vpop.f32.mrb[0].mxu0
        %7736 = vmatprep.mubr.bf16.mxu0 0
        %7737 = vmatmul.mubr.bf16.gmra.mrb[0].mxu0 %v7636
        %v7738 = vpop.f32.mrb[0].mxu0
        %v7739 = vadd.f32 0.0, %v7738
        %v7740 = vpop.f32.mrb[0].mxu0
        %v7741 = vpop.f32.mrb[0].mxu0
        %v7742 = vadd.f32 0.0, %v7741
        %v7743 = vpop.f32.mrb[0].mxu0
        %7744 = vmatprep.mubr.bf16.mxu0 0
        %7745 = vmatmul.mubr.bf16.gmra.mrb[0].mxu0 %v7637
        %v7746 = vpop.f32.mrb[0].mxu0
        %v7747 = vadd.f32 0.0, %v7746
        %v7748 = vpop.f32.mrb[0].mxu0
        %v7749 = vpop.f32.mrb[0].mxu0
        %v7750 = vadd.f32 0.0, %v7749
        %v7751 = vpop.f32.mrb[0].mxu0
        %7752 = vmatprep.mubr.bf16.mxu0 0
        %7753 = vmatmul.mubr.bf16.gmra.mrb[0].mxu0 %v7638
        %v7754 = vpop.f32.mrb[0].mxu0
        %v7755 = vadd.f32 0.0, %v7754
        %v7756 = vpop.f32.mrb[0].mxu0
        %v7757 = vpop.f32.mrb[0].mxu0
        %v7758 = vadd.f32 0.0, %v7757
        %v7759 = vpop.f32.mrb[0].mxu0
        %7760 = vmatprep.mubr.bf16.mxu0 0
        %7761 = vmatmul.mubr.bf16.gmra.mrb[0].mxu0 %v7639
        %v7762 = vpop.f32.mrb[0].mxu0
        %v7763 = vadd.f32 0.0, %v7762
        %v7764 = vpop.f32.mrb[0].mxu0
        %v7765 = vpop.f32.mrb[0].mxu0
        %v7766 = vadd.f32 0.0, %v7765
        %v7767 = vpop.f32.mrb[0].mxu0
        %7768 = vdwg.mxu0
        %v7769 = vpack.c.bf16 %v7710, %v7707
        %v7770 = vpack.c.bf16 %v7718, %v7715
        %v7771 = vpack.c.bf16 %v7726, %v7723
        %v7772 = vpack.c.bf16 %v7734, %v7731
        %v7773 = vpack.c.bf16 %v7742, %v7739
        %v7774 = vpack.c.bf16 %v7750, %v7747
        %v7775 = vpack.c.bf16 %v7758, %v7755
        %v7776 = vpack.c.bf16 %v7766, %v7763
        %v7781 = vunpack.c.l.b16 %v6857
        %v7782 = vunpack.c.l.b16 %v6858
        %v7783 = vunpack.c.l.b16 %v6859
        %v7784 = vunpack.c.l.b16 %v6860
        %v7785 = vpack.c.b16 %v7782, %v7781
        %v7786 = vpack.c.b16 %v7784, %v7783
        %v7790 = vsel %vm2236, %v7769, 0
        %v7793 = vsel %vm2236, %v7770, 0
        %v7796 = vsel %vm2236, %v7771, 0
        %v7799 = vsel %vm2236, %v7772, 0
        %v7802 = vsel %vm2236, %v7773, 0
        %v7805 = vsel %vm2236, %v7774, 0
        %v7808 = vsel %vm2236, %v7775, 0
        %v7811 = vsel %vm2236, %v7776, 0
        %7813 = vmatprep.subr.bf16.mxu0 0
        %7814 = vmatpush1.bf16.msra.mxu0 %v7785
        %7815 = vmatprep.subr.bf16.mxu0 0
        %7816 = vmatpush1.bf16.msra.mxu0 %v7786
        %7817 = vmatprep.subr.bf16.mxu0 0
        %7818 = vmatpush1.bf16.msra.mxu0 0
        %7819 = vmatprep.subr.bf16.mxu0 0
        %7820 = vmatpush1.bf16.msra.mxu0 0
        %7821 = vmatprep.subr.bf16.mxu0 0
        %7822 = vmatpush1.bf16.msra.mxu0 0
        %7823 = vmatprep.subr.bf16.mxu0 0
        %7824 = vmatpush1.bf16.msra.mxu0 0
        %7825 = vmatprep.subr.bf16.mxu0 0
        %7826 = vmatpush1.bf16.msra.mxu0 0
        %7827 = vmatprep.subr.bf16.mxu0 0
        %7828 = vmatpush1.bf16.msra.mxu0 0
        %7829 = vmatprep.subr.bf16.mxu0 0
        %7830 = vmatpush1.bf16.msra.mxu0 0
        %7831 = vmatprep.subr.bf16.mxu0 0
        %7832 = vmatpush1.bf16.msra.mxu0 0
        %7833 = vmatprep.subr.bf16.mxu0 0
        %7834 = vmatpush1.bf16.msra.mxu0 0
        %7835 = vmatprep.subr.bf16.mxu0 0
        %7836 = vmatpush1.bf16.msra.mxu0 0
        %7837 = vmatprep.subr.bf16.mxu0 0
        %7838 = vmatpush1.bf16.msra.mxu0 0
        %7839 = vmatprep.subr.bf16.mxu0 0
        %7840 = vmatpush1.bf16.msra.mxu0 0
        %7841 = vmatprep.subr.bf16.mxu0 0
        %7842 = vmatpush1.bf16.msra.mxu0 0
        %7843 = vmatprep.subr.bf16.mxu0 0
        %7844 = vmatpush1.bf16.msra.mxu0 0
        %7845 = vmatprep.mubr.bf16.mxu0 0
        %7846 = vmatmul.mubr.bf16.gmra.mrb[0].mxu0 %v7790
        %v7847 = vpop.f32.mrb[0].mxu0
        %v7848 = vadd.f32 0.0, %v7847
        %v7849 = vpop.f32.mrb[0].mxu0
        %v7850 = vpop.f32.mrb[0].mxu0
        %v7851 = vadd.f32 0.0, %v7850
        %v7852 = vpop.f32.mrb[0].mxu0
        %7853 = vmatprep.mubr.bf16.mxu0 0
        %7854 = vmatmul.mubr.bf16.gmra.mrb[0].mxu0 %v7793
        %v7855 = vpop.f32.mrb[0].mxu0
        %v7856 = vadd.f32 0.0, %v7855
        %v7857 = vpop.f32.mrb[0].mxu0
        %v7858 = vpop.f32.mrb[0].mxu0
        %v7859 = vadd.f32 0.0, %v7858
        %v7860 = vpop.f32.mrb[0].mxu0
        %7861 = vmatprep.mubr.bf16.mxu0 0
        %7862 = vmatmul.mubr.bf16.gmra.mrb[0].mxu0 %v7796
        %v7863 = vpop.f32.mrb[0].mxu0
        %v7864 = vadd.f32 0.0, %v7863
        %v7865 = vpop.f32.mrb[0].mxu0
        %v7866 = vpop.f32.mrb[0].mxu0
        %v7867 = vadd.f32 0.0, %v7866
        %v7868 = vpop.f32.mrb[0].mxu0
        %7869 = vmatprep.mubr.bf16.mxu0 0
        %7870 = vmatmul.mubr.bf16.gmra.mrb[0].mxu0 %v7799
        %v7871 = vpop.f32.mrb[0].mxu0
        %v7872 = vadd.f32 0.0, %v7871
        %v7873 = vpop.f32.mrb[0].mxu0
        %v7874 = vpop.f32.mrb[0].mxu0
        %v7875 = vadd.f32 0.0, %v7874
        %v7876 = vpop.f32.mrb[0].mxu0
        %7877 = vmatprep.mubr.bf16.mxu0 0
        %7878 = vmatmul.mubr.bf16.gmra.mrb[0].mxu0 %v7802
        %v7879 = vpop.f32.mrb[0].mxu0
        %v7880 = vadd.f32 0.0, %v7879
        %v7881 = vpop.f32.mrb[0].mxu0
        %v7882 = vpop.f32.mrb[0].mxu0
        %v7883 = vadd.f32 0.0, %v7882
        %v7884 = vpop.f32.mrb[0].mxu0
        %7885 = vmatprep.mubr.bf16.mxu0 0
        %7886 = vmatmul.mubr.bf16.gmra.mrb[0].mxu0 %v7805
        %v7887 = vpop.f32.mrb[0].mxu0
        %v7888 = vadd.f32 0.0, %v7887
        %v7889 = vpop.f32.mrb[0].mxu0
        %v7890 = vpop.f32.mrb[0].mxu0
        %v7891 = vadd.f32 0.0, %v7890
        %v7892 = vpop.f32.mrb[0].mxu0
        %7893 = vmatprep.mubr.bf16.mxu0 0
        %7894 = vmatmul.mubr.bf16.gmra.mrb[0].mxu0 %v7808
        %v7895 = vpop.f32.mrb[0].mxu0
        %v7896 = vadd.f32 0.0, %v7895
        %v7897 = vpop.f32.mrb[0].mxu0
        %v7898 = vpop.f32.mrb[0].mxu0
        %v7899 = vadd.f32 0.0, %v7898
        %v7900 = vpop.f32.mrb[0].mxu0
        %7901 = vmatprep.mubr.bf16.mxu0 0
        %7902 = vmatmul.mubr.bf16.gmra.mrb[0].mxu0 %v7811
        %v7903 = vpop.f32.mrb[0].mxu0
        %v7904 = vadd.f32 0.0, %v7903
        %v7905 = vpop.f32.mrb[0].mxu0
        %v7906 = vpop.f32.mrb[0].mxu0
        %v7907 = vadd.f32 0.0, %v7906
        %v7908 = vpop.f32.mrb[0].mxu0
        %7909 = vdwg.mxu0
        %v7914 = vunpack.c.l.b16 %v6853
        %v7915 = vunpack.c.l.b16 %v6854
        %v7916 = vunpack.c.l.b16 %v6855
        %v7917 = vunpack.c.l.b16 %v6856
        %v7918 = vpack.c.b16 %v7915, %v7914
        %v7919 = vpack.c.b16 %v7917, %v7916
        %v7923 = vsel %vm2236, %v7287, 0
        %v7926 = vsel %vm2236, %v7288, 0
        %v7929 = vsel %vm2236, %v7289, 0
        %v7932 = vsel %vm2236, %v7290, 0
        %v7935 = vsel %vm2236, %v7291, 0
        %v7938 = vsel %vm2236, %v7292, 0
        %v7941 = vsel %vm2236, %v7293, 0
        %v7944 = vsel %vm2236, %v7294, 0
        %7946 = vmatprep.subr.bf16.mxu0 0
        %7947 = vmatpush1.bf16.msra.mxu0 %v7918
        %7948 = vmatprep.subr.bf16.mxu0 0
        %7949 = vmatpush1.bf16.msra.mxu0 %v7919
        %7950 = vmatprep.subr.bf16.mxu0 0
        %7951 = vmatpush1.bf16.msra.mxu0 0
        %7952 = vmatprep.subr.bf16.mxu0 0
        %7953 = vmatpush1.bf16.msra.mxu0 0
        %7954 = vmatprep.subr.bf16.mxu0 0
        %7955 = vmatpush1.bf16.msra.mxu0 0
        %7956 = vmatprep.subr.bf16.mxu0 0
        %7957 = vmatpush1.bf16.msra.mxu0 0
        %7958 = vmatprep.subr.bf16.mxu0 0
        %7959 = vmatpush1.bf16.msra.mxu0 0
        %7960 = vmatprep.subr.bf16.mxu0 0
        %7961 = vmatpush1.bf16.msra.mxu0 0
        %7962 = vmatprep.subr.bf16.mxu0 0
        %7963 = vmatpush1.bf16.msra.mxu0 0
        %7964 = vmatprep.subr.bf16.mxu0 0
        %7965 = vmatpush1.bf16.msra.mxu0 0
        %7966 = vmatprep.subr.bf16.mxu0 0
        %7967 = vmatpush1.bf16.msra.mxu0 0
        %7968 = vmatprep.subr.bf16.mxu0 0
        %7969 = vmatpush1.bf16.msra.mxu0 0
        %7970 = vmatprep.subr.bf16.mxu0 0
        %7971 = vmatpush1.bf16.msra.mxu0 0
        %7972 = vmatprep.subr.bf16.mxu0 0
        %7973 = vmatpush1.bf16.msra.mxu0 0
        %7974 = vmatprep.subr.bf16.mxu0 0
        %7975 = vmatpush1.bf16.msra.mxu0 0
        %7976 = vmatprep.subr.bf16.mxu0 0
        %7977 = vmatpush1.bf16.msra.mxu0 0
        %7978 = vmatprep.mubr.bf16.mxu0 0
        %7979 = vmatmul.mubr.bf16.gmra.mrb[0].mxu0 %v7923
        %v7980 = vpop.f32.mrb[0].mxu0
        %v7981 = vadd.f32 %v7848, %v7980
        %v7982 = vpop.f32.mrb[0].mxu0
        %v7983 = vpop.f32.mrb[0].mxu0
        %v7984 = vadd.f32 %v7851, %v7983
        %v7985 = vpop.f32.mrb[0].mxu0
        %7986 = vmatprep.mubr.bf16.mxu0 0
        %7987 = vmatmul.mubr.bf16.gmra.mrb[0].mxu0 %v7926
        %v7988 = vpop.f32.mrb[0].mxu0
        %v7989 = vadd.f32 %v7856, %v7988
        %v7990 = vpop.f32.mrb[0].mxu0
        %v7991 = vpop.f32.mrb[0].mxu0
        %v7992 = vadd.f32 %v7859, %v7991
        %v7993 = vpop.f32.mrb[0].mxu0
        %7994 = vmatprep.mubr.bf16.mxu0 0
        %7995 = vmatmul.mubr.bf16.gmra.mrb[0].mxu0 %v7929
        %v7996 = vpop.f32.mrb[0].mxu0
        %v7997 = vadd.f32 %v7864, %v7996
        %v7998 = vpop.f32.mrb[0].mxu0
        %v7999 = vpop.f32.mrb[0].mxu0
        %v8000 = vadd.f32 %v7867, %v7999
        %v8001 = vpop.f32.mrb[0].mxu0
        %8002 = vmatprep.mubr.bf16.mxu0 0
        %8003 = vmatmul.mubr.bf16.gmra.mrb[0].mxu0 %v7932
        %v8004 = vpop.f32.mrb[0].mxu0
        %v8005 = vadd.f32 %v7872, %v8004
        %v8006 = vpop.f32.mrb[0].mxu0
        %v8007 = vpop.f32.mrb[0].mxu0
        %v8008 = vadd.f32 %v7875, %v8007
        %v8009 = vpop.f32.mrb[0].mxu0
        %8010 = vmatprep.mubr.bf16.mxu0 0
        %8011 = vmatmul.mubr.bf16.gmra.mrb[0].mxu0 %v7935
        %v8012 = vpop.f32.mrb[0].mxu0
        %v8013 = vadd.f32 %v7880, %v8012
        %v8014 = vpop.f32.mrb[0].mxu0
        %v8015 = vpop.f32.mrb[0].mxu0
        %v8016 = vadd.f32 %v7883, %v8015
        %v8017 = vpop.f32.mrb[0].mxu0
        %8018 = vmatprep.mubr.bf16.mxu0 0
        %8019 = vmatmul.mubr.bf16.gmra.mrb[0].mxu0 %v7938
        %v8020 = vpop.f32.mrb[0].mxu0
        %v8021 = vadd.f32 %v7888, %v8020
        %v8022 = vpop.f32.mrb[0].mxu0
        %v8023 = vpop.f32.mrb[0].mxu0
        %v8024 = vadd.f32 %v7891, %v8023
        %v8025 = vpop.f32.mrb[0].mxu0
        %8026 = vmatprep.mubr.bf16.mxu0 0
        %8027 = vmatmul.mubr.bf16.gmra.mrb[0].mxu0 %v7941
        %v8028 = vpop.f32.mrb[0].mxu0
        %v8029 = vadd.f32 %v7896, %v8028
        %v8030 = vpop.f32.mrb[0].mxu0
        %v8031 = vpop.f32.mrb[0].mxu0
        %v8032 = vadd.f32 %v7899, %v8031
        %v8033 = vpop.f32.mrb[0].mxu0
        %8034 = vmatprep.mubr.bf16.mxu0 0
        %8035 = vmatmul.mubr.bf16.gmra.mrb[0].mxu0 %v7944
        %v8036 = vpop.f32.mrb[0].mxu0
        %v8037 = vadd.f32 %v7904, %v8036
        %v8038 = vpop.f32.mrb[0].mxu0
        %v8039 = vpop.f32.mrb[0].mxu0
        %v8040 = vadd.f32 %v7907, %v8039
        %v8041 = vpop.f32.mrb[0].mxu0
        %8042 = vdwg.mxu0
        %8043 = vrot.lane.b32.xlu0 %v6869, 64
        %v8044 = vpop.permute.xlu0 %8043
        %8045 = vrot.lane.b32.xlu0 %v6870, 64
        %v8046 = vpop.permute.xlu0 %8045
        %8047 = vrot.lane.b32.xlu0 %v6871, 64
        %v8048 = vpop.permute.xlu0 %8047
        %8049 = vrot.lane.b32.xlu0 %v6872, 64
        %v8050 = vpop.permute.xlu0 %8049
        %8051 = vrot.lane.b32.xlu0 %v6873, 64
        %v8052 = vpop.permute.xlu0 %8051
        %8053 = vrot.lane.b32.xlu0 %v6874, 64
        %v8054 = vpop.permute.xlu0 %8053
        %8055 = vrot.lane.b32.xlu0 %v6875, 64
        %v8056 = vpop.permute.xlu0 %8055
        %8057 = vrot.lane.b32.xlu0 %v6876, 64
        %v8058 = vpop.permute.xlu0 %8057
        %8059 = vrot.lane.b32.xlu0 %v6877, 64
        %v8060 = vpop.permute.xlu0 %8059
        %8061 = vrot.lane.b32.xlu0 %v6878, 64
        %v8062 = vpop.permute.xlu0 %8061
        %8063 = vrot.lane.b32.xlu0 %v6879, 64
        %v8064 = vpop.permute.xlu0 %8063
        %8065 = vrot.lane.b32.xlu0 %v6880, 64
        %v8066 = vpop.permute.xlu0 %8065
        %8067 = vrot.lane.b32.xlu0 %v6881, 64
        %v8068 = vpop.permute.xlu0 %8067
        %8069 = vrot.lane.b32.xlu0 %v6882, 64
        %v8070 = vpop.permute.xlu0 %8069
        %8071 = vrot.lane.b32.xlu0 %v6883, 64
        %v8072 = vpop.permute.xlu0 %8071
        %8073 = vrot.lane.b32.xlu0 %v6884, 64
        %v8074 = vpop.permute.xlu0 %8073
        %v8076 = vsel %vm2236, %v8044, 0
        %v8079 = vsel %vm2236, %v8046, 0
        %v8082 = vsel %vm2236, %v8048, 0
        %v8085 = vsel %vm2236, %v8050, 0
        %v8088 = vsel %vm2236, %v8052, 0
        %v8091 = vsel %vm2236, %v8054, 0
        %v8094 = vsel %vm2236, %v8056, 0
        %v8097 = vsel %vm2236, %v8058, 0
        %v8100 = vsel %vm2236, %v8060, 0
        %v8103 = vsel %vm2236, %v8062, 0
        %v8106 = vsel %vm2236, %v8064, 0
        %v8109 = vsel %vm2236, %v8066, 0
        %v8112 = vsel %vm2236, %v8068, 0
        %v8115 = vsel %vm2236, %v8070, 0
        %v8118 = vsel %vm2236, %v8072, 0
        %v8121 = vsel %vm2236, %v8074, 0
        %8123 = vmatprep.subr.bf16.mxu0 0
        %8124 = vmatpush1.bf16.xpose.msra.mxu0 %v8100
        %8125 = vmatprep.subr.bf16.mxu0 0
        %8126 = vmatpush1.bf16.xpose.msra.mxu0 %v8103
        %8127 = vmatprep.subr.bf16.mxu0 0
        %8128 = vmatpush1.bf16.xpose.msra.mxu0 %v8106
        %8129 = vmatprep.subr.bf16.mxu0 0
        %8130 = vmatpush1.bf16.xpose.msra.mxu0 %v8109
        %8131 = vmatprep.subr.bf16.mxu0 0
        %8132 = vmatpush1.bf16.xpose.msra.mxu0 %v8112
        %8133 = vmatprep.subr.bf16.mxu0 0
        %8134 = vmatpush1.bf16.xpose.msra.mxu0 %v8115
        %8135 = vmatprep.subr.bf16.mxu0 0
        %8136 = vmatpush1.bf16.xpose.msra.mxu0 %v8118
        %8137 = vmatprep.subr.bf16.mxu0 0
        %8138 = vmatpush1.bf16.xpose.msra.mxu0 %v8121
        %8139 = vmatprep.subr.bf16.mxu0 0
        %8140 = vmatpush1.bf16.xpose.msra.mxu0 0
        %8141 = vmatprep.subr.bf16.mxu0 0
        %8142 = vmatpush1.bf16.xpose.msra.mxu0 0
        %8143 = vmatprep.subr.bf16.mxu0 0
        %8144 = vmatpush1.bf16.xpose.msra.mxu0 0
        %8145 = vmatprep.subr.bf16.mxu0 0
        %8146 = vmatpush1.bf16.xpose.msra.mxu0 0
        %8147 = vmatprep.subr.bf16.mxu0 0
        %8148 = vmatpush1.bf16.xpose.msra.mxu0 0
        %8149 = vmatprep.subr.bf16.mxu0 0
        %8150 = vmatpush1.bf16.xpose.msra.mxu0 0
        %8151 = vmatprep.subr.bf16.mxu0 0
        %8152 = vmatpush1.bf16.xpose.msra.mxu0 0
        %8153 = vmatprep.subr.bf16.mxu0 0
        %8154 = vmatpush1.bf16.xpose.msra.mxu0 0
        %8155 = vmatprep.mubr.bf16.mxu0 0
        %8156 = vmatmul.mubr.bf16.gmra.mrb[0].mxu0 %v8076
        %v8157 = vpop.f32.mrb[0].mxu0
        %v8158 = vadd.f32 %v1514, %v8157
        %v8159 = vpop.f32.mrb[0].mxu0
        %v8160 = vpop.f32.mrb[0].mxu0
        %v8161 = vadd.f32 %v1515, %v8160
        %v8162 = vpop.f32.mrb[0].mxu0
        %8163 = vmatprep.mubr.bf16.mxu0 0
        %8164 = vmatmul.mubr.bf16.gmra.mrb[0].mxu0 %v8079
        %v8165 = vpop.f32.mrb[0].mxu0
        %v8166 = vadd.f32 %v1516, %v8165
        %v8167 = vpop.f32.mrb[0].mxu0
        %v8168 = vpop.f32.mrb[0].mxu0
        %v8169 = vadd.f32 %v1517, %v8168
        %v8170 = vpop.f32.mrb[0].mxu0
        %8171 = vmatprep.mubr.bf16.mxu0 0
        %8172 = vmatmul.mubr.bf16.gmra.mrb[0].mxu0 %v8082
        %v8173 = vpop.f32.mrb[0].mxu0
        %v8174 = vadd.f32 %v1518, %v8173
        %v8175 = vpop.f32.mrb[0].mxu0
        %v8176 = vpop.f32.mrb[0].mxu0
        %v8177 = vadd.f32 %v1519, %v8176
        %v8178 = vpop.f32.mrb[0].mxu0
        %8179 = vmatprep.mubr.bf16.mxu0 0
        %8180 = vmatmul.mubr.bf16.gmra.mrb[0].mxu0 %v8085
        %v8181 = vpop.f32.mrb[0].mxu0
        %v8182 = vadd.f32 %v1520, %v8181
        %v8183 = vpop.f32.mrb[0].mxu0
        %v8184 = vpop.f32.mrb[0].mxu0
        %v8185 = vadd.f32 %v1521, %v8184
        %v8186 = vpop.f32.mrb[0].mxu0
        %8187 = vmatprep.mubr.bf16.mxu0 0
        %8188 = vmatmul.mubr.bf16.gmra.mrb[0].mxu0 %v8088
        %v8189 = vpop.f32.mrb[0].mxu0
        %v8190 = vadd.f32 %v1522, %v8189
        %v8191 = vpop.f32.mrb[0].mxu0
        %v8192 = vpop.f32.mrb[0].mxu0
        %v8193 = vadd.f32 %v1523, %v8192
        %v8194 = vpop.f32.mrb[0].mxu0
        %8195 = vmatprep.mubr.bf16.mxu0 0
        %8196 = vmatmul.mubr.bf16.gmra.mrb[0].mxu0 %v8091
        %v8197 = vpop.f32.mrb[0].mxu0
        %v8198 = vadd.f32 %v1524, %v8197
        %v8199 = vpop.f32.mrb[0].mxu0
        %v8200 = vpop.f32.mrb[0].mxu0
        %v8201 = vadd.f32 %v1525, %v8200
        %v8202 = vpop.f32.mrb[0].mxu0
        %8203 = vmatprep.mubr.bf16.mxu0 0
        %8204 = vmatmul.mubr.bf16.gmra.mrb[0].mxu0 %v8094
        %v8205 = vpop.f32.mrb[0].mxu0
        %v8206 = vadd.f32 %v1526, %v8205
        %v8207 = vpop.f32.mrb[0].mxu0
        %v8208 = vpop.f32.mrb[0].mxu0
        %v8209 = vadd.f32 %v1527, %v8208
        %v8210 = vpop.f32.mrb[0].mxu0
        %8211 = vmatprep.mubr.bf16.mxu0 0
        %8212 = vmatmul.mubr.bf16.gmra.mrb[0].mxu0 %v8097
        %v8213 = vpop.f32.mrb[0].mxu0
        %v8214 = vadd.f32 %v1528, %v8213
        %v8215 = vpop.f32.mrb[0].mxu0
        %v8216 = vpop.f32.mrb[0].mxu0
        %v8217 = vadd.f32 %v1529, %v8216
        %v8218 = vpop.f32.mrb[0].mxu0
        %8219 = vdwg.mxu0
        %8220 = vmax.xlane.f32.xlu0 %v8158
        %v8221 = vpop.xlane.xlu0 %8220
        %8222 = vmax.xlane.f32.xlu0 %v8161
        %v8223 = vpop.xlane.xlu0 %8222
        %8224 = vmax.xlane.f32.xlu0 %v8166
        %v8225 = vpop.xlane.xlu0 %8224
        %8226 = vmax.xlane.f32.xlu0 %v8169
        %v8227 = vpop.xlane.xlu0 %8226
        %8228 = vmax.xlane.f32.xlu0 %v8174
        %v8229 = vpop.xlane.xlu0 %8228
        %8230 = vmax.xlane.f32.xlu0 %v8177
        %v8231 = vpop.xlane.xlu0 %8230
        %8232 = vmax.xlane.f32.xlu0 %v8182
        %v8233 = vpop.xlane.xlu0 %8232
        %8234 = vmax.xlane.f32.xlu0 %v8185
        %v8235 = vpop.xlane.xlu0 %8234
        %8236 = vmax.xlane.f32.xlu0 %v8190
        %v8237 = vpop.xlane.xlu0 %8236
        %8238 = vmax.xlane.f32.xlu0 %v8193
        %v8239 = vpop.xlane.xlu0 %8238
        %8240 = vmax.xlane.f32.xlu0 %v8198
        %v8241 = vpop.xlane.xlu0 %8240
        %8242 = vmax.xlane.f32.xlu0 %v8201
        %v8243 = vpop.xlane.xlu0 %8242
        %8244 = vmax.xlane.f32.xlu0 %v8206
        %v8245 = vpop.xlane.xlu0 %8244
        %8246 = vmax.xlane.f32.xlu0 %v8209
        %v8247 = vpop.xlane.xlu0 %8246
        %8248 = vmax.xlane.f32.xlu0 %v8214
        %v8249 = vpop.xlane.xlu0 %8248
        %8250 = vmax.xlane.f32.xlu0 %v8217
        %v8251 = vpop.xlane.xlu0 %8250
        %v8252 = vsub.f32 %v8158, %v8221
        %v8253 = vsub.f32 %v8161, %v8223
        %v8254 = vsub.f32 %v8166, %v8225
        %v8255 = vsub.f32 %v8169, %v8227
        %v8256 = vsub.f32 %v8174, %v8229
        %v8257 = vsub.f32 %v8177, %v8231
        %v8258 = vsub.f32 %v8182, %v8233
        %v8259 = vsub.f32 %v8185, %v8235
        %v8260 = vsub.f32 %v8190, %v8237
        %v8261 = vsub.f32 %v8193, %v8239
        %v8262 = vsub.f32 %v8198, %v8241
        %v8263 = vsub.f32 %v8201, %v8243
        %v8264 = vsub.f32 %v8206, %v8245
        %v8265 = vsub.f32 %v8209, %v8247
        %v8266 = vsub.f32 %v8214, %v8249
        %v8267 = vsub.f32 %v8217, %v8251
        %v8268 = vmul.f32 %v8252, 1.442695
        %v8269 = vpow.pop %v8268
        %v8270 = vmul.f32 %v8253, 1.442695
        %v8271 = vpow.pop %v8270
        %v8272 = vmul.f32 %v8254, 1.442695
        %v8273 = vpow.pop %v8272
        %v8274 = vmul.f32 %v8255, 1.442695
        %v8275 = vpow.pop %v8274
        %v8276 = vmul.f32 %v8256, 1.442695
        %v8277 = vpow.pop %v8276
        %v8278 = vmul.f32 %v8257, 1.442695
        %v8279 = vpow.pop %v8278
        %v8280 = vmul.f32 %v8258, 1.442695
        %v8281 = vpow.pop %v8280
        %v8282 = vmul.f32 %v8259, 1.442695
        %v8283 = vpow.pop %v8282
        %v8284 = vmul.f32 %v8260, 1.442695
        %v8285 = vpow.pop %v8284
        %v8286 = vmul.f32 %v8261, 1.442695
        %v8287 = vpow.pop %v8286
        %v8288 = vmul.f32 %v8262, 1.442695
        %v8289 = vpow.pop %v8288
        %v8290 = vmul.f32 %v8263, 1.442695
        %v8291 = vpow.pop %v8290
        %v8292 = vmul.f32 %v8264, 1.442695
        %v8293 = vpow.pop %v8292
        %v8294 = vmul.f32 %v8265, 1.442695
        %v8295 = vpow.pop %v8294
        %v8296 = vmul.f32 %v8266, 1.442695
        %v8297 = vpow.pop %v8296
        %v8298 = vmul.f32 %v8267, 1.442695
        %v8299 = vpow.pop %v8298
        %8300 = vadd.xlane.f32.xlu0 %v8269
        %v8301 = vpop.xlane.xlu0 %8300
        %8302 = vadd.xlane.f32.xlu0 %v8271
        %v8303 = vpop.xlane.xlu0 %8302
        %8304 = vadd.xlane.f32.xlu0 %v8273
        %v8305 = vpop.xlane.xlu0 %8304
        %8306 = vadd.xlane.f32.xlu0 %v8275
        %v8307 = vpop.xlane.xlu0 %8306
        %8308 = vadd.xlane.f32.xlu0 %v8277
        %v8309 = vpop.xlane.xlu0 %8308
        %8310 = vadd.xlane.f32.xlu0 %v8279
        %v8311 = vpop.xlane.xlu0 %8310
        %8312 = vadd.xlane.f32.xlu0 %v8281
        %v8313 = vpop.xlane.xlu0 %8312
        %8314 = vadd.xlane.f32.xlu0 %v8283
        %v8315 = vpop.xlane.xlu0 %8314
        %8316 = vadd.xlane.f32.xlu0 %v8285
        %v8317 = vpop.xlane.xlu0 %8316
        %8318 = vadd.xlane.f32.xlu0 %v8287
        %v8319 = vpop.xlane.xlu0 %8318
        %8320 = vadd.xlane.f32.xlu0 %v8289
        %v8321 = vpop.xlane.xlu0 %8320
        %8322 = vadd.xlane.f32.xlu0 %v8291
        %v8323 = vpop.xlane.xlu0 %8322
        %8324 = vadd.xlane.f32.xlu0 %v8293
        %v8325 = vpop.xlane.xlu0 %8324
        %8326 = vadd.xlane.f32.xlu0 %v8295
        %v8327 = vpop.xlane.xlu0 %8326
        %8328 = vadd.xlane.f32.xlu0 %v8297
        %v8329 = vpop.xlane.xlu0 %8328
        %8330 = vadd.xlane.f32.xlu0 %v8299
        %v8331 = vpop.xlane.xlu0 %8330
        %v8332 = vrcp.pop %v8301
        %v8333 = vrcp.pop %v8303
        %v8334 = vrcp.pop %v8305
        %v8335 = vrcp.pop %v8307
        %v8336 = vrcp.pop %v8309
        %v8337 = vrcp.pop %v8311
        %v8338 = vrcp.pop %v8313
        %v8339 = vrcp.pop %v8315
        %v8340 = vrcp.pop %v8317
        %v8341 = vrcp.pop %v8319
        %v8342 = vrcp.pop %v8321
        %v8343 = vrcp.pop %v8323
        %v8344 = vrcp.pop %v8325
        %v8345 = vrcp.pop %v8327
        %v8346 = vrcp.pop %v8329
        %v8347 = vrcp.pop %v8331
        %v8348 = vmul.f32 %v8269, %v8332
        %v8349 = vmul.f32 %v8271, %v8333
        %v8350 = vmul.f32 %v8273, %v8334
        %v8351 = vmul.f32 %v8275, %v8335
        %v8352 = vmul.f32 %v8277, %v8336
        %v8353 = vmul.f32 %v8279, %v8337
        %v8354 = vmul.f32 %v8281, %v8338
        %v8355 = vmul.f32 %v8283, %v8339
        %v8356 = vmul.f32 %v8285, %v8340
        %v8357 = vmul.f32 %v8287, %v8341
        %v8358 = vmul.f32 %v8289, %v8342
        %v8359 = vmul.f32 %v8291, %v8343
        %v8360 = vmul.f32 %v8293, %v8344
        %v8361 = vmul.f32 %v8295, %v8345
        %v8362 = vmul.f32 %v8297, %v8346
        %v8363 = vmul.f32 %v8299, %v8347
        %v8364 = vpack.c.bf16 %v8349, %v8348
        %v8365 = vpack.c.bf16 %v8351, %v8350
        %v8366 = vpack.c.bf16 %v8353, %v8352
        %v8367 = vpack.c.bf16 %v8355, %v8354
        %v8368 = vpack.c.bf16 %v8357, %v8356
        %v8369 = vpack.c.bf16 %v8359, %v8358
        %v8370 = vpack.c.bf16 %v8361, %v8360
        %v8371 = vpack.c.bf16 %v8363, %v8362
        %8372 = vrot.lane.b32.xlu0 %v6885, 64
        %v8373 = vpop.permute.xlu0 %8372
        %8374 = vrot.lane.b32.xlu0 %v6886, 64
        %v8375 = vpop.permute.xlu0 %8374
        %8376 = vrot.lane.b32.xlu0 %v6887, 64
        %v8377 = vpop.permute.xlu0 %8376
        %8378 = vrot.lane.b32.xlu0 %v6888, 64
        %v8379 = vpop.permute.xlu0 %8378
        %8380 = vrot.lane.b32.xlu0 %v6889, 64
        %v8381 = vpop.permute.xlu0 %8380
        %8382 = vrot.lane.b32.xlu0 %v6890, 64
        %v8383 = vpop.permute.xlu0 %8382
        %8384 = vrot.lane.b32.xlu0 %v6891, 64
        %v8385 = vpop.permute.xlu0 %8384
        %8386 = vrot.lane.b32.xlu0 %v6892, 64
        %v8387 = vpop.permute.xlu0 %8386
        %8396 = vmatprep.subr.bf16.mxu0 0
        %8397 = vmatpush1.bf16.msra.mxu0 %v8373
        %8398 = vmatprep.subr.bf16.mxu0 0
        %8399 = vmatpush1.bf16.msra.mxu0 %v8375
        %8400 = vmatprep.subr.bf16.mxu0 0
        %8401 = vmatpush1.bf16.msra.mxu0 %v8377
        %8402 = vmatprep.subr.bf16.mxu0 0
        %8403 = vmatpush1.bf16.msra.mxu0 %v8379
        %8404 = vmatprep.subr.bf16.mxu0 0
        %8405 = vmatpush1.bf16.msra.mxu0 %v8381
        %8406 = vmatprep.subr.bf16.mxu0 0
        %8407 = vmatpush1.bf16.msra.mxu0 %v8383
        %8408 = vmatprep.subr.bf16.mxu0 0
        %8409 = vmatpush1.bf16.msra.mxu0 %v8385
        %8410 = vmatprep.subr.bf16.mxu0 0
        %8411 = vmatpush1.bf16.msra.mxu0 %v8387
        %8412 = vmatprep.subr.bf16.mxu0 0
        %8413 = vmatpush1.bf16.msra.mxu0 0
        %8414 = vmatprep.subr.bf16.mxu0 0
        %8415 = vmatpush1.bf16.msra.mxu0 0
        %8416 = vmatprep.subr.bf16.mxu0 0
        %8417 = vmatpush1.bf16.msra.mxu0 0
        %8418 = vmatprep.subr.bf16.mxu0 0
        %8419 = vmatpush1.bf16.msra.mxu0 0
        %8420 = vmatprep.subr.bf16.mxu0 0
        %8421 = vmatpush1.bf16.msra.mxu0 0
        %8422 = vmatprep.subr.bf16.mxu0 0
        %8423 = vmatpush1.bf16.msra.mxu0 0
        %8424 = vmatprep.subr.bf16.mxu0 0
        %8425 = vmatpush1.bf16.msra.mxu0 0
        %8426 = vmatprep.subr.bf16.mxu0 0
        %8427 = vmatpush1.bf16.msra.mxu0 0
        %8428 = vmatprep.mubr.bf16.mxu0 0
        %8429 = vmatmul.mubr.bf16.gmra.mrb[0].mxu0 %v8364
        %v8430 = vpop.f32.mrb[0].mxu0
        %v8431 = vadd.f32 0.0, %v8430
        %v8432 = vpop.f32.mrb[0].mxu0
        %v8433 = vpop.f32.mrb[0].mxu0
        %v8434 = vadd.f32 0.0, %v8433
        %v8435 = vpop.f32.mrb[0].mxu0
        %8436 = vmatprep.mubr.bf16.mxu0 0
        %8437 = vmatmul.mubr.bf16.gmra.mrb[0].mxu0 %v8365
        %v8438 = vpop.f32.mrb[0].mxu0
        %v8439 = vadd.f32 0.0, %v8438
        %v8440 = vpop.f32.mrb[0].mxu0
        %v8441 = vpop.f32.mrb[0].mxu0
        %v8442 = vadd.f32 0.0, %v8441
        %v8443 = vpop.f32.mrb[0].mxu0
        %8444 = vmatprep.mubr.bf16.mxu0 0
        %8445 = vmatmul.mubr.bf16.gmra.mrb[0].mxu0 %v8366
        %v8446 = vpop.f32.mrb[0].mxu0
        %v8447 = vadd.f32 0.0, %v8446
        %v8448 = vpop.f32.mrb[0].mxu0
        %v8449 = vpop.f32.mrb[0].mxu0
        %v8450 = vadd.f32 0.0, %v8449
        %v8451 = vpop.f32.mrb[0].mxu0
        %8452 = vmatprep.mubr.bf16.mxu0 0
        %8453 = vmatmul.mubr.bf16.gmra.mrb[0].mxu0 %v8367
        %v8454 = vpop.f32.mrb[0].mxu0
        %v8455 = vadd.f32 0.0, %v8454
        %v8456 = vpop.f32.mrb[0].mxu0
        %v8457 = vpop.f32.mrb[0].mxu0
        %v8458 = vadd.f32 0.0, %v8457
        %v8459 = vpop.f32.mrb[0].mxu0
        %8460 = vmatprep.mubr.bf16.mxu0 0
        %8461 = vmatmul.mubr.bf16.gmra.mrb[0].mxu0 %v8368
        %v8462 = vpop.f32.mrb[0].mxu0
        %v8463 = vadd.f32 0.0, %v8462
        %v8464 = vpop.f32.mrb[0].mxu0
        %v8465 = vpop.f32.mrb[0].mxu0
        %v8466 = vadd.f32 0.0, %v8465
        %v8467 = vpop.f32.mrb[0].mxu0
        %8468 = vmatprep.mubr.bf16.mxu0 0
        %8469 = vmatmul.mubr.bf16.gmra.mrb[0].mxu0 %v8369
        %v8470 = vpop.f32.mrb[0].mxu0
        %v8471 = vadd.f32 0.0, %v8470
        %v8472 = vpop.f32.mrb[0].mxu0
        %v8473 = vpop.f32.mrb[0].mxu0
        %v8474 = vadd.f32 0.0, %v8473
        %v8475 = vpop.f32.mrb[0].mxu0
        %8476 = vmatprep.mubr.bf16.mxu0 0
        %8477 = vmatmul.mubr.bf16.gmra.mrb[0].mxu0 %v8370
        %v8478 = vpop.f32.mrb[0].mxu0
        %v8479 = vadd.f32 0.0, %v8478
        %v8480 = vpop.f32.mrb[0].mxu0
        %v8481 = vpop.f32.mrb[0].mxu0
        %v8482 = vadd.f32 0.0, %v8481
        %v8483 = vpop.f32.mrb[0].mxu0
        %8484 = vmatprep.mubr.bf16.mxu0 0
        %8485 = vmatmul.mubr.bf16.gmra.mrb[0].mxu0 %v8371
        %v8486 = vpop.f32.mrb[0].mxu0
        %v8487 = vadd.f32 0.0, %v8486
        %v8488 = vpop.f32.mrb[0].mxu0
        %v8489 = vpop.f32.mrb[0].mxu0
        %v8490 = vadd.f32 0.0, %v8489
        %v8491 = vpop.f32.mrb[0].mxu0
        %8492 = vdwg.mxu0
        %v8493 = vpack.c.bf16 %v8434, %v8431
        %v8494 = vpack.c.bf16 %v8442, %v8439
        %v8495 = vpack.c.bf16 %v8450, %v8447
        %v8496 = vpack.c.bf16 %v8458, %v8455
        %v8497 = vpack.c.bf16 %v8466, %v8463
        %v8498 = vpack.c.bf16 %v8474, %v8471
        %v8499 = vpack.c.bf16 %v8482, %v8479
        %v8500 = vpack.c.bf16 %v8490, %v8487
        %v8505 = vunpack.c.l.b16 %v6861
        %v8506 = vunpack.c.l.b16 %v6862
        %v8507 = vunpack.c.l.b16 %v6863
        %v8508 = vunpack.c.l.b16 %v6864
        %v8509 = vpack.c.b16 %v8506, %v8505
        %v8510 = vpack.c.b16 %v8508, %v8507
        %v8514 = vsel %vm2236, %v8493, 0
        %v8517 = vsel %vm2236, %v8494, 0
        %v8520 = vsel %vm2236, %v8495, 0
        %v8523 = vsel %vm2236, %v8496, 0
        %v8526 = vsel %vm2236, %v8497, 0
        %v8529 = vsel %vm2236, %v8498, 0
        %v8532 = vsel %vm2236, %v8499, 0
        %v8535 = vsel %vm2236, %v8500, 0
        %8537 = vmatprep.subr.bf16.mxu0 0
        %8538 = vmatpush1.bf16.msra.mxu0 %v8509
        %8539 = vmatprep.subr.bf16.mxu0 0
        %8540 = vmatpush1.bf16.msra.mxu0 %v8510
        %8541 = vmatprep.subr.bf16.mxu0 0
        %8542 = vmatpush1.bf16.msra.mxu0 0
        %8543 = vmatprep.subr.bf16.mxu0 0
        %8544 = vmatpush1.bf16.msra.mxu0 0
        %8545 = vmatprep.subr.bf16.mxu0 0
        %8546 = vmatpush1.bf16.msra.mxu0 0
        %8547 = vmatprep.subr.bf16.mxu0 0
        %8548 = vmatpush1.bf16.msra.mxu0 0
        %8549 = vmatprep.subr.bf16.mxu0 0
        %8550 = vmatpush1.bf16.msra.mxu0 0
        %8551 = vmatprep.subr.bf16.mxu0 0
        %8552 = vmatpush1.bf16.msra.mxu0 0
        %8553 = vmatprep.subr.bf16.mxu0 0
        %8554 = vmatpush1.bf16.msra.mxu0 0
        %8555 = vmatprep.subr.bf16.mxu0 0
        %8556 = vmatpush1.bf16.msra.mxu0 0
        %8557 = vmatprep.subr.bf16.mxu0 0
        %8558 = vmatpush1.bf16.msra.mxu0 0
        %8559 = vmatprep.subr.bf16.mxu0 0
        %8560 = vmatpush1.bf16.msra.mxu0 0
        %8561 = vmatprep.subr.bf16.mxu0 0
        %8562 = vmatpush1.bf16.msra.mxu0 0
        %8563 = vmatprep.subr.bf16.mxu0 0
        %8564 = vmatpush1.bf16.msra.mxu0 0
        %8565 = vmatprep.subr.bf16.mxu0 0
        %8566 = vmatpush1.bf16.msra.mxu0 0
        %8567 = vmatprep.subr.bf16.mxu0 0
        %8568 = vmatpush1.bf16.msra.mxu0 0
        %8569 = vmatprep.mubr.bf16.mxu0 0
        %8570 = vmatmul.mubr.bf16.gmra.mrb[0].mxu0 %v8514
        %v8571 = vpop.f32.mrb[0].mxu0
        %v8572 = vadd.f32 0.0, %v8571
        %v8573 = vpop.f32.mrb[0].mxu0
        %v8574 = vpop.f32.mrb[0].mxu0
        %v8575 = vadd.f32 0.0, %v8574
        %v8576 = vpop.f32.mrb[0].mxu0
        %8577 = vmatprep.mubr.bf16.mxu0 0
        %8578 = vmatmul.mubr.bf16.gmra.mrb[0].mxu0 %v8517
        %v8579 = vpop.f32.mrb[0].mxu0
        %v8580 = vadd.f32 0.0, %v8579
        %v8581 = vpop.f32.mrb[0].mxu0
        %v8582 = vpop.f32.mrb[0].mxu0
        %v8583 = vadd.f32 0.0, %v8582
        %v8584 = vpop.f32.mrb[0].mxu0
        %8585 = vmatprep.mubr.bf16.mxu0 0
        %8586 = vmatmul.mubr.bf16.gmra.mrb[0].mxu0 %v8520
        %v8587 = vpop.f32.mrb[0].mxu0
        %v8588 = vadd.f32 0.0, %v8587
        %v8589 = vpop.f32.mrb[0].mxu0
        %v8590 = vpop.f32.mrb[0].mxu0
        %v8591 = vadd.f32 0.0, %v8590
        %v8592 = vpop.f32.mrb[0].mxu0
        %8593 = vmatprep.mubr.bf16.mxu0 0
        %8594 = vmatmul.mubr.bf16.gmra.mrb[0].mxu0 %v8523
        %v8595 = vpop.f32.mrb[0].mxu0
        %v8596 = vadd.f32 0.0, %v8595
        %v8597 = vpop.f32.mrb[0].mxu0
        %v8598 = vpop.f32.mrb[0].mxu0
        %v8599 = vadd.f32 0.0, %v8598
        %v8600 = vpop.f32.mrb[0].mxu0
        %8601 = vmatprep.mubr.bf16.mxu0 0
        %8602 = vmatmul.mubr.bf16.gmra.mrb[0].mxu0 %v8526
        %v8603 = vpop.f32.mrb[0].mxu0
        %v8604 = vadd.f32 0.0, %v8603
        %v8605 = vpop.f32.mrb[0].mxu0
        %v8606 = vpop.f32.mrb[0].mxu0
        %v8607 = vadd.f32 0.0, %v8606
        %v8608 = vpop.f32.mrb[0].mxu0
        %8609 = vmatprep.mubr.bf16.mxu0 0
        %8610 = vmatmul.mubr.bf16.gmra.mrb[0].mxu0 %v8529
        %v8611 = vpop.f32.mrb[0].mxu0
        %v8612 = vadd.f32 0.0, %v8611
        %v8613 = vpop.f32.mrb[0].mxu0
        %v8614 = vpop.f32.mrb[0].mxu0
        %v8615 = vadd.f32 0.0, %v8614
        %v8616 = vpop.f32.mrb[0].mxu0
        %8617 = vmatprep.mubr.bf16.mxu0 0
        %8618 = vmatmul.mubr.bf16.gmra.mrb[0].mxu0 %v8532
        %v8619 = vpop.f32.mrb[0].mxu0
        %v8620 = vadd.f32 0.0, %v8619
        %v8621 = vpop.f32.mrb[0].mxu0
        %v8622 = vpop.f32.mrb[0].mxu0
        %v8623 = vadd.f32 0.0, %v8622
        %v8624 = vpop.f32.mrb[0].mxu0
        %8625 = vmatprep.mubr.bf16.mxu0 0
        %8626 = vmatmul.mubr.bf16.gmra.mrb[0].mxu0 %v8535
        %v8627 = vpop.f32.mrb[0].mxu0
        %v8628 = vadd.f32 0.0, %v8627
        %v8629 = vpop.f32.mrb[0].mxu0
        %v8630 = vpop.f32.mrb[0].mxu0
        %v8631 = vadd.f32 0.0, %v8630
        %v8632 = vpop.f32.mrb[0].mxu0
        %8633 = vdwg.mxu0
        %v8634 = vadd.f32 %v7981, %v8572
        %v8635 = vadd.f32 %v7984, %v8575
        %v8636 = vadd.f32 %v7989, %v8580
        %v8637 = vadd.f32 %v7992, %v8583
        %v8638 = vadd.f32 %v7997, %v8588
        %v8639 = vadd.f32 %v8000, %v8591
        %v8640 = vadd.f32 %v8005, %v8596
        %v8641 = vadd.f32 %v8008, %v8599
        %v8642 = vadd.f32 %v8013, %v8604
        %v8643 = vadd.f32 %v8016, %v8607
        %v8644 = vadd.f32 %v8021, %v8612
        %v8645 = vadd.f32 %v8024, %v8615
        %v8646 = vadd.f32 %v8029, %v8620
        %v8647 = vadd.f32 %v8032, %v8623
        %v8648 = vadd.f32 %v8037, %v8628
        %v8649 = vadd.f32 %v8040, %v8631
        %8650 = vrot.lane.b32.xlu0 %v6869, 32
        %v8651 = vpop.permute.xlu0 %8650
        %8652 = vrot.lane.b32.xlu0 %v6870, 32
        %v8653 = vpop.permute.xlu0 %8652
        %8654 = vrot.lane.b32.xlu0 %v6871, 32
        %v8655 = vpop.permute.xlu0 %8654
        %8656 = vrot.lane.b32.xlu0 %v6872, 32
        %v8657 = vpop.permute.xlu0 %8656
        %8658 = vrot.lane.b32.xlu0 %v6873, 32
        %v8659 = vpop.permute.xlu0 %8658
        %8660 = vrot.lane.b32.xlu0 %v6874, 32
        %v8661 = vpop.permute.xlu0 %8660
        %8662 = vrot.lane.b32.xlu0 %v6875, 32
        %v8663 = vpop.permute.xlu0 %8662
        %8664 = vrot.lane.b32.xlu0 %v6876, 32
        %v8665 = vpop.permute.xlu0 %8664
        %8666 = vrot.lane.b32.xlu0 %v6877, 32
        %v8667 = vpop.permute.xlu0 %8666
        %8668 = vrot.lane.b32.xlu0 %v6878, 32
        %v8669 = vpop.permute.xlu0 %8668
        %8670 = vrot.lane.b32.xlu0 %v6879, 32
        %v8671 = vpop.permute.xlu0 %8670
        %8672 = vrot.lane.b32.xlu0 %v6880, 32
        %v8673 = vpop.permute.xlu0 %8672
        %8674 = vrot.lane.b32.xlu0 %v6881, 32
        %v8675 = vpop.permute.xlu0 %8674
        %8676 = vrot.lane.b32.xlu0 %v6882, 32
        %v8677 = vpop.permute.xlu0 %8676
        %8678 = vrot.lane.b32.xlu0 %v6883, 32
        %v8679 = vpop.permute.xlu0 %8678
        %8680 = vrot.lane.b32.xlu0 %v6884, 32
        %v8681 = vpop.permute.xlu0 %8680
        %v8683 = vsel %vm2236, %v8651, 0
        %v8686 = vsel %vm2236, %v8653, 0
        %v8689 = vsel %vm2236, %v8655, 0
        %v8692 = vsel %vm2236, %v8657, 0
        %v8695 = vsel %vm2236, %v8659, 0
        %v8698 = vsel %vm2236, %v8661, 0
        %v8701 = vsel %vm2236, %v8663, 0
        %v8704 = vsel %vm2236, %v8665, 0
        %v8707 = vsel %vm2236, %v8667, 0
        %v8710 = vsel %vm2236, %v8669, 0
        %v8713 = vsel %vm2236, %v8671, 0
        %v8716 = vsel %vm2236, %v8673, 0
        %v8719 = vsel %vm2236, %v8675, 0
        %v8722 = vsel %vm2236, %v8677, 0
        %v8725 = vsel %vm2236, %v8679, 0
        %v8728 = vsel %vm2236, %v8681, 0
        %8730 = vmatprep.subr.bf16.mxu0 0
        %8731 = vmatpush1.bf16.xpose.msra.mxu0 %v8707
        %8732 = vmatprep.subr.bf16.mxu0 0
        %8733 = vmatpush1.bf16.xpose.msra.mxu0 %v8710
        %8734 = vmatprep.subr.bf16.mxu0 0
        %8735 = vmatpush1.bf16.xpose.msra.mxu0 %v8713
        %8736 = vmatprep.subr.bf16.mxu0 0
        %8737 = vmatpush1.bf16.xpose.msra.mxu0 %v8716
        %8738 = vmatprep.subr.bf16.mxu0 0
        %8739 = vmatpush1.bf16.xpose.msra.mxu0 %v8719
        %8740 = vmatprep.subr.bf16.mxu0 0
        %8741 = vmatpush1.bf16.xpose.msra.mxu0 %v8722
        %8742 = vmatprep.subr.bf16.mxu0 0
        %8743 = vmatpush1.bf16.xpose.msra.mxu0 %v8725
        %8744 = vmatprep.subr.bf16.mxu0 0
        %8745 = vmatpush1.bf16.xpose.msra.mxu0 %v8728
        %8746 = vmatprep.subr.bf16.mxu0 0
        %8747 = vmatpush1.bf16.xpose.msra.mxu0 0
        %8748 = vmatprep.subr.bf16.mxu0 0
        %8749 = vmatpush1.bf16.xpose.msra.mxu0 0
        %8750 = vmatprep.subr.bf16.mxu0 0
        %8751 = vmatpush1.bf16.xpose.msra.mxu0 0
        %8752 = vmatprep.subr.bf16.mxu0 0
        %8753 = vmatpush1.bf16.xpose.msra.mxu0 0
        %8754 = vmatprep.subr.bf16.mxu0 0
        %8755 = vmatpush1.bf16.xpose.msra.mxu0 0
        %8756 = vmatprep.subr.bf16.mxu0 0
        %8757 = vmatpush1.bf16.xpose.msra.mxu0 0
        %8758 = vmatprep.subr.bf16.mxu0 0
        %8759 = vmatpush1.bf16.xpose.msra.mxu0 0
        %8760 = vmatprep.subr.bf16.mxu0 0
        %8761 = vmatpush1.bf16.xpose.msra.mxu0 0
        %8762 = vmatprep.mubr.bf16.mxu0 0
        %8763 = vmatmul.mubr.bf16.gmra.mrb[0].mxu0 %v8683
        %v8764 = vpop.f32.mrb[0].mxu0
        %v8765 = vadd.f32 %v1514, %v8764
        %v8766 = vpop.f32.mrb[0].mxu0
        %v8767 = vpop.f32.mrb[0].mxu0
        %v8768 = vadd.f32 %v1515, %v8767
        %v8769 = vpop.f32.mrb[0].mxu0
        %8770 = vmatprep.mubr.bf16.mxu0 0
        %8771 = vmatmul.mubr.bf16.gmra.mrb[0].mxu0 %v8686
        %v8772 = vpop.f32.mrb[0].mxu0
        %v8773 = vadd.f32 %v1516, %v8772
        %v8774 = vpop.f32.mrb[0].mxu0
        %v8775 = vpop.f32.mrb[0].mxu0
        %v8776 = vadd.f32 %v1517, %v8775
        %v8777 = vpop.f32.mrb[0].mxu0
        %8778 = vmatprep.mubr.bf16.mxu0 0
        %8779 = vmatmul.mubr.bf16.gmra.mrb[0].mxu0 %v8689
        %v8780 = vpop.f32.mrb[0].mxu0
        %v8781 = vadd.f32 %v1518, %v8780
        %v8782 = vpop.f32.mrb[0].mxu0
        %v8783 = vpop.f32.mrb[0].mxu0
        %v8784 = vadd.f32 %v1519, %v8783
        %v8785 = vpop.f32.mrb[0].mxu0
        %8786 = vmatprep.mubr.bf16.mxu0 0
        %8787 = vmatmul.mubr.bf16.gmra.mrb[0].mxu0 %v8692
        %v8788 = vpop.f32.mrb[0].mxu0
        %v8789 = vadd.f32 %v1520, %v8788
        %v8790 = vpop.f32.mrb[0].mxu0
        %v8791 = vpop.f32.mrb[0].mxu0
        %v8792 = vadd.f32 %v1521, %v8791
        %v8793 = vpop.f32.mrb[0].mxu0
        %8794 = vmatprep.mubr.bf16.mxu0 0
        %8795 = vmatmul.mubr.bf16.gmra.mrb[0].mxu0 %v8695
        %v8796 = vpop.f32.mrb[0].mxu0
        %v8797 = vadd.f32 %v1522, %v8796
        %v8798 = vpop.f32.mrb[0].mxu0
        %v8799 = vpop.f32.mrb[0].mxu0
        %v8800 = vadd.f32 %v1523, %v8799
        %v8801 = vpop.f32.mrb[0].mxu0
        %8802 = vmatprep.mubr.bf16.mxu0 0
        %8803 = vmatmul.mubr.bf16.gmra.mrb[0].mxu0 %v8698
        %v8804 = vpop.f32.mrb[0].mxu0
        %v8805 = vadd.f32 %v1524, %v8804
        %v8806 = vpop.f32.mrb[0].mxu0
        %v8807 = vpop.f32.mrb[0].mxu0
        %v8808 = vadd.f32 %v1525, %v8807
        %v8809 = vpop.f32.mrb[0].mxu0
        %8810 = vmatprep.mubr.bf16.mxu0 0
        %8811 = vmatmul.mubr.bf16.gmra.mrb[0].mxu0 %v8701
        %v8812 = vpop.f32.mrb[0].mxu0
        %v8813 = vadd.f32 %v1526, %v8812
        %v8814 = vpop.f32.mrb[0].mxu0
        %v8815 = vpop.f32.mrb[0].mxu0
        %v8816 = vadd.f32 %v1527, %v8815
        %v8817 = vpop.f32.mrb[0].mxu0
        %8818 = vmatprep.mubr.bf16.mxu0 0
        %8819 = vmatmul.mubr.bf16.gmra.mrb[0].mxu0 %v8704
        %v8820 = vpop.f32.mrb[0].mxu0
        %v8821 = vadd.f32 %v1528, %v8820
        %v8822 = vpop.f32.mrb[0].mxu0
        %v8823 = vpop.f32.mrb[0].mxu0
        %v8824 = vadd.f32 %v1529, %v8823
        %v8825 = vpop.f32.mrb[0].mxu0
        %8826 = vdwg.mxu0
        %8827 = vmax.xlane.f32.xlu0 %v8765
        %v8828 = vpop.xlane.xlu0 %8827
        %8829 = vmax.xlane.f32.xlu0 %v8768
        %v8830 = vpop.xlane.xlu0 %8829
        %8831 = vmax.xlane.f32.xlu0 %v8773
        %v8832 = vpop.xlane.xlu0 %8831
        %8833 = vmax.xlane.f32.xlu0 %v8776
        %v8834 = vpop.xlane.xlu0 %8833
        %8835 = vmax.xlane.f32.xlu0 %v8781
        %v8836 = vpop.xlane.xlu0 %8835
        %8837 = vmax.xlane.f32.xlu0 %v8784
        %v8838 = vpop.xlane.xlu0 %8837
        %8839 = vmax.xlane.f32.xlu0 %v8789
        %v8840 = vpop.xlane.xlu0 %8839
        %8841 = vmax.xlane.f32.xlu0 %v8792
        %v8842 = vpop.xlane.xlu0 %8841
        %8843 = vmax.xlane.f32.xlu0 %v8797
        %v8844 = vpop.xlane.xlu0 %8843
        %8845 = vmax.xlane.f32.xlu0 %v8800
        %v8846 = vpop.xlane.xlu0 %8845
        %8847 = vmax.xlane.f32.xlu0 %v8805
        %v8848 = vpop.xlane.xlu0 %8847
        %8849 = vmax.xlane.f32.xlu0 %v8808
        %v8850 = vpop.xlane.xlu0 %8849
        %8851 = vmax.xlane.f32.xlu0 %v8813
        %v8852 = vpop.xlane.xlu0 %8851
        %8853 = vmax.xlane.f32.xlu0 %v8816
        %v8854 = vpop.xlane.xlu0 %8853
        %8855 = vmax.xlane.f32.xlu0 %v8821
        %v8856 = vpop.xlane.xlu0 %8855
        %8857 = vmax.xlane.f32.xlu0 %v8824
        %v8858 = vpop.xlane.xlu0 %8857
        %v8859 = vsub.f32 %v8765, %v8828
        %v8860 = vsub.f32 %v8768, %v8830
        %v8861 = vsub.f32 %v8773, %v8832
        %v8862 = vsub.f32 %v8776, %v8834
        %v8863 = vsub.f32 %v8781, %v8836
        %v8864 = vsub.f32 %v8784, %v8838
        %v8865 = vsub.f32 %v8789, %v8840
        %v8866 = vsub.f32 %v8792, %v8842
        %v8867 = vsub.f32 %v8797, %v8844
        %v8868 = vsub.f32 %v8800, %v8846
        %v8869 = vsub.f32 %v8805, %v8848
        %v8870 = vsub.f32 %v8808, %v8850
        %v8871 = vsub.f32 %v8813, %v8852
        %v8872 = vsub.f32 %v8816, %v8854
        %v8873 = vsub.f32 %v8821, %v8856
        %v8874 = vsub.f32 %v8824, %v8858
        %v8875 = vmul.f32 %v8859, 1.442695
        %v8876 = vpow.pop %v8875
        %v8877 = vmul.f32 %v8860, 1.442695
        %v8878 = vpow.pop %v8877
        %v8879 = vmul.f32 %v8861, 1.442695
        %v8880 = vpow.pop %v8879
        %v8881 = vmul.f32 %v8862, 1.442695
        %v8882 = vpow.pop %v8881
        %v8883 = vmul.f32 %v8863, 1.442695
        %v8884 = vpow.pop %v8883
        %v8885 = vmul.f32 %v8864, 1.442695
        %v8886 = vpow.pop %v8885
        %v8887 = vmul.f32 %v8865, 1.442695
        %v8888 = vpow.pop %v8887
        %v8889 = vmul.f32 %v8866, 1.442695
        %v8890 = vpow.pop %v8889
        %v8891 = vmul.f32 %v8867, 1.442695
        %v8892 = vpow.pop %v8891
        %v8893 = vmul.f32 %v8868, 1.442695
        %v8894 = vpow.pop %v8893
        %v8895 = vmul.f32 %v8869, 1.442695
        %v8896 = vpow.pop %v8895
        %v8897 = vmul.f32 %v8870, 1.442695
        %v8898 = vpow.pop %v8897
        %v8899 = vmul.f32 %v8871, 1.442695
        %v8900 = vpow.pop %v8899
        %v8901 = vmul.f32 %v8872, 1.442695
        %v8902 = vpow.pop %v8901
        %v8903 = vmul.f32 %v8873, 1.442695
        %v8904 = vpow.pop %v8903
        %v8905 = vmul.f32 %v8874, 1.442695
        %v8906 = vpow.pop %v8905
        %8907 = vadd.xlane.f32.xlu0 %v8876
        %v8908 = vpop.xlane.xlu0 %8907
        %8909 = vadd.xlane.f32.xlu0 %v8878
        %v8910 = vpop.xlane.xlu0 %8909
        %8911 = vadd.xlane.f32.xlu0 %v8880
        %v8912 = vpop.xlane.xlu0 %8911
        %8913 = vadd.xlane.f32.xlu0 %v8882
        %v8914 = vpop.xlane.xlu0 %8913
        %8915 = vadd.xlane.f32.xlu0 %v8884
        %v8916 = vpop.xlane.xlu0 %8915
        %8917 = vadd.xlane.f32.xlu0 %v8886
        %v8918 = vpop.xlane.xlu0 %8917
        %8919 = vadd.xlane.f32.xlu0 %v8888
        %v8920 = vpop.xlane.xlu0 %8919
        %8921 = vadd.xlane.f32.xlu0 %v8890
        %v8922 = vpop.xlane.xlu0 %8921
        %8923 = vadd.xlane.f32.xlu0 %v8892
        %v8924 = vpop.xlane.xlu0 %8923
        %8925 = vadd.xlane.f32.xlu0 %v8894
        %v8926 = vpop.xlane.xlu0 %8925
        %8927 = vadd.xlane.f32.xlu0 %v8896
        %v8928 = vpop.xlane.xlu0 %8927
        %8929 = vadd.xlane.f32.xlu0 %v8898
        %v8930 = vpop.xlane.xlu0 %8929
        %8931 = vadd.xlane.f32.xlu0 %v8900
        %v8932 = vpop.xlane.xlu0 %8931
        %8933 = vadd.xlane.f32.xlu0 %v8902
        %v8934 = vpop.xlane.xlu0 %8933
        %8935 = vadd.xlane.f32.xlu0 %v8904
        %v8936 = vpop.xlane.xlu0 %8935
        %8937 = vadd.xlane.f32.xlu0 %v8906
        %v8938 = vpop.xlane.xlu0 %8937
        %v8939 = vrcp.pop %v8908
        %v8940 = vrcp.pop %v8910
        %v8941 = vrcp.pop %v8912
        %v8942 = vrcp.pop %v8914
        %v8943 = vrcp.pop %v8916
        %v8944 = vrcp.pop %v8918
        %v8945 = vrcp.pop %v8920
        %v8946 = vrcp.pop %v8922
        %v8947 = vrcp.pop %v8924
        %v8948 = vrcp.pop %v8926
        %v8949 = vrcp.pop %v8928
        %v8950 = vrcp.pop %v8930
        %v8951 = vrcp.pop %v8932
        %v8952 = vrcp.pop %v8934
        %v8953 = vrcp.pop %v8936
        %v8954 = vrcp.pop %v8938
        %v8955 = vmul.f32 %v8876, %v8939
        %v8956 = vmul.f32 %v8878, %v8940
        %v8957 = vmul.f32 %v8880, %v8941
        %v8958 = vmul.f32 %v8882, %v8942
        %v8959 = vmul.f32 %v8884, %v8943
        %v8960 = vmul.f32 %v8886, %v8944
        %v8961 = vmul.f32 %v8888, %v8945
        %v8962 = vmul.f32 %v8890, %v8946
        %v8963 = vmul.f32 %v8892, %v8947
        %v8964 = vmul.f32 %v8894, %v8948
        %v8965 = vmul.f32 %v8896, %v8949
        %v8966 = vmul.f32 %v8898, %v8950
        %v8967 = vmul.f32 %v8900, %v8951
        %v8968 = vmul.f32 %v8902, %v8952
        %v8969 = vmul.f32 %v8904, %v8953
        %v8970 = vmul.f32 %v8906, %v8954
        %v8971 = vpack.c.bf16 %v8956, %v8955
        %v8972 = vpack.c.bf16 %v8958, %v8957
        %v8973 = vpack.c.bf16 %v8960, %v8959
        %v8974 = vpack.c.bf16 %v8962, %v8961
        %v8975 = vpack.c.bf16 %v8964, %v8963
        %v8976 = vpack.c.bf16 %v8966, %v8965
        %v8977 = vpack.c.bf16 %v8968, %v8967
        %v8978 = vpack.c.bf16 %v8970, %v8969
        %8979 = vrot.lane.b32.xlu0 %v6885, 32
        %v8980 = vpop.permute.xlu0 %8979
        %8981 = vrot.lane.b32.xlu0 %v6886, 32
        %v8982 = vpop.permute.xlu0 %8981
        %8983 = vrot.lane.b32.xlu0 %v6887, 32
        %v8984 = vpop.permute.xlu0 %8983
        %8985 = vrot.lane.b32.xlu0 %v6888, 32
        %v8986 = vpop.permute.xlu0 %8985
        %8987 = vrot.lane.b32.xlu0 %v6889, 32
        %v8988 = vpop.permute.xlu0 %8987
        %8989 = vrot.lane.b32.xlu0 %v6890, 32
        %v8990 = vpop.permute.xlu0 %8989
        %8991 = vrot.lane.b32.xlu0 %v6891, 32
        %v8992 = vpop.permute.xlu0 %8991
        %8993 = vrot.lane.b32.xlu0 %v6892, 32
        %v8994 = vpop.permute.xlu0 %8993
        %9003 = vmatprep.subr.bf16.mxu0 0
        %9004 = vmatpush1.bf16.msra.mxu0 %v8980
        %9005 = vmatprep.subr.bf16.mxu0 0
        %9006 = vmatpush1.bf16.msra.mxu0 %v8982
        %9007 = vmatprep.subr.bf16.mxu0 0
        %9008 = vmatpush1.bf16.msra.mxu0 %v8984
        %9009 = vmatprep.subr.bf16.mxu0 0
        %9010 = vmatpush1.bf16.msra.mxu0 %v8986
        %9011 = vmatprep.subr.bf16.mxu0 0
        %9012 = vmatpush1.bf16.msra.mxu0 %v8988
        %9013 = vmatprep.subr.bf16.mxu0 0
        %9014 = vmatpush1.bf16.msra.mxu0 %v8990
        %9015 = vmatprep.subr.bf16.mxu0 0
        %9016 = vmatpush1.bf16.msra.mxu0 %v8992
        %9017 = vmatprep.subr.bf16.mxu0 0
        %9018 = vmatpush1.bf16.msra.mxu0 %v8994
        %9019 = vmatprep.subr.bf16.mxu0 0
        %9020 = vmatpush1.bf16.msra.mxu0 0
        %9021 = vmatprep.subr.bf16.mxu0 0
        %9022 = vmatpush1.bf16.msra.mxu0 0
        %9023 = vmatprep.subr.bf16.mxu0 0
        %9024 = vmatpush1.bf16.msra.mxu0 0
        %9025 = vmatprep.subr.bf16.mxu0 0
        %9026 = vmatpush1.bf16.msra.mxu0 0
        %9027 = vmatprep.subr.bf16.mxu0 0
        %9028 = vmatpush1.bf16.msra.mxu0 0
        %9029 = vmatprep.subr.bf16.mxu0 0
        %9030 = vmatpush1.bf16.msra.mxu0 0
        %9031 = vmatprep.subr.bf16.mxu0 0
        %9032 = vmatpush1.bf16.msra.mxu0 0
        %9033 = vmatprep.subr.bf16.mxu0 0
        %9034 = vmatpush1.bf16.msra.mxu0 0
        %9035 = vmatprep.mubr.bf16.mxu0 0
        %9036 = vmatmul.mubr.bf16.gmra.mrb[0].mxu0 %v8971
        %v9037 = vpop.f32.mrb[0].mxu0
        %v9038 = vadd.f32 0.0, %v9037
        %v9039 = vpop.f32.mrb[0].mxu0
        %v9040 = vpop.f32.mrb[0].mxu0
        %v9041 = vadd.f32 0.0, %v9040
        %v9042 = vpop.f32.mrb[0].mxu0
        %9043 = vmatprep.mubr.bf16.mxu0 0
        %9044 = vmatmul.mubr.bf16.gmra.mrb[0].mxu0 %v8972
        %v9045 = vpop.f32.mrb[0].mxu0
        %v9046 = vadd.f32 0.0, %v9045
        %v9047 = vpop.f32.mrb[0].mxu0
        %v9048 = vpop.f32.mrb[0].mxu0
        %v9049 = vadd.f32 0.0, %v9048
        %v9050 = vpop.f32.mrb[0].mxu0
        %9051 = vmatprep.mubr.bf16.mxu0 0
        %9052 = vmatmul.mubr.bf16.gmra.mrb[0].mxu0 %v8973
        %v9053 = vpop.f32.mrb[0].mxu0
        %v9054 = vadd.f32 0.0, %v9053
        %v9055 = vpop.f32.mrb[0].mxu0
        %v9056 = vpop.f32.mrb[0].mxu0
        %v9057 = vadd.f32 0.0, %v9056
        %v9058 = vpop.f32.mrb[0].mxu0
        %9059 = vmatprep.mubr.bf16.mxu0 0
        %9060 = vmatmul.mubr.bf16.gmra.mrb[0].mxu0 %v8974
        %v9061 = vpop.f32.mrb[0].mxu0
        %v9062 = vadd.f32 0.0, %v9061
        %v9063 = vpop.f32.mrb[0].mxu0
        %v9064 = vpop.f32.mrb[0].mxu0
        %v9065 = vadd.f32 0.0, %v9064
        %v9066 = vpop.f32.mrb[0].mxu0
        %9067 = vmatprep.mubr.bf16.mxu0 0
        %9068 = vmatmul.mubr.bf16.gmra.mrb[0].mxu0 %v8975
        %v9069 = vpop.f32.mrb[0].mxu0
        %v9070 = vadd.f32 0.0, %v9069
        %v9071 = vpop.f32.mrb[0].mxu0
        %v9072 = vpop.f32.mrb[0].mxu0
        %v9073 = vadd.f32 0.0, %v9072
        %v9074 = vpop.f32.mrb[0].mxu0
        %9075 = vmatprep.mubr.bf16.mxu0 0
        %9076 = vmatmul.mubr.bf16.gmra.mrb[0].mxu0 %v8976
        %v9077 = vpop.f32.mrb[0].mxu0
        %v9078 = vadd.f32 0.0, %v9077
        %v9079 = vpop.f32.mrb[0].mxu0
        %v9080 = vpop.f32.mrb[0].mxu0
        %v9081 = vadd.f32 0.0, %v9080
        %v9082 = vpop.f32.mrb[0].mxu0
        %9083 = vmatprep.mubr.bf16.mxu0 0
        %9084 = vmatmul.mubr.bf16.gmra.mrb[0].mxu0 %v8977
        %v9085 = vpop.f32.mrb[0].mxu0
        %v9086 = vadd.f32 0.0, %v9085
        %v9087 = vpop.f32.mrb[0].mxu0
        %v9088 = vpop.f32.mrb[0].mxu0
        %v9089 = vadd.f32 0.0, %v9088
        %v9090 = vpop.f32.mrb[0].mxu0
        %9091 = vmatprep.mubr.bf16.mxu0 0
        %9092 = vmatmul.mubr.bf16.gmra.mrb[0].mxu0 %v8978
        %v9093 = vpop.f32.mrb[0].mxu0
        %v9094 = vadd.f32 0.0, %v9093
        %v9095 = vpop.f32.mrb[0].mxu0
        %v9096 = vpop.f32.mrb[0].mxu0
        %v9097 = vadd.f32 0.0, %v9096
        %v9098 = vpop.f32.mrb[0].mxu0
        %9099 = vdwg.mxu0
        %v9100 = vpack.c.bf16 %v9041, %v9038
        %v9101 = vpack.c.bf16 %v9049, %v9046
        %v9102 = vpack.c.bf16 %v9057, %v9054
        %v9103 = vpack.c.bf16 %v9065, %v9062
        %v9104 = vpack.c.bf16 %v9073, %v9070
        %v9105 = vpack.c.bf16 %v9081, %v9078
        %v9106 = vpack.c.bf16 %v9089, %v9086
        %v9107 = vpack.c.bf16 %v9097, %v9094
        %v9112 = vunpack.c.l.b16 %v6865
        %v9113 = vunpack.c.l.b16 %v6866
        %v9114 = vunpack.c.l.b16 %v6867
        %v9115 = vunpack.c.l.b16 %v6868
        %v9116 = vpack.c.b16 %v9113, %v9112
        %v9117 = vpack.c.b16 %v9115, %v9114
        %v9121 = vsel %vm2236, %v9100, 0
        %v9124 = vsel %vm2236, %v9101, 0
        %v9127 = vsel %vm2236, %v9102, 0
        %v9130 = vsel %vm2236, %v9103, 0
        %v9133 = vsel %vm2236, %v9104, 0
        %v9136 = vsel %vm2236, %v9105, 0
        %v9139 = vsel %vm2236, %v9106, 0
        %v9142 = vsel %vm2236, %v9107, 0
        %9144 = vmatprep.subr.bf16.mxu0 0
        %9145 = vmatpush1.bf16.msra.mxu0 %v9116
        %9146 = vmatprep.subr.bf16.mxu0 0
        %9147 = vmatpush1.bf16.msra.mxu0 %v9117
        %9148 = vmatprep.subr.bf16.mxu0 0
        %9149 = vmatpush1.bf16.msra.mxu0 0
        %9150 = vmatprep.subr.bf16.mxu0 0
        %9151 = vmatpush1.bf16.msra.mxu0 0
        %9152 = vmatprep.subr.bf16.mxu0 0
        %9153 = vmatpush1.bf16.msra.mxu0 0
        %9154 = vmatprep.subr.bf16.mxu0 0
        %9155 = vmatpush1.bf16.msra.mxu0 0
        %9156 = vmatprep.subr.bf16.mxu0 0
        %9157 = vmatpush1.bf16.msra.mxu0 0
        %9158 = vmatprep.subr.bf16.mxu0 0
        %9159 = vmatpush1.bf16.msra.mxu0 0
        %9160 = vmatprep.subr.bf16.mxu0 0
        %9161 = vmatpush1.bf16.msra.mxu0 0
        %9162 = vmatprep.subr.bf16.mxu0 0
        %9163 = vmatpush1.bf16.msra.mxu0 0
        %9164 = vmatprep.subr.bf16.mxu0 0
        %9165 = vmatpush1.bf16.msra.mxu0 0
        %9166 = vmatprep.subr.bf16.mxu0 0
        %9167 = vmatpush1.bf16.msra.mxu0 0
        %9168 = vmatprep.subr.bf16.mxu0 0
        %9169 = vmatpush1.bf16.msra.mxu0 0
        %9170 = vmatprep.subr.bf16.mxu0 0
        %9171 = vmatpush1.bf16.msra.mxu0 0
        %9172 = vmatprep.subr.bf16.mxu0 0
        %9173 = vmatpush1.bf16.msra.mxu0 0
        %9174 = vmatprep.subr.bf16.mxu0 0
        %9175 = vmatpush1.bf16.msra.mxu0 0
        %9176 = vmatprep.mubr.bf16.mxu0 0
        %9177 = vmatmul.mubr.bf16.gmra.mrb[0].mxu0 %v9121
        %v9178 = vpop.f32.mrb[0].mxu0
        %v9179 = vadd.f32 0.0, %v9178
        %v9180 = vpop.f32.mrb[0].mxu0
        %v9181 = vpop.f32.mrb[0].mxu0
        %v9182 = vadd.f32 0.0, %v9181
        %v9183 = vpop.f32.mrb[0].mxu0
        %9184 = vmatprep.mubr.bf16.mxu0 0
        %9185 = vmatmul.mubr.bf16.gmra.mrb[0].mxu0 %v9124
        %v9186 = vpop.f32.mrb[0].mxu0
        %v9187 = vadd.f32 0.0, %v9186
        %v9188 = vpop.f32.mrb[0].mxu0
        %v9189 = vpop.f32.mrb[0].mxu0
        %v9190 = vadd.f32 0.0, %v9189
        %v9191 = vpop.f32.mrb[0].mxu0
        %9192 = vmatprep.mubr.bf16.mxu0 0
        %9193 = vmatmul.mubr.bf16.gmra.mrb[0].mxu0 %v9127
        %v9194 = vpop.f32.mrb[0].mxu0
        %v9195 = vadd.f32 0.0, %v9194
        %v9196 = vpop.f32.mrb[0].mxu0
        %v9197 = vpop.f32.mrb[0].mxu0
        %v9198 = vadd.f32 0.0, %v9197
        %v9199 = vpop.f32.mrb[0].mxu0
        %9200 = vmatprep.mubr.bf16.mxu0 0
        %9201 = vmatmul.mubr.bf16.gmra.mrb[0].mxu0 %v9130
        %v9202 = vpop.f32.mrb[0].mxu0
        %v9203 = vadd.f32 0.0, %v9202
        %v9204 = vpop.f32.mrb[0].mxu0
        %v9205 = vpop.f32.mrb[0].mxu0
        %v9206 = vadd.f32 0.0, %v9205
        %v9207 = vpop.f32.mrb[0].mxu0
        %9208 = vmatprep.mubr.bf16.mxu0 0
        %9209 = vmatmul.mubr.bf16.gmra.mrb[0].mxu0 %v9133
        %v9210 = vpop.f32.mrb[0].mxu0
        %v9211 = vadd.f32 0.0, %v9210
        %v9212 = vpop.f32.mrb[0].mxu0
        %v9213 = vpop.f32.mrb[0].mxu0
        %v9214 = vadd.f32 0.0, %v9213
        %v9215 = vpop.f32.mrb[0].mxu0
        %9216 = vmatprep.mubr.bf16.mxu0 0
        %9217 = vmatmul.mubr.bf16.gmra.mrb[0].mxu0 %v9136
        %v9218 = vpop.f32.mrb[0].mxu0
        %v9219 = vadd.f32 0.0, %v9218
        %v9220 = vpop.f32.mrb[0].mxu0
        %v9221 = vpop.f32.mrb[0].mxu0
        %v9222 = vadd.f32 0.0, %v9221
        %v9223 = vpop.f32.mrb[0].mxu0
        %9224 = vmatprep.mubr.bf16.mxu0 0
        %9225 = vmatmul.mubr.bf16.gmra.mrb[0].mxu0 %v9139
        %v9226 = vpop.f32.mrb[0].mxu0
        %v9227 = vadd.f32 0.0, %v9226
        %v9228 = vpop.f32.mrb[0].mxu0
        %v9229 = vpop.f32.mrb[0].mxu0
        %v9230 = vadd.f32 0.0, %v9229
        %v9231 = vpop.f32.mrb[0].mxu0
        %9232 = vmatprep.mubr.bf16.mxu0 0
        %9233 = vmatmul.mubr.bf16.gmra.mrb[0].mxu0 %v9142
        %v9234 = vpop.f32.mrb[0].mxu0
        %v9235 = vadd.f32 0.0, %v9234
        %v9236 = vpop.f32.mrb[0].mxu0
        %v9237 = vpop.f32.mrb[0].mxu0
        %v9238 = vadd.f32 0.0, %v9237
        %v9239 = vpop.f32.mrb[0].mxu0
        %9240 = vdwg.mxu0
        %v9241 = vadd.f32 %v8634, %v9179
        %v9242 = vadd.f32 %v8635, %v9182
        %v9243 = vadd.f32 %v8636, %v9187
        %v9244 = vadd.f32 %v8637, %v9190
        %v9245 = vadd.f32 %v8638, %v9195
        %v9246 = vadd.f32 %v8639, %v9198
        %v9247 = vadd.f32 %v8640, %v9203
        %v9248 = vadd.f32 %v8641, %v9206
        %v9249 = vadd.f32 %v8642, %v9211
        %v9250 = vadd.f32 %v8643, %v9214
        %v9251 = vadd.f32 %v8644, %v9219
        %v9252 = vadd.f32 %v8645, %v9222
        %v9253 = vadd.f32 %v8646, %v9227
        %v9254 = vadd.f32 %v8647, %v9230
        %v9255 = vadd.f32 %v8648, %v9235
        %v9256 = vadd.f32 %v8649, %v9238
        %v9257 = vadd.f32 %v6167, %v9241
        %v9258 = vadd.f32 %v6168, %v9242
        %v9259 = vadd.f32 %v6169, %v9243
        %v9260 = vadd.f32 %v6170, %v9244
        %v9261 = vadd.f32 %v6171, %v9245
        %v9262 = vadd.f32 %v6172, %v9246
        %v9263 = vadd.f32 %v6173, %v9247
        %v9264 = vadd.f32 %v6174, %v9248
        %v9265 = vadd.f32 %v6175, %v9249
        %v9266 = vadd.f32 %v6176, %v9250
        %v9267 = vadd.f32 %v6177, %v9251
        %v9268 = vadd.f32 %v6178, %v9252
        %v9269 = vadd.f32 %v6179, %v9253
        %v9270 = vadd.f32 %v6180, %v9254
        %v9271 = vadd.f32 %v6181, %v9255
        %v9272 = vadd.f32 %v6182, %v9256
        %s9273 = scalar_lea.vmem %s10, 1
        %v9274 = vld [vmem:[%s9273] sm:$0x1]
        %v9276 = vlaneseq
        %v9277 = vshrl.u32 %v9276, 7
        %v9278 = vsub.s32 0, %v9277
        %v9279 = vrot.slane %v9274, %v9278
        %v9281 = vadd.f32 %v9257, %v9279
        %v9282 = vadd.f32 %v9258, %v9279
        %v9283 = vadd.f32 %v9259, %v9279
        %v9284 = vadd.f32 %v9260, %v9279
        %v9285 = vadd.f32 %v9261, %v9279
        %v9286 = vadd.f32 %v9262, %v9279
        %v9287 = vadd.f32 %v9263, %v9279
        %v9288 = vadd.f32 %v9264, %v9279
        %v9289 = vadd.f32 %v9265, %v9279
        %v9290 = vadd.f32 %v9266, %v9279
        %v9291 = vadd.f32 %v9267, %v9279
        %v9292 = vadd.f32 %v9268, %v9279
        %v9293 = vadd.f32 %v9269, %v9279
        %v9294 = vadd.f32 %v9270, %v9279
        %v9295 = vadd.f32 %v9271, %v9279
        %v9296 = vadd.f32 %v9272, %v9279
        %s9297 = scalar_lea.vmem %s11, 1
        %v9298 = vld [vmem:[%s9297] sm:$0x1]
        %s9299 = scalar_lea.vmem %s12, 1
        %v9300 = vld [vmem:[%s9299] sm:$0x1]
        %9301 = vadd.xlane.f32.xlu0 %v9281
        %v9302 = vpop.xlane.xlu0 %9301
        %9303 = vadd.xlane.f32.xlu0 %v9282
        %v9304 = vpop.xlane.xlu0 %9303
        %9305 = vadd.xlane.f32.xlu0 %v9283
        %v9306 = vpop.xlane.xlu0 %9305
        %9307 = vadd.xlane.f32.xlu0 %v9284
        %v9308 = vpop.xlane.xlu0 %9307
        %9309 = vadd.xlane.f32.xlu0 %v9285
        %v9310 = vpop.xlane.xlu0 %9309
        %9311 = vadd.xlane.f32.xlu0 %v9286
        %v9312 = vpop.xlane.xlu0 %9311
        %9313 = vadd.xlane.f32.xlu0 %v9287
        %v9314 = vpop.xlane.xlu0 %9313
        %9315 = vadd.xlane.f32.xlu0 %v9288
        %v9316 = vpop.xlane.xlu0 %9315
        %9317 = vadd.xlane.f32.xlu0 %v9289
        %v9318 = vpop.xlane.xlu0 %9317
        %9319 = vadd.xlane.f32.xlu0 %v9290
        %v9320 = vpop.xlane.xlu0 %9319
        %9321 = vadd.xlane.f32.xlu0 %v9291
        %v9322 = vpop.xlane.xlu0 %9321
        %9323 = vadd.xlane.f32.xlu0 %v9292
        %v9324 = vpop.xlane.xlu0 %9323
        %9325 = vadd.xlane.f32.xlu0 %v9293
        %v9326 = vpop.xlane.xlu0 %9325
        %9327 = vadd.xlane.f32.xlu0 %v9294
        %v9328 = vpop.xlane.xlu0 %9327
        %9329 = vadd.xlane.f32.xlu0 %v9295
        %v9330 = vpop.xlane.xlu0 %9329
        %9331 = vadd.xlane.f32.xlu0 %v9296
        %v9332 = vpop.xlane.xlu0 %9331
        %v9333 = vmul.f32 %v9302, %v1564
        %v9334 = vmul.f32 %v9304, %v1564
        %v9335 = vmul.f32 %v9306, %v1564
        %v9336 = vmul.f32 %v9308, %v1564
        %v9337 = vmul.f32 %v9310, %v1564
        %v9338 = vmul.f32 %v9312, %v1564
        %v9339 = vmul.f32 %v9314, %v1564
        %v9340 = vmul.f32 %v9316, %v1564
        %v9341 = vmul.f32 %v9318, %v1564
        %v9342 = vmul.f32 %v9320, %v1564
        %v9343 = vmul.f32 %v9322, %v1564
        %v9344 = vmul.f32 %v9324, %v1564
        %v9345 = vmul.f32 %v9326, %v1564
        %v9346 = vmul.f32 %v9328, %v1564
        %v9347 = vmul.f32 %v9330, %v1564
        %v9348 = vmul.f32 %v9332, %v1564
        %v9349 = vmul.f32 %v9281, %v9281
        %v9350 = vmul.f32 %v9282, %v9282
        %v9351 = vmul.f32 %v9283, %v9283
        %v9352 = vmul.f32 %v9284, %v9284
        %v9353 = vmul.f32 %v9285, %v9285
        %v9354 = vmul.f32 %v9286, %v9286
        %v9355 = vmul.f32 %v9287, %v9287
        %v9356 = vmul.f32 %v9288, %v9288
        %v9357 = vmul.f32 %v9289, %v9289
        %v9358 = vmul.f32 %v9290, %v9290
        %v9359 = vmul.f32 %v9291, %v9291
        %v9360 = vmul.f32 %v9292, %v9292
        %v9361 = vmul.f32 %v9293, %v9293
        %v9362 = vmul.f32 %v9294, %v9294
        %v9363 = vmul.f32 %v9295, %v9295
        %v9364 = vmul.f32 %v9296, %v9296
        %9365 = vadd.xlane.f32.xlu0 %v9349
        %v9366 = vpop.xlane.xlu0 %9365
        %9367 = vadd.xlane.f32.xlu0 %v9350
        %v9368 = vpop.xlane.xlu0 %9367
        %9369 = vadd.xlane.f32.xlu0 %v9351
        %v9370 = vpop.xlane.xlu0 %9369
        %9371 = vadd.xlane.f32.xlu0 %v9352
        %v9372 = vpop.xlane.xlu0 %9371
        %9373 = vadd.xlane.f32.xlu0 %v9353
        %v9374 = vpop.xlane.xlu0 %9373
        %9375 = vadd.xlane.f32.xlu0 %v9354
        %v9376 = vpop.xlane.xlu0 %9375
        %9377 = vadd.xlane.f32.xlu0 %v9355
        %v9378 = vpop.xlane.xlu0 %9377
        %9379 = vadd.xlane.f32.xlu0 %v9356
        %v9380 = vpop.xlane.xlu0 %9379
        %9381 = vadd.xlane.f32.xlu0 %v9357
        %v9382 = vpop.xlane.xlu0 %9381
        %9383 = vadd.xlane.f32.xlu0 %v9358
        %v9384 = vpop.xlane.xlu0 %9383
        %9385 = vadd.xlane.f32.xlu0 %v9359
        %v9386 = vpop.xlane.xlu0 %9385
        %9387 = vadd.xlane.f32.xlu0 %v9360
        %v9388 = vpop.xlane.xlu0 %9387
        %9389 = vadd.xlane.f32.xlu0 %v9361
        %v9390 = vpop.xlane.xlu0 %9389
        %9391 = vadd.xlane.f32.xlu0 %v9362
        %v9392 = vpop.xlane.xlu0 %9391
        %9393 = vadd.xlane.f32.xlu0 %v9363
        %v9394 = vpop.xlane.xlu0 %9393
        %9395 = vadd.xlane.f32.xlu0 %v9364
        %v9396 = vpop.xlane.xlu0 %9395
        %v9397 = vmul.f32 %v9366, %v1564
        %v9398 = vmul.f32 %v9368, %v1564
        %v9399 = vmul.f32 %v9370, %v1564
        %v9400 = vmul.f32 %v9372, %v1564
        %v9401 = vmul.f32 %v9374, %v1564
        %v9402 = vmul.f32 %v9376, %v1564
        %v9403 = vmul.f32 %v9378, %v1564
        %v9404 = vmul.f32 %v9380, %v1564
        %v9405 = vmul.f32 %v9382, %v1564
        %v9406 = vmul.f32 %v9384, %v1564
        %v9407 = vmul.f32 %v9386, %v1564
        %v9408 = vmul.f32 %v9388, %v1564
        %v9409 = vmul.f32 %v9390, %v1564
        %v9410 = vmul.f32 %v9392, %v1564
        %v9411 = vmul.f32 %v9394, %v1564
        %v9412 = vmul.f32 %v9396, %v1564
        %v9413 = vmul.f32 %v9333, %v9333
        %v9414 = vmul.f32 %v9334, %v9334
        %v9415 = vmul.f32 %v9335, %v9335
        %v9416 = vmul.f32 %v9336, %v9336
        %v9417 = vmul.f32 %v9337, %v9337
        %v9418 = vmul.f32 %v9338, %v9338
        %v9419 = vmul.f32 %v9339, %v9339
        %v9420 = vmul.f32 %v9340, %v9340
        %v9421 = vmul.f32 %v9341, %v9341
        %v9422 = vmul.f32 %v9342, %v9342
        %v9423 = vmul.f32 %v9343, %v9343
        %v9424 = vmul.f32 %v9344, %v9344
        %v9425 = vmul.f32 %v9345, %v9345
        %v9426 = vmul.f32 %v9346, %v9346
        %v9427 = vmul.f32 %v9347, %v9347
        %v9428 = vmul.f32 %v9348, %v9348
        %v9429 = vsub.f32 %v9397, %v9413
        %v9430 = vsub.f32 %v9398, %v9414
        %v9431 = vsub.f32 %v9399, %v9415
        %v9432 = vsub.f32 %v9400, %v9416
        %v9433 = vsub.f32 %v9401, %v9417
        %v9434 = vsub.f32 %v9402, %v9418
        %v9435 = vsub.f32 %v9403, %v9419
        %v9436 = vsub.f32 %v9404, %v9420
        %v9437 = vsub.f32 %v9405, %v9421
        %v9438 = vsub.f32 %v9406, %v9422
        %v9439 = vsub.f32 %v9407, %v9423
        %v9440 = vsub.f32 %v9408, %v9424
        %v9441 = vsub.f32 %v9409, %v9425
        %v9442 = vsub.f32 %v9410, %v9426
        %v9443 = vsub.f32 %v9411, %v9427
        %v9444 = vsub.f32 %v9412, %v9428
        %v9445 = vmax.f32 %v9429, 0.0
        %v9446 = vmax.f32 %v9430, 0.0
        %v9447 = vmax.f32 %v9431, 0.0
        %v9448 = vmax.f32 %v9432, 0.0
        %v9449 = vmax.f32 %v9433, 0.0
        %v9450 = vmax.f32 %v9434, 0.0
        %v9451 = vmax.f32 %v9435, 0.0
        %v9452 = vmax.f32 %v9436, 0.0
        %v9453 = vmax.f32 %v9437, 0.0
        %v9454 = vmax.f32 %v9438, 0.0
        %v9455 = vmax.f32 %v9439, 0.0
        %v9456 = vmax.f32 %v9440, 0.0
        %v9457 = vmax.f32 %v9441, 0.0
        %v9458 = vmax.f32 %v9442, 0.0
        %v9459 = vmax.f32 %v9443, 0.0
        %v9460 = vmax.f32 %v9444, 0.0
        %v9461 = vsub.f32 %v9281, %v9333
        %v9462 = vsub.f32 %v9282, %v9334
        %v9463 = vsub.f32 %v9283, %v9335
        %v9464 = vsub.f32 %v9284, %v9336
        %v9465 = vsub.f32 %v9285, %v9337
        %v9466 = vsub.f32 %v9286, %v9338
        %v9467 = vsub.f32 %v9287, %v9339
        %v9468 = vsub.f32 %v9288, %v9340
        %v9469 = vsub.f32 %v9289, %v9341
        %v9470 = vsub.f32 %v9290, %v9342
        %v9471 = vsub.f32 %v9291, %v9343
        %v9472 = vsub.f32 %v9292, %v9344
        %v9473 = vsub.f32 %v9293, %v9345
        %v9474 = vsub.f32 %v9294, %v9346
        %v9475 = vsub.f32 %v9295, %v9347
        %v9476 = vsub.f32 %v9296, %v9348
        %v9477 = vadd.f32 %v9445, 1e-06
        %v9478 = vadd.f32 %v9446, 1e-06
        %v9479 = vadd.f32 %v9447, 1e-06
        %v9480 = vadd.f32 %v9448, 1e-06
        %v9481 = vadd.f32 %v9449, 1e-06
        %v9482 = vadd.f32 %v9450, 1e-06
        %v9483 = vadd.f32 %v9451, 1e-06
        %v9484 = vadd.f32 %v9452, 1e-06
        %v9485 = vadd.f32 %v9453, 1e-06
        %v9486 = vadd.f32 %v9454, 1e-06
        %v9487 = vadd.f32 %v9455, 1e-06
        %v9488 = vadd.f32 %v9456, 1e-06
        %v9489 = vadd.f32 %v9457, 1e-06
        %v9490 = vadd.f32 %v9458, 1e-06
        %v9491 = vadd.f32 %v9459, 1e-06
        %v9492 = vadd.f32 %v9460, 1e-06
        %v9493 = vrsqrt.pop %v9477
        %v9494 = vrsqrt.pop %v9478
        %v9495 = vrsqrt.pop %v9479
        %v9496 = vrsqrt.pop %v9480
        %v9497 = vrsqrt.pop %v9481
        %v9498 = vrsqrt.pop %v9482
        %v9499 = vrsqrt.pop %v9483
        %v9500 = vrsqrt.pop %v9484
        %v9501 = vrsqrt.pop %v9485
        %v9502 = vrsqrt.pop %v9486
        %v9503 = vrsqrt.pop %v9487
        %v9504 = vrsqrt.pop %v9488
        %v9505 = vrsqrt.pop %v9489
        %v9506 = vrsqrt.pop %v9490
        %v9507 = vrsqrt.pop %v9491
        %v9508 = vrsqrt.pop %v9492
        %v9509 = vmul.f32 %v9461, %v9493
        %v9510 = vmul.f32 %v9462, %v9494
        %v9511 = vmul.f32 %v9463, %v9495
        %v9512 = vmul.f32 %v9464, %v9496
        %v9513 = vmul.f32 %v9465, %v9497
        %v9514 = vmul.f32 %v9466, %v9498
        %v9515 = vmul.f32 %v9467, %v9499
        %v9516 = vmul.f32 %v9468, %v9500
        %v9517 = vmul.f32 %v9469, %v9501
        %v9518 = vmul.f32 %v9470, %v9502
        %v9519 = vmul.f32 %v9471, %v9503
        %v9520 = vmul.f32 %v9472, %v9504
        %v9521 = vmul.f32 %v9473, %v9505
        %v9522 = vmul.f32 %v9474, %v9506
        %v9523 = vmul.f32 %v9475, %v9507
        %v9524 = vmul.f32 %v9476, %v9508
        %v9526 = vlaneseq
        %v9527 = vshrl.u32 %v9526, 7
        %v9528 = vsub.s32 0, %v9527
        %v9529 = vrot.slane %v9298, %v9528
        %v9531 = vmul.f32 %v9509, %v9529
        %v9532 = vmul.f32 %v9510, %v9529
        %v9533 = vmul.f32 %v9511, %v9529
        %v9534 = vmul.f32 %v9512, %v9529
        %v9535 = vmul.f32 %v9513, %v9529
        %v9536 = vmul.f32 %v9514, %v9529
        %v9537 = vmul.f32 %v9515, %v9529
        %v9538 = vmul.f32 %v9516, %v9529
        %v9539 = vmul.f32 %v9517, %v9529
        %v9540 = vmul.f32 %v9518, %v9529
        %v9541 = vmul.f32 %v9519, %v9529
        %v9542 = vmul.f32 %v9520, %v9529
        %v9543 = vmul.f32 %v9521, %v9529
        %v9544 = vmul.f32 %v9522, %v9529
        %v9545 = vmul.f32 %v9523, %v9529
        %v9546 = vmul.f32 %v9524, %v9529
        %v9548 = vlaneseq
        %v9549 = vshrl.u32 %v9548, 7
        %v9550 = vsub.s32 0, %v9549
        %v9551 = vrot.slane %v9300, %v9550
        %v9553 = vadd.f32 %v9531, %v9551
        %v9554 = vadd.f32 %v9532, %v9551
        %v9555 = vadd.f32 %v9533, %v9551
        %v9556 = vadd.f32 %v9534, %v9551
        %v9557 = vadd.f32 %v9535, %v9551
        %v9558 = vadd.f32 %v9536, %v9551
        %v9559 = vadd.f32 %v9537, %v9551
        %v9560 = vadd.f32 %v9538, %v9551
        %v9561 = vadd.f32 %v9539, %v9551
        %v9562 = vadd.f32 %v9540, %v9551
        %v9563 = vadd.f32 %v9541, %v9551
        %v9564 = vadd.f32 %v9542, %v9551
        %v9565 = vadd.f32 %v9543, %v9551
        %v9566 = vadd.f32 %v9544, %v9551
        %v9567 = vadd.f32 %v9545, %v9551
        %v9568 = vadd.f32 %v9546, %v9551
        %v9569 = vpack.c.bf16 %v9554, %v9553
        %v9570 = vpack.c.bf16 %v9556, %v9555
        %v9571 = vpack.c.bf16 %v9558, %v9557
        %v9572 = vpack.c.bf16 %v9560, %v9559
        %v9573 = vpack.c.bf16 %v9562, %v9561
        %v9574 = vpack.c.bf16 %v9564, %v9563
        %v9575 = vpack.c.bf16 %v9566, %v9565
        %v9576 = vpack.c.bf16 %v9568, %v9567
        %s9577 = scalar_lea.vmem %s13, 256
        %v9578 = vld [vmem:[%s9577] sm:$0xff]
        %v9579 = vld [vmem:[%s9577 + $0x8] sm:$0xff]
        %v9580 = vld [vmem:[%s9577 + $0x10] sm:$0xff]
        %v9581 = vld [vmem:[%s9577 + $0x18] sm:$0xff]
        %v9582 = vld [vmem:[%s9577 + $0x20] sm:$0xff]
        %v9583 = vld [vmem:[%s9577 + $0x28] sm:$0xff]
        %v9584 = vld [vmem:[%s9577 + $0x30] sm:$0xff]
        %v9585 = vld [vmem:[%s9577 + $0x38] sm:$0xff]
        %v9586 = vld [vmem:[%s9577 + $0x40] sm:$0xff]
        %v9587 = vld [vmem:[%s9577 + $0x48] sm:$0xff]
        %v9588 = vld [vmem:[%s9577 + $0x50] sm:$0xff]
        %v9589 = vld [vmem:[%s9577 + $0x58] sm:$0xff]
        %v9590 = vld [vmem:[%s9577 + $0x60] sm:$0xff]
        %v9591 = vld [vmem:[%s9577 + $0x68] sm:$0xff]
        %v9592 = vld [vmem:[%s9577 + $0x70] sm:$0xff]
        %v9593 = vld [vmem:[%s9577 + $0x78] sm:$0xff]
        %v9594 = vld [vmem:[%s9577 + $0x80] sm:$0xff]
        %v9595 = vld [vmem:[%s9577 + $0x88] sm:$0xff]
        %v9596 = vld [vmem:[%s9577 + $0x90] sm:$0xff]
        %v9597 = vld [vmem:[%s9577 + $0x98] sm:$0xff]
        %v9598 = vld [vmem:[%s9577 + $0xa0] sm:$0xff]
        %v9599 = vld [vmem:[%s9577 + $0xa8] sm:$0xff]
        %v9600 = vld [vmem:[%s9577 + $0xb0] sm:$0xff]
        %v9601 = vld [vmem:[%s9577 + $0xb8] sm:$0xff]
        %v9602 = vld [vmem:[%s9577 + $0xc0] sm:$0xff]
        %v9603 = vld [vmem:[%s9577 + $0xc8] sm:$0xff]
        %v9604 = vld [vmem:[%s9577 + $0xd0] sm:$0xff]
        %v9605 = vld [vmem:[%s9577 + $0xd8] sm:$0xff]
        %v9606 = vld [vmem:[%s9577 + $0xe0] sm:$0xff]
        %v9607 = vld [vmem:[%s9577 + $0xe8] sm:$0xff]
        %v9608 = vld [vmem:[%s9577 + $0xf0] sm:$0xff]
        %v9609 = vld [vmem:[%s9577 + $0xf8] sm:$0xff]
        %s9610 = scalar_lea.vmem %s14, 4
        %v9611 = vld [vmem:[%s9610] sm:$0xf]
        %v9613 = vlaneseq
        %v9614 = vshrl.u32 %v9613, 7
        %v9615 = vsub.s32 0, %v9614
        %v9616 = vrot.slane %v9611, %v9615
        %v9617 = vlaneseq
        %v9618 = vshrl.u32 %v9617, 7
        %v9619 = vsub.s32 1, %v9618
        %v9620 = vrot.slane %v9611, %v9619
        %v9621 = vlaneseq
        %v9622 = vshrl.u32 %v9621, 7
        %v9623 = vsub.s32 2, %v9622
        %v9624 = vrot.slane %v9611, %v9623
        %v9625 = vlaneseq
        %v9626 = vshrl.u32 %v9625, 7
        %v9627 = vsub.s32 3, %v9626
        %v9628 = vrot.slane %v9611, %v9627
        %v9665 = vunpack.c.l.b16 %v9578
        %v9666 = vunpack.c.h.b16 %v9578
        %v9667 = vunpack.c.l.b16 %v9579
        %v9668 = vunpack.c.h.b16 %v9579
        %v9669 = vunpack.c.l.b16 %v9580
        %v9670 = vunpack.c.h.b16 %v9580
        %v9671 = vunpack.c.l.b16 %v9581
        %v9672 = vunpack.c.h.b16 %v9581
        %v9673 = vunpack.c.l.b16 %v9582
        %v9674 = vunpack.c.h.b16 %v9582
        %v9675 = vunpack.c.l.b16 %v9583
        %v9676 = vunpack.c.h.b16 %v9583
        %v9677 = vunpack.c.l.b16 %v9584
        %v9678 = vunpack.c.h.b16 %v9584
        %v9679 = vunpack.c.l.b16 %v9585
        %v9680 = vunpack.c.h.b16 %v9585
        %v9681 = vunpack.c.l.b16 %v9586
        %v9682 = vunpack.c.h.b16 %v9586
        %v9683 = vunpack.c.l.b16 %v9587
        %v9684 = vunpack.c.h.b16 %v9587
        %v9685 = vunpack.c.l.b16 %v9588
        %v9686 = vunpack.c.h.b16 %v9588
        %v9687 = vunpack.c.l.b16 %v9589
        %v9688 = vunpack.c.h.b16 %v9589
        %v9689 = vunpack.c.l.b16 %v9590
        %v9690 = vunpack.c.h.b16 %v9590
        %v9691 = vunpack.c.l.b16 %v9591
        %v9692 = vunpack.c.h.b16 %v9591
        %v9693 = vunpack.c.l.b16 %v9592
        %v9694 = vunpack.c.h.b16 %v9592
        %v9695 = vunpack.c.l.b16 %v9593
        %v9696 = vunpack.c.h.b16 %v9593
        %v9697 = vunpack.c.l.b16 %v9594
        %v9698 = vunpack.c.h.b16 %v9594
        %v9699 = vunpack.c.l.b16 %v9595
        %v9700 = vunpack.c.h.b16 %v9595
        %v9701 = vunpack.c.l.b16 %v9596
        %v9702 = vunpack.c.h.b16 %v9596
        %v9703 = vunpack.c.l.b16 %v9597
        %v9704 = vunpack.c.h.b16 %v9597
        %v9705 = vunpack.c.l.b16 %v9598
        %v9706 = vunpack.c.h.b16 %v9598
        %v9707 = vunpack.c.l.b16 %v9599
        %v9708 = vunpack.c.h.b16 %v9599
        %v9709 = vunpack.c.l.b16 %v9600
        %v9710 = vunpack.c.h.b16 %v9600
        %v9711 = vunpack.c.l.b16 %v9601
        %v9712 = vunpack.c.h.b16 %v9601
        %v9713 = vunpack.c.l.b16 %v9602
        %v9714 = vunpack.c.h.b16 %v9602
        %v9715 = vunpack.c.l.b16 %v9603
        %v9716 = vunpack.c.h.b16 %v9603
        %v9717 = vunpack.c.l.b16 %v9604
        %v9718 = vunpack.c.h.b16 %v9604
        %v9719 = vunpack.c.l.b16 %v9605
        %v9720 = vunpack.c.h.b16 %v9605
        %v9721 = vunpack.c.l.b16 %v9606
        %v9722 = vunpack.c.h.b16 %v9606
        %v9723 = vunpack.c.l.b16 %v9607
        %v9724 = vunpack.c.h.b16 %v9607
        %v9725 = vunpack.c.l.b16 %v9608
        %v9726 = vunpack.c.h.b16 %v9608
        %v9727 = vunpack.c.l.b16 %v9609
        %v9728 = vunpack.c.h.b16 %v9609
        %v9729 = vpack.c.b16 %v9669, %v9665
        %v9730 = vpack.c.b16 %v9670, %v9666
        %v9731 = vpack.c.b16 %v9671, %v9667
        %v9732 = vpack.c.b16 %v9672, %v9668
        %v9733 = vpack.c.b16 %v9677, %v9673
        %v9734 = vpack.c.b16 %v9678, %v9674
        %v9735 = vpack.c.b16 %v9679, %v9675
        %v9736 = vpack.c.b16 %v9680, %v9676
        %v9737 = vpack.c.b16 %v9685, %v9681
        %v9738 = vpack.c.b16 %v9686, %v9682
        %v9739 = vpack.c.b16 %v9687, %v9683
        %v9740 = vpack.c.b16 %v9688, %v9684
        %v9741 = vpack.c.b16 %v9693, %v9689
        %v9742 = vpack.c.b16 %v9694, %v9690
        %v9743 = vpack.c.b16 %v9695, %v9691
        %v9744 = vpack.c.b16 %v9696, %v9692
        %v9745 = vpack.c.b16 %v9701, %v9697
        %v9746 = vpack.c.b16 %v9702, %v9698
        %v9747 = vpack.c.b16 %v9703, %v9699
        %v9748 = vpack.c.b16 %v9704, %v9700
        %v9749 = vpack.c.b16 %v9709, %v9705
        %v9750 = vpack.c.b16 %v9710, %v9706
        %v9751 = vpack.c.b16 %v9711, %v9707
        %v9752 = vpack.c.b16 %v9712, %v9708
        %v9753 = vpack.c.b16 %v9717, %v9713
        %v9754 = vpack.c.b16 %v9718, %v9714
        %v9755 = vpack.c.b16 %v9719, %v9715
        %v9756 = vpack.c.b16 %v9720, %v9716
        %v9757 = vpack.c.b16 %v9725, %v9721
        %v9758 = vpack.c.b16 %v9726, %v9722
        %v9759 = vpack.c.b16 %v9727, %v9723
        %v9760 = vpack.c.b16 %v9728, %v9724
        %9793 = vmatprep.subr.bf16.mxu0 %v9730
        %9794 = vmatpush1.bf16.msra.mxu0 %v9729
        %9795 = vmatprep.subr.bf16.mxu0 %v9734
        %9796 = vmatpush1.bf16.msra.mxu0 %v9733
        %9797 = vmatprep.subr.bf16.mxu0 %v9738
        %9798 = vmatpush1.bf16.msra.mxu0 %v9737
        %9799 = vmatprep.subr.bf16.mxu0 %v9742
        %9800 = vmatpush1.bf16.msra.mxu0 %v9741
        %9801 = vmatprep.subr.bf16.mxu0 %v9746
        %9802 = vmatpush1.bf16.msra.mxu0 %v9745
        %9803 = vmatprep.subr.bf16.mxu0 %v9750
        %9804 = vmatpush1.bf16.msra.mxu0 %v9749
        %9805 = vmatprep.subr.bf16.mxu0 %v9754
        %9806 = vmatpush1.bf16.msra.mxu0 %v9753
        %9807 = vmatprep.subr.bf16.mxu0 %v9758
        %9808 = vmatpush1.bf16.msra.mxu0 %v9757
        %9809 = vmatprep.subr.bf16.mxu0 0
        %9810 = vmatpush1.bf16.msra.mxu0 0
        %9811 = vmatprep.subr.bf16.mxu0 0
        %9812 = vmatpush1.bf16.msra.mxu0 0
        %9813 = vmatprep.subr.bf16.mxu0 0
        %9814 = vmatpush1.bf16.msra.mxu0 0
        %9815 = vmatprep.subr.bf16.mxu0 0
        %9816 = vmatpush1.bf16.msra.mxu0 0
        %9817 = vmatprep.subr.bf16.mxu0 0
        %9818 = vmatpush1.bf16.msra.mxu0 0
        %9819 = vmatprep.subr.bf16.mxu0 0
        %9820 = vmatpush1.bf16.msra.mxu0 0
        %9821 = vmatprep.subr.bf16.mxu0 0
        %9822 = vmatpush1.bf16.msra.mxu0 0
        %9823 = vmatprep.subr.bf16.mxu0 0
        %9824 = vmatpush1.bf16.msra.mxu0 0
        %9825 = vmatprep.mubr.bf16.mxu0 0
        %9826 = vmatmul.mubr.bf16.gmra.mrb[0].mxu0 %v9569
        %v9827 = vpop.f32.mrb[0].mxu0
        %v9828 = vadd.f32 %v9616, %v9827
        %v9829 = vpop.f32.mrb[0].mxu0
        %v9830 = vadd.f32 %v9620, %v9829
        %v9831 = vpop.f32.mrb[0].mxu0
        %v9832 = vadd.f32 %v9616, %v9831
        %v9833 = vpop.f32.mrb[0].mxu0
        %v9834 = vadd.f32 %v9620, %v9833
        %9835 = vmatprep.mubr.bf16.mxu0 0
        %9836 = vmatmul.mubr.bf16.gmra.mrb[0].mxu0 %v9570
        %v9837 = vpop.f32.mrb[0].mxu0
        %v9838 = vadd.f32 %v9616, %v9837
        %v9839 = vpop.f32.mrb[0].mxu0
        %v9840 = vadd.f32 %v9620, %v9839
        %v9841 = vpop.f32.mrb[0].mxu0
        %v9842 = vadd.f32 %v9616, %v9841
        %v9843 = vpop.f32.mrb[0].mxu0
        %v9844 = vadd.f32 %v9620, %v9843
        %9845 = vmatprep.mubr.bf16.mxu0 0
        %9846 = vmatmul.mubr.bf16.gmra.mrb[0].mxu0 %v9571
        %v9847 = vpop.f32.mrb[0].mxu0
        %v9848 = vadd.f32 %v9616, %v9847
        %v9849 = vpop.f32.mrb[0].mxu0
        %v9850 = vadd.f32 %v9620, %v9849
        %v9851 = vpop.f32.mrb[0].mxu0
        %v9852 = vadd.f32 %v9616, %v9851
        %v9853 = vpop.f32.mrb[0].mxu0
        %v9854 = vadd.f32 %v9620, %v9853
        %9855 = vmatprep.mubr.bf16.mxu0 0
        %9856 = vmatmul.mubr.bf16.gmra.mrb[0].mxu0 %v9572
        %v9857 = vpop.f32.mrb[0].mxu0
        %v9858 = vadd.f32 %v9616, %v9857
        %v9859 = vpop.f32.mrb[0].mxu0
        %v9860 = vadd.f32 %v9620, %v9859
        %v9861 = vpop.f32.mrb[0].mxu0
        %v9862 = vadd.f32 %v9616, %v9861
        %v9863 = vpop.f32.mrb[0].mxu0
        %v9864 = vadd.f32 %v9620, %v9863
        %9865 = vmatprep.mubr.bf16.mxu0 0
        %9866 = vmatmul.mubr.bf16.gmra.mrb[0].mxu0 %v9573
        %v9867 = vpop.f32.mrb[0].mxu0
        %v9868 = vadd.f32 %v9616, %v9867
        %v9869 = vpop.f32.mrb[0].mxu0
        %v9870 = vadd.f32 %v9620, %v9869
        %v9871 = vpop.f32.mrb[0].mxu0
        %v9872 = vadd.f32 %v9616, %v9871
        %v9873 = vpop.f32.mrb[0].mxu0
        %v9874 = vadd.f32 %v9620, %v9873
        %9875 = vmatprep.mubr.bf16.mxu0 0
        %9876 = vmatmul.mubr.bf16.gmra.mrb[0].mxu0 %v9574
        %v9877 = vpop.f32.mrb[0].mxu0
        %v9878 = vadd.f32 %v9616, %v9877
        %v9879 = vpop.f32.mrb[0].mxu0
        %v9880 = vadd.f32 %v9620, %v9879
        %v9881 = vpop.f32.mrb[0].mxu0
        %v9882 = vadd.f32 %v9616, %v9881
        %v9883 = vpop.f32.mrb[0].mxu0
        %v9884 = vadd.f32 %v9620, %v9883
        %9885 = vmatprep.mubr.bf16.mxu0 0
        %9886 = vmatmul.mubr.bf16.gmra.mrb[0].mxu0 %v9575
        %v9887 = vpop.f32.mrb[0].mxu0
        %v9888 = vadd.f32 %v9616, %v9887
        %v9889 = vpop.f32.mrb[0].mxu0
        %v9890 = vadd.f32 %v9620, %v9889
        %v9891 = vpop.f32.mrb[0].mxu0
        %v9892 = vadd.f32 %v9616, %v9891
        %v9893 = vpop.f32.mrb[0].mxu0
        %v9894 = vadd.f32 %v9620, %v9893
        %9895 = vmatprep.mubr.bf16.mxu0 0
        %9896 = vmatmul.mubr.bf16.gmra.mrb[0].mxu0 %v9576
        %v9897 = vpop.f32.mrb[0].mxu0
        %v9898 = vadd.f32 %v9616, %v9897
        %v9899 = vpop.f32.mrb[0].mxu0
        %v9900 = vadd.f32 %v9620, %v9899
        %v9901 = vpop.f32.mrb[0].mxu0
        %v9902 = vadd.f32 %v9616, %v9901
        %v9903 = vpop.f32.mrb[0].mxu0
        %v9904 = vadd.f32 %v9620, %v9903
        %9905 = vdwg.mxu0
        %9906 = vmatprep.subr.bf16.mxu0 %v9732
        %9907 = vmatpush1.bf16.msra.mxu0 %v9731
        %9908 = vmatprep.subr.bf16.mxu0 %v9736
        %9909 = vmatpush1.bf16.msra.mxu0 %v9735
        %9910 = vmatprep.subr.bf16.mxu0 %v9740
        %9911 = vmatpush1.bf16.msra.mxu0 %v9739
        %9912 = vmatprep.subr.bf16.mxu0 %v9744
        %9913 = vmatpush1.bf16.msra.mxu0 %v9743
        %9914 = vmatprep.subr.bf16.mxu0 %v9748
        %9915 = vmatpush1.bf16.msra.mxu0 %v9747
        %9916 = vmatprep.subr.bf16.mxu0 %v9752
        %9917 = vmatpush1.bf16.msra.mxu0 %v9751
        %9918 = vmatprep.subr.bf16.mxu0 %v9756
        %9919 = vmatpush1.bf16.msra.mxu0 %v9755
        %9920 = vmatprep.subr.bf16.mxu0 %v9760
        %9921 = vmatpush1.bf16.msra.mxu0 %v9759
        %9922 = vmatprep.subr.bf16.mxu0 0
        %9923 = vmatpush1.bf16.msra.mxu0 0
        %9924 = vmatprep.subr.bf16.mxu0 0
        %9925 = vmatpush1.bf16.msra.mxu0 0
        %9926 = vmatprep.subr.bf16.mxu0 0
        %9927 = vmatpush1.bf16.msra.mxu0 0
        %9928 = vmatprep.subr.bf16.mxu0 0
        %9929 = vmatpush1.bf16.msra.mxu0 0
        %9930 = vmatprep.subr.bf16.mxu0 0
        %9931 = vmatpush1.bf16.msra.mxu0 0
        %9932 = vmatprep.subr.bf16.mxu0 0
        %9933 = vmatpush1.bf16.msra.mxu0 0
        %9934 = vmatprep.subr.bf16.mxu0 0
        %9935 = vmatpush1.bf16.msra.mxu0 0
        %9936 = vmatprep.subr.bf16.mxu0 0
        %9937 = vmatpush1.bf16.msra.mxu0 0
        %9938 = vmatprep.mubr.bf16.mxu0 0
        %9939 = vmatmul.mubr.bf16.gmra.mrb[0].mxu0 %v9569
        %v9940 = vpop.f32.mrb[0].mxu0
        %v9941 = vadd.f32 %v9624, %v9940
        %v9942 = vpop.f32.mrb[0].mxu0
        %v9943 = vadd.f32 %v9628, %v9942
        %v9944 = vpop.f32.mrb[0].mxu0
        %v9945 = vadd.f32 %v9624, %v9944
        %v9946 = vpop.f32.mrb[0].mxu0
        %v9947 = vadd.f32 %v9628, %v9946
        %9948 = vmatprep.mubr.bf16.mxu0 0
        %9949 = vmatmul.mubr.bf16.gmra.mrb[0].mxu0 %v9570
        %v9950 = vpop.f32.mrb[0].mxu0
        %v9951 = vadd.f32 %v9624, %v9950
        %v9952 = vpop.f32.mrb[0].mxu0
        %v9953 = vadd.f32 %v9628, %v9952
        %v9954 = vpop.f32.mrb[0].mxu0
        %v9955 = vadd.f32 %v9624, %v9954
        %v9956 = vpop.f32.mrb[0].mxu0
        %v9957 = vadd.f32 %v9628, %v9956
        %9958 = vmatprep.mubr.bf16.mxu0 0
        %9959 = vmatmul.mubr.bf16.gmra.mrb[0].mxu0 %v9571
        %v9960 = vpop.f32.mrb[0].mxu0
        %v9961 = vadd.f32 %v9624, %v9960
        %v9962 = vpop.f32.mrb[0].mxu0
        %v9963 = vadd.f32 %v9628, %v9962
        %v9964 = vpop.f32.mrb[0].mxu0
        %v9965 = vadd.f32 %v9624, %v9964
        %v9966 = vpop.f32.mrb[0].mxu0
        %v9967 = vadd.f32 %v9628, %v9966
        %9968 = vmatprep.mubr.bf16.mxu0 0
        %9969 = vmatmul.mubr.bf16.gmra.mrb[0].mxu0 %v9572
        %v9970 = vpop.f32.mrb[0].mxu0
        %v9971 = vadd.f32 %v9624, %v9970
        %v9972 = vpop.f32.mrb[0].mxu0
        %v9973 = vadd.f32 %v9628, %v9972
        %v9974 = vpop.f32.mrb[0].mxu0
        %v9975 = vadd.f32 %v9624, %v9974
        %v9976 = vpop.f32.mrb[0].mxu0
        %v9977 = vadd.f32 %v9628, %v9976
        %9978 = vmatprep.mubr.bf16.mxu0 0
        %9979 = vmatmul.mubr.bf16.gmra.mrb[0].mxu0 %v9573
        %v9980 = vpop.f32.mrb[0].mxu0
        %v9981 = vadd.f32 %v9624, %v9980
        %v9982 = vpop.f32.mrb[0].mxu0
        %v9983 = vadd.f32 %v9628, %v9982
        %v9984 = vpop.f32.mrb[0].mxu0
        %v9985 = vadd.f32 %v9624, %v9984
        %v9986 = vpop.f32.mrb[0].mxu0
        %v9987 = vadd.f32 %v9628, %v9986
        %9988 = vmatprep.mubr.bf16.mxu0 0
        %9989 = vmatmul.mubr.bf16.gmra.mrb[0].mxu0 %v9574
        %v9990 = vpop.f32.mrb[0].mxu0
        %v9991 = vadd.f32 %v9624, %v9990
        %v9992 = vpop.f32.mrb[0].mxu0
        %v9993 = vadd.f32 %v9628, %v9992
        %v9994 = vpop.f32.mrb[0].mxu0
        %v9995 = vadd.f32 %v9624, %v9994
        %v9996 = vpop.f32.mrb[0].mxu0
        %v9997 = vadd.f32 %v9628, %v9996
        %9998 = vmatprep.mubr.bf16.mxu0 0
        %9999 = vmatmul.mubr.bf16.gmra.mrb[0].mxu0 %v9575
        %v10000 = vpop.f32.mrb[0].mxu0
        %v10001 = vadd.f32 %v9624, %v10000
        %v10002 = vpop.f32.mrb[0].mxu0
        %v10003 = vadd.f32 %v9628, %v10002
        %v10004 = vpop.f32.mrb[0].mxu0
        %v10005 = vadd.f32 %v9624, %v10004
        %v10006 = vpop.f32.mrb[0].mxu0
        %v10007 = vadd.f32 %v9628, %v10006
        %10008 = vmatprep.mubr.bf16.mxu0 0
        %10009 = vmatmul.mubr.bf16.gmra.mrb[0].mxu0 %v9576
        %v10010 = vpop.f32.mrb[0].mxu0
        %v10011 = vadd.f32 %v9624, %v10010
        %v10012 = vpop.f32.mrb[0].mxu0
        %v10013 = vadd.f32 %v9628, %v10012
        %v10014 = vpop.f32.mrb[0].mxu0
        %v10015 = vadd.f32 %v9624, %v10014
        %v10016 = vpop.f32.mrb[0].mxu0
        %v10017 = vadd.f32 %v9628, %v10016
        %10018 = vdwg.mxu0
        %v10019 = vmul.f32 %v9828, 0.5
        %v10020 = vmul.f32 %v9830, 0.5
        %v10021 = vmul.f32 %v9941, 0.5
        %v10022 = vmul.f32 %v9943, 0.5
        %v10023 = vmul.f32 %v9832, 0.5
        %v10024 = vmul.f32 %v9834, 0.5
        %v10025 = vmul.f32 %v9945, 0.5
        %v10026 = vmul.f32 %v9947, 0.5
        %v10027 = vmul.f32 %v9838, 0.5
        %v10028 = vmul.f32 %v9840, 0.5
        %v10029 = vmul.f32 %v9951, 0.5
        %v10030 = vmul.f32 %v9953, 0.5
        %v10031 = vmul.f32 %v9842, 0.5
        %v10032 = vmul.f32 %v9844, 0.5
        %v10033 = vmul.f32 %v9955, 0.5
        %v10034 = vmul.f32 %v9957, 0.5
        %v10035 = vmul.f32 %v9848, 0.5
        %v10036 = vmul.f32 %v9850, 0.5
        %v10037 = vmul.f32 %v9961, 0.5
        %v10038 = vmul.f32 %v9963, 0.5
        %v10039 = vmul.f32 %v9852, 0.5
        %v10040 = vmul.f32 %v9854, 0.5
        %v10041 = vmul.f32 %v9965, 0.5
        %v10042 = vmul.f32 %v9967, 0.5
        %v10043 = vmul.f32 %v9858, 0.5
        %v10044 = vmul.f32 %v9860, 0.5
        %v10045 = vmul.f32 %v9971, 0.5
        %v10046 = vmul.f32 %v9973, 0.5
        %v10047 = vmul.f32 %v9862, 0.5
        %v10048 = vmul.f32 %v9864, 0.5
        %v10049 = vmul.f32 %v9975, 0.5
        %v10050 = vmul.f32 %v9977, 0.5
        %v10051 = vmul.f32 %v9868, 0.5
        %v10052 = vmul.f32 %v9870, 0.5
        %v10053 = vmul.f32 %v9981, 0.5
        %v10054 = vmul.f32 %v9983, 0.5
        %v10055 = vmul.f32 %v9872, 0.5
        %v10056 = vmul.f32 %v9874, 0.5
        %v10057 = vmul.f32 %v9985, 0.5
        %v10058 = vmul.f32 %v9987, 0.5
        %v10059 = vmul.f32 %v9878, 0.5
        %v10060 = vmul.f32 %v9880, 0.5
        %v10061 = vmul.f32 %v9991, 0.5
        %v10062 = vmul.f32 %v9993, 0.5
        %v10063 = vmul.f32 %v9882, 0.5
        %v10064 = vmul.f32 %v9884, 0.5
        %v10065 = vmul.f32 %v9995, 0.5
        %v10066 = vmul.f32 %v9997, 0.5
        %v10067 = vmul.f32 %v9888, 0.5
        %v10068 = vmul.f32 %v9890, 0.5
        %v10069 = vmul.f32 %v10001, 0.5
        %v10070 = vmul.f32 %v10003, 0.5
        %v10071 = vmul.f32 %v9892, 0.5
        %v10072 = vmul.f32 %v9894, 0.5
        %v10073 = vmul.f32 %v10005, 0.5
        %v10074 = vmul.f32 %v10007, 0.5
        %v10075 = vmul.f32 %v9898, 0.5
        %v10076 = vmul.f32 %v9900, 0.5
        %v10077 = vmul.f32 %v10011, 0.5
        %v10078 = vmul.f32 %v10013, 0.5
        %v10079 = vmul.f32 %v9902, 0.5
        %v10080 = vmul.f32 %v9904, 0.5
        %v10081 = vmul.f32 %v10015, 0.5
        %v10082 = vmul.f32 %v10017, 0.5
        %v10083 = vmul.f32 %v9828, 0.70710677
        %v10084 = vmul.f32 %v9830, 0.70710677
        %v10085 = vmul.f32 %v9941, 0.70710677
        %v10086 = vmul.f32 %v9943, 0.70710677
        %v10087 = vmul.f32 %v9832, 0.70710677
        %v10088 = vmul.f32 %v9834, 0.70710677
        %v10089 = vmul.f32 %v9945, 0.70710677
        %v10090 = vmul.f32 %v9947, 0.70710677
        %v10091 = vmul.f32 %v9838, 0.70710677
        %v10092 = vmul.f32 %v9840, 0.70710677
        %v10093 = vmul.f32 %v9951, 0.70710677
        %v10094 = vmul.f32 %v9953, 0.70710677
        %v10095 = vmul.f32 %v9842, 0.70710677
        %v10096 = vmul.f32 %v9844, 0.70710677
        %v10097 = vmul.f32 %v9955, 0.70710677
        %v10098 = vmul.f32 %v9957, 0.70710677
        %v10099 = vmul.f32 %v9848, 0.70710677
        %v10100 = vmul.f32 %v9850, 0.70710677
        %v10101 = vmul.f32 %v9961, 0.70710677
        %v10102 = vmul.f32 %v9963, 0.70710677
        %v10103 = vmul.f32 %v9852, 0.70710677
        %v10104 = vmul.f32 %v9854, 0.70710677
        %v10105 = vmul.f32 %v9965, 0.70710677
        %v10106 = vmul.f32 %v9967, 0.70710677
        %v10107 = vmul.f32 %v9858, 0.70710677
        %v10108 = vmul.f32 %v9860, 0.70710677
        %v10109 = vmul.f32 %v9971, 0.70710677
        %v10110 = vmul.f32 %v9973, 0.70710677
        %v10111 = vmul.f32 %v9862, 0.70710677
        %v10112 = vmul.f32 %v9864, 0.70710677
        %v10113 = vmul.f32 %v9975, 0.70710677
        %v10114 = vmul.f32 %v9977, 0.70710677
        %v10115 = vmul.f32 %v9868, 0.70710677
        %v10116 = vmul.f32 %v9870, 0.70710677
        %v10117 = vmul.f32 %v9981, 0.70710677
        %v10118 = vmul.f32 %v9983, 0.70710677
        %v10119 = vmul.f32 %v9872, 0.70710677
        %v10120 = vmul.f32 %v9874, 0.70710677
        %v10121 = vmul.f32 %v9985, 0.70710677
        %v10122 = vmul.f32 %v9987, 0.70710677
        %v10123 = vmul.f32 %v9878, 0.70710677
        %v10124 = vmul.f32 %v9880, 0.70710677
        %v10125 = vmul.f32 %v9991, 0.70710677
        %v10126 = vmul.f32 %v9993, 0.70710677
        %v10127 = vmul.f32 %v9882, 0.70710677
        %v10128 = vmul.f32 %v9884, 0.70710677
        %v10129 = vmul.f32 %v9995, 0.70710677
        %v10130 = vmul.f32 %v9997, 0.70710677
        %v10131 = vmul.f32 %v9888, 0.70710677
        %v10132 = vmul.f32 %v9890, 0.70710677
        %v10133 = vmul.f32 %v10001, 0.70710677
        %v10134 = vmul.f32 %v10003, 0.70710677
        %v10135 = vmul.f32 %v9892, 0.70710677
        %v10136 = vmul.f32 %v9894, 0.70710677
        %v10137 = vmul.f32 %v10005, 0.70710677
        %v10138 = vmul.f32 %v10007, 0.70710677
        %v10139 = vmul.f32 %v9898, 0.70710677
        %v10140 = vmul.f32 %v9900, 0.70710677
        %v10141 = vmul.f32 %v10011, 0.70710677
        %v10142 = vmul.f32 %v10013, 0.70710677
        %v10143 = vmul.f32 %v9902, 0.70710677
        %v10144 = vmul.f32 %v9904, 0.70710677
        %v10145 = vmul.f32 %v10015, 0.70710677
        %v10146 = vmul.f32 %v10017, 0.70710677
        %v10147 = verf.f32.pop %v10083
        %v10148 = verf.f32.pop %v10084
        %v10149 = verf.f32.pop %v10085
        %v10150 = verf.f32.pop %v10086
        %v10151 = verf.f32.pop %v10087
        %v10152 = verf.f32.pop %v10088
        %v10153 = verf.f32.pop %v10089
        %v10154 = verf.f32.pop %v10090
        %v10155 = verf.f32.pop %v10091
        %v10156 = verf.f32.pop %v10092
        %v10157 = verf.f32.pop %v10093
        %v10158 = verf.f32.pop %v10094
        %v10159 = verf.f32.pop %v10095
        %v10160 = verf.f32.pop %v10096
        %v10161 = verf.f32.pop %v10097
        %v10162 = verf.f32.pop %v10098
        %v10163 = verf.f32.pop %v10099
        %v10164 = verf.f32.pop %v10100
        %v10165 = verf.f32.pop %v10101
        %v10166 = verf.f32.pop %v10102
        %v10167 = verf.f32.pop %v10103
        %v10168 = verf.f32.pop %v10104
        %v10169 = verf.f32.pop %v10105
        %v10170 = verf.f32.pop %v10106
        %v10171 = verf.f32.pop %v10107
        %v10172 = verf.f32.pop %v10108
        %v10173 = verf.f32.pop %v10109
        %v10174 = verf.f32.pop %v10110
        %v10175 = verf.f32.pop %v10111
        %v10176 = verf.f32.pop %v10112
        %v10177 = verf.f32.pop %v10113
        %v10178 = verf.f32.pop %v10114
        %v10179 = verf.f32.pop %v10115
        %v10180 = verf.f32.pop %v10116
        %v10181 = verf.f32.pop %v10117
        %v10182 = verf.f32.pop %v10118
        %v10183 = verf.f32.pop %v10119
        %v10184 = verf.f32.pop %v10120
        %v10185 = verf.f32.pop %v10121
        %v10186 = verf.f32.pop %v10122
        %v10187 = verf.f32.pop %v10123
        %v10188 = verf.f32.pop %v10124
        %v10189 = verf.f32.pop %v10125
        %v10190 = verf.f32.pop %v10126
        %v10191 = verf.f32.pop %v10127
        %v10192 = verf.f32.pop %v10128
        %v10193 = verf.f32.pop %v10129
        %v10194 = verf.f32.pop %v10130
        %v10195 = verf.f32.pop %v10131
        %v10196 = verf.f32.pop %v10132
        %v10197 = verf.f32.pop %v10133
        %v10198 = verf.f32.pop %v10134
        %v10199 = verf.f32.pop %v10135
        %v10200 = verf.f32.pop %v10136
        %v10201 = verf.f32.pop %v10137
        %v10202 = verf.f32.pop %v10138
        %v10203 = verf.f32.pop %v10139
        %v10204 = verf.f32.pop %v10140
        %v10205 = verf.f32.pop %v10141
        %v10206 = verf.f32.pop %v10142
        %v10207 = verf.f32.pop %v10143
        %v10208 = verf.f32.pop %v10144
        %v10209 = verf.f32.pop %v10145
        %v10210 = verf.f32.pop %v10146
        %v10211 = vadd.f32 %v10147, 1.0
        %v10212 = vadd.f32 %v10148, 1.0
        %v10213 = vadd.f32 %v10149, 1.0
        %v10214 = vadd.f32 %v10150, 1.0
        %v10215 = vadd.f32 %v10151, 1.0
        %v10216 = vadd.f32 %v10152, 1.0
        %v10217 = vadd.f32 %v10153, 1.0
        %v10218 = vadd.f32 %v10154, 1.0
        %v10219 = vadd.f32 %v10155, 1.0
        %v10220 = vadd.f32 %v10156, 1.0
        %v10221 = vadd.f32 %v10157, 1.0
        %v10222 = vadd.f32 %v10158, 1.0
        %v10223 = vadd.f32 %v10159, 1.0
        %v10224 = vadd.f32 %v10160, 1.0
        %v10225 = vadd.f32 %v10161, 1.0
        %v10226 = vadd.f32 %v10162, 1.0
        %v10227 = vadd.f32 %v10163, 1.0
        %v10228 = vadd.f32 %v10164, 1.0
        %v10229 = vadd.f32 %v10165, 1.0
        %v10230 = vadd.f32 %v10166, 1.0
        %v10231 = vadd.f32 %v10167, 1.0
        %v10232 = vadd.f32 %v10168, 1.0
        %v10233 = vadd.f32 %v10169, 1.0
        %v10234 = vadd.f32 %v10170, 1.0
        %v10235 = vadd.f32 %v10171, 1.0
        %v10236 = vadd.f32 %v10172, 1.0
        %v10237 = vadd.f32 %v10173, 1.0
        %v10238 = vadd.f32 %v10174, 1.0
        %v10239 = vadd.f32 %v10175, 1.0
        %v10240 = vadd.f32 %v10176, 1.0
        %v10241 = vadd.f32 %v10177, 1.0
        %v10242 = vadd.f32 %v10178, 1.0
        %v10243 = vadd.f32 %v10179, 1.0
        %v10244 = vadd.f32 %v10180, 1.0
        %v10245 = vadd.f32 %v10181, 1.0
        %v10246 = vadd.f32 %v10182, 1.0
        %v10247 = vadd.f32 %v10183, 1.0
        %v10248 = vadd.f32 %v10184, 1.0
        %v10249 = vadd.f32 %v10185, 1.0
        %v10250 = vadd.f32 %v10186, 1.0
        %v10251 = vadd.f32 %v10187, 1.0
        %v10252 = vadd.f32 %v10188, 1.0
        %v10253 = vadd.f32 %v10189, 1.0
        %v10254 = vadd.f32 %v10190, 1.0
        %v10255 = vadd.f32 %v10191, 1.0
        %v10256 = vadd.f32 %v10192, 1.0
        %v10257 = vadd.f32 %v10193, 1.0
        %v10258 = vadd.f32 %v10194, 1.0
        %v10259 = vadd.f32 %v10195, 1.0
        %v10260 = vadd.f32 %v10196, 1.0
        %v10261 = vadd.f32 %v10197, 1.0
        %v10262 = vadd.f32 %v10198, 1.0
        %v10263 = vadd.f32 %v10199, 1.0
        %v10264 = vadd.f32 %v10200, 1.0
        %v10265 = vadd.f32 %v10201, 1.0
        %v10266 = vadd.f32 %v10202, 1.0
        %v10267 = vadd.f32 %v10203, 1.0
        %v10268 = vadd.f32 %v10204, 1.0
        %v10269 = vadd.f32 %v10205, 1.0
        %v10270 = vadd.f32 %v10206, 1.0
        %v10271 = vadd.f32 %v10207, 1.0
        %v10272 = vadd.f32 %v10208, 1.0
        %v10273 = vadd.f32 %v10209, 1.0
        %v10274 = vadd.f32 %v10210, 1.0
        %v10275 = vmul.f32 %v10019, %v10211
        %v10276 = vmul.f32 %v10020, %v10212
        %v10277 = vmul.f32 %v10021, %v10213
        %v10278 = vmul.f32 %v10022, %v10214
        %v10279 = vmul.f32 %v10023, %v10215
        %v10280 = vmul.f32 %v10024, %v10216
        %v10281 = vmul.f32 %v10025, %v10217
        %v10282 = vmul.f32 %v10026, %v10218
        %v10283 = vmul.f32 %v10027, %v10219
        %v10284 = vmul.f32 %v10028, %v10220
        %v10285 = vmul.f32 %v10029, %v10221
        %v10286 = vmul.f32 %v10030, %v10222
        %v10287 = vmul.f32 %v10031, %v10223
        %v10288 = vmul.f32 %v10032, %v10224
        %v10289 = vmul.f32 %v10033, %v10225
        %v10290 = vmul.f32 %v10034, %v10226
        %v10291 = vmul.f32 %v10035, %v10227
        %v10292 = vmul.f32 %v10036, %v10228
        %v10293 = vmul.f32 %v10037, %v10229
        %v10294 = vmul.f32 %v10038, %v10230
        %v10295 = vmul.f32 %v10039, %v10231
        %v10296 = vmul.f32 %v10040, %v10232
        %v10297 = vmul.f32 %v10041, %v10233
        %v10298 = vmul.f32 %v10042, %v10234
        %v10299 = vmul.f32 %v10043, %v10235
        %v10300 = vmul.f32 %v10044, %v10236
        %v10301 = vmul.f32 %v10045, %v10237
        %v10302 = vmul.f32 %v10046, %v10238
        %v10303 = vmul.f32 %v10047, %v10239
        %v10304 = vmul.f32 %v10048, %v10240
        %v10305 = vmul.f32 %v10049, %v10241
        %v10306 = vmul.f32 %v10050, %v10242
        %v10307 = vmul.f32 %v10051, %v10243
        %v10308 = vmul.f32 %v10052, %v10244
        %v10309 = vmul.f32 %v10053, %v10245
        %v10310 = vmul.f32 %v10054, %v10246
        %v10311 = vmul.f32 %v10055, %v10247
        %v10312 = vmul.f32 %v10056, %v10248
        %v10313 = vmul.f32 %v10057, %v10249
        %v10314 = vmul.f32 %v10058, %v10250
        %v10315 = vmul.f32 %v10059, %v10251
        %v10316 = vmul.f32 %v10060, %v10252
        %v10317 = vmul.f32 %v10061, %v10253
        %v10318 = vmul.f32 %v10062, %v10254
        %v10319 = vmul.f32 %v10063, %v10255
        %v10320 = vmul.f32 %v10064, %v10256
        %v10321 = vmul.f32 %v10065, %v10257
        %v10322 = vmul.f32 %v10066, %v10258
        %v10323 = vmul.f32 %v10067, %v10259
        %v10324 = vmul.f32 %v10068, %v10260
        %v10325 = vmul.f32 %v10069, %v10261
        %v10326 = vmul.f32 %v10070, %v10262
        %v10327 = vmul.f32 %v10071, %v10263
        %v10328 = vmul.f32 %v10072, %v10264
        %v10329 = vmul.f32 %v10073, %v10265
        %v10330 = vmul.f32 %v10074, %v10266
        %v10331 = vmul.f32 %v10075, %v10267
        %v10332 = vmul.f32 %v10076, %v10268
        %v10333 = vmul.f32 %v10077, %v10269
        %v10334 = vmul.f32 %v10078, %v10270
        %v10335 = vmul.f32 %v10079, %v10271
        %v10336 = vmul.f32 %v10080, %v10272
        %v10337 = vmul.f32 %v10081, %v10273
        %v10338 = vmul.f32 %v10082, %v10274
        %v10339 = vpack.c.bf16 %v10279, %v10275
        %v10340 = vpack.c.bf16 %v10280, %v10276
        %v10341 = vpack.c.bf16 %v10281, %v10277
        %v10342 = vpack.c.bf16 %v10282, %v10278
        %v10343 = vpack.c.bf16 %v10287, %v10283
        %v10344 = vpack.c.bf16 %v10288, %v10284
        %v10345 = vpack.c.bf16 %v10289, %v10285
        %v10346 = vpack.c.bf16 %v10290, %v10286
        %v10347 = vpack.c.bf16 %v10295, %v10291
        %v10348 = vpack.c.bf16 %v10296, %v10292
        %v10349 = vpack.c.bf16 %v10297, %v10293
        %v10350 = vpack.c.bf16 %v10298, %v10294
        %v10351 = vpack.c.bf16 %v10303, %v10299
        %v10352 = vpack.c.bf16 %v10304, %v10300
        %v10353 = vpack.c.bf16 %v10305, %v10301
        %v10354 = vpack.c.bf16 %v10306, %v10302
        %v10355 = vpack.c.bf16 %v10311, %v10307
        %v10356 = vpack.c.bf16 %v10312, %v10308
        %v10357 = vpack.c.bf16 %v10313, %v10309
        %v10358 = vpack.c.bf16 %v10314, %v10310
        %v10359 = vpack.c.bf16 %v10319, %v10315
        %v10360 = vpack.c.bf16 %v10320, %v10316
        %v10361 = vpack.c.bf16 %v10321, %v10317
        %v10362 = vpack.c.bf16 %v10322, %v10318
        %v10363 = vpack.c.bf16 %v10327, %v10323
        %v10364 = vpack.c.bf16 %v10328, %v10324
        %v10365 = vpack.c.bf16 %v10329, %v10325
        %v10366 = vpack.c.bf16 %v10330, %v10326
        %v10367 = vpack.c.bf16 %v10335, %v10331
        %v10368 = vpack.c.bf16 %v10336, %v10332
        %v10369 = vpack.c.bf16 %v10337, %v10333
        %v10370 = vpack.c.bf16 %v10338, %v10334
        %s10371 = scalar_lea.vmem %s15, 256
        %v10372 = vld [vmem:[%s10371] sm:$0xf]
        %v10373 = vld [vmem:[%s10371 + $0x4] sm:$0xf]
        %v10374 = vld [vmem:[%s10371 + $0x8] sm:$0xf]
        %v10375 = vld [vmem:[%s10371 + $0xc] sm:$0xf]
        %v10376 = vld [vmem:[%s10371 + $0x10] sm:$0xf]
        %v10377 = vld [vmem:[%s10371 + $0x14] sm:$0xf]
        %v10378 = vld [vmem:[%s10371 + $0x18] sm:$0xf]
        %v10379 = vld [vmem:[%s10371 + $0x1c] sm:$0xf]
        %v10380 = vld [vmem:[%s10371 + $0x20] sm:$0xf]
        %v10381 = vld [vmem:[%s10371 + $0x24] sm:$0xf]
        %v10382 = vld [vmem:[%s10371 + $0x28] sm:$0xf]
        %v10383 = vld [vmem:[%s10371 + $0x2c] sm:$0xf]
        %v10384 = vld [vmem:[%s10371 + $0x30] sm:$0xf]
        %v10385 = vld [vmem:[%s10371 + $0x34] sm:$0xf]
        %v10386 = vld [vmem:[%s10371 + $0x38] sm:$0xf]
        %v10387 = vld [vmem:[%s10371 + $0x3c] sm:$0xf]
        %v10388 = vld [vmem:[%s10371 + $0x40] sm:$0xf]
        %v10389 = vld [vmem:[%s10371 + $0x44] sm:$0xf]
        %v10390 = vld [vmem:[%s10371 + $0x48] sm:$0xf]
        %v10391 = vld [vmem:[%s10371 + $0x4c] sm:$0xf]
        %v10392 = vld [vmem:[%s10371 + $0x50] sm:$0xf]
        %v10393 = vld [vmem:[%s10371 + $0x54] sm:$0xf]
        %v10394 = vld [vmem:[%s10371 + $0x58] sm:$0xf]
        %v10395 = vld [vmem:[%s10371 + $0x5c] sm:$0xf]
        %v10396 = vld [vmem:[%s10371 + $0x60] sm:$0xf]
        %v10397 = vld [vmem:[%s10371 + $0x64] sm:$0xf]
        %v10398 = vld [vmem:[%s10371 + $0x68] sm:$0xf]
        %v10399 = vld [vmem:[%s10371 + $0x6c] sm:$0xf]
        %v10400 = vld [vmem:[%s10371 + $0x70] sm:$0xf]
        %v10401 = vld [vmem:[%s10371 + $0x74] sm:$0xf]
        %v10402 = vld [vmem:[%s10371 + $0x78] sm:$0xf]
        %v10403 = vld [vmem:[%s10371 + $0x7c] sm:$0xf]
        %v10404 = vld [vmem:[%s10371 + $0x80] sm:$0xf]
        %v10405 = vld [vmem:[%s10371 + $0x84] sm:$0xf]
        %v10406 = vld [vmem:[%s10371 + $0x88] sm:$0xf]
        %v10407 = vld [vmem:[%s10371 + $0x8c] sm:$0xf]
        %v10408 = vld [vmem:[%s10371 + $0x90] sm:$0xf]
        %v10409 = vld [vmem:[%s10371 + $0x94] sm:$0xf]
        %v10410 = vld [vmem:[%s10371 + $0x98] sm:$0xf]
        %v10411 = vld [vmem:[%s10371 + $0x9c] sm:$0xf]
        %v10412 = vld [vmem:[%s10371 + $0xa0] sm:$0xf]
        %v10413 = vld [vmem:[%s10371 + $0xa4] sm:$0xf]
        %v10414 = vld [vmem:[%s10371 + $0xa8] sm:$0xf]
        %v10415 = vld [vmem:[%s10371 + $0xac] sm:$0xf]
        %v10416 = vld [vmem:[%s10371 + $0xb0] sm:$0xf]
        %v10417 = vld [vmem:[%s10371 + $0xb4] sm:$0xf]
        %v10418 = vld [vmem:[%s10371 + $0xb8] sm:$0xf]
        %v10419 = vld [vmem:[%s10371 + $0xbc] sm:$0xf]
        %v10420 = vld [vmem:[%s10371 + $0xc0] sm:$0xf]
        %v10421 = vld [vmem:[%s10371 + $0xc4] sm:$0xf]
        %v10422 = vld [vmem:[%s10371 + $0xc8] sm:$0xf]
        %v10423 = vld [vmem:[%s10371 + $0xcc] sm:$0xf]
        %v10424 = vld [vmem:[%s10371 + $0xd0] sm:$0xf]
        %v10425 = vld [vmem:[%s10371 + $0xd4] sm:$0xf]
        %v10426 = vld [vmem:[%s10371 + $0xd8] sm:$0xf]
        %v10427 = vld [vmem:[%s10371 + $0xdc] sm:$0xf]
        %v10428 = vld [vmem:[%s10371 + $0xe0] sm:$0xf]
        %v10429 = vld [vmem:[%s10371 + $0xe4] sm:$0xf]
        %v10430 = vld [vmem:[%s10371 + $0xe8] sm:$0xf]
        %v10431 = vld [vmem:[%s10371 + $0xec] sm:$0xf]
        %v10432 = vld [vmem:[%s10371 + $0xf0] sm:$0xf]
        %v10433 = vld [vmem:[%s10371 + $0xf4] sm:$0xf]
        %v10434 = vld [vmem:[%s10371 + $0xf8] sm:$0xf]
        %v10435 = vld [vmem:[%s10371 + $0xfc] sm:$0xf]
        %s10436 = scalar_lea.vmem %s16, 1
        %v10437 = vld [vmem:[%s10436] sm:$0x1]
        %v10439 = vlaneseq
        %v10440 = vshrl.u32 %v10439, 7
        %v10441 = vsub.s32 0, %v10440
        %v10442 = vrot.slane %v10437, %v10441
        %v10508 = vunpack.c.l.b16 %v10372
        %v10509 = vunpack.c.l.b16 %v10373
        %v10510 = vunpack.c.l.b16 %v10374
        %v10511 = vunpack.c.l.b16 %v10375
        %v10512 = vunpack.c.l.b16 %v10376
        %v10513 = vunpack.c.l.b16 %v10377
        %v10514 = vunpack.c.l.b16 %v10378
        %v10515 = vunpack.c.l.b16 %v10379
        %v10516 = vunpack.c.l.b16 %v10380
        %v10517 = vunpack.c.l.b16 %v10381
        %v10518 = vunpack.c.l.b16 %v10382
        %v10519 = vunpack.c.l.b16 %v10383
        %v10520 = vunpack.c.l.b16 %v10384
        %v10521 = vunpack.c.l.b16 %v10385
        %v10522 = vunpack.c.l.b16 %v10386
        %v10523 = vunpack.c.l.b16 %v10387
        %v10524 = vunpack.c.l.b16 %v10388
        %v10525 = vunpack.c.l.b16 %v10389
        %v10526 = vunpack.c.l.b16 %v10390
        %v10527 = vunpack.c.l.b16 %v10391
        %v10528 = vunpack.c.l.b16 %v10392
        %v10529 = vunpack.c.l.b16 %v10393
        %v10530 = vunpack.c.l.b16 %v10394
        %v10531 = vunpack.c.l.b16 %v10395
        %v10532 = vunpack.c.l.b16 %v10396
        %v10533 = vunpack.c.l.b16 %v10397
        %v10534 = vunpack.c.l.b16 %v10398
        %v10535 = vunpack.c.l.b16 %v10399
        %v10536 = vunpack.c.l.b16 %v10400
        %v10537 = vunpack.c.l.b16 %v10401
        %v10538 = vunpack.c.l.b16 %v10402
        %v10539 = vunpack.c.l.b16 %v10403
        %v10540 = vunpack.c.l.b16 %v10404
        %v10541 = vunpack.c.l.b16 %v10405
        %v10542 = vunpack.c.l.b16 %v10406
        %v10543 = vunpack.c.l.b16 %v10407
        %v10544 = vunpack.c.l.b16 %v10408
        %v10545 = vunpack.c.l.b16 %v10409
        %v10546 = vunpack.c.l.b16 %v10410
        %v10547 = vunpack.c.l.b16 %v10411
        %v10548 = vunpack.c.l.b16 %v10412
        %v10549 = vunpack.c.l.b16 %v10413
        %v10550 = vunpack.c.l.b16 %v10414
        %v10551 = vunpack.c.l.b16 %v10415
        %v10552 = vunpack.c.l.b16 %v10416
        %v10553 = vunpack.c.l.b16 %v10417
        %v10554 = vunpack.c.l.b16 %v10418
        %v10555 = vunpack.c.l.b16 %v10419
        %v10556 = vunpack.c.l.b16 %v10420
        %v10557 = vunpack.c.l.b16 %v10421
        %v10558 = vunpack.c.l.b16 %v10422
        %v10559 = vunpack.c.l.b16 %v10423
        %v10560 = vunpack.c.l.b16 %v10424
        %v10561 = vunpack.c.l.b16 %v10425
        %v10562 = vunpack.c.l.b16 %v10426
        %v10563 = vunpack.c.l.b16 %v10427
        %v10564 = vunpack.c.l.b16 %v10428
        %v10565 = vunpack.c.l.b16 %v10429
        %v10566 = vunpack.c.l.b16 %v10430
        %v10567 = vunpack.c.l.b16 %v10431
        %v10568 = vunpack.c.l.b16 %v10432
        %v10569 = vunpack.c.l.b16 %v10433
        %v10570 = vunpack.c.l.b16 %v10434
        %v10571 = vunpack.c.l.b16 %v10435
        %v10572 = vpack.c.b16 %v10509, %v10508
        %v10573 = vpack.c.b16 %v10511, %v10510
        %v10574 = vpack.c.b16 %v10513, %v10512
        %v10575 = vpack.c.b16 %v10515, %v10514
        %v10576 = vpack.c.b16 %v10517, %v10516
        %v10577 = vpack.c.b16 %v10519, %v10518
        %v10578 = vpack.c.b16 %v10521, %v10520
        %v10579 = vpack.c.b16 %v10523, %v10522
        %v10580 = vpack.c.b16 %v10525, %v10524
        %v10581 = vpack.c.b16 %v10527, %v10526
        %v10582 = vpack.c.b16 %v10529, %v10528
        %v10583 = vpack.c.b16 %v10531, %v10530
        %v10584 = vpack.c.b16 %v10533, %v10532
        %v10585 = vpack.c.b16 %v10535, %v10534
        %v10586 = vpack.c.b16 %v10537, %v10536
        %v10587 = vpack.c.b16 %v10539, %v10538
        %v10588 = vpack.c.b16 %v10541, %v10540
        %v10589 = vpack.c.b16 %v10543, %v10542
        %v10590 = vpack.c.b16 %v10545, %v10544
        %v10591 = vpack.c.b16 %v10547, %v10546
        %v10592 = vpack.c.b16 %v10549, %v10548
        %v10593 = vpack.c.b16 %v10551, %v10550
        %v10594 = vpack.c.b16 %v10553, %v10552
        %v10595 = vpack.c.b16 %v10555, %v10554
        %v10596 = vpack.c.b16 %v10557, %v10556
        %v10597 = vpack.c.b16 %v10559, %v10558
        %v10598 = vpack.c.b16 %v10561, %v10560
        %v10599 = vpack.c.b16 %v10563, %v10562
        %v10600 = vpack.c.b16 %v10565, %v10564
        %v10601 = vpack.c.b16 %v10567, %v10566
        %v10602 = vpack.c.b16 %v10569, %v10568
        %v10603 = vpack.c.b16 %v10571, %v10570
        %10636 = vmatprep.subr.bf16.mxu0 0
        %10637 = vmatpush1.bf16.msra.mxu0 %v10572
        %10638 = vmatprep.subr.bf16.mxu0 0
        %10639 = vmatpush1.bf16.msra.mxu0 %v10573
        %10640 = vmatprep.subr.bf16.mxu0 0
        %10641 = vmatpush1.bf16.msra.mxu0 %v10574
        %10642 = vmatprep.subr.bf16.mxu0 0
        %10643 = vmatpush1.bf16.msra.mxu0 %v10575
        %10644 = vmatprep.subr.bf16.mxu0 0
        %10645 = vmatpush1.bf16.msra.mxu0 %v10576
        %10646 = vmatprep.subr.bf16.mxu0 0
        %10647 = vmatpush1.bf16.msra.mxu0 %v10577
        %10648 = vmatprep.subr.bf16.mxu0 0
        %10649 = vmatpush1.bf16.msra.mxu0 %v10578
        %10650 = vmatprep.subr.bf16.mxu0 0
        %10651 = vmatpush1.bf16.msra.mxu0 %v10579
        %10652 = vmatprep.subr.bf16.mxu0 0
        %10653 = vmatpush1.bf16.msra.mxu0 %v10580
        %10654 = vmatprep.subr.bf16.mxu0 0
        %10655 = vmatpush1.bf16.msra.mxu0 %v10581
        %10656 = vmatprep.subr.bf16.mxu0 0
        %10657 = vmatpush1.bf16.msra.mxu0 %v10582
        %10658 = vmatprep.subr.bf16.mxu0 0
        %10659 = vmatpush1.bf16.msra.mxu0 %v10583
        %10660 = vmatprep.subr.bf16.mxu0 0
        %10661 = vmatpush1.bf16.msra.mxu0 %v10584
        %10662 = vmatprep.subr.bf16.mxu0 0
        %10663 = vmatpush1.bf16.msra.mxu0 %v10585
        %10664 = vmatprep.subr.bf16.mxu0 0
        %10665 = vmatpush1.bf16.msra.mxu0 %v10586
        %10666 = vmatprep.subr.bf16.mxu0 0
        %10667 = vmatpush1.bf16.msra.mxu0 %v10587
        %10668 = vmatprep.mubr.bf16.mxu0 %v10340
        %10669 = vmatmul.mubr.bf16.gmra.mrb[0].mxu0 %v10339
        %v10670 = vpop.f32.mrb[0].mxu0
        %v10671 = vadd.f32 %v10442, %v10670
        %v10672 = vpop.f32.mrb[0].mxu0
        %v10673 = vpop.f32.mrb[0].mxu0
        %v10674 = vadd.f32 %v10442, %v10673
        %v10675 = vpop.f32.mrb[0].mxu0
        %10676 = vmatprep.mubr.bf16.mxu0 %v10344
        %10677 = vmatmul.mubr.bf16.gmra.mrb[0].mxu0 %v10343
        %v10678 = vpop.f32.mrb[0].mxu0
        %v10679 = vadd.f32 %v10442, %v10678
        %v10680 = vpop.f32.mrb[0].mxu0
        %v10681 = vpop.f32.mrb[0].mxu0
        %v10682 = vadd.f32 %v10442, %v10681
        %v10683 = vpop.f32.mrb[0].mxu0
        %10684 = vmatprep.mubr.bf16.mxu0 %v10348
        %10685 = vmatmul.mubr.bf16.gmra.mrb[0].mxu0 %v10347
        %v10686 = vpop.f32.mrb[0].mxu0
        %v10687 = vadd.f32 %v10442, %v10686
        %v10688 = vpop.f32.mrb[0].mxu0
        %v10689 = vpop.f32.mrb[0].mxu0
        %v10690 = vadd.f32 %v10442, %v10689
        %v10691 = vpop.f32.mrb[0].mxu0
        %10692 = vmatprep.mubr.bf16.mxu0 %v10352
        %10693 = vmatmul.mubr.bf16.gmra.mrb[0].mxu0 %v10351
        %v10694 = vpop.f32.mrb[0].mxu0
        %v10695 = vadd.f32 %v10442, %v10694
        %v10696 = vpop.f32.mrb[0].mxu0
        %v10697 = vpop.f32.mrb[0].mxu0
        %v10698 = vadd.f32 %v10442, %v10697
        %v10699 = vpop.f32.mrb[0].mxu0
        %10700 = vmatprep.mubr.bf16.mxu0 %v10356
        %10701 = vmatmul.mubr.bf16.gmra.mrb[0].mxu0 %v10355
        %v10702 = vpop.f32.mrb[0].mxu0
        %v10703 = vadd.f32 %v10442, %v10702
        %v10704 = vpop.f32.mrb[0].mxu0
        %v10705 = vpop.f32.mrb[0].mxu0
        %v10706 = vadd.f32 %v10442, %v10705
        %v10707 = vpop.f32.mrb[0].mxu0
        %10708 = vmatprep.mubr.bf16.mxu0 %v10360
        %10709 = vmatmul.mubr.bf16.gmra.mrb[0].mxu0 %v10359
        %v10710 = vpop.f32.mrb[0].mxu0
        %v10711 = vadd.f32 %v10442, %v10710
        %v10712 = vpop.f32.mrb[0].mxu0
        %v10713 = vpop.f32.mrb[0].mxu0
        %v10714 = vadd.f32 %v10442, %v10713
        %v10715 = vpop.f32.mrb[0].mxu0
        %10716 = vmatprep.mubr.bf16.mxu0 %v10364
        %10717 = vmatmul.mubr.bf16.gmra.mrb[0].mxu0 %v10363
        %v10718 = vpop.f32.mrb[0].mxu0
        %v10719 = vadd.f32 %v10442, %v10718
        %v10720 = vpop.f32.mrb[0].mxu0
        %v10721 = vpop.f32.mrb[0].mxu0
        %v10722 = vadd.f32 %v10442, %v10721
        %v10723 = vpop.f32.mrb[0].mxu0
        %10724 = vmatprep.mubr.bf16.mxu0 %v10368
        %10725 = vmatmul.mubr.bf16.gmra.mrb[0].mxu0 %v10367
        %v10726 = vpop.f32.mrb[0].mxu0
        %v10727 = vadd.f32 %v10442, %v10726
        %v10728 = vpop.f32.mrb[0].mxu0
        %v10729 = vpop.f32.mrb[0].mxu0
        %v10730 = vadd.f32 %v10442, %v10729
        %v10731 = vpop.f32.mrb[0].mxu0
        %10732 = vdwg.mxu0
        %10733 = vmatprep.subr.bf16.mxu0 0
        %10734 = vmatpush1.bf16.msra.mxu0 %v10588
        %10735 = vmatprep.subr.bf16.mxu0 0
        %10736 = vmatpush1.bf16.msra.mxu0 %v10589
        %10737 = vmatprep.subr.bf16.mxu0 0
        %10738 = vmatpush1.bf16.msra.mxu0 %v10590
        %10739 = vmatprep.subr.bf16.mxu0 0
        %10740 = vmatpush1.bf16.msra.mxu0 %v10591
        %10741 = vmatprep.subr.bf16.mxu0 0
        %10742 = vmatpush1.bf16.msra.mxu0 %v10592
        %10743 = vmatprep.subr.bf16.mxu0 0
        %10744 = vmatpush1.bf16.msra.mxu0 %v10593
        %10745 = vmatprep.subr.bf16.mxu0 0
        %10746 = vmatpush1.bf16.msra.mxu0 %v10594
        %10747 = vmatprep.subr.bf16.mxu0 0
        %10748 = vmatpush1.bf16.msra.mxu0 %v10595
        %10749 = vmatprep.subr.bf16.mxu0 0
        %10750 = vmatpush1.bf16.msra.mxu0 %v10596
        %10751 = vmatprep.subr.bf16.mxu0 0
        %10752 = vmatpush1.bf16.msra.mxu0 %v10597
        %10753 = vmatprep.subr.bf16.mxu0 0
        %10754 = vmatpush1.bf16.msra.mxu0 %v10598
        %10755 = vmatprep.subr.bf16.mxu0 0
        %10756 = vmatpush1.bf16.msra.mxu0 %v10599
        %10757 = vmatprep.subr.bf16.mxu0 0
        %10758 = vmatpush1.bf16.msra.mxu0 %v10600
        %10759 = vmatprep.subr.bf16.mxu0 0
        %10760 = vmatpush1.bf16.msra.mxu0 %v10601
        %10761 = vmatprep.subr.bf16.mxu0 0
        %10762 = vmatpush1.bf16.msra.mxu0 %v10602
        %10763 = vmatprep.subr.bf16.mxu0 0
        %10764 = vmatpush1.bf16.msra.mxu0 %v10603
        %10765 = vmatprep.mubr.bf16.mxu0 %v10342
        %10766 = vmatmul.mubr.bf16.gmra.mrb[0].mxu0 %v10341
        %v10767 = vpop.f32.mrb[0].mxu0
        %v10768 = vadd.f32 %v10671, %v10767
        %v10769 = vpop.f32.mrb[0].mxu0
        %v10770 = vpop.f32.mrb[0].mxu0
        %v10771 = vadd.f32 %v10674, %v10770
        %v10772 = vpop.f32.mrb[0].mxu0
        %10773 = vmatprep.mubr.bf16.mxu0 %v10346
        %10774 = vmatmul.mubr.bf16.gmra.mrb[0].mxu0 %v10345
        %v10775 = vpop.f32.mrb[0].mxu0
        %v10776 = vadd.f32 %v10679, %v10775
        %v10777 = vpop.f32.mrb[0].mxu0
        %v10778 = vpop.f32.mrb[0].mxu0
        %v10779 = vadd.f32 %v10682, %v10778
        %v10780 = vpop.f32.mrb[0].mxu0
        %10781 = vmatprep.mubr.bf16.mxu0 %v10350
        %10782 = vmatmul.mubr.bf16.gmra.mrb[0].mxu0 %v10349
        %v10783 = vpop.f32.mrb[0].mxu0
        %v10784 = vadd.f32 %v10687, %v10783
        %v10785 = vpop.f32.mrb[0].mxu0
        %v10786 = vpop.f32.mrb[0].mxu0
        %v10787 = vadd.f32 %v10690, %v10786
        %v10788 = vpop.f32.mrb[0].mxu0
        %10789 = vmatprep.mubr.bf16.mxu0 %v10354
        %10790 = vmatmul.mubr.bf16.gmra.mrb[0].mxu0 %v10353
        %v10791 = vpop.f32.mrb[0].mxu0
        %v10792 = vadd.f32 %v10695, %v10791
        %v10793 = vpop.f32.mrb[0].mxu0
        %v10794 = vpop.f32.mrb[0].mxu0
        %v10795 = vadd.f32 %v10698, %v10794
        %v10796 = vpop.f32.mrb[0].mxu0
        %10797 = vmatprep.mubr.bf16.mxu0 %v10358
        %10798 = vmatmul.mubr.bf16.gmra.mrb[0].mxu0 %v10357
        %v10799 = vpop.f32.mrb[0].mxu0
        %v10800 = vadd.f32 %v10703, %v10799
        %v10801 = vpop.f32.mrb[0].mxu0
        %v10802 = vpop.f32.mrb[0].mxu0
        %v10803 = vadd.f32 %v10706, %v10802
        %v10804 = vpop.f32.mrb[0].mxu0
        %10805 = vmatprep.mubr.bf16.mxu0 %v10362
        %10806 = vmatmul.mubr.bf16.gmra.mrb[0].mxu0 %v10361
        %v10807 = vpop.f32.mrb[0].mxu0
        %v10808 = vadd.f32 %v10711, %v10807
        %v10809 = vpop.f32.mrb[0].mxu0
        %v10810 = vpop.f32.mrb[0].mxu0
        %v10811 = vadd.f32 %v10714, %v10810
        %v10812 = vpop.f32.mrb[0].mxu0
        %10813 = vmatprep.mubr.bf16.mxu0 %v10366
        %10814 = vmatmul.mubr.bf16.gmra.mrb[0].mxu0 %v10365
        %v10815 = vpop.f32.mrb[0].mxu0
        %v10816 = vadd.f32 %v10719, %v10815
        %v10817 = vpop.f32.mrb[0].mxu0
        %v10818 = vpop.f32.mrb[0].mxu0
        %v10819 = vadd.f32 %v10722, %v10818
        %v10820 = vpop.f32.mrb[0].mxu0
        %10821 = vmatprep.mubr.bf16.mxu0 %v10370
        %10822 = vmatmul.mubr.bf16.gmra.mrb[0].mxu0 %v10369
        %v10823 = vpop.f32.mrb[0].mxu0
        %v10824 = vadd.f32 %v10727, %v10823
        %v10825 = vpop.f32.mrb[0].mxu0
        %v10826 = vpop.f32.mrb[0].mxu0
        %v10827 = vadd.f32 %v10730, %v10826
        %v10828 = vpop.f32.mrb[0].mxu0
        %10829 = vdwg.mxu0
        %v10830 = vadd.f32 %v9281, %v10768
        %v10831 = vadd.f32 %v9282, %v10771
        %v10832 = vadd.f32 %v9283, %v10776
        %v10833 = vadd.f32 %v9284, %v10779
        %v10834 = vadd.f32 %v9285, %v10784
        %v10835 = vadd.f32 %v9286, %v10787
        %v10836 = vadd.f32 %v9287, %v10792
        %v10837 = vadd.f32 %v9288, %v10795
        %v10838 = vadd.f32 %v9289, %v10800
        %v10839 = vadd.f32 %v9290, %v10803
        %v10840 = vadd.f32 %v9291, %v10808
        %v10841 = vadd.f32 %v9292, %v10811
        %v10842 = vadd.f32 %v9293, %v10816
        %v10843 = vadd.f32 %v9294, %v10819
        %v10844 = vadd.f32 %v9295, %v10824
        %v10845 = vadd.f32 %v9296, %v10827
        %v10846 = vld [vmem:[%s17] sm:$0x1]
        %v10847 = vld [vmem:[%s18] sm:$0x1]
        %10848 = vadd.xlane.f32.xlu0 %v10830
        %v10849 = vpop.xlane.xlu0 %10848
        %10850 = vadd.xlane.f32.xlu0 %v10831
        %v10851 = vpop.xlane.xlu0 %10850
        %10852 = vadd.xlane.f32.xlu0 %v10832
        %v10853 = vpop.xlane.xlu0 %10852
        %10854 = vadd.xlane.f32.xlu0 %v10833
        %v10855 = vpop.xlane.xlu0 %10854
        %10856 = vadd.xlane.f32.xlu0 %v10834
        %v10857 = vpop.xlane.xlu0 %10856
        %10858 = vadd.xlane.f32.xlu0 %v10835
        %v10859 = vpop.xlane.xlu0 %10858
        %10860 = vadd.xlane.f32.xlu0 %v10836
        %v10861 = vpop.xlane.xlu0 %10860
        %10862 = vadd.xlane.f32.xlu0 %v10837
        %v10863 = vpop.xlane.xlu0 %10862
        %10864 = vadd.xlane.f32.xlu0 %v10838
        %v10865 = vpop.xlane.xlu0 %10864
        %10866 = vadd.xlane.f32.xlu0 %v10839
        %v10867 = vpop.xlane.xlu0 %10866
        %10868 = vadd.xlane.f32.xlu0 %v10840
        %v10869 = vpop.xlane.xlu0 %10868
        %10870 = vadd.xlane.f32.xlu0 %v10841
        %v10871 = vpop.xlane.xlu0 %10870
        %10872 = vadd.xlane.f32.xlu0 %v10842
        %v10873 = vpop.xlane.xlu0 %10872
        %10874 = vadd.xlane.f32.xlu0 %v10843
        %v10875 = vpop.xlane.xlu0 %10874
        %10876 = vadd.xlane.f32.xlu0 %v10844
        %v10877 = vpop.xlane.xlu0 %10876
        %10878 = vadd.xlane.f32.xlu0 %v10845
        %v10879 = vpop.xlane.xlu0 %10878
        %v10880 = vmul.f32 %v10849, %v1564
        %v10881 = vmul.f32 %v10851, %v1564
        %v10882 = vmul.f32 %v10853, %v1564
        %v10883 = vmul.f32 %v10855, %v1564
        %v10884 = vmul.f32 %v10857, %v1564
        %v10885 = vmul.f32 %v10859, %v1564
        %v10886 = vmul.f32 %v10861, %v1564
        %v10887 = vmul.f32 %v10863, %v1564
        %v10888 = vmul.f32 %v10865, %v1564
        %v10889 = vmul.f32 %v10867, %v1564
        %v10890 = vmul.f32 %v10869, %v1564
        %v10891 = vmul.f32 %v10871, %v1564
        %v10892 = vmul.f32 %v10873, %v1564
        %v10893 = vmul.f32 %v10875, %v1564
        %v10894 = vmul.f32 %v10877, %v1564
        %v10895 = vmul.f32 %v10879, %v1564
        %v10896 = vmul.f32 %v10830, %v10830
        %v10897 = vmul.f32 %v10831, %v10831
        %v10898 = vmul.f32 %v10832, %v10832
        %v10899 = vmul.f32 %v10833, %v10833
        %v10900 = vmul.f32 %v10834, %v10834
        %v10901 = vmul.f32 %v10835, %v10835
        %v10902 = vmul.f32 %v10836, %v10836
        %v10903 = vmul.f32 %v10837, %v10837
        %v10904 = vmul.f32 %v10838, %v10838
        %v10905 = vmul.f32 %v10839, %v10839
        %v10906 = vmul.f32 %v10840, %v10840
        %v10907 = vmul.f32 %v10841, %v10841
        %v10908 = vmul.f32 %v10842, %v10842
        %v10909 = vmul.f32 %v10843, %v10843
        %v10910 = vmul.f32 %v10844, %v10844
        %v10911 = vmul.f32 %v10845, %v10845
        %10912 = vadd.xlane.f32.xlu0 %v10896
        %v10913 = vpop.xlane.xlu0 %10912
        %10914 = vadd.xlane.f32.xlu0 %v10897
        %v10915 = vpop.xlane.xlu0 %10914
        %10916 = vadd.xlane.f32.xlu0 %v10898
        %v10917 = vpop.xlane.xlu0 %10916
        %10918 = vadd.xlane.f32.xlu0 %v10899
        %v10919 = vpop.xlane.xlu0 %10918
        %10920 = vadd.xlane.f32.xlu0 %v10900
        %v10921 = vpop.xlane.xlu0 %10920
        %10922 = vadd.xlane.f32.xlu0 %v10901
        %v10923 = vpop.xlane.xlu0 %10922
        %10924 = vadd.xlane.f32.xlu0 %v10902
        %v10925 = vpop.xlane.xlu0 %10924
        %10926 = vadd.xlane.f32.xlu0 %v10903
        %v10927 = vpop.xlane.xlu0 %10926
        %10928 = vadd.xlane.f32.xlu0 %v10904
        %v10929 = vpop.xlane.xlu0 %10928
        %10930 = vadd.xlane.f32.xlu0 %v10905
        %v10931 = vpop.xlane.xlu0 %10930
        %10932 = vadd.xlane.f32.xlu0 %v10906
        %v10933 = vpop.xlane.xlu0 %10932
        %10934 = vadd.xlane.f32.xlu0 %v10907
        %v10935 = vpop.xlane.xlu0 %10934
        %10936 = vadd.xlane.f32.xlu0 %v10908
        %v10937 = vpop.xlane.xlu0 %10936
        %10938 = vadd.xlane.f32.xlu0 %v10909
        %v10939 = vpop.xlane.xlu0 %10938
        %10940 = vadd.xlane.f32.xlu0 %v10910
        %v10941 = vpop.xlane.xlu0 %10940
        %10942 = vadd.xlane.f32.xlu0 %v10911
        %v10943 = vpop.xlane.xlu0 %10942
        %v10944 = vmul.f32 %v10913, %v1564
        %v10945 = vmul.f32 %v10915, %v1564
        %v10946 = vmul.f32 %v10917, %v1564
        %v10947 = vmul.f32 %v10919, %v1564
        %v10948 = vmul.f32 %v10921, %v1564
        %v10949 = vmul.f32 %v10923, %v1564
        %v10950 = vmul.f32 %v10925, %v1564
        %v10951 = vmul.f32 %v10927, %v1564
        %v10952 = vmul.f32 %v10929, %v1564
        %v10953 = vmul.f32 %v10931, %v1564
        %v10954 = vmul.f32 %v10933, %v1564
        %v10955 = vmul.f32 %v10935, %v1564
        %v10956 = vmul.f32 %v10937, %v1564
        %v10957 = vmul.f32 %v10939, %v1564
        %v10958 = vmul.f32 %v10941, %v1564
        %v10959 = vmul.f32 %v10943, %v1564
        %v10960 = vmul.f32 %v10880, %v10880
        %v10961 = vmul.f32 %v10881, %v10881
        %v10962 = vmul.f32 %v10882, %v10882
        %v10963 = vmul.f32 %v10883, %v10883
        %v10964 = vmul.f32 %v10884, %v10884
        %v10965 = vmul.f32 %v10885, %v10885
        %v10966 = vmul.f32 %v10886, %v10886
        %v10967 = vmul.f32 %v10887, %v10887
        %v10968 = vmul.f32 %v10888, %v10888
        %v10969 = vmul.f32 %v10889, %v10889
        %v10970 = vmul.f32 %v10890, %v10890
        %v10971 = vmul.f32 %v10891, %v10891
        %v10972 = vmul.f32 %v10892, %v10892
        %v10973 = vmul.f32 %v10893, %v10893
        %v10974 = vmul.f32 %v10894, %v10894
        %v10975 = vmul.f32 %v10895, %v10895
        %v10976 = vsub.f32 %v10944, %v10960
        %v10977 = vsub.f32 %v10945, %v10961
        %v10978 = vsub.f32 %v10946, %v10962
        %v10979 = vsub.f32 %v10947, %v10963
        %v10980 = vsub.f32 %v10948, %v10964
        %v10981 = vsub.f32 %v10949, %v10965
        %v10982 = vsub.f32 %v10950, %v10966
        %v10983 = vsub.f32 %v10951, %v10967
        %v10984 = vsub.f32 %v10952, %v10968
        %v10985 = vsub.f32 %v10953, %v10969
        %v10986 = vsub.f32 %v10954, %v10970
        %v10987 = vsub.f32 %v10955, %v10971
        %v10988 = vsub.f32 %v10956, %v10972
        %v10989 = vsub.f32 %v10957, %v10973
        %v10990 = vsub.f32 %v10958, %v10974
        %v10991 = vsub.f32 %v10959, %v10975
        %v10992 = vmax.f32 %v10976, 0.0
        %v10993 = vmax.f32 %v10977, 0.0
        %v10994 = vmax.f32 %v10978, 0.0
        %v10995 = vmax.f32 %v10979, 0.0
        %v10996 = vmax.f32 %v10980, 0.0
        %v10997 = vmax.f32 %v10981, 0.0
        %v10998 = vmax.f32 %v10982, 0.0
        %v10999 = vmax.f32 %v10983, 0.0
        %v11000 = vmax.f32 %v10984, 0.0
        %v11001 = vmax.f32 %v10985, 0.0
        %v11002 = vmax.f32 %v10986, 0.0
        %v11003 = vmax.f32 %v10987, 0.0
        %v11004 = vmax.f32 %v10988, 0.0
        %v11005 = vmax.f32 %v10989, 0.0
        %v11006 = vmax.f32 %v10990, 0.0
        %v11007 = vmax.f32 %v10991, 0.0
        %v11008 = vsub.f32 %v10830, %v10880
        %v11009 = vsub.f32 %v10831, %v10881
        %v11010 = vsub.f32 %v10832, %v10882
        %v11011 = vsub.f32 %v10833, %v10883
        %v11012 = vsub.f32 %v10834, %v10884
        %v11013 = vsub.f32 %v10835, %v10885
        %v11014 = vsub.f32 %v10836, %v10886
        %v11015 = vsub.f32 %v10837, %v10887
        %v11016 = vsub.f32 %v10838, %v10888
        %v11017 = vsub.f32 %v10839, %v10889
        %v11018 = vsub.f32 %v10840, %v10890
        %v11019 = vsub.f32 %v10841, %v10891
        %v11020 = vsub.f32 %v10842, %v10892
        %v11021 = vsub.f32 %v10843, %v10893
        %v11022 = vsub.f32 %v10844, %v10894
        %v11023 = vsub.f32 %v10845, %v10895
        %v11024 = vadd.f32 %v10992, 1e-06
        %v11025 = vadd.f32 %v10993, 1e-06
        %v11026 = vadd.f32 %v10994, 1e-06
        %v11027 = vadd.f32 %v10995, 1e-06
        %v11028 = vadd.f32 %v10996, 1e-06
        %v11029 = vadd.f32 %v10997, 1e-06
        %v11030 = vadd.f32 %v10998, 1e-06
        %v11031 = vadd.f32 %v10999, 1e-06
        %v11032 = vadd.f32 %v11000, 1e-06
        %v11033 = vadd.f32 %v11001, 1e-06
        %v11034 = vadd.f32 %v11002, 1e-06
        %v11035 = vadd.f32 %v11003, 1e-06
        %v11036 = vadd.f32 %v11004, 1e-06
        %v11037 = vadd.f32 %v11005, 1e-06
        %v11038 = vadd.f32 %v11006, 1e-06
        %v11039 = vadd.f32 %v11007, 1e-06
        %v11040 = vrsqrt.pop %v11024
        %v11041 = vrsqrt.pop %v11025
        %v11042 = vrsqrt.pop %v11026
        %v11043 = vrsqrt.pop %v11027
        %v11044 = vrsqrt.pop %v11028
        %v11045 = vrsqrt.pop %v11029
        %v11046 = vrsqrt.pop %v11030
        %v11047 = vrsqrt.pop %v11031
        %v11048 = vrsqrt.pop %v11032
        %v11049 = vrsqrt.pop %v11033
        %v11050 = vrsqrt.pop %v11034
        %v11051 = vrsqrt.pop %v11035
        %v11052 = vrsqrt.pop %v11036
        %v11053 = vrsqrt.pop %v11037
        %v11054 = vrsqrt.pop %v11038
        %v11055 = vrsqrt.pop %v11039
        %v11056 = vmul.f32 %v11008, %v11040
        %v11057 = vmul.f32 %v11009, %v11041
        %v11058 = vmul.f32 %v11010, %v11042
        %v11059 = vmul.f32 %v11011, %v11043
        %v11060 = vmul.f32 %v11012, %v11044
        %v11061 = vmul.f32 %v11013, %v11045
        %v11062 = vmul.f32 %v11014, %v11046
        %v11063 = vmul.f32 %v11015, %v11047
        %v11064 = vmul.f32 %v11016, %v11048
        %v11065 = vmul.f32 %v11017, %v11049
        %v11066 = vmul.f32 %v11018, %v11050
        %v11067 = vmul.f32 %v11019, %v11051
        %v11068 = vmul.f32 %v11020, %v11052
        %v11069 = vmul.f32 %v11021, %v11053
        %v11070 = vmul.f32 %v11022, %v11054
        %v11071 = vmul.f32 %v11023, %v11055
        %v11073 = vlaneseq
        %v11074 = vshrl.u32 %v11073, 7
        %v11075 = vsub.s32 0, %v11074
        %v11076 = vrot.slane %v10846, %v11075
        %v11078 = vmul.f32 %v11056, %v11076
        %v11079 = vmul.f32 %v11057, %v11076
        %v11080 = vmul.f32 %v11058, %v11076
        %v11081 = vmul.f32 %v11059, %v11076
        %v11082 = vmul.f32 %v11060, %v11076
        %v11083 = vmul.f32 %v11061, %v11076
        %v11084 = vmul.f32 %v11062, %v11076
        %v11085 = vmul.f32 %v11063, %v11076
        %v11086 = vmul.f32 %v11064, %v11076
        %v11087 = vmul.f32 %v11065, %v11076
        %v11088 = vmul.f32 %v11066, %v11076
        %v11089 = vmul.f32 %v11067, %v11076
        %v11090 = vmul.f32 %v11068, %v11076
        %v11091 = vmul.f32 %v11069, %v11076
        %v11092 = vmul.f32 %v11070, %v11076
        %v11093 = vmul.f32 %v11071, %v11076
        %v11095 = vlaneseq
        %v11096 = vshrl.u32 %v11095, 7
        %v11097 = vsub.s32 0, %v11096
        %v11098 = vrot.slane %v10847, %v11097
        %v11100 = vadd.f32 %v11078, %v11098
        %v11101 = vadd.f32 %v11079, %v11098
        %v11102 = vadd.f32 %v11080, %v11098
        %v11103 = vadd.f32 %v11081, %v11098
        %v11104 = vadd.f32 %v11082, %v11098
        %v11105 = vadd.f32 %v11083, %v11098
        %v11106 = vadd.f32 %v11084, %v11098
        %v11107 = vadd.f32 %v11085, %v11098
        %v11108 = vadd.f32 %v11086, %v11098
        %v11109 = vadd.f32 %v11087, %v11098
        %v11110 = vadd.f32 %v11088, %v11098
        %v11111 = vadd.f32 %v11089, %v11098
        %v11112 = vadd.f32 %v11090, %v11098
        %v11113 = vadd.f32 %v11091, %v11098
        %v11114 = vadd.f32 %v11092, %v11098
        %v11115 = vadd.f32 %v11093, %v11098
        %11116 = vst [vmem:[%s598] sm:$0xff] %v11100
        %11117 = vst [vmem:[%s598 + $0x8] sm:$0xff] %v11101
        %11118 = vst [vmem:[%s598 + $0x10] sm:$0xff] %v11102
        %11119 = vst [vmem:[%s598 + $0x18] sm:$0xff] %v11103
        %11120 = vst [vmem:[%s598 + $0x20] sm:$0xff] %v11104
        %11121 = vst [vmem:[%s598 + $0x28] sm:$0xff] %v11105
        %11122 = vst [vmem:[%s598 + $0x30] sm:$0xff] %v11106
        %11123 = vst [vmem:[%s598 + $0x38] sm:$0xff] %v11107
        %11124 = vst [vmem:[%s598 + $0x40] sm:$0xff] %v11108
        %11125 = vst [vmem:[%s598 + $0x48] sm:$0xff] %v11109
        %11126 = vst [vmem:[%s598 + $0x50] sm:$0xff] %v11110
        %11127 = vst [vmem:[%s598 + $0x58] sm:$0xff] %v11111
        %11128 = vst [vmem:[%s598 + $0x60] sm:$0xff] %v11112
        %11129 = vst [vmem:[%s598 + $0x68] sm:$0xff] %v11113
        %11130 = vst [vmem:[%s598 + $0x70] sm:$0xff] %v11114
        %11131 = vst [vmem:[%s598 + $0x78] sm:$0xff] %v11115
        %s11132 = sand.u32 %s445, 1
        %s11133 = scalar_lea.sflag [#allocation3], %s11132
        %s11134 = sand.u32 %s445, 1
        %s11135 = smul.addr %s11134, 128
        %s11136 = scalar_lea.vmem [#allocation2], %s11135
        // Predicated region
        $region97: #{ijepa_encoder_forward.1} parent=95 // pred_check
          %p11137 = pneg %p455
        $region98: #{ijepa_encoder_forward.1} parent=95 // pred_check_branch
          %11139 = sbr.rel (%p11137) target = $region100
        $region99: #{ijepa_encoder_forward.1} parent=95 // pred_region
          %s11140 = smul.u32 16, %s33
          %s11142 = ssub.s32 2048, 2048
          %11143 = vsyncadd %s11133, %s11142
          %s11144 = smul.addr %s11140, 128
          %s11145 = scalar_lea.hbm %s19, %s11144
          %s11146 = sshll.u32 %s11136, 4
          %s11147 = int_to_ptr.vmem [resolvable:$true] %s11146
          %11152 = dma.vmem_to_hbm [thread:$0]  %s11147, 2048, %s11145, %s11133, 128, 128, 8
        $region100: #{ijepa_encoder_forward.1} parent=95 // pred_fallthru
          _
      $region96: #{ijepa_encoder_forward.1} parent=5 // pred_fallthru
        _
      %p11153 = scmp.le.s32.totalorder 2, %s28
      // Predicated region
      $region101: #{ijepa_encoder_forward.1} parent=5 // pred_check
        %p11154 = pneg %p11153
      $region102: #{ijepa_encoder_forward.1} parent=5 // pred_check_branch
        %11156 = sbr.rel (%p11154) target = $region104
      $region103: #{ijepa_encoder_forward.1} parent=5 // pred_region
        %s11157 = ssub.s32 %s28, 2
        // Predicated region
        $region105: #{ijepa_encoder_forward.1} parent=103 // pred_check
          %p11158 = pneg %p461
        $region106: #{ijepa_encoder_forward.1} parent=103 // pred_check_branch
          %11160 = sbr.rel (%p11158) target = $region108
        $region107: #{ijepa_encoder_forward.1} parent=103 // pred_region
          %s11161 = sand.u32 %s446, 1
          %s11162 = scalar_lea.sflag [#allocation3], %s11161
          %s11163 = sand.u32 %s446, 1
          %s11164 = smul.addr %s11163, 128
          %s11165 = scalar_lea.vmem [#allocation2], %s11164
          %11166 = dma.done %s11162, 2048
        $region108: #{ijepa_encoder_forward.1} parent=103 // pred_fallthru
          _
      $region104: #{ijepa_encoder_forward.1} parent=5 // pred_fallthru
        _
    $region6: #{ijepa_encoder_forward.1} parent=1 // loop_footer
      %s32 = sadd.s32 1, %s28
    $region7: #{ijepa_encoder_forward.1} parent=1 // loop_footer_branch
      %27 = sbr.rel target = $region3
    $region8: #{ijepa_encoder_forward.1} parent=1 // loop_exit
      _
    %11167 = vsyncpa [#allocation3], 1
    %s11168 = scalar_lea.sflag [#allocation3], 1
    %11169 = vsyncpa %s11168, 1

</llo_original>
